<compile_context>
chip_gen: v7x
topology: tpu7x:2x2x1
jax: 0.10.0
libtpu: 0.0.40
codegen_flags: <defaults>
</compile_context>

<pallas_src>
import jax
import jax.numpy as jnp
from jax.experimental import pallas as pl
from jax.experimental.pallas import tpu as pltpu

EPS = 1e-5
HIDDEN = 1024
TILE_H = 512                      # hidden-dim tile of fc1/fc2 streamed per grid step
NUM_TILES = HIDDEN // TILE_H
WIDTH = 168                       # fixed by fc1 in-features = 3 * H * 168


# ---------------------------------------------------------------------------
# Fused forward kernel
# ---------------------------------------------------------------------------
def _fused_forward_kernel(
    x_ref,      # ((H*N), W)          f32  VMEM   input, row i*N+n = x[n, 0, i, :]
    w1s_ref,    # (54,)               f32  SMEM   conv1.weight flat (co, ci, kh, kw)
    g1_ref,     # (6,)                f32  SMEM   bn1 gamma
    be1_ref,    # (6,)                f32  SMEM   bn1 beta
    w2s_ref,    # (162,)              f32  SMEM   conv2.weight flat (co, ci, kh, kw)
    g2_ref,     # (3,)                f32  SMEM   bn2 gamma
    be2_ref,    # (3,)                f32  SMEM   bn2 beta
    w1fc_ref,   # (1, K_PAD, TILE_H)  bf16 VMEM   contiguous fc1 weight tile
    b1fc_ref,   # (1, TILE_H)         f32  VMEM   fc1 bias tile
    w2fc_ref,   # (1, TILE_H)         f32  VMEM   fc2 weight tile (lane-dense)
    b2fc_ref,   # (1,)                f32  SMEM   fc2 bias
    o_ref,      # (N, 1)              f32  VMEM   output
    xpad_ref,   # ((H+2)*N, W)        f32  VMEM scratch  zero-padded conv1 input
    y1pad_ref,  # (6, (H+2)*N, W)     f32  VMEM scratch  zero-padded conv1 output
    act_ref,    # (NPAD, K_PAD)       f32  VMEM scratch  conv2 output, NCHW-flatten cols
    acc_ref,    # (NPAD, 1)           f32  VMEM scratch  fc2 partial sums
):
    t = pl.program_id(0)
    n_batch = o_ref.shape[0]
    hn, w = x_ref.shape
    h_rows = hn // n_batch          # spatial H (= num_input_channels)
    hw = h_rows * w                 # per-channel flatten size

    # ------------- stage 1 (grid step 0 only): both convs + BN + ReLU -------------
    @pl.when(t == 0)
    def _conv_stage():
        acc_ref[...] = jnp.zeros_like(acc_ref)
        act_ref[...] = jnp.zeros_like(act_ref)
        xpad_ref[...] = jnp.zeros_like(xpad_ref)
        y1pad_ref[...] = jnp.zeros_like(y1pad_ref)
        # padded convention: row p*N + n  <->  x[n, 0, p-1, :], zero ring at p=0, p=H+1
        xpad_ref[n_batch:(1 + h_rows) * n_batch, :] = x_ref[...]

        col = jax.lax.broadcasted_iota(jnp.int32, ((h_rows + 2) * n_batch, w), 1)
        lane_valid = {-1: col >= 1, 1: col <= w - 2}

        def w_shift(a, ox):          # result[..., j] = a[..., j + ox], zero-padded in W
            if ox == 0:
                return a
            s = pltpu.roll(a, shift=(-ox) % w, axis=1)
            return jnp.where(lane_valid[ox], s, 0.0)

        def taps_for(padded):        # 9 shifted views: tap[kh*3+kw][i*N+n, j]
            sh = [w_shift(padded, dx - 1) for dx in range(3)]
            return [sh[dx][dy * n_batch:(dy + h_rows) * n_batch, :]
                    for dy in range(3) for dx in range(3)]

        inv_cnt = 1.0 / float(hn * w)

        def bn_relu(a, gamma, beta):     # training-mode BatchNorm2d + ReLU, one pass
            s = jnp.sum(a)
            sq = jnp.sum(a * a)
            mean = s * inv_cnt
            var = sq * inv_cnt - mean * mean      # biased variance (torch training mode)
            return jnp.maximum((a - mean) * jax.lax.rsqrt(var + EPS) * gamma + beta, 0.0)

        # conv1: 1 -> 6 channels, 3x3, pad 1 (bias dropped: cancelled by BN mean)
        t1 = taps_for(xpad_ref[...])
        for co in range(6):
            y = jnp.zeros((hn, w), jnp.float32)
            for k in range(9):
                y = y + w1s_ref[co * 9 + k] * t1[k]
            y1pad_ref[co, n_batch:(1 + h_rows) * n_batch, :] = bn_relu(
                y, g1_ref[co], be1_ref[co])

        # conv2: 6 -> 3 channels, 3x3, pad 1.  Taps are built per input channel and
        # consumed immediately (keeps ~12 live vregs instead of 54+).
        acc2 = [jnp.zeros((hn, w), jnp.float32) for _ in range(3)]
        for ci in range(6):
            taps = taps_for(y1pad_ref[ci])
            for co in range(3):
                for k in range(9):
                    acc2[co] = acc2[co] + w2s_ref[(co * 6 + ci) * 9 + k] * taps[k]
        for co in range(3):
            a = bn_relu(acc2[co], g2_ref[co], be2_ref[co])
            # row (i, n) of a  ->  act[n, co*H*W + i*W : co*H*W + (i+1)*W]
            # (NCHW flatten order; columns >= 3*H*W stay zero, extra rows are padding)
            for i in range(h_rows):
                act_ref[0:n_batch, co * hw + i * w: co * hw + (i + 1) * w] = (
                    a[i * n_batch:(i + 1) * n_batch, :])

    # ------------- stage 2 (every grid step): fc1 tile + relu + fc2 partial -------------
    # Single K~2016 bf16 MXU matmul per step; fc1_w tile already lives in VMEM as bf16.
    hid = jnp.dot(act_ref[...].astype(jnp.bfloat16), w1fc_ref[0],
                  preferred_element_type=jnp.float32)           # (NPAD, TILE_H) f32
    hid = jnp.maximum(hid + b1fc_ref[...], 0.0)
    # lane-dense fc2 partial: VPU multiply + XLU lane reduce (no 1-column matmul)
    acc_ref[...] += jnp.sum(hid * w2fc_ref[...], axis=-1, keepdims=True)

    @pl.when(t == pl.num_programs(0) - 1)
    def _finalize():
        o_ref[...] = acc_ref[0:n_batch, :] + b2fc_ref[0]


# ---------------------------------------------------------------------------
# Parameters (deterministic synthetic init, stored in kernel-friendly layouts)
# ---------------------------------------------------------------------------
def init_params(num_input_channels, key):
    """Correspondence with the PyTorch module:
       conv1.weight (6,1,3,3) -> conv1_w flat (54,)   [C-order (co, ci, kh, kw)]
       conv2.weight (3,6,3,3) -> conv2_w flat (162,)
       bn{1,2}.{weight,bias}  -> bn*_g / bn*_b
       fc1.weight (1024, 3*H*168), NCHW flatten -> fc1_w (NUM_TILES, K_PAD, TILE_H)
           bf16, row k = flatten index (c*H*W + i*W + j), rows >= 3*H*W zero-padded,
           tile t holds output columns [t*TILE_H, (t+1)*TILE_H).
       fc2.weight (1, 1024)   -> fc2_w (1, 1024)  (lane-dense)
       Conv biases are omitted: under training-mode BatchNorm (batch statistics)
       a per-channel pre-BN constant is exactly cancelled by the mean subtraction.
    """
    h, w = num_input_channels, WIDTH
    k_feat = 3 * h * w
    k_pad = ((k_feat + 127) // 128) * 128
    ks = jax.random.split(key, 6)
    w1 = 0.2 * jax.random.normal(ks[0], (6, 1, 3, 3), jnp.float32)
    w2 = 0.2 * jax.random.normal(ks[1], (3, 6, 3, 3), jnp.float32)
    # fc1 weight in (in, out) form, input-feature order (c, i, j) == torch NCHW flatten
    fc1_w = 0.02 * jax.random.normal(ks[2], (k_feat, HIDDEN), jnp.float32)
    fc1_w_pad = jnp.zeros((k_pad, HIDDEN), jnp.float32).at[:k_feat].set(fc1_w)
    fc1_w_tiled = jnp.transpose(
        fc1_w_pad.reshape(k_pad, NUM_TILES, TILE_H), (1, 0, 2)).astype(jnp.bfloat16)
    return {
        "conv1_w": w1.reshape(-1),
        "bn1_g": jnp.ones((6,), jnp.float32),
        "bn1_b": jnp.zeros((6,), jnp.float32),
        "conv2_w": w2.reshape(-1),
        "bn2_g": jnp.ones((3,), jnp.float32),
        "bn2_b": jnp.zeros((3,), jnp.float32),
        "fc1_w": fc1_w_tiled,                                   # contiguous-per-tile, bf16
        "fc1_b": 0.02 * jax.random.normal(ks[3], (1, HIDDEN), jnp.float32),
        "fc2_w": 0.02 * jax.random.normal(ks[4], (1, HIDDEN), jnp.float32),
        "fc2_b": 0.02 * jax.random.normal(ks[5], (1,), jnp.float32),
    }


# ---------------------------------------------------------------------------
# Forward pass (single fused pallas_call)
# ---------------------------------------------------------------------------
def stacked2d_linear_forward(x_nchw, params):
    n, cin, h, w = x_nchw.shape
    assert cin == 1 and w == WIDTH and HIDDEN % TILE_H == 0
    npad = max(8, ((n + 7) // 8) * 8)   # pad batch rows to a full sublane tile
    k_pad = params["fc1_w"].shape[1]
    # row i*N + n  ->  x[n, 0, i, :]
    x2d = jnp.transpose(x_nchw[:, 0, :, :], (1, 0, 2)).reshape(h * n, w).astype(jnp.float32)

    fc1_bytes = params["fc1_w"].size * params["fc1_w"].dtype.itemsize
    cost = pl.CostEstimate(
        flops=2 * npad * k_pad * HIDDEN + 2 * npad * HIDDEN + 2 * 216 * n * h * w,
        transcendentals=0,
        bytes_accessed=fc1_bytes + 4 * h * n * w + 8 * HIDDEN + 4 * n,
    )

    # TODO(synk): at large batch the conv scratch ((H+2)*N*W per buffer) grows linearly;
    # batch tiling / a batch grid axis would be needed before it exceeds scoped VMEM.
    return pl.pallas_call(
        _fused_forward_kernel,
        out_shape=jax.ShapeDtypeStruct((n, 1), jnp.float32),
        grid=(NUM_TILES,),
        in_specs=[
            pl.BlockSpec((h * n, w), lambda t: (0, 0)),                 # x2d
            pl.BlockSpec(memory_space=pltpu.MemorySpace.SMEM),          # conv1_w
            pl.BlockSpec(memory_space=pltpu.MemorySpace.SMEM),          # bn1_g
            pl.BlockSpec(memory_space=pltpu.MemorySpace.SMEM),          # bn1_b
            pl.BlockSpec(memory_space=pltpu.MemorySpace.SMEM),          # conv2_w
            pl.BlockSpec(memory_space=pltpu.MemorySpace.SMEM),          # bn2_g
            pl.BlockSpec(memory_space=pltpu.MemorySpace.SMEM),          # bn2_b
            pl.BlockSpec((1, k_pad, TILE_H), lambda t: (t, 0, 0)),      # fc1_w tile (contig)
            pl.BlockSpec((1, TILE_H), lambda t: (0, t)),                # fc1_b tile
            pl.BlockSpec((1, TILE_H), lambda t: (0, t)),                # fc2_w tile
            pl.BlockSpec(memory_space=pltpu.MemorySpace.SMEM),          # fc2_b
        ],
        out_specs=pl.BlockSpec((n, 1), lambda t: (0, 0)),
        scratch_shapes=[
            pltpu.VMEM(((h + 2) * n, w), jnp.float32),     # padded conv1 input
            pltpu.VMEM((6, (h + 2) * n, w), jnp.float32),  # padded conv1 output
            pltpu.VMEM((npad, k_pad), jnp.float32),        # conv2 output, matmul layout
            pltpu.VMEM((npad, 1), jnp.float32),            # fc2 partial accumulator
        ],
        compiler_params=pltpu.CompilerParams(
            # hidden-dim tiles accumulate into acc_ref -> must stay sequential
            dimension_semantics=("arbitrary",),
        ),
        cost_estimate=cost,
    )(
        x2d,
        params["conv1_w"], params["bn1_g"], params["bn1_b"],
        params["conv2_w"], params["bn2_g"], params["bn2_b"],
        params["fc1_w"], params["fc1_b"], params["fc2_w"], params["fc2_b"],
    )


# ---------------------------------------------------------------------------
# Pure-JAX reference (same semantics) for validation
# ---------------------------------------------------------------------------
def _reference_forward(x_nchw, params):
    n = x_nchw.shape[0]
    x = x_nchw.astype(jnp.float32)

    def conv3x3(inp, wgt):
        return jax.lax.conv_general_dilated(
            inp, wgt, window_strides=(1, 1), padding=((1, 1), (1, 1)),
            dimension_numbers=("NCHW", "OIHW", "NCHW"),
            precision=jax.lax.Precision.HIGHEST)

    def bn_relu(y, g, b):
        mean = jnp.mean(y, axis=(0, 2, 3), keepdims=True)
        var = jnp.mean(jnp.square(y - mean), axis=(0, 2, 3), keepdims=True)
        yhat = (y - mean) * jax.lax.rsqrt(var + EPS)
        return jnp.maximum(yhat * g.reshape(1, -1, 1, 1) + b.reshape(1, -1, 1, 1), 0.0)

    y1 = bn_relu(conv3x3(x, params["conv1_w"].reshape(6, 1, 3, 3)),
                 params["bn1_g"], params["bn1_b"])
    y2 = bn_relu(conv3x3(y1, params["conv2_w"].reshape(3, 6, 3, 3)),
                 params["bn2_g"], params["bn2_b"])
    flat = y2.reshape(n, -1)                                    # NCHW flatten
    k_feat = flat.shape[1]
    w_t = params["fc1_w"].astype(jnp.float32)                   # (T, K_PAD, TILE_H)
    w1 = jnp.transpose(w_t, (1, 0, 2)).reshape(w_t.shape[1], HIDDEN)[:k_feat]
    hid = jnp.maximum(jnp.dot(flat, w1, precision=jax.lax.Precision.HIGHEST)
                      + params["fc1_b"], 0.0)
    w2 = params["fc2_w"].reshape(HIDDEN, 1)
    return jnp.dot(hid, w2, precision=jax.lax.Precision.HIGHEST) + params["fc2_b"]


if __name__ == "__main__":
    num_input_channels = 4      # H of the (N, 1, H, 168) input; fc1 in-features = 3*4*168
    batch = 2
    key = jax.random.PRNGKey(0)
    k_x, k_p = jax.random.split(key)

    x = jax.random.normal(k_x, (batch, 1, num_input_channels, WIDTH), jnp.float32)
    params = init_params(num_input_channels, k_p)

    fwd = jax.jit(stacked2d_linear_forward)
    out = jax.block_until_ready(fwd(x, params))
    assert out.shape == (batch, 1) and out.dtype == jnp.float32

    ref = jax.block_until_ready(_reference_forward(x, params))
    assert jnp.allclose(out, ref, atol=2e-3, rtol=2e-3), (out, ref)

    # TODO(synk): BatchNorm running_mean/running_var buffer updates are not reproduced;
    # normalization uses PyTorch training-mode batch statistics.
    print("KERNEL_OK")
</pallas_src>

<mosaic_0001>
module attributes {stable_mosaic.version = 11 : i64} {
  func.func @_fused_forward_kernel(%arg0: i32, %arg1: memref<8x168xf32, #tpu.memory_space<vmem>>, %arg2: memref<54xf32, #tpu.memory_space<smem>>, %arg3: memref<6xf32, #tpu.memory_space<smem>>, %arg4: memref<6xf32, #tpu.memory_space<smem>>, %arg5: memref<162xf32, #tpu.memory_space<smem>>, %arg6: memref<3xf32, #tpu.memory_space<smem>>, %arg7: memref<3xf32, #tpu.memory_space<smem>>, %arg8: memref<1x2048x512xbf16, #tpu.memory_space<vmem>>, %arg9: memref<1x512xf32, #tpu.memory_space<vmem>>, %arg10: memref<1x512xf32, #tpu.memory_space<vmem>>, %arg11: memref<1xf32, #tpu.memory_space<smem>>, %arg12: memref<2x1xf32, #tpu.memory_space<vmem>>, %arg13: memref<12x168xf32, #tpu.memory_space<vmem>>, %arg14: memref<6x12x168xf32, #tpu.memory_space<vmem>>, %arg15: memref<8x2048xf32, #tpu.memory_space<vmem>>, %arg16: memref<8x1xf32, #tpu.memory_space<vmem>>) attributes {dimension_semantics = [#tpu.dimension_semantics<arbitrary>], iteration_bounds = array<i64: 2>, scalar_prefetch = 0 : i64, scratch_operands = 4 : i64, tpu.core_type = #tpu.core_type<tc>, window_params = [{pipeline_mode = #tpu.pipeline_mode<synchronous>, transform_indices = @transform_0, window_bounds = array<i64: 8, 168>}, {transform_indices = @transform_1, window_bounds = array<i64: 54>}, {transform_indices = @transform_2, window_bounds = array<i64: 6>}, {transform_indices = @transform_3, window_bounds = array<i64: 6>}, {transform_indices = @transform_4, window_bounds = array<i64: 162>}, {transform_indices = @transform_5, window_bounds = array<i64: 3>}, {transform_indices = @transform_6, window_bounds = array<i64: 3>}, {transform_indices = @transform_7, window_bounds = array<i64: 1, 2048, 512>}, {transform_indices = @transform_8, window_bounds = array<i64: 1, 512>}, {transform_indices = @transform_9, window_bounds = array<i64: 1, 512>}, {transform_indices = @transform_10, window_bounds = array<i64: 1>}, {pipeline_mode = #tpu.pipeline_mode<synchronous>, transform_indices = @transform_11, window_bounds = array<i64: 2, 1>}]} {
    %c0_i32 = arith.constant 0 : i32
    %0 = arith.cmpi eq, %arg0, %c0_i32 : i32
    %1 = arith.extui %0 : i1 to i32
    %c0_i32_0 = arith.constant 0 : i32
    %2 = arith.cmpi ne, %1, %c0_i32_0 : i32
    scf.if %2 {
      %cst_16 = arith.constant 0.000000e+00 : f32
      %24 = vector.broadcast %cst_16 : f32 to vector<8x1xf32>
      %c0_17 = arith.constant 0 : index
      %c0_18 = arith.constant 0 : index
      %25 = vector.load %arg16[%c0_17, %c0_18] : memref<8x1xf32, #tpu.memory_space<vmem>>, vector<8x1xf32>
      tpu.vector_store %arg16[%c0_17, %c0_18], %24 {strides = array<i32>} : memref<8x1xf32, #tpu.memory_space<vmem>>, vector<8x1xf32>,
      %cst_19 = arith.constant 0.000000e+00 : f32
      %26 = vector.broadcast %cst_19 : f32 to vector<8x2048xf32>
      %c0_20 = arith.constant 0 : index
      %c0_21 = arith.constant 0 : index
      %27 = vector.load %arg15[%c0_20, %c0_21] : memref<8x2048xf32, #tpu.memory_space<vmem>>, vector<8x2048xf32>
      tpu.vector_store %arg15[%c0_20, %c0_21], %26 {strides = array<i32>} : memref<8x2048xf32, #tpu.memory_space<vmem>>, vector<8x2048xf32>,
      %cst_22 = arith.constant 0.000000e+00 : f32
      %28 = vector.broadcast %cst_22 : f32 to vector<12x168xf32>
      %c0_23 = arith.constant 0 : index
      %c0_24 = arith.constant 0 : index
      %29 = vector.load %arg13[%c0_23, %c0_24] : memref<12x168xf32, #tpu.memory_space<vmem>>, vector<12x168xf32>
      tpu.vector_store %arg13[%c0_23, %c0_24], %28 {strides = array<i32>} : memref<12x168xf32, #tpu.memory_space<vmem>>, vector<12x168xf32>,
      %cst_25 = arith.constant 0.000000e+00 : f32
      %30 = vector.broadcast %cst_25 : f32 to vector<6x12x168xf32>
      %c0_26 = arith.constant 0 : index
      %c0_27 = arith.constant 0 : index
      %c0_28 = arith.constant 0 : index
      %31 = vector.load %arg14[%c0_26, %c0_27, %c0_28] : memref<6x12x168xf32, #tpu.memory_space<vmem>>, vector<6x12x168xf32>
      tpu.vector_store %arg14[%c0_26, %c0_27, %c0_28], %30 {strides = array<i32>} : memref<6x12x168xf32, #tpu.memory_space<vmem>>, vector<6x12x168xf32>,
      %c0_29 = arith.constant 0 : index
      %c0_30 = arith.constant 0 : index
      %32 = vector.load %arg1[%c0_29, %c0_30] : memref<8x168xf32, #tpu.memory_space<vmem>>, vector<8x168xf32>
      %c2 = arith.constant 2 : index
      %c0_31 = arith.constant 0 : index
      %33 = vector.load %arg13[%c2, %c0_31] : memref<12x168xf32, #tpu.memory_space<vmem>>, vector<8x168xf32>
      tpu.vector_store %arg13[%c2, %c0_31], %32 {strides = array<i32>} : memref<12x168xf32, #tpu.memory_space<vmem>>, vector<8x168xf32>,
      %34 = tpu.iota {dimensions = array<i32: 1>} : vector<12x168xi32>
      %c1_i32_32 = arith.constant 1 : i32
      %35 = vector.broadcast %c1_i32_32 : i32 to vector<12x168xi32>
      %36 = arith.cmpi sge, %34, %35 : vector<12x168xi32>
      %c166_i32 = arith.constant 166 : i32
      %37 = vector.broadcast %c166_i32 : i32 to vector<12x168xi32>
      %38 = arith.cmpi sle, %34, %37 : vector<12x168xi32>
      %c0_33 = arith.constant 0 : index
      %c0_34 = arith.constant 0 : index
      %39 = vector.load %arg13[%c0_33, %c0_34] : memref<12x168xf32, #tpu.memory_space<vmem>>, vector<12x168xf32>
      %c1_i32_35 = arith.constant 1 : i32
      %40 = tpu.dynamic_rotate %39 by %c1_i32_35 dim 1 : vector<12x168xf32>, i32 -> vector<12x168xf32>
      %cst_36 = arith.constant 0.000000e+00 : f32
      %41 = vector.broadcast %cst_36 : f32 to vector<12x168xf32>
      %42 = arith.select %36, %40, %41 : vector<12x168xi1>, vector<12x168xf32>
      %c167_i32 = arith.constant 167 : i32
      %43 = tpu.dynamic_rotate %39 by %c167_i32 dim 1 : vector<12x168xf32>, i32 -> vector<12x168xf32>
      %cst_37 = arith.constant 0.000000e+00 : f32
      %44 = vector.broadcast %cst_37 : f32 to vector<12x168xf32>
      %45 = arith.select %38, %43, %44 : vector<12x168xi1>, vector<12x168xf32>
      %46 = vector.extract_strided_slice %42 {offsets = [0, 0], sizes = [8, 168], strides = [1, 1]} : vector<12x168xf32> to vector<8x168xf32>
      %47 = vector.extract_strided_slice %39 {offsets = [0, 0], sizes = [8, 168], strides = [1, 1]} : vector<12x168xf32> to vector<8x168xf32>
      %48 = vector.extract_strided_slice %45 {offsets = [0, 0], sizes = [8, 168], strides = [1, 1]} : vector<12x168xf32> to vector<8x168xf32>
      %49 = vector.extract_strided_slice %42 {offsets = [2, 0], sizes = [8, 168], strides = [1, 1]} : vector<12x168xf32> to vector<8x168xf32>
      %50 = vector.extract_strided_slice %39 {offsets = [2, 0], sizes = [8, 168], strides = [1, 1]} : vector<12x168xf32> to vector<8x168xf32>
      %51 = vector.extract_strided_slice %45 {offsets = [2, 0], sizes = [8, 168], strides = [1, 1]} : vector<12x168xf32> to vector<8x168xf32>
      %52 = vector.extract_strided_slice %42 {offsets = [4, 0], sizes = [8, 168], strides = [1, 1]} : vector<12x168xf32> to vector<8x168xf32>
      %53 = vector.extract_strided_slice %39 {offsets = [4, 0], sizes = [8, 168], strides = [1, 1]} : vector<12x168xf32> to vector<8x168xf32>
      %54 = vector.extract_strided_slice %45 {offsets = [4, 0], sizes = [8, 168], strides = [1, 1]} : vector<12x168xf32> to vector<8x168xf32>
      %cst_38 = arith.constant 0.000000e+00 : f32
      %55 = vector.broadcast %cst_38 : f32 to vector<8x168xf32>
      %c0_39 = arith.constant 0 : index
      %56 = memref.load %arg2[%c0_39] : memref<54xf32, #tpu.memory_space<smem>>
      %57 = vector.broadcast %56 : f32 to vector<8x168xf32>
      %58 = arith.mulf %57, %46 : vector<8x168xf32>
      %59 = arith.addf %55, %58 : vector<8x168xf32>
      %c1 = arith.constant 1 : index
      %60 = memref.load %arg2[%c1] : memref<54xf32, #tpu.memory_space<smem>>
      %61 = vector.broadcast %60 : f32 to vector<8x168xf32>
      %62 = arith.mulf %61, %47 : vector<8x168xf32>
      %63 = arith.addf %59, %62 : vector<8x168xf32>
      %c2_40 = arith.constant 2 : index
      %64 = memref.load %arg2[%c2_40] : memref<54xf32, #tpu.memory_space<smem>>
      %65 = vector.broadcast %64 : f32 to vector<8x168xf32>
      %66 = arith.mulf %65, %48 : vector<8x168xf32>
      %67 = arith.addf %63, %66 : vector<8x168xf32>
      %c3 = arith.constant 3 : index
      %68 = memref.load %arg2[%c3] : memref<54xf32, #tpu.memory_space<smem>>
      %69 = vector.broadcast %68 : f32 to vector<8x168xf32>
      %70 = arith.mulf %69, %49 : vector<8x168xf32>
      %71 = arith.addf %67, %70 : vector<8x168xf32>
      %c4 = arith.constant 4 : index
      %72 = memref.load %arg2[%c4] : memref<54xf32, #tpu.memory_space<smem>>
      %73 = vector.broadcast %72 : f32 to vector<8x168xf32>
      %74 = arith.mulf %73, %50 : vector<8x168xf32>
      %75 = arith.addf %71, %74 : vector<8x168xf32>
      %c5 = arith.constant 5 : index
      %76 = memref.load %arg2[%c5] : memref<54xf32, #tpu.memory_space<smem>>
      %77 = vector.broadcast %76 : f32 to vector<8x168xf32>
      %78 = arith.mulf %77, %51 : vector<8x168xf32>
      %79 = arith.addf %75, %78 : vector<8x168xf32>
      %c6 = arith.constant 6 : index
      %80 = memref.load %arg2[%c6] : memref<54xf32, #tpu.memory_space<smem>>
      %81 = vector.broadcast %80 : f32 to vector<8x168xf32>
      %82 = arith.mulf %81, %52 : vector<8x168xf32>
      %83 = arith.addf %79, %82 : vector<8x168xf32>
      %c7 = arith.constant 7 : index
      %84 = memref.load %arg2[%c7] : memref<54xf32, #tpu.memory_space<smem>>
      %85 = vector.broadcast %84 : f32 to vector<8x168xf32>
      %86 = arith.mulf %85, %53 : vector<8x168xf32>
      %87 = arith.addf %83, %86 : vector<8x168xf32>
      %c8 = arith.constant 8 : index
      %88 = memref.load %arg2[%c8] : memref<54xf32, #tpu.memory_space<smem>>
      %89 = vector.broadcast %88 : f32 to vector<8x168xf32>
      %90 = arith.mulf %89, %54 : vector<8x168xf32>
      %91 = arith.addf %87, %90 : vector<8x168xf32>
      %c0_41 = arith.constant 0 : index
      %92 = memref.load %arg3[%c0_41] : memref<6xf32, #tpu.memory_space<smem>>
      %c0_42 = arith.constant 0 : index
      %93 = memref.load %arg4[%c0_42] : memref<6xf32, #tpu.memory_space<smem>>
      %94 = vector.shape_cast %91 : vector<8x168xf32> to vector<1x8x168xf32>
      %cst_43 = arith.constant dense<0.000000e+00> : vector<1xf32>
      %95 = vector.multi_reduction <add>, %94, %cst_43 [1, 2] : vector<1x8x168xf32> to vector<1xf32>
      %96 = vector.shape_cast %95 : vector<1xf32> to vector<1x1x1xf32>
      %97 = vector.extract %96[0, 0, 0] : f32 from vector<1x1x1xf32>
      %98 = arith.mulf %91, %91 : vector<8x168xf32>
      %99 = vector.shape_cast %98 : vector<8x168xf32> to vector<1x8x168xf32>
      %cst_44 = arith.constant dense<0.000000e+00> : vector<1xf32>
      %100 = vector.multi_reduction <add>, %99, %cst_44 [1, 2] : vector<1x8x168xf32> to vector<1xf32>
      %101 = vector.shape_cast %100 : vector<1xf32> to vector<1x1x1xf32>
      %102 = vector.extract %101[0, 0, 0] : f32 from vector<1x1x1xf32>
      %cst_45 = arith.constant 7.44047633E-4 : f32
      %103 = arith.mulf %97, %cst_45 : f32
      %cst_46 = arith.constant 7.44047633E-4 : f32
      %104 = arith.mulf %102, %cst_46 : f32
      %105 = arith.mulf %103, %103 : f32
      %106 = arith.subf %104, %105 : f32
      %107 = vector.broadcast %103 : f32 to vector<8x168xf32>
      %108 = arith.subf %91, %107 : vector<8x168xf32>
      %cst_47 = arith.constant 9.99999974E-6 : f32
      %109 = arith.addf %106, %cst_47 : f32
      %110 = math.rsqrt %109 : f32
      %111 = vector.broadcast %110 : f32 to vector<8x168xf32>
      %112 = arith.mulf %108, %111 : vector<8x168xf32>
      %113 = vector.broadcast %92 : f32 to vector<8x168xf32>
      %114 = arith.mulf %112, %113 : vector<8x168xf32>
      %115 = vector.broadcast %93 : f32 to vector<8x168xf32>
      %116 = arith.addf %114, %115 : vector<8x168xf32>
      %cst_48 = arith.constant 0.000000e+00 : f32
      %117 = vector.broadcast %cst_48 : f32 to vector<8x168xf32>
      %118 = arith.maximumf %116, %117 : vector<8x168xf32>
      %c0_49 = arith.constant 0 : index
      %c2_50 = arith.constant 2 : index
      %c0_51 = arith.constant 0 : index
      %119 = vector.load %arg14[%c0_49, %c2_50, %c0_51] : memref<6x12x168xf32, #tpu.memory_space<vmem>>, vector<1x8x168xf32>
      %120 = vector.shape_cast %119 : vector<1x8x168xf32> to vector<8x168xf32>
      %121 = vector.shape_cast %118 : vector<8x168xf32> to vector<1x8x168xf32>
      tpu.vector_store %arg14[%c0_49, %c2_50, %c0_51], %121 {strides = array<i32>} : memref<6x12x168xf32, #tpu.memory_space<vmem>>, vector<1x8x168xf32>,
      %cst_52 = arith.constant 0.000000e+00 : f32
      %122 = vector.broadcast %cst_52 : f32 to vector<8x168xf32>
      %c9 = arith.constant 9 : index
      %123 = memref.load %arg2[%c9] : memref<54xf32, #tpu.memory_space<smem>>
      %124 = vector.broadcast %123 : f32 to vector<8x168xf32>
      %125 = arith.mulf %124, %46 : vector<8x168xf32>
      %126 = arith.addf %122, %125 : vector<8x168xf32>
      %c10 = arith.constant 10 : index
      %127 = memref.load %arg2[%c10] : memref<54xf32, #tpu.memory_space<smem>>
      %128 = vector.broadcast %127 : f32 to vector<8x168xf32>
      %129 = arith.mulf %128, %47 : vector<8x168xf32>
      %130 = arith.addf %126, %129 : vector<8x168xf32>
      %c11 = arith.constant 11 : index
      %131 = memref.load %arg2[%c11] : memref<54xf32, #tpu.memory_space<smem>>
      %132 = vector.broadcast %131 : f32 to vector<8x168xf32>
      %133 = arith.mulf %132, %48 : vector<8x168xf32>
      %134 = arith.addf %130, %133 : vector<8x168xf32>
      %c12 = arith.constant 12 : index
      %135 = memref.load %arg2[%c12] : memref<54xf32, #tpu.memory_space<smem>>
      %136 = vector.broadcast %135 : f32 to vector<8x168xf32>
      %137 = arith.mulf %136, %49 : vector<8x168xf32>
      %138 = arith.addf %134, %137 : vector<8x168xf32>
      %c13 = arith.constant 13 : index
      %139 = memref.load %arg2[%c13] : memref<54xf32, #tpu.memory_space<smem>>
      %140 = vector.broadcast %139 : f32 to vector<8x168xf32>
      %141 = arith.mulf %140, %50 : vector<8x168xf32>
      %142 = arith.addf %138, %141 : vector<8x168xf32>
      %c14 = arith.constant 14 : index
      %143 = memref.load %arg2[%c14] : memref<54xf32, #tpu.memory_space<smem>>
      %144 = vector.broadcast %143 : f32 to vector<8x168xf32>
      %145 = arith.mulf %144, %51 : vector<8x168xf32>
      %146 = arith.addf %142, %145 : vector<8x168xf32>
      %c15 = arith.constant 15 : index
      %147 = memref.load %arg2[%c15] : memref<54xf32, #tpu.memory_space<smem>>
      %148 = vector.broadcast %147 : f32 to vector<8x168xf32>
      %149 = arith.mulf %148, %52 : vector<8x168xf32>
      %150 = arith.addf %146, %149 : vector<8x168xf32>
      %c16 = arith.constant 16 : index
      %151 = memref.load %arg2[%c16] : memref<54xf32, #tpu.memory_space<smem>>
      %152 = vector.broadcast %151 : f32 to vector<8x168xf32>
      %153 = arith.mulf %152, %53 : vector<8x168xf32>
      %154 = arith.addf %150, %153 : vector<8x168xf32>
      %c17 = arith.constant 17 : index
      %155 = memref.load %arg2[%c17] : memref<54xf32, #tpu.memory_space<smem>>
      %156 = vector.broadcast %155 : f32 to vector<8x168xf32>
      %157 = arith.mulf %156, %54 : vector<8x168xf32>
      %158 = arith.addf %154, %157 : vector<8x168xf32>
      %c1_53 = arith.constant 1 : index
      %159 = memref.load %arg3[%c1_53] : memref<6xf32, #tpu.memory_space<smem>>
      %c1_54 = arith.constant 1 : index
      %160 = memref.load %arg4[%c1_54] : memref<6xf32, #tpu.memory_space<smem>>
      %161 = vector.shape_cast %158 : vector<8x168xf32> to vector<1x8x168xf32>
      %cst_55 = arith.constant dense<0.000000e+00> : vector<1xf32>
      %162 = vector.multi_reduction <add>, %161, %cst_55 [1, 2] : vector<1x8x168xf32> to vector<1xf32>
      %163 = vector.shape_cast %162 : vector<1xf32> to vector<1x1x1xf32>
      %164 = vector.extract %163[0, 0, 0] : f32 from vector<1x1x1xf32>
      %165 = arith.mulf %158, %158 : vector<8x168xf32>
      %166 = vector.shape_cast %165 : vector<8x168xf32> to vector<1x8x168xf32>
      %cst_56 = arith.constant dense<0.000000e+00> : vector<1xf32>
      %167 = vector.multi_reduction <add>, %166, %cst_56 [1, 2] : vector<1x8x168xf32> to vector<1xf32>
      %168 = vector.shape_cast %167 : vector<1xf32> to vector<1x1x1xf32>
      %169 = vector.extract %168[0, 0, 0] : f32 from vector<1x1x1xf32>
      %cst_57 = arith.constant 7.44047633E-4 : f32
      %170 = arith.mulf %164, %cst_57 : f32
      %cst_58 = arith.constant 7.44047633E-4 : f32
      %171 = arith.mulf %169, %cst_58 : f32
      %172 = arith.mulf %170, %170 : f32
      %173 = arith.subf %171, %172 : f32
      %174 = vector.broadcast %170 : f32 to vector<8x168xf32>
      %175 = arith.subf %158, %174 : vector<8x168xf32>
      %cst_59 = arith.constant 9.99999974E-6 : f32
      %176 = arith.addf %173, %cst_59 : f32
      %177 = math.rsqrt %176 : f32
      %178 = vector.broadcast %177 : f32 to vector<8x168xf32>
      %179 = arith.mulf %175, %178 : vector<8x168xf32>
      %180 = vector.broadcast %159 : f32 to vector<8x168xf32>
      %181 = arith.mulf %179, %180 : vector<8x168xf32>
      %182 = vector.broadcast %160 : f32 to vector<8x168xf32>
      %183 = arith.addf %181, %182 : vector<8x168xf32>
      %cst_60 = arith.constant 0.000000e+00 : f32
      %184 = vector.broadcast %cst_60 : f32 to vector<8x168xf32>
      %185 = arith.maximumf %183, %184 : vector<8x168xf32>
      %c1_61 = arith.constant 1 : index
      %c2_62 = arith.constant 2 : index
      %c0_63 = arith.constant 0 : index
      %186 = vector.load %arg14[%c1_61, %c2_62, %c0_63] : memref<6x12x168xf32, #tpu.memory_space<vmem>>, vector<1x8x168xf32>
      %187 = vector.shape_cast %186 : vector<1x8x168xf32> to vector<8x168xf32>
      %188 = vector.shape_cast %185 : vector<8x168xf32> to vector<1x8x168xf32>
      tpu.vector_store %arg14[%c1_61, %c2_62, %c0_63], %188 {strides = array<i32>} : memref<6x12x168xf32, #tpu.memory_space<vmem>>, vector<1x8x168xf32>,
      %cst_64 = arith.constant 0.000000e+00 : f32
      %189 = vector.broadcast %cst_64 : f32 to vector<8x168xf32>
      %c18 = arith.constant 18 : index
      %190 = memref.load %arg2[%c18] : memref<54xf32, #tpu.memory_space<smem>>
      %191 = vector.broadcast %190 : f32 to vector<8x168xf32>
      %192 = arith.mulf %191, %46 : vector<8x168xf32>
      %193 = arith.addf %189, %192 : vector<8x168xf32>
      %c19 = arith.constant 19 : index
      %194 = memref.load %arg2[%c19] : memref<54xf32, #tpu.memory_space<smem>>
      %195 = vector.broadcast %194 : f32 to vector<8x168xf32>
      %196 = arith.mulf %195, %47 : vector<8x168xf32>
      %197 = arith.addf %193, %196 : vector<8x168xf32>
      %c20 = arith.constant 20 : index
      %198 = memref.load %arg2[%c20] : memref<54xf32, #tpu.memory_space<smem>>
      %199 = vector.broadcast %198 : f32 to vector<8x168xf32>
      %200 = arith.mulf %199, %48 : vector<8x168xf32>
      %201 = arith.addf %197, %200 : vector<8x168xf32>
      %c21 = arith.constant 21 : index
      %202 = memref.load %arg2[%c21] : memref<54xf32, #tpu.memory_space<smem>>
      %203 = vector.broadcast %202 : f32 to vector<8x168xf32>
      %204 = arith.mulf %203, %49 : vector<8x168xf32>
      %205 = arith.addf %201, %204 : vector<8x168xf32>
      %c22 = arith.constant 22 : index
      %206 = memref.load %arg2[%c22] : memref<54xf32, #tpu.memory_space<smem>>
      %207 = vector.broadcast %206 : f32 to vector<8x168xf32>
      %208 = arith.mulf %207, %50 : vector<8x168xf32>
      %209 = arith.addf %205, %208 : vector<8x168xf32>
      %c23 = arith.constant 23 : index
      %210 = memref.load %arg2[%c23] : memref<54xf32, #tpu.memory_space<smem>>
      %211 = vector.broadcast %210 : f32 to vector<8x168xf32>
      %212 = arith.mulf %211, %51 : vector<8x168xf32>
      %213 = arith.addf %209, %212 : vector<8x168xf32>
      %c24 = arith.constant 24 : index
      %214 = memref.load %arg2[%c24] : memref<54xf32, #tpu.memory_space<smem>>
      %215 = vector.broadcast %214 : f32 to vector<8x168xf32>
      %216 = arith.mulf %215, %52 : vector<8x168xf32>
      %217 = arith.addf %213, %216 : vector<8x168xf32>
      %c25 = arith.constant 25 : index
      %218 = memref.load %arg2[%c25] : memref<54xf32, #tpu.memory_space<smem>>
      %219 = vector.broadcast %218 : f32 to vector<8x168xf32>
      %220 = arith.mulf %219, %53 : vector<8x168xf32>
      %221 = arith.addf %217, %220 : vector<8x168xf32>
      %c26 = arith.constant 26 : index
      %222 = memref.load %arg2[%c26] : memref<54xf32, #tpu.memory_space<smem>>
      %223 = vector.broadcast %222 : f32 to vector<8x168xf32>
      %224 = arith.mulf %223, %54 : vector<8x168xf32>
      %225 = arith.addf %221, %224 : vector<8x168xf32>
      %c2_65 = arith.constant 2 : index
      %226 = memref.load %arg3[%c2_65] : memref<6xf32, #tpu.memory_space<smem>>
      %c2_66 = arith.constant 2 : index
      %227 = memref.load %arg4[%c2_66] : memref<6xf32, #tpu.memory_space<smem>>
      %228 = vector.shape_cast %225 : vector<8x168xf32> to vector<1x8x168xf32>
      %cst_67 = arith.constant dense<0.000000e+00> : vector<1xf32>
      %229 = vector.multi_reduction <add>, %228, %cst_67 [1, 2] : vector<1x8x168xf32> to vector<1xf32>
      %230 = vector.shape_cast %229 : vector<1xf32> to vector<1x1x1xf32>
      %231 = vector.extract %230[0, 0, 0] : f32 from vector<1x1x1xf32>
      %232 = arith.mulf %225, %225 : vector<8x168xf32>
      %233 = vector.shape_cast %232 : vector<8x168xf32> to vector<1x8x168xf32>
      %cst_68 = arith.constant dense<0.000000e+00> : vector<1xf32>
      %234 = vector.multi_reduction <add>, %233, %cst_68 [1, 2] : vector<1x8x168xf32> to vector<1xf32>
      %235 = vector.shape_cast %234 : vector<1xf32> to vector<1x1x1xf32>
      %236 = vector.extract %235[0, 0, 0] : f32 from vector<1x1x1xf32>
      %cst_69 = arith.constant 7.44047633E-4 : f32
      %237 = arith.mulf %231, %cst_69 : f32
      %cst_70 = arith.constant 7.44047633E-4 : f32
      %238 = arith.mulf %236, %cst_70 : f32
      %239 = arith.mulf %237, %237 : f32
      %240 = arith.subf %238, %239 : f32
      %241 = vector.broadcast %237 : f32 to vector<8x168xf32>
      %242 = arith.subf %225, %241 : vector<8x168xf32>
      %cst_71 = arith.constant 9.99999974E-6 : f32
      %243 = arith.addf %240, %cst_71 : f32
      %244 = math.rsqrt %243 : f32
      %245 = vector.broadcast %244 : f32 to vector<8x168xf32>
      %246 = arith.mulf %242, %245 : vector<8x168xf32>
      %247 = vector.broadcast %226 : f32 to vector<8x168xf32>
      %248 = arith.mulf %246, %247 : vector<8x168xf32>
      %249 = vector.broadcast %227 : f32 to vector<8x168xf32>
      %250 = arith.addf %248, %249 : vector<8x168xf32>
      %cst_72 = arith.constant 0.000000e+00 : f32
      %251 = vector.broadcast %cst_72 : f32 to vector<8x168xf32>
      %252 = arith.maximumf %250, %251 : vector<8x168xf32>
      %c2_73 = arith.constant 2 : index
      %c2_74 = arith.constant 2 : index
      %c0_75 = arith.constant 0 : index
      %253 = vector.load %arg14[%c2_73, %c2_74, %c0_75] : memref<6x12x168xf32, #tpu.memory_space<vmem>>, vector<1x8x168xf32>
      %254 = vector.shape_cast %253 : vector<1x8x168xf32> to vector<8x168xf32>
      %255 = vector.shape_cast %252 : vector<8x168xf32> to vector<1x8x168xf32>
      tpu.vector_store %arg14[%c2_73, %c2_74, %c0_75], %255 {strides = array<i32>} : memref<6x12x168xf32, #tpu.memory_space<vmem>>, vector<1x8x168xf32>,
      %cst_76 = arith.constant 0.000000e+00 : f32
      %256 = vector.broadcast %cst_76 : f32 to vector<8x168xf32>
      %c27 = arith.constant 27 : index
      %257 = memref.load %arg2[%c27] : memref<54xf32, #tpu.memory_space<smem>>
      %258 = vector.broadcast %257 : f32 to vector<8x168xf32>
      %259 = arith.mulf %258, %46 : vector<8x168xf32>
      %260 = arith.addf %256, %259 : vector<8x168xf32>
      %c28 = arith.constant 28 : index
      %261 = memref.load %arg2[%c28] : memref<54xf32, #tpu.memory_space<smem>>
      %262 = vector.broadcast %261 : f32 to vector<8x168xf32>
      %263 = arith.mulf %262, %47 : vector<8x168xf32>
      %264 = arith.addf %260, %263 : vector<8x168xf32>
      %c29 = arith.constant 29 : index
      %265 = memref.load %arg2[%c29] : memref<54xf32, #tpu.memory_space<smem>>
      %266 = vector.broadcast %265 : f32 to vector<8x168xf32>
      %267 = arith.mulf %266, %48 : vector<8x168xf32>
      %268 = arith.addf %264, %267 : vector<8x168xf32>
      %c30 = arith.constant 30 : index
      %269 = memref.load %arg2[%c30] : memref<54xf32, #tpu.memory_space<smem>>
      %270 = vector.broadcast %269 : f32 to vector<8x168xf32>
      %271 = arith.mulf %270, %49 : vector<8x168xf32>
      %272 = arith.addf %268, %271 : vector<8x168xf32>
      %c31 = arith.constant 31 : index
      %273 = memref.load %arg2[%c31] : memref<54xf32, #tpu.memory_space<smem>>
      %274 = vector.broadcast %273 : f32 to vector<8x168xf32>
      %275 = arith.mulf %274, %50 : vector<8x168xf32>
      %276 = arith.addf %272, %275 : vector<8x168xf32>
      %c32 = arith.constant 32 : index
      %277 = memref.load %arg2[%c32] : memref<54xf32, #tpu.memory_space<smem>>
      %278 = vector.broadcast %277 : f32 to vector<8x168xf32>
      %279 = arith.mulf %278, %51 : vector<8x168xf32>
      %280 = arith.addf %276, %279 : vector<8x168xf32>
      %c33 = arith.constant 33 : index
      %281 = memref.load %arg2[%c33] : memref<54xf32, #tpu.memory_space<smem>>
      %282 = vector.broadcast %281 : f32 to vector<8x168xf32>
      %283 = arith.mulf %282, %52 : vector<8x168xf32>
      %284 = arith.addf %280, %283 : vector<8x168xf32>
      %c34 = arith.constant 34 : index
      %285 = memref.load %arg2[%c34] : memref<54xf32, #tpu.memory_space<smem>>
      %286 = vector.broadcast %285 : f32 to vector<8x168xf32>
      %287 = arith.mulf %286, %53 : vector<8x168xf32>
      %288 = arith.addf %284, %287 : vector<8x168xf32>
      %c35 = arith.constant 35 : index
      %289 = memref.load %arg2[%c35] : memref<54xf32, #tpu.memory_space<smem>>
      %290 = vector.broadcast %289 : f32 to vector<8x168xf32>
      %291 = arith.mulf %290, %54 : vector<8x168xf32>
      %292 = arith.addf %288, %291 : vector<8x168xf32>
      %c3_77 = arith.constant 3 : index
      %293 = memref.load %arg3[%c3_77] : memref<6xf32, #tpu.memory_space<smem>>
      %c3_78 = arith.constant 3 : index
      %294 = memref.load %arg4[%c3_78] : memref<6xf32, #tpu.memory_space<smem>>
      %295 = vector.shape_cast %292 : vector<8x168xf32> to vector<1x8x168xf32>
      %cst_79 = arith.constant dense<0.000000e+00> : vector<1xf32>
      %296 = vector.multi_reduction <add>, %295, %cst_79 [1, 2] : vector<1x8x168xf32> to vector<1xf32>
      %297 = vector.shape_cast %296 : vector<1xf32> to vector<1x1x1xf32>
      %298 = vector.extract %297[0, 0, 0] : f32 from vector<1x1x1xf32>
      %299 = arith.mulf %292, %292 : vector<8x168xf32>
      %300 = vector.shape_cast %299 : vector<8x168xf32> to vector<1x8x168xf32>
      %cst_80 = arith.constant dense<0.000000e+00> : vector<1xf32>
      %301 = vector.multi_reduction <add>, %300, %cst_80 [1, 2] : vector<1x8x168xf32> to vector<1xf32>
      %302 = vector.shape_cast %301 : vector<1xf32> to vector<1x1x1xf32>
      %303 = vector.extract %302[0, 0, 0] : f32 from vector<1x1x1xf32>
      %cst_81 = arith.constant 7.44047633E-4 : f32
      %304 = arith.mulf %298, %cst_81 : f32
      %cst_82 = arith.constant 7.44047633E-4 : f32
      %305 = arith.mulf %303, %cst_82 : f32
      %306 = arith.mulf %304, %304 : f32
      %307 = arith.subf %305, %306 : f32
      %308 = vector.broadcast %304 : f32 to vector<8x168xf32>
      %309 = arith.subf %292, %308 : vector<8x168xf32>
      %cst_83 = arith.constant 9.99999974E-6 : f32
      %310 = arith.addf %307, %cst_83 : f32
      %311 = math.rsqrt %310 : f32
      %312 = vector.broadcast %311 : f32 to vector<8x168xf32>
      %313 = arith.mulf %309, %312 : vector<8x168xf32>
      %314 = vector.broadcast %293 : f32 to vector<8x168xf32>
      %315 = arith.mulf %313, %314 : vector<8x168xf32>
      %316 = vector.broadcast %294 : f32 to vector<8x168xf32>
      %317 = arith.addf %315, %316 : vector<8x168xf32>
      %cst_84 = arith.constant 0.000000e+00 : f32
      %318 = vector.broadcast %cst_84 : f32 to vector<8x168xf32>
      %319 = arith.maximumf %317, %318 : vector<8x168xf32>
      %c3_85 = arith.constant 3 : index
      %c2_86 = arith.constant 2 : index
      %c0_87 = arith.constant 0 : index
      %320 = vector.load %arg14[%c3_85, %c2_86, %c0_87] : memref<6x12x168xf32, #tpu.memory_space<vmem>>, vector<1x8x168xf32>
      %321 = vector.shape_cast %320 : vector<1x8x168xf32> to vector<8x168xf32>
      %322 = vector.shape_cast %319 : vector<8x168xf32> to vector<1x8x168xf32>
      tpu.vector_store %arg14[%c3_85, %c2_86, %c0_87], %322 {strides = array<i32>} : memref<6x12x168xf32, #tpu.memory_space<vmem>>, vector<1x8x168xf32>,
      %cst_88 = arith.constant 0.000000e+00 : f32
      %323 = vector.broadcast %cst_88 : f32 to vector<8x168xf32>
      %c36 = arith.constant 36 : index
      %324 = memref.load %arg2[%c36] : memref<54xf32, #tpu.memory_space<smem>>
      %325 = vector.broadcast %324 : f32 to vector<8x168xf32>
      %326 = arith.mulf %325, %46 : vector<8x168xf32>
      %327 = arith.addf %323, %326 : vector<8x168xf32>
      %c37 = arith.constant 37 : index
      %328 = memref.load %arg2[%c37] : memref<54xf32, #tpu.memory_space<smem>>
      %329 = vector.broadcast %328 : f32 to vector<8x168xf32>
      %330 = arith.mulf %329, %47 : vector<8x168xf32>
      %331 = arith.addf %327, %330 : vector<8x168xf32>
      %c38 = arith.constant 38 : index
      %332 = memref.load %arg2[%c38] : memref<54xf32, #tpu.memory_space<smem>>
      %333 = vector.broadcast %332 : f32 to vector<8x168xf32>
      %334 = arith.mulf %333, %48 : vector<8x168xf32>
      %335 = arith.addf %331, %334 : vector<8x168xf32>
      %c39 = arith.constant 39 : index
      %336 = memref.load %arg2[%c39] : memref<54xf32, #tpu.memory_space<smem>>
      %337 = vector.broadcast %336 : f32 to vector<8x168xf32>
      %338 = arith.mulf %337, %49 : vector<8x168xf32>
      %339 = arith.addf %335, %338 : vector<8x168xf32>
      %c40 = arith.constant 40 : index
      %340 = memref.load %arg2[%c40] : memref<54xf32, #tpu.memory_space<smem>>
      %341 = vector.broadcast %340 : f32 to vector<8x168xf32>
      %342 = arith.mulf %341, %50 : vector<8x168xf32>
      %343 = arith.addf %339, %342 : vector<8x168xf32>
      %c41 = arith.constant 41 : index
      %344 = memref.load %arg2[%c41] : memref<54xf32, #tpu.memory_space<smem>>
      %345 = vector.broadcast %344 : f32 to vector<8x168xf32>
      %346 = arith.mulf %345, %51 : vector<8x168xf32>
      %347 = arith.addf %343, %346 : vector<8x168xf32>
      %c42 = arith.constant 42 : index
      %348 = memref.load %arg2[%c42] : memref<54xf32, #tpu.memory_space<smem>>
      %349 = vector.broadcast %348 : f32 to vector<8x168xf32>
      %350 = arith.mulf %349, %52 : vector<8x168xf32>
      %351 = arith.addf %347, %350 : vector<8x168xf32>
      %c43 = arith.constant 43 : index
      %352 = memref.load %arg2[%c43] : memref<54xf32, #tpu.memory_space<smem>>
      %353 = vector.broadcast %352 : f32 to vector<8x168xf32>
      %354 = arith.mulf %353, %53 : vector<8x168xf32>
      %355 = arith.addf %351, %354 : vector<8x168xf32>
      %c44 = arith.constant 44 : index
      %356 = memref.load %arg2[%c44] : memref<54xf32, #tpu.memory_space<smem>>
      %357 = vector.broadcast %356 : f32 to vector<8x168xf32>
      %358 = arith.mulf %357, %54 : vector<8x168xf32>
      %359 = arith.addf %355, %358 : vector<8x168xf32>
      %c4_89 = arith.constant 4 : index
      %360 = memref.load %arg3[%c4_89] : memref<6xf32, #tpu.memory_space<smem>>
      %c4_90 = arith.constant 4 : index
      %361 = memref.load %arg4[%c4_90] : memref<6xf32, #tpu.memory_space<smem>>
      %362 = vector.shape_cast %359 : vector<8x168xf32> to vector<1x8x168xf32>
      %cst_91 = arith.constant dense<0.000000e+00> : vector<1xf32>
      %363 = vector.multi_reduction <add>, %362, %cst_91 [1, 2] : vector<1x8x168xf32> to vector<1xf32>
      %364 = vector.shape_cast %363 : vector<1xf32> to vector<1x1x1xf32>
      %365 = vector.extract %364[0, 0, 0] : f32 from vector<1x1x1xf32>
      %366 = arith.mulf %359, %359 : vector<8x168xf32>
      %367 = vector.shape_cast %366 : vector<8x168xf32> to vector<1x8x168xf32>
      %cst_92 = arith.constant dense<0.000000e+00> : vector<1xf32>
      %368 = vector.multi_reduction <add>, %367, %cst_92 [1, 2] : vector<1x8x168xf32> to vector<1xf32>
      %369 = vector.shape_cast %368 : vector<1xf32> to vector<1x1x1xf32>
      %370 = vector.extract %369[0, 0, 0] : f32 from vector<1x1x1xf32>
      %cst_93 = arith.constant 7.44047633E-4 : f32
      %371 = arith.mulf %365, %cst_93 : f32
      %cst_94 = arith.constant 7.44047633E-4 : f32
      %372 = arith.mulf %370, %cst_94 : f32
      %373 = arith.mulf %371, %371 : f32
      %374 = arith.subf %372, %373 : f32
      %375 = vector.broadcast %371 : f32 to vector<8x168xf32>
      %376 = arith.subf %359, %375 : vector<8x168xf32>
      %cst_95 = arith.constant 9.99999974E-6 : f32
      %377 = arith.addf %374, %cst_95 : f32
      %378 = math.rsqrt %377 : f32
      %379 = vector.broadcast %378 : f32 to vector<8x168xf32>
      %380 = arith.mulf %376, %379 : vector<8x168xf32>
      %381 = vector.broadcast %360 : f32 to vector<8x168xf32>
      %382 = arith.mulf %380, %381 : vector<8x168xf32>
      %383 = vector.broadcast %361 : f32 to vector<8x168xf32>
      %384 = arith.addf %382, %383 : vector<8x168xf32>
      %cst_96 = arith.constant 0.000000e+00 : f32
      %385 = vector.broadcast %cst_96 : f32 to vector<8x168xf32>
      %386 = arith.maximumf %384, %385 : vector<8x168xf32>
      %c4_97 = arith.constant 4 : index
      %c2_98 = arith.constant 2 : index
      %c0_99 = arith.constant 0 : index
      %387 = vector.load %arg14[%c4_97, %c2_98, %c0_99] : memref<6x12x168xf32, #tpu.memory_space<vmem>>, vector<1x8x168xf32>
      %388 = vector.shape_cast %387 : vector<1x8x168xf32> to vector<8x168xf32>
      %389 = vector.shape_cast %386 : vector<8x168xf32> to vector<1x8x168xf32>
      tpu.vector_store %arg14[%c4_97, %c2_98, %c0_99], %389 {strides = array<i32>} : memref<6x12x168xf32, #tpu.memory_space<vmem>>, vector<1x8x168xf32>,
      %cst_100 = arith.constant 0.000000e+00 : f32
      %390 = vector.broadcast %cst_100 : f32 to vector<8x168xf32>
      %c45 = arith.constant 45 : index
      %391 = memref.load %arg2[%c45] : memref<54xf32, #tpu.memory_space<smem>>
      %392 = vector.broadcast %391 : f32 to vector<8x168xf32>
      %393 = arith.mulf %392, %46 : vector<8x168xf32>
      %394 = arith.addf %390, %393 : vector<8x168xf32>
      %c46 = arith.constant 46 : index
      %395 = memref.load %arg2[%c46] : memref<54xf32, #tpu.memory_space<smem>>
      %396 = vector.broadcast %395 : f32 to vector<8x168xf32>
      %397 = arith.mulf %396, %47 : vector<8x168xf32>
      %398 = arith.addf %394, %397 : vector<8x168xf32>
      %c47 = arith.constant 47 : index
      %399 = memref.load %arg2[%c47] : memref<54xf32, #tpu.memory_space<smem>>
      %400 = vector.broadcast %399 : f32 to vector<8x168xf32>
      %401 = arith.mulf %400, %48 : vector<8x168xf32>
      %402 = arith.addf %398, %401 : vector<8x168xf32>
      %c48 = arith.constant 48 : index
      %403 = memref.load %arg2[%c48] : memref<54xf32, #tpu.memory_space<smem>>
      %404 = vector.broadcast %403 : f32 to vector<8x168xf32>
      %405 = arith.mulf %404, %49 : vector<8x168xf32>
      %406 = arith.addf %402, %405 : vector<8x168xf32>
      %c49 = arith.constant 49 : index
      %407 = memref.load %arg2[%c49] : memref<54xf32, #tpu.memory_space<smem>>
      %408 = vector.broadcast %407 : f32 to vector<8x168xf32>
      %409 = arith.mulf %408, %50 : vector<8x168xf32>
      %410 = arith.addf %406, %409 : vector<8x168xf32>
      %c50 = arith.constant 50 : index
      %411 = memref.load %arg2[%c50] : memref<54xf32, #tpu.memory_space<smem>>
      %412 = vector.broadcast %411 : f32 to vector<8x168xf32>
      %413 = arith.mulf %412, %51 : vector<8x168xf32>
      %414 = arith.addf %410, %413 : vector<8x168xf32>
      %c51 = arith.constant 51 : index
      %415 = memref.load %arg2[%c51] : memref<54xf32, #tpu.memory_space<smem>>
      %416 = vector.broadcast %415 : f32 to vector<8x168xf32>
      %417 = arith.mulf %416, %52 : vector<8x168xf32>
      %418 = arith.addf %414, %417 : vector<8x168xf32>
      %c52 = arith.constant 52 : index
      %419 = memref.load %arg2[%c52] : memref<54xf32, #tpu.memory_space<smem>>
      %420 = vector.broadcast %419 : f32 to vector<8x168xf32>
      %421 = arith.mulf %420, %53 : vector<8x168xf32>
      %422 = arith.addf %418, %421 : vector<8x168xf32>
      %c53 = arith.constant 53 : index
      %423 = memref.load %arg2[%c53] : memref<54xf32, #tpu.memory_space<smem>>
      %424 = vector.broadcast %423 : f32 to vector<8x168xf32>
      %425 = arith.mulf %424, %54 : vector<8x168xf32>
      %426 = arith.addf %422, %425 : vector<8x168xf32>
      %c5_101 = arith.constant 5 : index
      %427 = memref.load %arg3[%c5_101] : memref<6xf32, #tpu.memory_space<smem>>
      %c5_102 = arith.constant 5 : index
      %428 = memref.load %arg4[%c5_102] : memref<6xf32, #tpu.memory_space<smem>>
      %429 = vector.shape_cast %426 : vector<8x168xf32> to vector<1x8x168xf32>
      %cst_103 = arith.constant dense<0.000000e+00> : vector<1xf32>
      %430 = vector.multi_reduction <add>, %429, %cst_103 [1, 2] : vector<1x8x168xf32> to vector<1xf32>
      %431 = vector.shape_cast %430 : vector<1xf32> to vector<1x1x1xf32>
      %432 = vector.extract %431[0, 0, 0] : f32 from vector<1x1x1xf32>
      %433 = arith.mulf %426, %426 : vector<8x168xf32>
      %434 = vector.shape_cast %433 : vector<8x168xf32> to vector<1x8x168xf32>
      %cst_104 = arith.constant dense<0.000000e+00> : vector<1xf32>
      %435 = vector.multi_reduction <add>, %434, %cst_104 [1, 2] : vector<1x8x168xf32> to vector<1xf32>
      %436 = vector.shape_cast %435 : vector<1xf32> to vector<1x1x1xf32>
      %437 = vector.extract %436[0, 0, 0] : f32 from vector<1x1x1xf32>
      %cst_105 = arith.constant 7.44047633E-4 : f32
      %438 = arith.mulf %432, %cst_105 : f32
      %cst_106 = arith.constant 7.44047633E-4 : f32
      %439 = arith.mulf %437, %cst_106 : f32
      %440 = arith.mulf %438, %438 : f32
      %441 = arith.subf %439, %440 : f32
      %442 = vector.broadcast %438 : f32 to vector<8x168xf32>
      %443 = arith.subf %426, %442 : vector<8x168xf32>
      %cst_107 = arith.constant 9.99999974E-6 : f32
      %444 = arith.addf %441, %cst_107 : f32
      %445 = math.rsqrt %444 : f32
      %446 = vector.broadcast %445 : f32 to vector<8x168xf32>
      %447 = arith.mulf %443, %446 : vector<8x168xf32>
      %448 = vector.broadcast %427 : f32 to vector<8x168xf32>
      %449 = arith.mulf %447, %448 : vector<8x168xf32>
      %450 = vector.broadcast %428 : f32 to vector<8x168xf32>
      %451 = arith.addf %449, %450 : vector<8x168xf32>
      %cst_108 = arith.constant 0.000000e+00 : f32
      %452 = vector.broadcast %cst_108 : f32 to vector<8x168xf32>
      %453 = arith.maximumf %451, %452 : vector<8x168xf32>
      %c5_109 = arith.constant 5 : index
      %c2_110 = arith.constant 2 : index
      %c0_111 = arith.constant 0 : index
      %454 = vector.load %arg14[%c5_109, %c2_110, %c0_111] : memref<6x12x168xf32, #tpu.memory_space<vmem>>, vector<1x8x168xf32>
      %455 = vector.shape_cast %454 : vector<1x8x168xf32> to vector<8x168xf32>
      %456 = vector.shape_cast %453 : vector<8x168xf32> to vector<1x8x168xf32>
      tpu.vector_store %arg14[%c5_109, %c2_110, %c0_111], %456 {strides = array<i32>} : memref<6x12x168xf32, #tpu.memory_space<vmem>>, vector<1x8x168xf32>,
      %cst_112 = arith.constant 0.000000e+00 : f32
      %457 = vector.broadcast %cst_112 : f32 to vector<8x168xf32>
      %cst_113 = arith.constant 0.000000e+00 : f32
      %458 = vector.broadcast %cst_113 : f32 to vector<8x168xf32>
      %cst_114 = arith.constant 0.000000e+00 : f32
      %459 = vector.broadcast %cst_114 : f32 to vector<8x168xf32>
      %c0_115 = arith.constant 0 : index
      %c0_116 = arith.constant 0 : index
      %c0_117 = arith.constant 0 : index
      %460 = vector.load %arg14[%c0_115, %c0_116, %c0_117] : memref<6x12x168xf32, #tpu.memory_space<vmem>>, vector<1x12x168xf32>
      %461 = vector.shape_cast %460 : vector<1x12x168xf32> to vector<12x168xf32>
      %c1_i32_118 = arith.constant 1 : i32
      %462 = tpu.dynamic_rotate %461 by %c1_i32_118 dim 1 : vector<12x168xf32>, i32 -> vector<12x168xf32>
      %cst_119 = arith.constant 0.000000e+00 : f32
      %463 = vector.broadcast %cst_119 : f32 to vector<12x168xf32>
      %464 = arith.select %36, %462, %463 : vector<12x168xi1>, vector<12x168xf32>
      %c167_i32_120 = arith.constant 167 : i32
      %465 = tpu.dynamic_rotate %461 by %c167_i32_120 dim 1 : vector<12x168xf32>, i32 -> vector<12x168xf32>
      %cst_121 = arith.constant 0.000000e+00 : f32
      %466 = vector.broadcast %cst_121 : f32 to vector<12x168xf32>
      %467 = arith.select %38, %465, %466 : vector<12x168xi1>, vector<12x168xf32>
      %468 = vector.extract_strided_slice %464 {offsets = [0, 0], sizes = [8, 168], strides = [1, 1]} : vector<12x168xf32> to vector<8x168xf32>
      %469 = vector.extract_strided_slice %461 {offsets = [0, 0], sizes = [8, 168], strides = [1, 1]} : vector<12x168xf32> to vector<8x168xf32>
      %470 = vector.extract_strided_slice %467 {offsets = [0, 0], sizes = [8, 168], strides = [1, 1]} : vector<12x168xf32> to vector<8x168xf32>
      %471 = vector.extract_strided_slice %464 {offsets = [2, 0], sizes = [8, 168], strides = [1, 1]} : vector<12x168xf32> to vector<8x168xf32>
      %472 = vector.extract_strided_slice %461 {offsets = [2, 0], sizes = [8, 168], strides = [1, 1]} : vector<12x168xf32> to vector<8x168xf32>
      %473 = vector.extract_strided_slice %467 {offsets = [2, 0], sizes = [8, 168], strides = [1, 1]} : vector<12x168xf32> to vector<8x168xf32>
      %474 = vector.extract_strided_slice %464 {offsets = [4, 0], sizes = [8, 168], strides = [1, 1]} : vector<12x168xf32> to vector<8x168xf32>
      %475 = vector.extract_strided_slice %461 {offsets = [4, 0], sizes = [8, 168], strides = [1, 1]} : vector<12x168xf32> to vector<8x168xf32>
      %476 = vector.extract_strided_slice %467 {offsets = [4, 0], sizes = [8, 168], strides = [1, 1]} : vector<12x168xf32> to vector<8x168xf32>
      %c0_122 = arith.constant 0 : index
      %477 = memref.load %arg5[%c0_122] : memref<162xf32, #tpu.memory_space<smem>>
      %478 = vector.broadcast %477 : f32 to vector<8x168xf32>
      %479 = arith.mulf %478, %468 : vector<8x168xf32>
      %480 = arith.addf %457, %479 : vector<8x168xf32>
      %c1_123 = arith.constant 1 : index
      %481 = memref.load %arg5[%c1_123] : memref<162xf32, #tpu.memory_space<smem>>
      %482 = vector.broadcast %481 : f32 to vector<8x168xf32>
      %483 = arith.mulf %482, %469 : vector<8x168xf32>
      %484 = arith.addf %480, %483 : vector<8x168xf32>
      %c2_124 = arith.constant 2 : index
      %485 = memref.load %arg5[%c2_124] : memref<162xf32, #tpu.memory_space<smem>>
      %486 = vector.broadcast %485 : f32 to vector<8x168xf32>
      %487 = arith.mulf %486, %470 : vector<8x168xf32>
      %488 = arith.addf %484, %487 : vector<8x168xf32>
      %c3_125 = arith.constant 3 : index
      %489 = memref.load %arg5[%c3_125] : memref<162xf32, #tpu.memory_space<smem>>
      %490 = vector.broadcast %489 : f32 to vector<8x168xf32>
      %491 = arith.mulf %490, %471 : vector<8x168xf32>
      %492 = arith.addf %488, %491 : vector<8x168xf32>
      %c4_126 = arith.constant 4 : index
      %493 = memref.load %arg5[%c4_126] : memref<162xf32, #tpu.memory_space<smem>>
      %494 = vector.broadcast %493 : f32 to vector<8x168xf32>
      %495 = arith.mulf %494, %472 : vector<8x168xf32>
      %496 = arith.addf %492, %495 : vector<8x168xf32>
      %c5_127 = arith.constant 5 : index
      %497 = memref.load %arg5[%c5_127] : memref<162xf32, #tpu.memory_space<smem>>
      %498 = vector.broadcast %497 : f32 to vector<8x168xf32>
      %499 = arith.mulf %498, %473 : vector<8x168xf32>
      %500 = arith.addf %496, %499 : vector<8x168xf32>
      %c6_128 = arith.constant 6 : index
      %501 = memref.load %arg5[%c6_128] : memref<162xf32, #tpu.memory_space<smem>>
      %502 = vector.broadcast %501 : f32 to vector<8x168xf32>
      %503 = arith.mulf %502, %474 : vector<8x168xf32>
      %504 = arith.addf %500, %503 : vector<8x168xf32>
      %c7_129 = arith.constant 7 : index
      %505 = memref.load %arg5[%c7_129] : memref<162xf32, #tpu.memory_space<smem>>
      %506 = vector.broadcast %505 : f32 to vector<8x168xf32>
      %507 = arith.mulf %506, %475 : vector<8x168xf32>
      %508 = arith.addf %504, %507 : vector<8x168xf32>
      %c8_130 = arith.constant 8 : index
      %509 = memref.load %arg5[%c8_130] : memref<162xf32, #tpu.memory_space<smem>>
      %510 = vector.broadcast %509 : f32 to vector<8x168xf32>
      %511 = arith.mulf %510, %476 : vector<8x168xf32>
      %512 = arith.addf %508, %511 : vector<8x168xf32>
      %c54 = arith.constant 54 : index
      %513 = memref.load %arg5[%c54] : memref<162xf32, #tpu.memory_space<smem>>
      %514 = vector.broadcast %513 : f32 to vector<8x168xf32>
      %515 = arith.mulf %514, %468 : vector<8x168xf32>
      %516 = arith.addf %458, %515 : vector<8x168xf32>
      %c55 = arith.constant 55 : index
      %517 = memref.load %arg5[%c55] : memref<162xf32, #tpu.memory_space<smem>>
      %518 = vector.broadcast %517 : f32 to vector<8x168xf32>
      %519 = arith.mulf %518, %469 : vector<8x168xf32>
      %520 = arith.addf %516, %519 : vector<8x168xf32>
      %c56 = arith.constant 56 : index
      %521 = memref.load %arg5[%c56] : memref<162xf32, #tpu.memory_space<smem>>
      %522 = vector.broadcast %521 : f32 to vector<8x168xf32>
      %523 = arith.mulf %522, %470 : vector<8x168xf32>
      %524 = arith.addf %520, %523 : vector<8x168xf32>
      %c57 = arith.constant 57 : index
      %525 = memref.load %arg5[%c57] : memref<162xf32, #tpu.memory_space<smem>>
      %526 = vector.broadcast %525 : f32 to vector<8x168xf32>
      %527 = arith.mulf %526, %471 : vector<8x168xf32>
      %528 = arith.addf %524, %527 : vector<8x168xf32>
      %c58 = arith.constant 58 : index
      %529 = memref.load %arg5[%c58] : memref<162xf32, #tpu.memory_space<smem>>
      %530 = vector.broadcast %529 : f32 to vector<8x168xf32>
      %531 = arith.mulf %530, %472 : vector<8x168xf32>
      %532 = arith.addf %528, %531 : vector<8x168xf32>
      %c59 = arith.constant 59 : index
      %533 = memref.load %arg5[%c59] : memref<162xf32, #tpu.memory_space<smem>>
      %534 = vector.broadcast %533 : f32 to vector<8x168xf32>
      %535 = arith.mulf %534, %473 : vector<8x168xf32>
      %536 = arith.addf %532, %535 : vector<8x168xf32>
      %c60 = arith.constant 60 : index
      %537 = memref.load %arg5[%c60] : memref<162xf32, #tpu.memory_space<smem>>
      %538 = vector.broadcast %537 : f32 to vector<8x168xf32>
      %539 = arith.mulf %538, %474 : vector<8x168xf32>
      %540 = arith.addf %536, %539 : vector<8x168xf32>
      %c61 = arith.constant 61 : index
      %541 = memref.load %arg5[%c61] : memref<162xf32, #tpu.memory_space<smem>>
      %542 = vector.broadcast %541 : f32 to vector<8x168xf32>
      %543 = arith.mulf %542, %475 : vector<8x168xf32>
      %544 = arith.addf %540, %543 : vector<8x168xf32>
      %c62 = arith.constant 62 : index
      %545 = memref.load %arg5[%c62] : memref<162xf32, #tpu.memory_space<smem>>
      %546 = vector.broadcast %545 : f32 to vector<8x168xf32>
      %547 = arith.mulf %546, %476 : vector<8x168xf32>
      %548 = arith.addf %544, %547 : vector<8x168xf32>
      %c108 = arith.constant 108 : index
      %549 = memref.load %arg5[%c108] : memref<162xf32, #tpu.memory_space<smem>>
      %550 = vector.broadcast %549 : f32 to vector<8x168xf32>
      %551 = arith.mulf %550, %468 : vector<8x168xf32>
      %552 = arith.addf %459, %551 : vector<8x168xf32>
      %c109 = arith.constant 109 : index
      %553 = memref.load %arg5[%c109] : memref<162xf32, #tpu.memory_space<smem>>
      %554 = vector.broadcast %553 : f32 to vector<8x168xf32>
      %555 = arith.mulf %554, %469 : vector<8x168xf32>
      %556 = arith.addf %552, %555 : vector<8x168xf32>
      %c110 = arith.constant 110 : index
      %557 = memref.load %arg5[%c110] : memref<162xf32, #tpu.memory_space<smem>>
      %558 = vector.broadcast %557 : f32 to vector<8x168xf32>
      %559 = arith.mulf %558, %470 : vector<8x168xf32>
      %560 = arith.addf %556, %559 : vector<8x168xf32>
      %c111 = arith.constant 111 : index
      %561 = memref.load %arg5[%c111] : memref<162xf32, #tpu.memory_space<smem>>
      %562 = vector.broadcast %561 : f32 to vector<8x168xf32>
      %563 = arith.mulf %562, %471 : vector<8x168xf32>
      %564 = arith.addf %560, %563 : vector<8x168xf32>
      %c112 = arith.constant 112 : index
      %565 = memref.load %arg5[%c112] : memref<162xf32, #tpu.memory_space<smem>>
      %566 = vector.broadcast %565 : f32 to vector<8x168xf32>
      %567 = arith.mulf %566, %472 : vector<8x168xf32>
      %568 = arith.addf %564, %567 : vector<8x168xf32>
      %c113 = arith.constant 113 : index
      %569 = memref.load %arg5[%c113] : memref<162xf32, #tpu.memory_space<smem>>
      %570 = vector.broadcast %569 : f32 to vector<8x168xf32>
      %571 = arith.mulf %570, %473 : vector<8x168xf32>
      %572 = arith.addf %568, %571 : vector<8x168xf32>
      %c114 = arith.constant 114 : index
      %573 = memref.load %arg5[%c114] : memref<162xf32, #tpu.memory_space<smem>>
      %574 = vector.broadcast %573 : f32 to vector<8x168xf32>
      %575 = arith.mulf %574, %474 : vector<8x168xf32>
      %576 = arith.addf %572, %575 : vector<8x168xf32>
      %c115 = arith.constant 115 : index
      %577 = memref.load %arg5[%c115] : memref<162xf32, #tpu.memory_space<smem>>
      %578 = vector.broadcast %577 : f32 to vector<8x168xf32>
      %579 = arith.mulf %578, %475 : vector<8x168xf32>
      %580 = arith.addf %576, %579 : vector<8x168xf32>
      %c116 = arith.constant 116 : index
      %581 = memref.load %arg5[%c116] : memref<162xf32, #tpu.memory_space<smem>>
      %582 = vector.broadcast %581 : f32 to vector<8x168xf32>
      %583 = arith.mulf %582, %476 : vector<8x168xf32>
      %584 = arith.addf %580, %583 : vector<8x168xf32>
      %c1_131 = arith.constant 1 : index
      %c0_132 = arith.constant 0 : index
      %c0_133 = arith.constant 0 : index
      %585 = vector.load %arg14[%c1_131, %c0_132, %c0_133] : memref<6x12x168xf32, #tpu.memory_space<vmem>>, vector<1x12x168xf32>
      %586 = vector.shape_cast %585 : vector<1x12x168xf32> to vector<12x168xf32>
      %c1_i32_134 = arith.constant 1 : i32
      %587 = tpu.dynamic_rotate %586 by %c1_i32_134 dim 1 : vector<12x168xf32>, i32 -> vector<12x168xf32>
      %cst_135 = arith.constant 0.000000e+00 : f32
      %588 = vector.broadcast %cst_135 : f32 to vector<12x168xf32>
      %589 = arith.select %36, %587, %588 : vector<12x168xi1>, vector<12x168xf32>
      %c167_i32_136 = arith.constant 167 : i32
      %590 = tpu.dynamic_rotate %586 by %c167_i32_136 dim 1 : vector<12x168xf32>, i32 -> vector<12x168xf32>
      %cst_137 = arith.constant 0.000000e+00 : f32
      %591 = vector.broadcast %cst_137 : f32 to vector<12x168xf32>
      %592 = arith.select %38, %590, %591 : vector<12x168xi1>, vector<12x168xf32>
      %593 = vector.extract_strided_slice %589 {offsets = [0, 0], sizes = [8, 168], strides = [1, 1]} : vector<12x168xf32> to vector<8x168xf32>
      %594 = vector.extract_strided_slice %586 {offsets = [0, 0], sizes = [8, 168], strides = [1, 1]} : vector<12x168xf32> to vector<8x168xf32>
      %595 = vector.extract_strided_slice %592 {offsets = [0, 0], sizes = [8, 168], strides = [1, 1]} : vector<12x168xf32> to vector<8x168xf32>
      %596 = vector.extract_strided_slice %589 {offsets = [2, 0], sizes = [8, 168], strides = [1, 1]} : vector<12x168xf32> to vector<8x168xf32>
      %597 = vector.extract_strided_slice %586 {offsets = [2, 0], sizes = [8, 168], strides = [1, 1]} : vector<12x168xf32> to vector<8x168xf32>
      %598 = vector.extract_strided_slice %592 {offsets = [2, 0], sizes = [8, 168], strides = [1, 1]} : vector<12x168xf32> to vector<8x168xf32>
      %599 = vector.extract_strided_slice %589 {offsets = [4, 0], sizes = [8, 168], strides = [1, 1]} : vector<12x168xf32> to vector<8x168xf32>
      %600 = vector.extract_strided_slice %586 {offsets = [4, 0], sizes = [8, 168], strides = [1, 1]} : vector<12x168xf32> to vector<8x168xf32>
      %601 = vector.extract_strided_slice %592 {offsets = [4, 0], sizes = [8, 168], strides = [1, 1]} : vector<12x168xf32> to vector<8x168xf32>
      %c9_138 = arith.constant 9 : index
      %602 = memref.load %arg5[%c9_138] : memref<162xf32, #tpu.memory_space<smem>>
      %603 = vector.broadcast %602 : f32 to vector<8x168xf32>
      %604 = arith.mulf %603, %593 : vector<8x168xf32>
      %605 = arith.addf %512, %604 : vector<8x168xf32>
      %c10_139 = arith.constant 10 : index
      %606 = memref.load %arg5[%c10_139] : memref<162xf32, #tpu.memory_space<smem>>
      %607 = vector.broadcast %606 : f32 to vector<8x168xf32>
      %608 = arith.mulf %607, %594 : vector<8x168xf32>
      %609 = arith.addf %605, %608 : vector<8x168xf32>
      %c11_140 = arith.constant 11 : index
      %610 = memref.load %arg5[%c11_140] : memref<162xf32, #tpu.memory_space<smem>>
      %611 = vector.broadcast %610 : f32 to vector<8x168xf32>
      %612 = arith.mulf %611, %595 : vector<8x168xf32>
      %613 = arith.addf %609, %612 : vector<8x168xf32>
      %c12_141 = arith.constant 12 : index
      %614 = memref.load %arg5[%c12_141] : memref<162xf32, #tpu.memory_space<smem>>
      %615 = vector.broadcast %614 : f32 to vector<8x168xf32>
      %616 = arith.mulf %615, %596 : vector<8x168xf32>
      %617 = arith.addf %613, %616 : vector<8x168xf32>
      %c13_142 = arith.constant 13 : index
      %618 = memref.load %arg5[%c13_142] : memref<162xf32, #tpu.memory_space<smem>>
      %619 = vector.broadcast %618 : f32 to vector<8x168xf32>
      %620 = arith.mulf %619, %597 : vector<8x168xf32>
      %621 = arith.addf %617, %620 : vector<8x168xf32>
      %c14_143 = arith.constant 14 : index
      %622 = memref.load %arg5[%c14_143] : memref<162xf32, #tpu.memory_space<smem>>
      %623 = vector.broadcast %622 : f32 to vector<8x168xf32>
      %624 = arith.mulf %623, %598 : vector<8x168xf32>
      %625 = arith.addf %621, %624 : vector<8x168xf32>
      %c15_144 = arith.constant 15 : index
      %626 = memref.load %arg5[%c15_144] : memref<162xf32, #tpu.memory_space<smem>>
      %627 = vector.broadcast %626 : f32 to vector<8x168xf32>
      %628 = arith.mulf %627, %599 : vector<8x168xf32>
      %629 = arith.addf %625, %628 : vector<8x168xf32>
      %c16_145 = arith.constant 16 : index
      %630 = memref.load %arg5[%c16_145] : memref<162xf32, #tpu.memory_space<smem>>
      %631 = vector.broadcast %630 : f32 to vector<8x168xf32>
      %632 = arith.mulf %631, %600 : vector<8x168xf32>
      %633 = arith.addf %629, %632 : vector<8x168xf32>
      %c17_146 = arith.constant 17 : index
      %634 = memref.load %arg5[%c17_146] : memref<162xf32, #tpu.memory_space<smem>>
      %635 = vector.broadcast %634 : f32 to vector<8x168xf32>
      %636 = arith.mulf %635, %601 : vector<8x168xf32>
      %637 = arith.addf %633, %636 : vector<8x168xf32>
      %c63 = arith.constant 63 : index
      %638 = memref.load %arg5[%c63] : memref<162xf32, #tpu.memory_space<smem>>
      %639 = vector.broadcast %638 : f32 to vector<8x168xf32>
      %640 = arith.mulf %639, %593 : vector<8x168xf32>
      %641 = arith.addf %548, %640 : vector<8x168xf32>
      %c64 = arith.constant 64 : index
      %642 = memref.load %arg5[%c64] : memref<162xf32, #tpu.memory_space<smem>>
      %643 = vector.broadcast %642 : f32 to vector<8x168xf32>
      %644 = arith.mulf %643, %594 : vector<8x168xf32>
      %645 = arith.addf %641, %644 : vector<8x168xf32>
      %c65 = arith.constant 65 : index
      %646 = memref.load %arg5[%c65] : memref<162xf32, #tpu.memory_space<smem>>
      %647 = vector.broadcast %646 : f32 to vector<8x168xf32>
      %648 = arith.mulf %647, %595 : vector<8x168xf32>
      %649 = arith.addf %645, %648 : vector<8x168xf32>
      %c66 = arith.constant 66 : index
      %650 = memref.load %arg5[%c66] : memref<162xf32, #tpu.memory_space<smem>>
      %651 = vector.broadcast %650 : f32 to vector<8x168xf32>
      %652 = arith.mulf %651, %596 : vector<8x168xf32>
      %653 = arith.addf %649, %652 : vector<8x168xf32>
      %c67 = arith.constant 67 : index
      %654 = memref.load %arg5[%c67] : memref<162xf32, #tpu.memory_space<smem>>
      %655 = vector.broadcast %654 : f32 to vector<8x168xf32>
      %656 = arith.mulf %655, %597 : vector<8x168xf32>
      %657 = arith.addf %653, %656 : vector<8x168xf32>
      %c68 = arith.constant 68 : index
      %658 = memref.load %arg5[%c68] : memref<162xf32, #tpu.memory_space<smem>>
      %659 = vector.broadcast %658 : f32 to vector<8x168xf32>
      %660 = arith.mulf %659, %598 : vector<8x168xf32>
      %661 = arith.addf %657, %660 : vector<8x168xf32>
      %c69 = arith.constant 69 : index
      %662 = memref.load %arg5[%c69] : memref<162xf32, #tpu.memory_space<smem>>
      %663 = vector.broadcast %662 : f32 to vector<8x168xf32>
      %664 = arith.mulf %663, %599 : vector<8x168xf32>
      %665 = arith.addf %661, %664 : vector<8x168xf32>
      %c70 = arith.constant 70 : index
      %666 = memref.load %arg5[%c70] : memref<162xf32, #tpu.memory_space<smem>>
      %667 = vector.broadcast %666 : f32 to vector<8x168xf32>
      %668 = arith.mulf %667, %600 : vector<8x168xf32>
      %669 = arith.addf %665, %668 : vector<8x168xf32>
      %c71 = arith.constant 71 : index
      %670 = memref.load %arg5[%c71] : memref<162xf32, #tpu.memory_space<smem>>
      %671 = vector.broadcast %670 : f32 to vector<8x168xf32>
      %672 = arith.mulf %671, %601 : vector<8x168xf32>
      %673 = arith.addf %669, %672 : vector<8x168xf32>
      %c117 = arith.constant 117 : index
      %674 = memref.load %arg5[%c117] : memref<162xf32, #tpu.memory_space<smem>>
      %675 = vector.broadcast %674 : f32 to vector<8x168xf32>
      %676 = arith.mulf %675, %593 : vector<8x168xf32>
      %677 = arith.addf %584, %676 : vector<8x168xf32>
      %c118 = arith.constant 118 : index
      %678 = memref.load %arg5[%c118] : memref<162xf32, #tpu.memory_space<smem>>
      %679 = vector.broadcast %678 : f32 to vector<8x168xf32>
      %680 = arith.mulf %679, %594 : vector<8x168xf32>
      %681 = arith.addf %677, %680 : vector<8x168xf32>
      %c119 = arith.constant 119 : index
      %682 = memref.load %arg5[%c119] : memref<162xf32, #tpu.memory_space<smem>>
      %683 = vector.broadcast %682 : f32 to vector<8x168xf32>
      %684 = arith.mulf %683, %595 : vector<8x168xf32>
      %685 = arith.addf %681, %684 : vector<8x168xf32>
      %c120 = arith.constant 120 : index
      %686 = memref.load %arg5[%c120] : memref<162xf32, #tpu.memory_space<smem>>
      %687 = vector.broadcast %686 : f32 to vector<8x168xf32>
      %688 = arith.mulf %687, %596 : vector<8x168xf32>
      %689 = arith.addf %685, %688 : vector<8x168xf32>
      %c121 = arith.constant 121 : index
      %690 = memref.load %arg5[%c121] : memref<162xf32, #tpu.memory_space<smem>>
      %691 = vector.broadcast %690 : f32 to vector<8x168xf32>
      %692 = arith.mulf %691, %597 : vector<8x168xf32>
      %693 = arith.addf %689, %692 : vector<8x168xf32>
      %c122 = arith.constant 122 : index
      %694 = memref.load %arg5[%c122] : memref<162xf32, #tpu.memory_space<smem>>
      %695 = vector.broadcast %694 : f32 to vector<8x168xf32>
      %696 = arith.mulf %695, %598 : vector<8x168xf32>
      %697 = arith.addf %693, %696 : vector<8x168xf32>
      %c123 = arith.constant 123 : index
      %698 = memref.load %arg5[%c123] : memref<162xf32, #tpu.memory_space<smem>>
      %699 = vector.broadcast %698 : f32 to vector<8x168xf32>
      %700 = arith.mulf %699, %599 : vector<8x168xf32>
      %701 = arith.addf %697, %700 : vector<8x168xf32>
      %c124 = arith.constant 124 : index
      %702 = memref.load %arg5[%c124] : memref<162xf32, #tpu.memory_space<smem>>
      %703 = vector.broadcast %702 : f32 to vector<8x168xf32>
      %704 = arith.mulf %703, %600 : vector<8x168xf32>
      %705 = arith.addf %701, %704 : vector<8x168xf32>
      %c125 = arith.constant 125 : index
      %706 = memref.load %arg5[%c125] : memref<162xf32, #tpu.memory_space<smem>>
      %707 = vector.broadcast %706 : f32 to vector<8x168xf32>
      %708 = arith.mulf %707, %601 : vector<8x168xf32>
      %709 = arith.addf %705, %708 : vector<8x168xf32>
      %c2_147 = arith.constant 2 : index
      %c0_148 = arith.constant 0 : index
      %c0_149 = arith.constant 0 : index
      %710 = vector.load %arg14[%c2_147, %c0_148, %c0_149] : memref<6x12x168xf32, #tpu.memory_space<vmem>>, vector<1x12x168xf32>
      %711 = vector.shape_cast %710 : vector<1x12x168xf32> to vector<12x168xf32>
      %c1_i32_150 = arith.constant 1 : i32
      %712 = tpu.dynamic_rotate %711 by %c1_i32_150 dim 1 : vector<12x168xf32>, i32 -> vector<12x168xf32>
      %cst_151 = arith.constant 0.000000e+00 : f32
      %713 = vector.broadcast %cst_151 : f32 to vector<12x168xf32>
      %714 = arith.select %36, %712, %713 : vector<12x168xi1>, vector<12x168xf32>
      %c167_i32_152 = arith.constant 167 : i32
      %715 = tpu.dynamic_rotate %711 by %c167_i32_152 dim 1 : vector<12x168xf32>, i32 -> vector<12x168xf32>
      %cst_153 = arith.constant 0.000000e+00 : f32
      %716 = vector.broadcast %cst_153 : f32 to vector<12x168xf32>
      %717 = arith.select %38, %715, %716 : vector<12x168xi1>, vector<12x168xf32>
      %718 = vector.extract_strided_slice %714 {offsets = [0, 0], sizes = [8, 168], strides = [1, 1]} : vector<12x168xf32> to vector<8x168xf32>
      %719 = vector.extract_strided_slice %711 {offsets = [0, 0], sizes = [8, 168], strides = [1, 1]} : vector<12x168xf32> to vector<8x168xf32>
      %720 = vector.extract_strided_slice %717 {offsets = [0, 0], sizes = [8, 168], strides = [1, 1]} : vector<12x168xf32> to vector<8x168xf32>
      %721 = vector.extract_strided_slice %714 {offsets = [2, 0], sizes = [8, 168], strides = [1, 1]} : vector<12x168xf32> to vector<8x168xf32>
      %722 = vector.extract_strided_slice %711 {offsets = [2, 0], sizes = [8, 168], strides = [1, 1]} : vector<12x168xf32> to vector<8x168xf32>
      %723 = vector.extract_strided_slice %717 {offsets = [2, 0], sizes = [8, 168], strides = [1, 1]} : vector<12x168xf32> to vector<8x168xf32>
      %724 = vector.extract_strided_slice %714 {offsets = [4, 0], sizes = [8, 168], strides = [1, 1]} : vector<12x168xf32> to vector<8x168xf32>
      %725 = vector.extract_strided_slice %711 {offsets = [4, 0], sizes = [8, 168], strides = [1, 1]} : vector<12x168xf32> to vector<8x168xf32>
      %726 = vector.extract_strided_slice %717 {offsets = [4, 0], sizes = [8, 168], strides = [1, 1]} : vector<12x168xf32> to vector<8x168xf32>
      %c18_154 = arith.constant 18 : index
      %727 = memref.load %arg5[%c18_154] : memref<162xf32, #tpu.memory_space<smem>>
      %728 = vector.broadcast %727 : f32 to vector<8x168xf32>
      %729 = arith.mulf %728, %718 : vector<8x168xf32>
      %730 = arith.addf %637, %729 : vector<8x168xf32>
      %c19_155 = arith.constant 19 : index
      %731 = memref.load %arg5[%c19_155] : memref<162xf32, #tpu.memory_space<smem>>
      %732 = vector.broadcast %731 : f32 to vector<8x168xf32>
      %733 = arith.mulf %732, %719 : vector<8x168xf32>
      %734 = arith.addf %730, %733 : vector<8x168xf32>
      %c20_156 = arith.constant 20 : index
      %735 = memref.load %arg5[%c20_156] : memref<162xf32, #tpu.memory_space<smem>>
      %736 = vector.broadcast %735 : f32 to vector<8x168xf32>
      %737 = arith.mulf %736, %720 : vector<8x168xf32>
      %738 = arith.addf %734, %737 : vector<8x168xf32>
      %c21_157 = arith.constant 21 : index
      %739 = memref.load %arg5[%c21_157] : memref<162xf32, #tpu.memory_space<smem>>
      %740 = vector.broadcast %739 : f32 to vector<8x168xf32>
      %741 = arith.mulf %740, %721 : vector<8x168xf32>
      %742 = arith.addf %738, %741 : vector<8x168xf32>
      %c22_158 = arith.constant 22 : index
      %743 = memref.load %arg5[%c22_158] : memref<162xf32, #tpu.memory_space<smem>>
      %744 = vector.broadcast %743 : f32 to vector<8x168xf32>
      %745 = arith.mulf %744, %722 : vector<8x168xf32>
      %746 = arith.addf %742, %745 : vector<8x168xf32>
      %c23_159 = arith.constant 23 : index
      %747 = memref.load %arg5[%c23_159] : memref<162xf32, #tpu.memory_space<smem>>
      %748 = vector.broadcast %747 : f32 to vector<8x168xf32>
      %749 = arith.mulf %748, %723 : vector<8x168xf32>
      %750 = arith.addf %746, %749 : vector<8x168xf32>
      %c24_160 = arith.constant 24 : index
      %751 = memref.load %arg5[%c24_160] : memref<162xf32, #tpu.memory_space<smem>>
      %752 = vector.broadcast %751 : f32 to vector<8x168xf32>
      %753 = arith.mulf %752, %724 : vector<8x168xf32>
      %754 = arith.addf %750, %753 : vector<8x168xf32>
      %c25_161 = arith.constant 25 : index
      %755 = memref.load %arg5[%c25_161] : memref<162xf32, #tpu.memory_space<smem>>
      %756 = vector.broadcast %755 : f32 to vector<8x168xf32>
      %757 = arith.mulf %756, %725 : vector<8x168xf32>
      %758 = arith.addf %754, %757 : vector<8x168xf32>
      %c26_162 = arith.constant 26 : index
      %759 = memref.load %arg5[%c26_162] : memref<162xf32, #tpu.memory_space<smem>>
      %760 = vector.broadcast %759 : f32 to vector<8x168xf32>
      %761 = arith.mulf %760, %726 : vector<8x168xf32>
      %762 = arith.addf %758, %761 : vector<8x168xf32>
      %c72 = arith.constant 72 : index
      %763 = memref.load %arg5[%c72] : memref<162xf32, #tpu.memory_space<smem>>
      %764 = vector.broadcast %763 : f32 to vector<8x168xf32>
      %765 = arith.mulf %764, %718 : vector<8x168xf32>
      %766 = arith.addf %673, %765 : vector<8x168xf32>
      %c73 = arith.constant 73 : index
      %767 = memref.load %arg5[%c73] : memref<162xf32, #tpu.memory_space<smem>>
      %768 = vector.broadcast %767 : f32 to vector<8x168xf32>
      %769 = arith.mulf %768, %719 : vector<8x168xf32>
      %770 = arith.addf %766, %769 : vector<8x168xf32>
      %c74 = arith.constant 74 : index
      %771 = memref.load %arg5[%c74] : memref<162xf32, #tpu.memory_space<smem>>
      %772 = vector.broadcast %771 : f32 to vector<8x168xf32>
      %773 = arith.mulf %772, %720 : vector<8x168xf32>
      %774 = arith.addf %770, %773 : vector<8x168xf32>
      %c75 = arith.constant 75 : index
      %775 = memref.load %arg5[%c75] : memref<162xf32, #tpu.memory_space<smem>>
      %776 = vector.broadcast %775 : f32 to vector<8x168xf32>
      %777 = arith.mulf %776, %721 : vector<8x168xf32>
      %778 = arith.addf %774, %777 : vector<8x168xf32>
      %c76 = arith.constant 76 : index
      %779 = memref.load %arg5[%c76] : memref<162xf32, #tpu.memory_space<smem>>
      %780 = vector.broadcast %779 : f32 to vector<8x168xf32>
      %781 = arith.mulf %780, %722 : vector<8x168xf32>
      %782 = arith.addf %778, %781 : vector<8x168xf32>
      %c77 = arith.constant 77 : index
      %783 = memref.load %arg5[%c77] : memref<162xf32, #tpu.memory_space<smem>>
      %784 = vector.broadcast %783 : f32 to vector<8x168xf32>
      %785 = arith.mulf %784, %723 : vector<8x168xf32>
      %786 = arith.addf %782, %785 : vector<8x168xf32>
      %c78 = arith.constant 78 : index
      %787 = memref.load %arg5[%c78] : memref<162xf32, #tpu.memory_space<smem>>
      %788 = vector.broadcast %787 : f32 to vector<8x168xf32>
      %789 = arith.mulf %788, %724 : vector<8x168xf32>
      %790 = arith.addf %786, %789 : vector<8x168xf32>
      %c79 = arith.constant 79 : index
      %791 = memref.load %arg5[%c79] : memref<162xf32, #tpu.memory_space<smem>>
      %792 = vector.broadcast %791 : f32 to vector<8x168xf32>
      %793 = arith.mulf %792, %725 : vector<8x168xf32>
      %794 = arith.addf %790, %793 : vector<8x168xf32>
      %c80 = arith.constant 80 : index
      %795 = memref.load %arg5[%c80] : memref<162xf32, #tpu.memory_space<smem>>
      %796 = vector.broadcast %795 : f32 to vector<8x168xf32>
      %797 = arith.mulf %796, %726 : vector<8x168xf32>
      %798 = arith.addf %794, %797 : vector<8x168xf32>
      %c126 = arith.constant 126 : index
      %799 = memref.load %arg5[%c126] : memref<162xf32, #tpu.memory_space<smem>>
      %800 = vector.broadcast %799 : f32 to vector<8x168xf32>
      %801 = arith.mulf %800, %718 : vector<8x168xf32>
      %802 = arith.addf %709, %801 : vector<8x168xf32>
      %c127 = arith.constant 127 : index
      %803 = memref.load %arg5[%c127] : memref<162xf32, #tpu.memory_space<smem>>
      %804 = vector.broadcast %803 : f32 to vector<8x168xf32>
      %805 = arith.mulf %804, %719 : vector<8x168xf32>
      %806 = arith.addf %802, %805 : vector<8x168xf32>
      %c128 = arith.constant 128 : index
      %807 = memref.load %arg5[%c128] : memref<162xf32, #tpu.memory_space<smem>>
      %808 = vector.broadcast %807 : f32 to vector<8x168xf32>
      %809 = arith.mulf %808, %720 : vector<8x168xf32>
      %810 = arith.addf %806, %809 : vector<8x168xf32>
      %c129 = arith.constant 129 : index
      %811 = memref.load %arg5[%c129] : memref<162xf32, #tpu.memory_space<smem>>
      %812 = vector.broadcast %811 : f32 to vector<8x168xf32>
      %813 = arith.mulf %812, %721 : vector<8x168xf32>
      %814 = arith.addf %810, %813 : vector<8x168xf32>
      %c130 = arith.constant 130 : index
      %815 = memref.load %arg5[%c130] : memref<162xf32, #tpu.memory_space<smem>>
      %816 = vector.broadcast %815 : f32 to vector<8x168xf32>
      %817 = arith.mulf %816, %722 : vector<8x168xf32>
      %818 = arith.addf %814, %817 : vector<8x168xf32>
      %c131 = arith.constant 131 : index
      %819 = memref.load %arg5[%c131] : memref<162xf32, #tpu.memory_space<smem>>
      %820 = vector.broadcast %819 : f32 to vector<8x168xf32>
      %821 = arith.mulf %820, %723 : vector<8x168xf32>
      %822 = arith.addf %818, %821 : vector<8x168xf32>
      %c132 = arith.constant 132 : index
      %823 = memref.load %arg5[%c132] : memref<162xf32, #tpu.memory_space<smem>>
      %824 = vector.broadcast %823 : f32 to vector<8x168xf32>
      %825 = arith.mulf %824, %724 : vector<8x168xf32>
      %826 = arith.addf %822, %825 : vector<8x168xf32>
      %c133 = arith.constant 133 : index
      %827 = memref.load %arg5[%c133] : memref<162xf32, #tpu.memory_space<smem>>
      %828 = vector.broadcast %827 : f32 to vector<8x168xf32>
      %829 = arith.mulf %828, %725 : vector<8x168xf32>
      %830 = arith.addf %826, %829 : vector<8x168xf32>
      %c134 = arith.constant 134 : index
      %831 = memref.load %arg5[%c134] : memref<162xf32, #tpu.memory_space<smem>>
      %832 = vector.broadcast %831 : f32 to vector<8x168xf32>
      %833 = arith.mulf %832, %726 : vector<8x168xf32>
      %834 = arith.addf %830, %833 : vector<8x168xf32>
      %c3_163 = arith.constant 3 : index
      %c0_164 = arith.constant 0 : index
      %c0_165 = arith.constant 0 : index
      %835 = vector.load %arg14[%c3_163, %c0_164, %c0_165] : memref<6x12x168xf32, #tpu.memory_space<vmem>>, vector<1x12x168xf32>
      %836 = vector.shape_cast %835 : vector<1x12x168xf32> to vector<12x168xf32>
      %c1_i32_166 = arith.constant 1 : i32
      %837 = tpu.dynamic_rotate %836 by %c1_i32_166 dim 1 : vector<12x168xf32>, i32 -> vector<12x168xf32>
      %cst_167 = arith.constant 0.000000e+00 : f32
      %838 = vector.broadcast %cst_167 : f32 to vector<12x168xf32>
      %839 = arith.select %36, %837, %838 : vector<12x168xi1>, vector<12x168xf32>
      %c167_i32_168 = arith.constant 167 : i32
      %840 = tpu.dynamic_rotate %836 by %c167_i32_168 dim 1 : vector<12x168xf32>, i32 -> vector<12x168xf32>
      %cst_169 = arith.constant 0.000000e+00 : f32
      %841 = vector.broadcast %cst_169 : f32 to vector<12x168xf32>
      %842 = arith.select %38, %840, %841 : vector<12x168xi1>, vector<12x168xf32>
      %843 = vector.extract_strided_slice %839 {offsets = [0, 0], sizes = [8, 168], strides = [1, 1]} : vector<12x168xf32> to vector<8x168xf32>
      %844 = vector.extract_strided_slice %836 {offsets = [0, 0], sizes = [8, 168], strides = [1, 1]} : vector<12x168xf32> to vector<8x168xf32>
      %845 = vector.extract_strided_slice %842 {offsets = [0, 0], sizes = [8, 168], strides = [1, 1]} : vector<12x168xf32> to vector<8x168xf32>
      %846 = vector.extract_strided_slice %839 {offsets = [2, 0], sizes = [8, 168], strides = [1, 1]} : vector<12x168xf32> to vector<8x168xf32>
      %847 = vector.extract_strided_slice %836 {offsets = [2, 0], sizes = [8, 168], strides = [1, 1]} : vector<12x168xf32> to vector<8x168xf32>
      %848 = vector.extract_strided_slice %842 {offsets = [2, 0], sizes = [8, 168], strides = [1, 1]} : vector<12x168xf32> to vector<8x168xf32>
      %849 = vector.extract_strided_slice %839 {offsets = [4, 0], sizes = [8, 168], strides = [1, 1]} : vector<12x168xf32> to vector<8x168xf32>
      %850 = vector.extract_strided_slice %836 {offsets = [4, 0], sizes = [8, 168], strides = [1, 1]} : vector<12x168xf32> to vector<8x168xf32>
      %851 = vector.extract_strided_slice %842 {offsets = [4, 0], sizes = [8, 168], strides = [1, 1]} : vector<12x168xf32> to vector<8x168xf32>
      %c27_170 = arith.constant 27 : index
      %852 = memref.load %arg5[%c27_170] : memref<162xf32, #tpu.memory_space<smem>>
      %853 = vector.broadcast %852 : f32 to vector<8x168xf32>
      %854 = arith.mulf %853, %843 : vector<8x168xf32>
      %855 = arith.addf %762, %854 : vector<8x168xf32>
      %c28_171 = arith.constant 28 : index
      %856 = memref.load %arg5[%c28_171] : memref<162xf32, #tpu.memory_space<smem>>
      %857 = vector.broadcast %856 : f32 to vector<8x168xf32>
      %858 = arith.mulf %857, %844 : vector<8x168xf32>
      %859 = arith.addf %855, %858 : vector<8x168xf32>
      %c29_172 = arith.constant 29 : index
      %860 = memref.load %arg5[%c29_172] : memref<162xf32, #tpu.memory_space<smem>>
      %861 = vector.broadcast %860 : f32 to vector<8x168xf32>
      %862 = arith.mulf %861, %845 : vector<8x168xf32>
      %863 = arith.addf %859, %862 : vector<8x168xf32>
      %c30_173 = arith.constant 30 : index
      %864 = memref.load %arg5[%c30_173] : memref<162xf32, #tpu.memory_space<smem>>
      %865 = vector.broadcast %864 : f32 to vector<8x168xf32>
      %866 = arith.mulf %865, %846 : vector<8x168xf32>
      %867 = arith.addf %863, %866 : vector<8x168xf32>
      %c31_174 = arith.constant 31 : index
      %868 = memref.load %arg5[%c31_174] : memref<162xf32, #tpu.memory_space<smem>>
      %869 = vector.broadcast %868 : f32 to vector<8x168xf32>
      %870 = arith.mulf %869, %847 : vector<8x168xf32>
      %871 = arith.addf %867, %870 : vector<8x168xf32>
      %c32_175 = arith.constant 32 : index
      %872 = memref.load %arg5[%c32_175] : memref<162xf32, #tpu.memory_space<smem>>
      %873 = vector.broadcast %872 : f32 to vector<8x168xf32>
      %874 = arith.mulf %873, %848 : vector<8x168xf32>
      %875 = arith.addf %871, %874 : vector<8x168xf32>
      %c33_176 = arith.constant 33 : index
      %876 = memref.load %arg5[%c33_176] : memref<162xf32, #tpu.memory_space<smem>>
      %877 = vector.broadcast %876 : f32 to vector<8x168xf32>
      %878 = arith.mulf %877, %849 : vector<8x168xf32>
      %879 = arith.addf %875, %878 : vector<8x168xf32>
      %c34_177 = arith.constant 34 : index
      %880 = memref.load %arg5[%c34_177] : memref<162xf32, #tpu.memory_space<smem>>
      %881 = vector.broadcast %880 : f32 to vector<8x168xf32>
      %882 = arith.mulf %881, %850 : vector<8x168xf32>
      %883 = arith.addf %879, %882 : vector<8x168xf32>
      %c35_178 = arith.constant 35 : index
      %884 = memref.load %arg5[%c35_178] : memref<162xf32, #tpu.memory_space<smem>>
      %885 = vector.broadcast %884 : f32 to vector<8x168xf32>
      %886 = arith.mulf %885, %851 : vector<8x168xf32>
      %887 = arith.addf %883, %886 : vector<8x168xf32>
      %c81 = arith.constant 81 : index
      %888 = memref.load %arg5[%c81] : memref<162xf32, #tpu.memory_space<smem>>
      %889 = vector.broadcast %888 : f32 to vector<8x168xf32>
      %890 = arith.mulf %889, %843 : vector<8x168xf32>
      %891 = arith.addf %798, %890 : vector<8x168xf32>
      %c82 = arith.constant 82 : index
      %892 = memref.load %arg5[%c82] : memref<162xf32, #tpu.memory_space<smem>>
      %893 = vector.broadcast %892 : f32 to vector<8x168xf32>
      %894 = arith.mulf %893, %844 : vector<8x168xf32>
      %895 = arith.addf %891, %894 : vector<8x168xf32>
      %c83 = arith.constant 83 : index
      %896 = memref.load %arg5[%c83] : memref<162xf32, #tpu.memory_space<smem>>
      %897 = vector.broadcast %896 : f32 to vector<8x168xf32>
      %898 = arith.mulf %897, %845 : vector<8x168xf32>
      %899 = arith.addf %895, %898 : vector<8x168xf32>
      %c84 = arith.constant 84 : index
      %900 = memref.load %arg5[%c84] : memref<162xf32, #tpu.memory_space<smem>>
      %901 = vector.broadcast %900 : f32 to vector<8x168xf32>
      %902 = arith.mulf %901, %846 : vector<8x168xf32>
      %903 = arith.addf %899, %902 : vector<8x168xf32>
      %c85 = arith.constant 85 : index
      %904 = memref.load %arg5[%c85] : memref<162xf32, #tpu.memory_space<smem>>
      %905 = vector.broadcast %904 : f32 to vector<8x168xf32>
      %906 = arith.mulf %905, %847 : vector<8x168xf32>
      %907 = arith.addf %903, %906 : vector<8x168xf32>
      %c86 = arith.constant 86 : index
      %908 = memref.load %arg5[%c86] : memref<162xf32, #tpu.memory_space<smem>>
      %909 = vector.broadcast %908 : f32 to vector<8x168xf32>
      %910 = arith.mulf %909, %848 : vector<8x168xf32>
      %911 = arith.addf %907, %910 : vector<8x168xf32>
      %c87 = arith.constant 87 : index
      %912 = memref.load %arg5[%c87] : memref<162xf32, #tpu.memory_space<smem>>
      %913 = vector.broadcast %912 : f32 to vector<8x168xf32>
      %914 = arith.mulf %913, %849 : vector<8x168xf32>
      %915 = arith.addf %911, %914 : vector<8x168xf32>
      %c88 = arith.constant 88 : index
      %916 = memref.load %arg5[%c88] : memref<162xf32, #tpu.memory_space<smem>>
      %917 = vector.broadcast %916 : f32 to vector<8x168xf32>
      %918 = arith.mulf %917, %850 : vector<8x168xf32>
      %919 = arith.addf %915, %918 : vector<8x168xf32>
      %c89 = arith.constant 89 : index
      %920 = memref.load %arg5[%c89] : memref<162xf32, #tpu.memory_space<smem>>
      %921 = vector.broadcast %920 : f32 to vector<8x168xf32>
      %922 = arith.mulf %921, %851 : vector<8x168xf32>
      %923 = arith.addf %919, %922 : vector<8x168xf32>
      %c135 = arith.constant 135 : index
      %924 = memref.load %arg5[%c135] : memref<162xf32, #tpu.memory_space<smem>>
      %925 = vector.broadcast %924 : f32 to vector<8x168xf32>
      %926 = arith.mulf %925, %843 : vector<8x168xf32>
      %927 = arith.addf %834, %926 : vector<8x168xf32>
      %c136 = arith.constant 136 : index
      %928 = memref.load %arg5[%c136] : memref<162xf32, #tpu.memory_space<smem>>
      %929 = vector.broadcast %928 : f32 to vector<8x168xf32>
      %930 = arith.mulf %929, %844 : vector<8x168xf32>
      %931 = arith.addf %927, %930 : vector<8x168xf32>
      %c137 = arith.constant 137 : index
      %932 = memref.load %arg5[%c137] : memref<162xf32, #tpu.memory_space<smem>>
      %933 = vector.broadcast %932 : f32 to vector<8x168xf32>
      %934 = arith.mulf %933, %845 : vector<8x168xf32>
      %935 = arith.addf %931, %934 : vector<8x168xf32>
      %c138 = arith.constant 138 : index
      %936 = memref.load %arg5[%c138] : memref<162xf32, #tpu.memory_space<smem>>
      %937 = vector.broadcast %936 : f32 to vector<8x168xf32>
      %938 = arith.mulf %937, %846 : vector<8x168xf32>
      %939 = arith.addf %935, %938 : vector<8x168xf32>
      %c139 = arith.constant 139 : index
      %940 = memref.load %arg5[%c139] : memref<162xf32, #tpu.memory_space<smem>>
      %941 = vector.broadcast %940 : f32 to vector<8x168xf32>
      %942 = arith.mulf %941, %847 : vector<8x168xf32>
      %943 = arith.addf %939, %942 : vector<8x168xf32>
      %c140 = arith.constant 140 : index
      %944 = memref.load %arg5[%c140] : memref<162xf32, #tpu.memory_space<smem>>
      %945 = vector.broadcast %944 : f32 to vector<8x168xf32>
      %946 = arith.mulf %945, %848 : vector<8x168xf32>
      %947 = arith.addf %943, %946 : vector<8x168xf32>
      %c141 = arith.constant 141 : index
      %948 = memref.load %arg5[%c141] : memref<162xf32, #tpu.memory_space<smem>>
      %949 = vector.broadcast %948 : f32 to vector<8x168xf32>
      %950 = arith.mulf %949, %849 : vector<8x168xf32>
      %951 = arith.addf %947, %950 : vector<8x168xf32>
      %c142 = arith.constant 142 : index
      %952 = memref.load %arg5[%c142] : memref<162xf32, #tpu.memory_space<smem>>
      %953 = vector.broadcast %952 : f32 to vector<8x168xf32>
      %954 = arith.mulf %953, %850 : vector<8x168xf32>
      %955 = arith.addf %951, %954 : vector<8x168xf32>
      %c143 = arith.constant 143 : index
      %956 = memref.load %arg5[%c143] : memref<162xf32, #tpu.memory_space<smem>>
      %957 = vector.broadcast %956 : f32 to vector<8x168xf32>
      %958 = arith.mulf %957, %851 : vector<8x168xf32>
      %959 = arith.addf %955, %958 : vector<8x168xf32>
      %c4_179 = arith.constant 4 : index
      %c0_180 = arith.constant 0 : index
      %c0_181 = arith.constant 0 : index
      %960 = vector.load %arg14[%c4_179, %c0_180, %c0_181] : memref<6x12x168xf32, #tpu.memory_space<vmem>>, vector<1x12x168xf32>
      %961 = vector.shape_cast %960 : vector<1x12x168xf32> to vector<12x168xf32>
      %c1_i32_182 = arith.constant 1 : i32
      %962 = tpu.dynamic_rotate %961 by %c1_i32_182 dim 1 : vector<12x168xf32>, i32 -> vector<12x168xf32>
      %cst_183 = arith.constant 0.000000e+00 : f32
      %963 = vector.broadcast %cst_183 : f32 to vector<12x168xf32>
      %964 = arith.select %36, %962, %963 : vector<12x168xi1>, vector<12x168xf32>
      %c167_i32_184 = arith.constant 167 : i32
      %965 = tpu.dynamic_rotate %961 by %c167_i32_184 dim 1 : vector<12x168xf32>, i32 -> vector<12x168xf32>
      %cst_185 = arith.constant 0.000000e+00 : f32
      %966 = vector.broadcast %cst_185 : f32 to vector<12x168xf32>
      %967 = arith.select %38, %965, %966 : vector<12x168xi1>, vector<12x168xf32>
      %968 = vector.extract_strided_slice %964 {offsets = [0, 0], sizes = [8, 168], strides = [1, 1]} : vector<12x168xf32> to vector<8x168xf32>
      %969 = vector.extract_strided_slice %961 {offsets = [0, 0], sizes = [8, 168], strides = [1, 1]} : vector<12x168xf32> to vector<8x168xf32>
      %970 = vector.extract_strided_slice %967 {offsets = [0, 0], sizes = [8, 168], strides = [1, 1]} : vector<12x168xf32> to vector<8x168xf32>
      %971 = vector.extract_strided_slice %964 {offsets = [2, 0], sizes = [8, 168], strides = [1, 1]} : vector<12x168xf32> to vector<8x168xf32>
      %972 = vector.extract_strided_slice %961 {offsets = [2, 0], sizes = [8, 168], strides = [1, 1]} : vector<12x168xf32> to vector<8x168xf32>
      %973 = vector.extract_strided_slice %967 {offsets = [2, 0], sizes = [8, 168], strides = [1, 1]} : vector<12x168xf32> to vector<8x168xf32>
      %974 = vector.extract_strided_slice %964 {offsets = [4, 0], sizes = [8, 168], strides = [1, 1]} : vector<12x168xf32> to vector<8x168xf32>
      %975 = vector.extract_strided_slice %961 {offsets = [4, 0], sizes = [8, 168], strides = [1, 1]} : vector<12x168xf32> to vector<8x168xf32>
      %976 = vector.extract_strided_slice %967 {offsets = [4, 0], sizes = [8, 168], strides = [1, 1]} : vector<12x168xf32> to vector<8x168xf32>
      %c36_186 = arith.constant 36 : index
      %977 = memref.load %arg5[%c36_186] : memref<162xf32, #tpu.memory_space<smem>>
      %978 = vector.broadcast %977 : f32 to vector<8x168xf32>
      %979 = arith.mulf %978, %968 : vector<8x168xf32>
      %980 = arith.addf %887, %979 : vector<8x168xf32>
      %c37_187 = arith.constant 37 : index
      %981 = memref.load %arg5[%c37_187] : memref<162xf32, #tpu.memory_space<smem>>
      %982 = vector.broadcast %981 : f32 to vector<8x168xf32>
      %983 = arith.mulf %982, %969 : vector<8x168xf32>
      %984 = arith.addf %980, %983 : vector<8x168xf32>
      %c38_188 = arith.constant 38 : index
      %985 = memref.load %arg5[%c38_188] : memref<162xf32, #tpu.memory_space<smem>>
      %986 = vector.broadcast %985 : f32 to vector<8x168xf32>
      %987 = arith.mulf %986, %970 : vector<8x168xf32>
      %988 = arith.addf %984, %987 : vector<8x168xf32>
      %c39_189 = arith.constant 39 : index
      %989 = memref.load %arg5[%c39_189] : memref<162xf32, #tpu.memory_space<smem>>
      %990 = vector.broadcast %989 : f32 to vector<8x168xf32>
      %991 = arith.mulf %990, %971 : vector<8x168xf32>
      %992 = arith.addf %988, %991 : vector<8x168xf32>
      %c40_190 = arith.constant 40 : index
      %993 = memref.load %arg5[%c40_190] : memref<162xf32, #tpu.memory_space<smem>>
      %994 = vector.broadcast %993 : f32 to vector<8x168xf32>
      %995 = arith.mulf %994, %972 : vector<8x168xf32>
      %996 = arith.addf %992, %995 : vector<8x168xf32>
      %c41_191 = arith.constant 41 : index
      %997 = memref.load %arg5[%c41_191] : memref<162xf32, #tpu.memory_space<smem>>
      %998 = vector.broadcast %997 : f32 to vector<8x168xf32>
      %999 = arith.mulf %998, %973 : vector<8x168xf32>
      %1000 = arith.addf %996, %999 : vector<8x168xf32>
      %c42_192 = arith.constant 42 : index
      %1001 = memref.load %arg5[%c42_192] : memref<162xf32, #tpu.memory_space<smem>>
      %1002 = vector.broadcast %1001 : f32 to vector<8x168xf32>
      %1003 = arith.mulf %1002, %974 : vector<8x168xf32>
      %1004 = arith.addf %1000, %1003 : vector<8x168xf32>
      %c43_193 = arith.constant 43 : index
      %1005 = memref.load %arg5[%c43_193] : memref<162xf32, #tpu.memory_space<smem>>
      %1006 = vector.broadcast %1005 : f32 to vector<8x168xf32>
      %1007 = arith.mulf %1006, %975 : vector<8x168xf32>
      %1008 = arith.addf %1004, %1007 : vector<8x168xf32>
      %c44_194 = arith.constant 44 : index
      %1009 = memref.load %arg5[%c44_194] : memref<162xf32, #tpu.memory_space<smem>>
      %1010 = vector.broadcast %1009 : f32 to vector<8x168xf32>
      %1011 = arith.mulf %1010, %976 : vector<8x168xf32>
      %1012 = arith.addf %1008, %1011 : vector<8x168xf32>
      %c90 = arith.constant 90 : index
      %1013 = memref.load %arg5[%c90] : memref<162xf32, #tpu.memory_space<smem>>
      %1014 = vector.broadcast %1013 : f32 to vector<8x168xf32>
      %1015 = arith.mulf %1014, %968 : vector<8x168xf32>
      %1016 = arith.addf %923, %1015 : vector<8x168xf32>
      %c91 = arith.constant 91 : index
      %1017 = memref.load %arg5[%c91] : memref<162xf32, #tpu.memory_space<smem>>
      %1018 = vector.broadcast %1017 : f32 to vector<8x168xf32>
      %1019 = arith.mulf %1018, %969 : vector<8x168xf32>
      %1020 = arith.addf %1016, %1019 : vector<8x168xf32>
      %c92 = arith.constant 92 : index
      %1021 = memref.load %arg5[%c92] : memref<162xf32, #tpu.memory_space<smem>>
      %1022 = vector.broadcast %1021 : f32 to vector<8x168xf32>
      %1023 = arith.mulf %1022, %970 : vector<8x168xf32>
      %1024 = arith.addf %1020, %1023 : vector<8x168xf32>
      %c93 = arith.constant 93 : index
      %1025 = memref.load %arg5[%c93] : memref<162xf32, #tpu.memory_space<smem>>
      %1026 = vector.broadcast %1025 : f32 to vector<8x168xf32>
      %1027 = arith.mulf %1026, %971 : vector<8x168xf32>
      %1028 = arith.addf %1024, %1027 : vector<8x168xf32>
      %c94 = arith.constant 94 : index
      %1029 = memref.load %arg5[%c94] : memref<162xf32, #tpu.memory_space<smem>>
      %1030 = vector.broadcast %1029 : f32 to vector<8x168xf32>
      %1031 = arith.mulf %1030, %972 : vector<8x168xf32>
      %1032 = arith.addf %1028, %1031 : vector<8x168xf32>
      %c95 = arith.constant 95 : index
      %1033 = memref.load %arg5[%c95] : memref<162xf32, #tpu.memory_space<smem>>
      %1034 = vector.broadcast %1033 : f32 to vector<8x168xf32>
      %1035 = arith.mulf %1034, %973 : vector<8x168xf32>
      %1036 = arith.addf %1032, %1035 : vector<8x168xf32>
      %c96 = arith.constant 96 : index
      %1037 = memref.load %arg5[%c96] : memref<162xf32, #tpu.memory_space<smem>>
      %1038 = vector.broadcast %1037 : f32 to vector<8x168xf32>
      %1039 = arith.mulf %1038, %974 : vector<8x168xf32>
      %1040 = arith.addf %1036, %1039 : vector<8x168xf32>
      %c97 = arith.constant 97 : index
      %1041 = memref.load %arg5[%c97] : memref<162xf32, #tpu.memory_space<smem>>
      %1042 = vector.broadcast %1041 : f32 to vector<8x168xf32>
      %1043 = arith.mulf %1042, %975 : vector<8x168xf32>
      %1044 = arith.addf %1040, %1043 : vector<8x168xf32>
      %c98 = arith.constant 98 : index
      %1045 = memref.load %arg5[%c98] : memref<162xf32, #tpu.memory_space<smem>>
      %1046 = vector.broadcast %1045 : f32 to vector<8x168xf32>
      %1047 = arith.mulf %1046, %976 : vector<8x168xf32>
      %1048 = arith.addf %1044, %1047 : vector<8x168xf32>
      %c144 = arith.constant 144 : index
      %1049 = memref.load %arg5[%c144] : memref<162xf32, #tpu.memory_space<smem>>
      %1050 = vector.broadcast %1049 : f32 to vector<8x168xf32>
      %1051 = arith.mulf %1050, %968 : vector<8x168xf32>
      %1052 = arith.addf %959, %1051 : vector<8x168xf32>
      %c145 = arith.constant 145 : index
      %1053 = memref.load %arg5[%c145] : memref<162xf32, #tpu.memory_space<smem>>
      %1054 = vector.broadcast %1053 : f32 to vector<8x168xf32>
      %1055 = arith.mulf %1054, %969 : vector<8x168xf32>
      %1056 = arith.addf %1052, %1055 : vector<8x168xf32>
      %c146 = arith.constant 146 : index
      %1057 = memref.load %arg5[%c146] : memref<162xf32, #tpu.memory_space<smem>>
      %1058 = vector.broadcast %1057 : f32 to vector<8x168xf32>
      %1059 = arith.mulf %1058, %970 : vector<8x168xf32>
      %1060 = arith.addf %1056, %1059 : vector<8x168xf32>
      %c147 = arith.constant 147 : index
      %1061 = memref.load %arg5[%c147] : memref<162xf32, #tpu.memory_space<smem>>
      %1062 = vector.broadcast %1061 : f32 to vector<8x168xf32>
      %1063 = arith.mulf %1062, %971 : vector<8x168xf32>
      %1064 = arith.addf %1060, %1063 : vector<8x168xf32>
      %c148 = arith.constant 148 : index
      %1065 = memref.load %arg5[%c148] : memref<162xf32, #tpu.memory_space<smem>>
      %1066 = vector.broadcast %1065 : f32 to vector<8x168xf32>
      %1067 = arith.mulf %1066, %972 : vector<8x168xf32>
      %1068 = arith.addf %1064, %1067 : vector<8x168xf32>
      %c149 = arith.constant 149 : index
      %1069 = memref.load %arg5[%c149] : memref<162xf32, #tpu.memory_space<smem>>
      %1070 = vector.broadcast %1069 : f32 to vector<8x168xf32>
      %1071 = arith.mulf %1070, %973 : vector<8x168xf32>
      %1072 = arith.addf %1068, %1071 : vector<8x168xf32>
      %c150 = arith.constant 150 : index
      %1073 = memref.load %arg5[%c150] : memref<162xf32, #tpu.memory_space<smem>>
      %1074 = vector.broadcast %1073 : f32 to vector<8x168xf32>
      %1075 = arith.mulf %1074, %974 : vector<8x168xf32>
      %1076 = arith.addf %1072, %1075 : vector<8x168xf32>
      %c151 = arith.constant 151 : index
      %1077 = memref.load %arg5[%c151] : memref<162xf32, #tpu.memory_space<smem>>
      %1078 = vector.broadcast %1077 : f32 to vector<8x168xf32>
      %1079 = arith.mulf %1078, %975 : vector<8x168xf32>
      %1080 = arith.addf %1076, %1079 : vector<8x168xf32>
      %c152 = arith.constant 152 : index
      %1081 = memref.load %arg5[%c152] : memref<162xf32, #tpu.memory_space<smem>>
      %1082 = vector.broadcast %1081 : f32 to vector<8x168xf32>
      %1083 = arith.mulf %1082, %976 : vector<8x168xf32>
      %1084 = arith.addf %1080, %1083 : vector<8x168xf32>
      %c5_195 = arith.constant 5 : index
      %c0_196 = arith.constant 0 : index
      %c0_197 = arith.constant 0 : index
      %1085 = vector.load %arg14[%c5_195, %c0_196, %c0_197] : memref<6x12x168xf32, #tpu.memory_space<vmem>>, vector<1x12x168xf32>
      %1086 = vector.shape_cast %1085 : vector<1x12x168xf32> to vector<12x168xf32>
      %c1_i32_198 = arith.constant 1 : i32
      %1087 = tpu.dynamic_rotate %1086 by %c1_i32_198 dim 1 : vector<12x168xf32>, i32 -> vector<12x168xf32>
      %cst_199 = arith.constant 0.000000e+00 : f32
      %1088 = vector.broadcast %cst_199 : f32 to vector<12x168xf32>
      %1089 = arith.select %36, %1087, %1088 : vector<12x168xi1>, vector<12x168xf32>
      %c167_i32_200 = arith.constant 167 : i32
      %1090 = tpu.dynamic_rotate %1086 by %c167_i32_200 dim 1 : vector<12x168xf32>, i32 -> vector<12x168xf32>
      %cst_201 = arith.constant 0.000000e+00 : f32
      %1091 = vector.broadcast %cst_201 : f32 to vector<12x168xf32>
      %1092 = arith.select %38, %1090, %1091 : vector<12x168xi1>, vector<12x168xf32>
      %1093 = vector.extract_strided_slice %1089 {offsets = [0, 0], sizes = [8, 168], strides = [1, 1]} : vector<12x168xf32> to vector<8x168xf32>
      %1094 = vector.extract_strided_slice %1086 {offsets = [0, 0], sizes = [8, 168], strides = [1, 1]} : vector<12x168xf32> to vector<8x168xf32>
      %1095 = vector.extract_strided_slice %1092 {offsets = [0, 0], sizes = [8, 168], strides = [1, 1]} : vector<12x168xf32> to vector<8x168xf32>
      %1096 = vector.extract_strided_slice %1089 {offsets = [2, 0], sizes = [8, 168], strides = [1, 1]} : vector<12x168xf32> to vector<8x168xf32>
      %1097 = vector.extract_strided_slice %1086 {offsets = [2, 0], sizes = [8, 168], strides = [1, 1]} : vector<12x168xf32> to vector<8x168xf32>
      %1098 = vector.extract_strided_slice %1092 {offsets = [2, 0], sizes = [8, 168], strides = [1, 1]} : vector<12x168xf32> to vector<8x168xf32>
      %1099 = vector.extract_strided_slice %1089 {offsets = [4, 0], sizes = [8, 168], strides = [1, 1]} : vector<12x168xf32> to vector<8x168xf32>
      %1100 = vector.extract_strided_slice %1086 {offsets = [4, 0], sizes = [8, 168], strides = [1, 1]} : vector<12x168xf32> to vector<8x168xf32>
      %1101 = vector.extract_strided_slice %1092 {offsets = [4, 0], sizes = [8, 168], strides = [1, 1]} : vector<12x168xf32> to vector<8x168xf32>
      %c45_202 = arith.constant 45 : index
      %1102 = memref.load %arg5[%c45_202] : memref<162xf32, #tpu.memory_space<smem>>
      %1103 = vector.broadcast %1102 : f32 to vector<8x168xf32>
      %1104 = arith.mulf %1103, %1093 : vector<8x168xf32>
      %1105 = arith.addf %1012, %1104 : vector<8x168xf32>
      %c46_203 = arith.constant 46 : index
      %1106 = memref.load %arg5[%c46_203] : memref<162xf32, #tpu.memory_space<smem>>
      %1107 = vector.broadcast %1106 : f32 to vector<8x168xf32>
      %1108 = arith.mulf %1107, %1094 : vector<8x168xf32>
      %1109 = arith.addf %1105, %1108 : vector<8x168xf32>
      %c47_204 = arith.constant 47 : index
      %1110 = memref.load %arg5[%c47_204] : memref<162xf32, #tpu.memory_space<smem>>
      %1111 = vector.broadcast %1110 : f32 to vector<8x168xf32>
      %1112 = arith.mulf %1111, %1095 : vector<8x168xf32>
      %1113 = arith.addf %1109, %1112 : vector<8x168xf32>
      %c48_205 = arith.constant 48 : index
      %1114 = memref.load %arg5[%c48_205] : memref<162xf32, #tpu.memory_space<smem>>
      %1115 = vector.broadcast %1114 : f32 to vector<8x168xf32>
      %1116 = arith.mulf %1115, %1096 : vector<8x168xf32>
      %1117 = arith.addf %1113, %1116 : vector<8x168xf32>
      %c49_206 = arith.constant 49 : index
      %1118 = memref.load %arg5[%c49_206] : memref<162xf32, #tpu.memory_space<smem>>
      %1119 = vector.broadcast %1118 : f32 to vector<8x168xf32>
      %1120 = arith.mulf %1119, %1097 : vector<8x168xf32>
      %1121 = arith.addf %1117, %1120 : vector<8x168xf32>
      %c50_207 = arith.constant 50 : index
      %1122 = memref.load %arg5[%c50_207] : memref<162xf32, #tpu.memory_space<smem>>
      %1123 = vector.broadcast %1122 : f32 to vector<8x168xf32>
      %1124 = arith.mulf %1123, %1098 : vector<8x168xf32>
      %1125 = arith.addf %1121, %1124 : vector<8x168xf32>
      %c51_208 = arith.constant 51 : index
      %1126 = memref.load %arg5[%c51_208] : memref<162xf32, #tpu.memory_space<smem>>
      %1127 = vector.broadcast %1126 : f32 to vector<8x168xf32>
      %1128 = arith.mulf %1127, %1099 : vector<8x168xf32>
      %1129 = arith.addf %1125, %1128 : vector<8x168xf32>
      %c52_209 = arith.constant 52 : index
      %1130 = memref.load %arg5[%c52_209] : memref<162xf32, #tpu.memory_space<smem>>
      %1131 = vector.broadcast %1130 : f32 to vector<8x168xf32>
      %1132 = arith.mulf %1131, %1100 : vector<8x168xf32>
      %1133 = arith.addf %1129, %1132 : vector<8x168xf32>
      %c53_210 = arith.constant 53 : index
      %1134 = memref.load %arg5[%c53_210] : memref<162xf32, #tpu.memory_space<smem>>
      %1135 = vector.broadcast %1134 : f32 to vector<8x168xf32>
      %1136 = arith.mulf %1135, %1101 : vector<8x168xf32>
      %1137 = arith.addf %1133, %1136 : vector<8x168xf32>
      %c99 = arith.constant 99 : index
      %1138 = memref.load %arg5[%c99] : memref<162xf32, #tpu.memory_space<smem>>
      %1139 = vector.broadcast %1138 : f32 to vector<8x168xf32>
      %1140 = arith.mulf %1139, %1093 : vector<8x168xf32>
      %1141 = arith.addf %1048, %1140 : vector<8x168xf32>
      %c100 = arith.constant 100 : index
      %1142 = memref.load %arg5[%c100] : memref<162xf32, #tpu.memory_space<smem>>
      %1143 = vector.broadcast %1142 : f32 to vector<8x168xf32>
      %1144 = arith.mulf %1143, %1094 : vector<8x168xf32>
      %1145 = arith.addf %1141, %1144 : vector<8x168xf32>
      %c101 = arith.constant 101 : index
      %1146 = memref.load %arg5[%c101] : memref<162xf32, #tpu.memory_space<smem>>
      %1147 = vector.broadcast %1146 : f32 to vector<8x168xf32>
      %1148 = arith.mulf %1147, %1095 : vector<8x168xf32>
      %1149 = arith.addf %1145, %1148 : vector<8x168xf32>
      %c102 = arith.constant 102 : index
      %1150 = memref.load %arg5[%c102] : memref<162xf32, #tpu.memory_space<smem>>
      %1151 = vector.broadcast %1150 : f32 to vector<8x168xf32>
      %1152 = arith.mulf %1151, %1096 : vector<8x168xf32>
      %1153 = arith.addf %1149, %1152 : vector<8x168xf32>
      %c103 = arith.constant 103 : index
      %1154 = memref.load %arg5[%c103] : memref<162xf32, #tpu.memory_space<smem>>
      %1155 = vector.broadcast %1154 : f32 to vector<8x168xf32>
      %1156 = arith.mulf %1155, %1097 : vector<8x168xf32>
      %1157 = arith.addf %1153, %1156 : vector<8x168xf32>
      %c104 = arith.constant 104 : index
      %1158 = memref.load %arg5[%c104] : memref<162xf32, #tpu.memory_space<smem>>
      %1159 = vector.broadcast %1158 : f32 to vector<8x168xf32>
      %1160 = arith.mulf %1159, %1098 : vector<8x168xf32>
      %1161 = arith.addf %1157, %1160 : vector<8x168xf32>
      %c105 = arith.constant 105 : index
      %1162 = memref.load %arg5[%c105] : memref<162xf32, #tpu.memory_space<smem>>
      %1163 = vector.broadcast %1162 : f32 to vector<8x168xf32>
      %1164 = arith.mulf %1163, %1099 : vector<8x168xf32>
      %1165 = arith.addf %1161, %1164 : vector<8x168xf32>
      %c106 = arith.constant 106 : index
      %1166 = memref.load %arg5[%c106] : memref<162xf32, #tpu.memory_space<smem>>
      %1167 = vector.broadcast %1166 : f32 to vector<8x168xf32>
      %1168 = arith.mulf %1167, %1100 : vector<8x168xf32>
      %1169 = arith.addf %1165, %1168 : vector<8x168xf32>
      %c107 = arith.constant 107 : index
      %1170 = memref.load %arg5[%c107] : memref<162xf32, #tpu.memory_space<smem>>
      %1171 = vector.broadcast %1170 : f32 to vector<8x168xf32>
      %1172 = arith.mulf %1171, %1101 : vector<8x168xf32>
      %1173 = arith.addf %1169, %1172 : vector<8x168xf32>
      %c153 = arith.constant 153 : index
      %1174 = memref.load %arg5[%c153] : memref<162xf32, #tpu.memory_space<smem>>
      %1175 = vector.broadcast %1174 : f32 to vector<8x168xf32>
      %1176 = arith.mulf %1175, %1093 : vector<8x168xf32>
      %1177 = arith.addf %1084, %1176 : vector<8x168xf32>
      %c154 = arith.constant 154 : index
      %1178 = memref.load %arg5[%c154] : memref<162xf32, #tpu.memory_space<smem>>
      %1179 = vector.broadcast %1178 : f32 to vector<8x168xf32>
      %1180 = arith.mulf %1179, %1094 : vector<8x168xf32>
      %1181 = arith.addf %1177, %1180 : vector<8x168xf32>
      %c155 = arith.constant 155 : index
      %1182 = memref.load %arg5[%c155] : memref<162xf32, #tpu.memory_space<smem>>
      %1183 = vector.broadcast %1182 : f32 to vector<8x168xf32>
      %1184 = arith.mulf %1183, %1095 : vector<8x168xf32>
      %1185 = arith.addf %1181, %1184 : vector<8x168xf32>
      %c156 = arith.constant 156 : index
      %1186 = memref.load %arg5[%c156] : memref<162xf32, #tpu.memory_space<smem>>
      %1187 = vector.broadcast %1186 : f32 to vector<8x168xf32>
      %1188 = arith.mulf %1187, %1096 : vector<8x168xf32>
      %1189 = arith.addf %1185, %1188 : vector<8x168xf32>
      %c157 = arith.constant 157 : index
      %1190 = memref.load %arg5[%c157] : memref<162xf32, #tpu.memory_space<smem>>
      %1191 = vector.broadcast %1190 : f32 to vector<8x168xf32>
      %1192 = arith.mulf %1191, %1097 : vector<8x168xf32>
      %1193 = arith.addf %1189, %1192 : vector<8x168xf32>
      %c158 = arith.constant 158 : index
      %1194 = memref.load %arg5[%c158] : memref<162xf32, #tpu.memory_space<smem>>
      %1195 = vector.broadcast %1194 : f32 to vector<8x168xf32>
      %1196 = arith.mulf %1195, %1098 : vector<8x168xf32>
      %1197 = arith.addf %1193, %1196 : vector<8x168xf32>
      %c159 = arith.constant 159 : index
      %1198 = memref.load %arg5[%c159] : memref<162xf32, #tpu.memory_space<smem>>
      %1199 = vector.broadcast %1198 : f32 to vector<8x168xf32>
      %1200 = arith.mulf %1199, %1099 : vector<8x168xf32>
      %1201 = arith.addf %1197, %1200 : vector<8x168xf32>
      %c160 = arith.constant 160 : index
      %1202 = memref.load %arg5[%c160] : memref<162xf32, #tpu.memory_space<smem>>
      %1203 = vector.broadcast %1202 : f32 to vector<8x168xf32>
      %1204 = arith.mulf %1203, %1100 : vector<8x168xf32>
      %1205 = arith.addf %1201, %1204 : vector<8x168xf32>
      %c161 = arith.constant 161 : index
      %1206 = memref.load %arg5[%c161] : memref<162xf32, #tpu.memory_space<smem>>
      %1207 = vector.broadcast %1206 : f32 to vector<8x168xf32>
      %1208 = arith.mulf %1207, %1101 : vector<8x168xf32>
      %1209 = arith.addf %1205, %1208 : vector<8x168xf32>
      %c0_211 = arith.constant 0 : index
      %1210 = memref.load %arg6[%c0_211] : memref<3xf32, #tpu.memory_space<smem>>
      %c0_212 = arith.constant 0 : index
      %1211 = memref.load %arg7[%c0_212] : memref<3xf32, #tpu.memory_space<smem>>
      %1212 = vector.shape_cast %1137 : vector<8x168xf32> to vector<1x8x168xf32>
      %cst_213 = arith.constant dense<0.000000e+00> : vector<1xf32>
      %1213 = vector.multi_reduction <add>, %1212, %cst_213 [1, 2] : vector<1x8x168xf32> to vector<1xf32>
      %1214 = vector.shape_cast %1213 : vector<1xf32> to vector<1x1x1xf32>
      %1215 = vector.extract %1214[0, 0, 0] : f32 from vector<1x1x1xf32>
      %1216 = arith.mulf %1137, %1137 : vector<8x168xf32>
      %1217 = vector.shape_cast %1216 : vector<8x168xf32> to vector<1x8x168xf32>
      %cst_214 = arith.constant dense<0.000000e+00> : vector<1xf32>
      %1218 = vector.multi_reduction <add>, %1217, %cst_214 [1, 2] : vector<1x8x168xf32> to vector<1xf32>
      %1219 = vector.shape_cast %1218 : vector<1xf32> to vector<1x1x1xf32>
      %1220 = vector.extract %1219[0, 0, 0] : f32 from vector<1x1x1xf32>
      %cst_215 = arith.constant 7.44047633E-4 : f32
      %1221 = arith.mulf %1215, %cst_215 : f32
      %cst_216 = arith.constant 7.44047633E-4 : f32
      %1222 = arith.mulf %1220, %cst_216 : f32
      %1223 = arith.mulf %1221, %1221 : f32
      %1224 = arith.subf %1222, %1223 : f32
      %1225 = vector.broadcast %1221 : f32 to vector<8x168xf32>
      %1226 = arith.subf %1137, %1225 : vector<8x168xf32>
      %cst_217 = arith.constant 9.99999974E-6 : f32
      %1227 = arith.addf %1224, %cst_217 : f32
      %1228 = math.rsqrt %1227 : f32
      %1229 = vector.broadcast %1228 : f32 to vector<8x168xf32>
      %1230 = arith.mulf %1226, %1229 : vector<8x168xf32>
      %1231 = vector.broadcast %1210 : f32 to vector<8x168xf32>
      %1232 = arith.mulf %1230, %1231 : vector<8x168xf32>
      %1233 = vector.broadcast %1211 : f32 to vector<8x168xf32>
      %1234 = arith.addf %1232, %1233 : vector<8x168xf32>
      %cst_218 = arith.constant 0.000000e+00 : f32
      %1235 = vector.broadcast %cst_218 : f32 to vector<8x168xf32>
      %1236 = arith.maximumf %1234, %1235 : vector<8x168xf32>
      %1237 = vector.extract_strided_slice %1236 {offsets = [0, 0], sizes = [2, 168], strides = [1, 1]} : vector<8x168xf32> to vector<2x168xf32>
      %c0_219 = arith.constant 0 : index
      %c0_220 = arith.constant 0 : index
      %1238 = vector.load %arg15[%c0_219, %c0_220] : memref<8x2048xf32, #tpu.memory_space<vmem>>, vector<2x168xf32>
      tpu.vector_store %arg15[%c0_219, %c0_220], %1237 {strides = array<i32>} : memref<8x2048xf32, #tpu.memory_space<vmem>>, vector<2x168xf32>,
      %1239 = vector.extract_strided_slice %1236 {offsets = [2, 0], sizes = [2, 168], strides = [1, 1]} : vector<8x168xf32> to vector<2x168xf32>
      %c0_221 = arith.constant 0 : index
      %c168 = arith.constant 168 : index
      %1240 = vector.load %arg15[%c0_221, %c168] : memref<8x2048xf32, #tpu.memory_space<vmem>>, vector<2x168xf32>
      tpu.vector_store %arg15[%c0_221, %c168], %1239 {strides = array<i32>} : memref<8x2048xf32, #tpu.memory_space<vmem>>, vector<2x168xf32>,
      %1241 = vector.extract_strided_slice %1236 {offsets = [4, 0], sizes = [2, 168], strides = [1, 1]} : vector<8x168xf32> to vector<2x168xf32>
      %c0_222 = arith.constant 0 : index
      %c336 = arith.constant 336 : index
      %1242 = vector.load %arg15[%c0_222, %c336] : memref<8x2048xf32, #tpu.memory_space<vmem>>, vector<2x168xf32>
      tpu.vector_store %arg15[%c0_222, %c336], %1241 {strides = array<i32>} : memref<8x2048xf32, #tpu.memory_space<vmem>>, vector<2x168xf32>,
      %1243 = vector.extract_strided_slice %1236 {offsets = [6, 0], sizes = [2, 168], strides = [1, 1]} : vector<8x168xf32> to vector<2x168xf32>
      %c0_223 = arith.constant 0 : index
      %c504 = arith.constant 504 : index
      %1244 = vector.load %arg15[%c0_223, %c504] : memref<8x2048xf32, #tpu.memory_space<vmem>>, vector<2x168xf32>
      tpu.vector_store %arg15[%c0_223, %c504], %1243 {strides = array<i32>} : memref<8x2048xf32, #tpu.memory_space<vmem>>, vector<2x168xf32>,
      %c1_224 = arith.constant 1 : index
      %1245 = memref.load %arg6[%c1_224] : memref<3xf32, #tpu.memory_space<smem>>
      %c1_225 = arith.constant 1 : index
      %1246 = memref.load %arg7[%c1_225] : memref<3xf32, #tpu.memory_space<smem>>
      %1247 = vector.shape_cast %1173 : vector<8x168xf32> to vector<1x8x168xf32>
      %cst_226 = arith.constant dense<0.000000e+00> : vector<1xf32>
      %1248 = vector.multi_reduction <add>, %1247, %cst_226 [1, 2] : vector<1x8x168xf32> to vector<1xf32>
      %1249 = vector.shape_cast %1248 : vector<1xf32> to vector<1x1x1xf32>
      %1250 = vector.extract %1249[0, 0, 0] : f32 from vector<1x1x1xf32>
      %1251 = arith.mulf %1173, %1173 : vector<8x168xf32>
      %1252 = vector.shape_cast %1251 : vector<8x168xf32> to vector<1x8x168xf32>
      %cst_227 = arith.constant dense<0.000000e+00> : vector<1xf32>
      %1253 = vector.multi_reduction <add>, %1252, %cst_227 [1, 2] : vector<1x8x168xf32> to vector<1xf32>
      %1254 = vector.shape_cast %1253 : vector<1xf32> to vector<1x1x1xf32>
      %1255 = vector.extract %1254[0, 0, 0] : f32 from vector<1x1x1xf32>
      %cst_228 = arith.constant 7.44047633E-4 : f32
      %1256 = arith.mulf %1250, %cst_228 : f32
      %cst_229 = arith.constant 7.44047633E-4 : f32
      %1257 = arith.mulf %1255, %cst_229 : f32
      %1258 = arith.mulf %1256, %1256 : f32
      %1259 = arith.subf %1257, %1258 : f32
      %1260 = vector.broadcast %1256 : f32 to vector<8x168xf32>
      %1261 = arith.subf %1173, %1260 : vector<8x168xf32>
      %cst_230 = arith.constant 9.99999974E-6 : f32
      %1262 = arith.addf %1259, %cst_230 : f32
      %1263 = math.rsqrt %1262 : f32
      %1264 = vector.broadcast %1263 : f32 to vector<8x168xf32>
      %1265 = arith.mulf %1261, %1264 : vector<8x168xf32>
      %1266 = vector.broadcast %1245 : f32 to vector<8x168xf32>
      %1267 = arith.mulf %1265, %1266 : vector<8x168xf32>
      %1268 = vector.broadcast %1246 : f32 to vector<8x168xf32>
      %1269 = arith.addf %1267, %1268 : vector<8x168xf32>
      %cst_231 = arith.constant 0.000000e+00 : f32
      %1270 = vector.broadcast %cst_231 : f32 to vector<8x168xf32>
      %1271 = arith.maximumf %1269, %1270 : vector<8x168xf32>
      %1272 = vector.extract_strided_slice %1271 {offsets = [0, 0], sizes = [2, 168], strides = [1, 1]} : vector<8x168xf32> to vector<2x168xf32>
      %c0_232 = arith.constant 0 : index
      %c672 = arith.constant 672 : index
      %1273 = vector.load %arg15[%c0_232, %c672] : memref<8x2048xf32, #tpu.memory_space<vmem>>, vector<2x168xf32>
      tpu.vector_store %arg15[%c0_232, %c672], %1272 {strides = array<i32>} : memref<8x2048xf32, #tpu.memory_space<vmem>>, vector<2x168xf32>,
      %1274 = vector.extract_strided_slice %1271 {offsets = [2, 0], sizes = [2, 168], strides = [1, 1]} : vector<8x168xf32> to vector<2x168xf32>
      %c0_233 = arith.constant 0 : index
      %c840 = arith.constant 840 : index
      %1275 = vector.load %arg15[%c0_233, %c840] : memref<8x2048xf32, #tpu.memory_space<vmem>>, vector<2x168xf32>
      tpu.vector_store %arg15[%c0_233, %c840], %1274 {strides = array<i32>} : memref<8x2048xf32, #tpu.memory_space<vmem>>, vector<2x168xf32>,
      %1276 = vector.extract_strided_slice %1271 {offsets = [4, 0], sizes = [2, 168], strides = [1, 1]} : vector<8x168xf32> to vector<2x168xf32>
      %c0_234 = arith.constant 0 : index
      %c1008 = arith.constant 1008 : index
      %1277 = vector.load %arg15[%c0_234, %c1008] : memref<8x2048xf32, #tpu.memory_space<vmem>>, vector<2x168xf32>
      tpu.vector_store %arg15[%c0_234, %c1008], %1276 {strides = array<i32>} : memref<8x2048xf32, #tpu.memory_space<vmem>>, vector<2x168xf32>,
      %1278 = vector.extract_strided_slice %1271 {offsets = [6, 0], sizes = [2, 168], strides = [1, 1]} : vector<8x168xf32> to vector<2x168xf32>
      %c0_235 = arith.constant 0 : index
      %c1176 = arith.constant 1176 : index
      %1279 = vector.load %arg15[%c0_235, %c1176] : memref<8x2048xf32, #tpu.memory_space<vmem>>, vector<2x168xf32>
      tpu.vector_store %arg15[%c0_235, %c1176], %1278 {strides = array<i32>} : memref<8x2048xf32, #tpu.memory_space<vmem>>, vector<2x168xf32>,
      %c2_236 = arith.constant 2 : index
      %1280 = memref.load %arg6[%c2_236] : memref<3xf32, #tpu.memory_space<smem>>
      %c2_237 = arith.constant 2 : index
      %1281 = memref.load %arg7[%c2_237] : memref<3xf32, #tpu.memory_space<smem>>
      %1282 = vector.shape_cast %1209 : vector<8x168xf32> to vector<1x8x168xf32>
      %cst_238 = arith.constant dense<0.000000e+00> : vector<1xf32>
      %1283 = vector.multi_reduction <add>, %1282, %cst_238 [1, 2] : vector<1x8x168xf32> to vector<1xf32>
      %1284 = vector.shape_cast %1283 : vector<1xf32> to vector<1x1x1xf32>
      %1285 = vector.extract %1284[0, 0, 0] : f32 from vector<1x1x1xf32>
      %1286 = arith.mulf %1209, %1209 : vector<8x168xf32>
      %1287 = vector.shape_cast %1286 : vector<8x168xf32> to vector<1x8x168xf32>
      %cst_239 = arith.constant dense<0.000000e+00> : vector<1xf32>
      %1288 = vector.multi_reduction <add>, %1287, %cst_239 [1, 2] : vector<1x8x168xf32> to vector<1xf32>
      %1289 = vector.shape_cast %1288 : vector<1xf32> to vector<1x1x1xf32>
      %1290 = vector.extract %1289[0, 0, 0] : f32 from vector<1x1x1xf32>
      %cst_240 = arith.constant 7.44047633E-4 : f32
      %1291 = arith.mulf %1285, %cst_240 : f32
      %cst_241 = arith.constant 7.44047633E-4 : f32
      %1292 = arith.mulf %1290, %cst_241 : f32
      %1293 = arith.mulf %1291, %1291 : f32
      %1294 = arith.subf %1292, %1293 : f32
      %1295 = vector.broadcast %1291 : f32 to vector<8x168xf32>
      %1296 = arith.subf %1209, %1295 : vector<8x168xf32>
      %cst_242 = arith.constant 9.99999974E-6 : f32
      %1297 = arith.addf %1294, %cst_242 : f32
      %1298 = math.rsqrt %1297 : f32
      %1299 = vector.broadcast %1298 : f32 to vector<8x168xf32>
      %1300 = arith.mulf %1296, %1299 : vector<8x168xf32>
      %1301 = vector.broadcast %1280 : f32 to vector<8x168xf32>
      %1302 = arith.mulf %1300, %1301 : vector<8x168xf32>
      %1303 = vector.broadcast %1281 : f32 to vector<8x168xf32>
      %1304 = arith.addf %1302, %1303 : vector<8x168xf32>
      %cst_243 = arith.constant 0.000000e+00 : f32
      %1305 = vector.broadcast %cst_243 : f32 to vector<8x168xf32>
      %1306 = arith.maximumf %1304, %1305 : vector<8x168xf32>
      %1307 = vector.extract_strided_slice %1306 {offsets = [0, 0], sizes = [2, 168], strides = [1, 1]} : vector<8x168xf32> to vector<2x168xf32>
      %c0_244 = arith.constant 0 : index
      %c1344 = arith.constant 1344 : index
      %1308 = vector.load %arg15[%c0_244, %c1344] : memref<8x2048xf32, #tpu.memory_space<vmem>>, vector<2x168xf32>
      tpu.vector_store %arg15[%c0_244, %c1344], %1307 {strides = array<i32>} : memref<8x2048xf32, #tpu.memory_space<vmem>>, vector<2x168xf32>,
      %1309 = vector.extract_strided_slice %1306 {offsets = [2, 0], sizes = [2, 168], strides = [1, 1]} : vector<8x168xf32> to vector<2x168xf32>
      %c0_245 = arith.constant 0 : index
      %c1512 = arith.constant 1512 : index
      %1310 = vector.load %arg15[%c0_245, %c1512] : memref<8x2048xf32, #tpu.memory_space<vmem>>, vector<2x168xf32>
      tpu.vector_store %arg15[%c0_245, %c1512], %1309 {strides = array<i32>} : memref<8x2048xf32, #tpu.memory_space<vmem>>, vector<2x168xf32>,
      %1311 = vector.extract_strided_slice %1306 {offsets = [4, 0], sizes = [2, 168], strides = [1, 1]} : vector<8x168xf32> to vector<2x168xf32>
      %c0_246 = arith.constant 0 : index
      %c1680 = arith.constant 1680 : index
      %1312 = vector.load %arg15[%c0_246, %c1680] : memref<8x2048xf32, #tpu.memory_space<vmem>>, vector<2x168xf32>
      tpu.vector_store %arg15[%c0_246, %c1680], %1311 {strides = array<i32>} : memref<8x2048xf32, #tpu.memory_space<vmem>>, vector<2x168xf32>,
      %1313 = vector.extract_strided_slice %1306 {offsets = [6, 0], sizes = [2, 168], strides = [1, 1]} : vector<8x168xf32> to vector<2x168xf32>
      %c0_247 = arith.constant 0 : index
      %c1848 = arith.constant 1848 : index
      %1314 = vector.load %arg15[%c0_247, %c1848] : memref<8x2048xf32, #tpu.memory_space<vmem>>, vector<2x168xf32>
      tpu.vector_store %arg15[%c0_247, %c1848], %1313 {strides = array<i32>} : memref<8x2048xf32, #tpu.memory_space<vmem>>, vector<2x168xf32>,
    } else {
    }
    %c0 = arith.constant 0 : index
    %c0_1 = arith.constant 0 : index
    %3 = vector.load %arg15[%c0, %c0_1] : memref<8x2048xf32, #tpu.memory_space<vmem>>, vector<8x2048xf32>
    %4 = arith.truncf %3 : vector<8x2048xf32> to vector<8x2048xbf16>
    %c0_2 = arith.constant 0 : index
    %c0_3 = arith.constant 0 : index
    %c0_4 = arith.constant 0 : index
    %5 = vector.load %arg8[%c0_2, %c0_3, %c0_4] : memref<1x2048x512xbf16, #tpu.memory_space<vmem>>, vector<1x2048x512xbf16>
    %6 = vector.shape_cast %5 : vector<1x2048x512xbf16> to vector<2048x512xbf16>
    %cst = arith.constant dense<0.000000e+00> : vector<8x512xf32>
    %7 = tpu.matmul %4, %6, %cst {dimension_numbers = #tpu.dot_dimension_numbers<[1], [0], [0], [1], [0, 0, 1, 1], [], []>} : vector<8x2048xbf16>, vector<2048x512xbf16>, vector<8x512xf32> -> vector<8x512xf32>
    %c0_5 = arith.constant 0 : index
    %c0_6 = arith.constant 0 : index
    %8 = vector.load %arg9[%c0_5, %c0_6] : memref<1x512xf32, #tpu.memory_space<vmem>>, vector<1x512xf32>
    %9 = vector.broadcast %8 : vector<1x512xf32> to vector<8x512xf32>
    %10 = arith.addf %7, %9 : vector<8x512xf32>
    %cst_7 = arith.constant 0.000000e+00 : f32
    %11 = vector.broadcast %cst_7 : f32 to vector<8x512xf32>
    %12 = arith.maximumf %10, %11 : vector<8x512xf32>
    %c0_8 = arith.constant 0 : index
    %c0_9 = arith.constant 0 : index
    %13 = vector.load %arg16[%c0_8, %c0_9] : memref<8x1xf32, #tpu.memory_space<vmem>>, vector<8x1xf32>
    %c0_10 = arith.constant 0 : index
    %c0_11 = arith.constant 0 : index
    %14 = vector.load %arg10[%c0_10, %c0_11] : memref<1x512xf32, #tpu.memory_space<vmem>>, vector<1x512xf32>
    %15 = vector.broadcast %14 : vector<1x512xf32> to vector<8x512xf32>
    %16 = arith.mulf %12, %15 : vector<8x512xf32>
    %cst_12 = arith.constant dense<0.000000e+00> : vector<8xf32>
    %17 = vector.multi_reduction <add>, %16, %cst_12 [1] : vector<8x512xf32> to vector<8xf32>
    %18 = vector.shape_cast %17 : vector<8xf32> to vector<8x1xf32>
    %19 = arith.addf %13, %18 : vector<8x1xf32>
    %c0_13 = arith.constant 0 : index
    %c0_14 = arith.constant 0 : index
    %20 = vector.load %arg16[%c0_13, %c0_14] : memref<8x1xf32, #tpu.memory_space<vmem>>, vector<8x1xf32>
    tpu.vector_store %arg16[%c0_13, %c0_14], %19 {strides = array<i32>} : memref<8x1xf32, #tpu.memory_space<vmem>>, vector<8x1xf32>,
    %c1_i32 = arith.constant 1 : i32
    %21 = arith.cmpi eq, %arg0, %c1_i32 : i32
    %22 = arith.extui %21 : i1 to i32
    %c0_i32_15 = arith.constant 0 : i32
    %23 = arith.cmpi ne, %22, %c0_i32_15 : i32
    scf.if %23 {
      %c0_16 = arith.constant 0 : index
      %c0_17 = arith.constant 0 : index
      %24 = vector.load %arg16[%c0_16, %c0_17] : memref<8x1xf32, #tpu.memory_space<vmem>>, vector<2x1xf32>
      %c0_18 = arith.constant 0 : index
      %25 = memref.load %arg11[%c0_18] : memref<1xf32, #tpu.memory_space<smem>>
      %26 = vector.broadcast %25 : f32 to vector<2x1xf32>
      %27 = arith.addf %24, %26 : vector<2x1xf32>
      %c0_19 = arith.constant 0 : index
      %c0_20 = arith.constant 0 : index
      %28 = vector.load %arg12[%c0_19, %c0_20] : memref<2x1xf32, #tpu.memory_space<vmem>>, vector<2x1xf32>
      tpu.vector_store %arg12[%c0_19, %c0_20], %27 {strides = array<i32>} : memref<2x1xf32, #tpu.memory_space<vmem>>, vector<2x1xf32>,
    } else {
    }
    return
  }
  func.func @transform_0(%arg0: i32) -> (i32, i32) {
    %c0_i32 = arith.constant 0 : i32
    %c0_i32_0 = arith.constant 0 : i32
    %c0_i32_1 = arith.constant 0 : i32
    return %c0_i32, %c0_i32_0 : i32, i32
  }
  func.func @transform_1(%arg0: i32) -> i32 {
    %c0_i32 = arith.constant 0 : i32
    %c0_i32_0 = arith.constant 0 : i32
    return %c0_i32 : i32
  }
  func.func @transform_2(%arg0: i32) -> i32 {
    %c0_i32 = arith.constant 0 : i32
    %c0_i32_0 = arith.constant 0 : i32
    return %c0_i32 : i32
  }
  func.func @transform_3(%arg0: i32) -> i32 {
    %c0_i32 = arith.constant 0 : i32
    %c0_i32_0 = arith.constant 0 : i32
    return %c0_i32 : i32
  }
  func.func @transform_4(%arg0: i32) -> i32 {
    %c0_i32 = arith.constant 0 : i32
    %c0_i32_0 = arith.constant 0 : i32
    return %c0_i32 : i32
  }
  func.func @transform_5(%arg0: i32) -> i32 {
    %c0_i32 = arith.constant 0 : i32
    %c0_i32_0 = arith.constant 0 : i32
    return %c0_i32 : i32
  }
  func.func @transform_6(%arg0: i32) -> i32 {
    %c0_i32 = arith.constant 0 : i32
    %c0_i32_0 = arith.constant 0 : i32
    return %c0_i32 : i32
  }
  func.func @transform_7(%arg0: i32) -> (i32, i32, i32) {
    %c0_i32 = arith.constant 0 : i32
    %c0_i32_0 = arith.constant 0 : i32
    %c0_i32_1 = arith.constant 0 : i32
    return %arg0, %c0_i32, %c0_i32_0 : i32, i32, i32
  }
  func.func @transform_8(%arg0: i32) -> (i32, i32) {
    %c0_i32 = arith.constant 0 : i32
    %c0_i32_0 = arith.constant 0 : i32
    return %c0_i32, %arg0 : i32, i32
  }
  func.func @transform_9(%arg0: i32) -> (i32, i32) {
    %c0_i32 = arith.constant 0 : i32
    %c0_i32_0 = arith.constant 0 : i32
    return %c0_i32, %arg0 : i32, i32
  }
  func.func @transform_10(%arg0: i32) -> i32 {
    %c0_i32 = arith.constant 0 : i32
    %c0_i32_0 = arith.constant 0 : i32
    return %c0_i32 : i32
  }
  func.func @transform_11(%arg0: i32) -> (i32, i32) {
    %c0_i32 = arith.constant 0 : i32
    %c0_i32_0 = arith.constant 0 : i32
    %c0_i32_1 = arith.constant 0 : i32
    return %c0_i32, %c0_i32_0 : i32, i32
  }
}

</mosaic_0001>

<llo_original>
// kernel: stacked2d_linear_forward.1
$region0: #{stacked2d_linear_forward.1}
  #allocation0 [shape = 'u32[]', space=smem, size = 0x4, offset = 0x4, fixed_abs, tag = 'smem constant byte address 0x4 - core index']
  #allocation1 [shape = 'u32[144,128]{1,0:T(1,128)}', space=vmem, size = 0x12000, scoped, tag = 'internal scratch']
  #allocation2 [shape = 'f32[12,168]{1,0:T(8,128)}', space=vmem, size = 0x4000, scoped, tag = 'scratch operand']
  #allocation3 [shape = 'f32[6,12,168]{2,1,0:T(8,128)}', space=vmem, size = 0x18000, scoped, tag = 'scratch operand']
  #allocation4 [shape = 'f32[8,2048]{1,0:T(8,128)}', space=vmem, size = 0x10000, scoped, tag = 'scratch operand']
  #allocation5 [shape = 'f32[8,1]{1,0:T(8,128)}', space=vmem, size = 0x1000, scoped, tag = 'scratch operand']
  #allocation6 [shape = 'f32[1]{0:T(128)S(6)}', space=smem, size = 0x200, scoped, tag = 'scoped memory for stacked2d_linear_forward.1']
  %s0 = inlined_call_operand.vmem [shape: f32[8,168], index: 0, kind: input, shape index: {}]
  %s1 = inlined_call_operand.hbm [shape: f32[54], index: 1, kind: input, shape index: {}]
  %s2 = inlined_call_operand.hbm [shape: f32[6], index: 2, kind: input, shape index: {}]
  %s3 = inlined_call_operand.hbm [shape: f32[6], index: 3, kind: input, shape index: {}]
  %s4 = inlined_call_operand.hbm [shape: f32[162], index: 4, kind: input, shape index: {}]
  %s5 = inlined_call_operand.hbm [shape: f32[3], index: 5, kind: input, shape index: {}]
  %s6 = inlined_call_operand.hbm [shape: f32[3], index: 6, kind: input, shape index: {}]
  %s7 = inlined_call_operand.hbm [shape: bf16[2,2048,512], index: 7, kind: input, shape index: {}]
  %s8 = inlined_call_operand.hbm [shape: f32[1,1024], index: 8, kind: input, shape index: {}]
  %s9 = inlined_call_operand.hbm [shape: f32[1,1024], index: 9, kind: input, shape index: {}]
  %s10 = inlined_call_operand.<no memory space> [shape: f32[1], index: 10, kind: input, shape index: {}]
  %s11 = inlined_call_operand.vmem [shape: f32[2,1], index: 11, kind: output, shape index: {}]
  %s12 = sld [smem:[#allocation0]]
  $region121: #{stacked2d_linear_forward.1} parent=0
    _
  %s14 = ssub.s32 1, %s12
  %s15 = scalar_select 0, %s14, %s12
  %16 = sst [smem:[#allocation6]] %s10
  $region1: #{stacked2d_linear_forward.1} parent=0
    #allocation7 [shape = 'u8[512]{0}', space=smem, size = 0x200, scoped, tag = 'input window, operand 1, single buffered']
    #allocation8 [shape = 's32[2]{0}', space=sflag, size = 0x8, scoped, tag = 'scoped memory for stacked2d_linear_forward.1']
    #allocation9 [shape = 's32[2]{0}', space=sflag, size = 0x8, scoped, tag = 'scoped memory for stacked2d_linear_forward.1']
    #allocation10 [shape = 'u8[512]{0}', space=smem, size = 0x200, scoped, tag = 'input window, operand 2, single buffered']
    #allocation11 [shape = 's32[1]{0}', space=sflag, size = 0x4, scoped, tag = 'scoped memory for stacked2d_linear_forward.1']
    #allocation12 [shape = 'u8[512]{0}', space=smem, size = 0x200, scoped, tag = 'input window, operand 3, single buffered']
    #allocation13 [shape = 'u8[1024]{0}', space=smem, size = 0x400, scoped, tag = 'input window, operand 4, single buffered']
    #allocation14 [shape = 's32[1]{0}', space=sflag, size = 0x4, scoped, tag = 'scoped memory for stacked2d_linear_forward.1']
    #allocation15 [shape = 'u8[512]{0}', space=smem, size = 0x200, scoped, tag = 'input window, operand 5, single buffered']
    #allocation16 [shape = 'u8[512]{0}', space=smem, size = 0x200, scoped, tag = 'input window, operand 6, single buffered']
    #allocation17 [shape = 's32[1]{0}', space=sflag, size = 0x4, scoped, tag = 'scoped memory for stacked2d_linear_forward.1']
    #allocation18 [shape = 'u8[4194304]{0}', space=vmem, size = 0x400000, scoped, tag = 'input window, operand 7']
    #allocation19 [shape = 'u8[4096]{0}', space=vmem, size = 0x1000, scoped, tag = 'input window, operand 8']
    #allocation20 [shape = 's32[2]{0}', space=sflag, size = 0x8, scoped, tag = 'scoped memory for stacked2d_linear_forward.1']
    #allocation21 [shape = 'u8[4096]{0}', space=vmem, size = 0x1000, scoped, tag = 'input window, operand 9']
    %17 = vsyncpa [#allocation9], 0
    %18 = vsyncpa [#allocation11], 0
    %19 = vsyncpa [#allocation14], 0
    %20 = vsyncpa [#allocation17], 0
    %21 = vsyncpa [#allocation8], 0
    %s22 = scalar_lea.sflag [#allocation8], 1
    %23 = vsyncpa %s22, 0
    %24 = vsyncpa [#allocation20], 0
    %s25 = scalar_lea.sflag [#allocation20], 1
    %26 = vsyncpa %s25, 0
    loop: start=0, step=1, limit=4
    $region2: #{stacked2d_linear_forward.1} parent=1 // loop_pre_header
      _
    $region3: #{stacked2d_linear_forward.1} parent=1 // loop_header
      %s28 = sphi 0, %s32
      %p29 = scmp.ge.s32.totalorder %s28, 4
      %s36 = sphi 0, %s36
      %s38 = sphi 0, %s36
      %s39 = sphi 0, %s38
      %s53 = sphi 0, %s39
      %s57 = sphi 0, %s57
      %s59 = sphi 0, %s57
      %s60 = sphi 0, %s59
      %s74 = sphi 0, %s60
      %s78 = sphi 0, %s78
      %s80 = sphi 0, %s78
      %s81 = sphi 0, %s80
      %s95 = sphi 0, %s81
      %s99 = sphi 0, %s99
      %s101 = sphi 0, %s99
      %s102 = sphi 0, %s101
      %s116 = sphi 0, %s102
      %s120 = sphi 0, %s120
      %s122 = sphi 0, %s120
      %s123 = sphi 0, %s122
      %s137 = sphi 0, %s123
      %s141 = sphi 0, %s141
      %s143 = sphi 0, %s141
      %s144 = sphi 0, %s143
      %s158 = sphi 0, %s144
      %s162 = sphi 0, %s162
      %s164 = sphi 0, %s162
      %s165 = sphi 0, %s164
      %s179 = sphi 0, %s165
      %s185 = sphi 0, %s187
      %s188 = sphi 0, %s185
      %s189 = sphi 0, %s188
      %s205 = sphi 0, %s189
      %s211 = sphi 0, %s213
      %s214 = sphi 0, %s211
      %s215 = sphi 0, %s214
      %s231 = sphi 0, %s215
      %s237 = sphi 0, %s239
      %s240 = sphi 0, %s237
      %s241 = sphi 0, %s240
      %s257 = sphi 0, %s241
      %s261 = sphi 0, %s261
      %s263 = sphi 0, %s261
      %s264 = sphi 0, %s263
      %s278 = sphi 0, %s264
      %s282 = sphi 0, %s282
      %s284 = sphi 0, %s282
      %s285 = sphi 0, %s284
      %s299 = sphi 0, %s285
    $region4: #{stacked2d_linear_forward.1} parent=1 // loop_header_branch
      %31 = sbr.rel (%p29) target = $region8
    $region5: #{stacked2d_linear_forward.1} parent=1 // loop_body
      %s33 = ssub.s32 %s28, 1
      %s34 = ssub.s32 %s28, 2
      %s35 = sadd.s32 %s28, 1
      %s37 = sadd.s32 %s36, 1
      %p40 = scmp.eq.s32.totalorder %s28, 1
      %p41 = scmp.ne.s32.totalorder %s36, %s38
      %p42 = scmp.eq.s32.totalorder %s28, 0
      %p43 = por %p41, %p42
      %p44 = scmp.ne.s32.totalorder %s36, %s38
      %p45 = scmp.eq.s32.totalorder %s33, 1
      %p46 = por %p44, %p45
      %p47 = scmp.ne.s32.totalorder %s38, %s39
      %p48 = scmp.eq.s32.totalorder %s33, 0
      %p49 = por %p47, %p48
      %p50 = scmp.ne.s32.totalorder %s38, %s39
      %p51 = scmp.eq.s32.totalorder %s34, 1
      %p52 = por %p50, %p51
      %p54 = scmp.ne.s32.totalorder %s39, %s53
      %p55 = scmp.eq.s32.totalorder %s34, 0
      %p56 = por %p54, %p55
      %s58 = sadd.s32 %s57, 1
      %p61 = scmp.eq.s32.totalorder %s28, 1
      %p62 = scmp.ne.s32.totalorder %s57, %s59
      %p63 = scmp.eq.s32.totalorder %s28, 0
      %p64 = por %p62, %p63
      %p65 = scmp.ne.s32.totalorder %s57, %s59
      %p66 = scmp.eq.s32.totalorder %s33, 1
      %p67 = por %p65, %p66
      %p68 = scmp.ne.s32.totalorder %s59, %s60
      %p69 = scmp.eq.s32.totalorder %s33, 0
      %p70 = por %p68, %p69
      %p71 = scmp.ne.s32.totalorder %s59, %s60
      %p72 = scmp.eq.s32.totalorder %s34, 1
      %p73 = por %p71, %p72
      %p75 = scmp.ne.s32.totalorder %s60, %s74
      %p76 = scmp.eq.s32.totalorder %s34, 0
      %p77 = por %p75, %p76
      %s79 = sadd.s32 %s78, 1
      %p82 = scmp.eq.s32.totalorder %s28, 1
      %p83 = scmp.ne.s32.totalorder %s78, %s80
      %p84 = scmp.eq.s32.totalorder %s28, 0
      %p85 = por %p83, %p84
      %p86 = scmp.ne.s32.totalorder %s78, %s80
      %p87 = scmp.eq.s32.totalorder %s33, 1
      %p88 = por %p86, %p87
      %p89 = scmp.ne.s32.totalorder %s80, %s81
      %p90 = scmp.eq.s32.totalorder %s33, 0
      %p91 = por %p89, %p90
      %p92 = scmp.ne.s32.totalorder %s80, %s81
      %p93 = scmp.eq.s32.totalorder %s34, 1
      %p94 = por %p92, %p93
      %p96 = scmp.ne.s32.totalorder %s81, %s95
      %p97 = scmp.eq.s32.totalorder %s34, 0
      %p98 = por %p96, %p97
      %s100 = sadd.s32 %s99, 1
      %p103 = scmp.eq.s32.totalorder %s28, 1
      %p104 = scmp.ne.s32.totalorder %s99, %s101
      %p105 = scmp.eq.s32.totalorder %s28, 0
      %p106 = por %p104, %p105
      %p107 = scmp.ne.s32.totalorder %s99, %s101
      %p108 = scmp.eq.s32.totalorder %s33, 1
      %p109 = por %p107, %p108
      %p110 = scmp.ne.s32.totalorder %s101, %s102
      %p111 = scmp.eq.s32.totalorder %s33, 0
      %p112 = por %p110, %p111
      %p113 = scmp.ne.s32.totalorder %s101, %s102
      %p114 = scmp.eq.s32.totalorder %s34, 1
      %p115 = por %p113, %p114
      %p117 = scmp.ne.s32.totalorder %s102, %s116
      %p118 = scmp.eq.s32.totalorder %s34, 0
      %p119 = por %p117, %p118
      %s121 = sadd.s32 %s120, 1
      %p124 = scmp.eq.s32.totalorder %s28, 1
      %p125 = scmp.ne.s32.totalorder %s120, %s122
      %p126 = scmp.eq.s32.totalorder %s28, 0
      %p127 = por %p125, %p126
      %p128 = scmp.ne.s32.totalorder %s120, %s122
      %p129 = scmp.eq.s32.totalorder %s33, 1
      %p130 = por %p128, %p129
      %p131 = scmp.ne.s32.totalorder %s122, %s123
      %p132 = scmp.eq.s32.totalorder %s33, 0
      %p133 = por %p131, %p132
      %p134 = scmp.ne.s32.totalorder %s122, %s123
      %p135 = scmp.eq.s32.totalorder %s34, 1
      %p136 = por %p134, %p135
      %p138 = scmp.ne.s32.totalorder %s123, %s137
      %p139 = scmp.eq.s32.totalorder %s34, 0
      %p140 = por %p138, %p139
      %s142 = sadd.s32 %s141, 1
      %p145 = scmp.eq.s32.totalorder %s28, 1
      %p146 = scmp.ne.s32.totalorder %s141, %s143
      %p147 = scmp.eq.s32.totalorder %s28, 0
      %p148 = por %p146, %p147
      %p149 = scmp.ne.s32.totalorder %s141, %s143
      %p150 = scmp.eq.s32.totalorder %s33, 1
      %p151 = por %p149, %p150
      %p152 = scmp.ne.s32.totalorder %s143, %s144
      %p153 = scmp.eq.s32.totalorder %s33, 0
      %p154 = por %p152, %p153
      %p155 = scmp.ne.s32.totalorder %s143, %s144
      %p156 = scmp.eq.s32.totalorder %s34, 1
      %p157 = por %p155, %p156
      %p159 = scmp.ne.s32.totalorder %s144, %s158
      %p160 = scmp.eq.s32.totalorder %s34, 0
      %p161 = por %p159, %p160
      %s163 = sadd.s32 %s162, 1
      %p166 = scmp.eq.s32.totalorder %s28, 1
      %p167 = scmp.ne.s32.totalorder %s162, %s164
      %p168 = scmp.eq.s32.totalorder %s28, 0
      %p169 = por %p167, %p168
      %p170 = scmp.ne.s32.totalorder %s162, %s164
      %p171 = scmp.eq.s32.totalorder %s33, 1
      %p172 = por %p170, %p171
      %p173 = scmp.ne.s32.totalorder %s164, %s165
      %p174 = scmp.eq.s32.totalorder %s33, 0
      %p175 = por %p173, %p174
      %p176 = scmp.ne.s32.totalorder %s164, %s165
      %p177 = scmp.eq.s32.totalorder %s34, 1
      %p178 = por %p176, %p177
      %p180 = scmp.ne.s32.totalorder %s165, %s179
      %p181 = scmp.eq.s32.totalorder %s34, 0
      %p182 = por %p180, %p181
      %s183 = ssub.s32 %s28, %s35
      %p184 = scmp.eq.s32.totalorder %s183, 0
      %s186 = sadd.s32 %s185, 1
      %s187 = scalar_select %p184, %s185, %s186
      %p190 = pneg %p184
      %p191 = scmp.eq.s32.totalorder %s28, 1
      %p192 = por %p190, %p191
      %p193 = scmp.ne.s32.totalorder %s185, %s188
      %p194 = scmp.eq.s32.totalorder %s28, 0
      %p195 = por %p193, %p194
      %p196 = scmp.ne.s32.totalorder %s185, %s188
      %p197 = scmp.eq.s32.totalorder %s33, 1
      %p198 = por %p196, %p197
      %p199 = scmp.ne.s32.totalorder %s188, %s189
      %p200 = scmp.eq.s32.totalorder %s33, 0
      %p201 = por %p199, %p200
      %p202 = scmp.ne.s32.totalorder %s188, %s189
      %p203 = scmp.eq.s32.totalorder %s34, 1
      %p204 = por %p202, %p203
      %p206 = scmp.ne.s32.totalorder %s189, %s205
      %p207 = scmp.eq.s32.totalorder %s34, 0
      %p208 = por %p206, %p207
      %s209 = ssub.s32 %s28, %s35
      %p210 = scmp.eq.s32.totalorder %s209, 0
      %s212 = sadd.s32 %s211, 1
      %s213 = scalar_select %p210, %s211, %s212
      %p216 = pneg %p210
      %p217 = scmp.eq.s32.totalorder %s28, 1
      %p218 = por %p216, %p217
      %p219 = scmp.ne.s32.totalorder %s211, %s214
      %p220 = scmp.eq.s32.totalorder %s28, 0
      %p221 = por %p219, %p220
      %p222 = scmp.ne.s32.totalorder %s211, %s214
      %p223 = scmp.eq.s32.totalorder %s33, 1
      %p224 = por %p222, %p223
      %p225 = scmp.ne.s32.totalorder %s214, %s215
      %p226 = scmp.eq.s32.totalorder %s33, 0
      %p227 = por %p225, %p226
      %p228 = scmp.ne.s32.totalorder %s214, %s215
      %p229 = scmp.eq.s32.totalorder %s34, 1
      %p230 = por %p228, %p229
      %p232 = scmp.ne.s32.totalorder %s215, %s231
      %p233 = scmp.eq.s32.totalorder %s34, 0
      %p234 = por %p232, %p233
      %s235 = ssub.s32 %s28, %s35
      %p236 = scmp.eq.s32.totalorder %s235, 0
      %s238 = sadd.s32 %s237, 1
      %s239 = scalar_select %p236, %s237, %s238
      %p242 = pneg %p236
      %p243 = scmp.eq.s32.totalorder %s28, 1
      %p244 = por %p242, %p243
      %p245 = scmp.ne.s32.totalorder %s237, %s240
      %p246 = scmp.eq.s32.totalorder %s28, 0
      %p247 = por %p245, %p246
      %p248 = scmp.ne.s32.totalorder %s237, %s240
      %p249 = scmp.eq.s32.totalorder %s33, 1
      %p250 = por %p248, %p249
      %p251 = scmp.ne.s32.totalorder %s240, %s241
      %p252 = scmp.eq.s32.totalorder %s33, 0
      %p253 = por %p251, %p252
      %p254 = scmp.ne.s32.totalorder %s240, %s241
      %p255 = scmp.eq.s32.totalorder %s34, 1
      %p256 = por %p254, %p255
      %p258 = scmp.ne.s32.totalorder %s241, %s257
      %p259 = scmp.eq.s32.totalorder %s34, 0
      %p260 = por %p258, %p259
      %s262 = sadd.s32 %s261, 1
      %p265 = scmp.eq.s32.totalorder %s28, 1
      %p266 = scmp.ne.s32.totalorder %s261, %s263
      %p267 = scmp.eq.s32.totalorder %s28, 0
      %p268 = por %p266, %p267
      %p269 = scmp.ne.s32.totalorder %s261, %s263
      %p270 = scmp.eq.s32.totalorder %s33, 1
      %p271 = por %p269, %p270
      %p272 = scmp.ne.s32.totalorder %s263, %s264
      %p273 = scmp.eq.s32.totalorder %s33, 0
      %p274 = por %p272, %p273
      %p275 = scmp.ne.s32.totalorder %s263, %s264
      %p276 = scmp.eq.s32.totalorder %s34, 1
      %p277 = por %p275, %p276
      %p279 = scmp.ne.s32.totalorder %s264, %s278
      %p280 = scmp.eq.s32.totalorder %s34, 0
      %p281 = por %p279, %p280
      %s283 = sadd.s32 %s282, 1
      %p286 = scmp.eq.s32.totalorder %s28, 1
      %p287 = scmp.ne.s32.totalorder %s282, %s284
      %p288 = scmp.eq.s32.totalorder %s28, 0
      %p289 = por %p287, %p288
      %p290 = scmp.ne.s32.totalorder %s282, %s284
      %p291 = scmp.eq.s32.totalorder %s33, 1
      %p292 = por %p290, %p291
      %p293 = scmp.ne.s32.totalorder %s284, %s285
      %p294 = scmp.eq.s32.totalorder %s33, 0
      %p295 = por %p293, %p294
      %p296 = scmp.ne.s32.totalorder %s284, %s285
      %p297 = scmp.eq.s32.totalorder %s34, 1
      %p298 = por %p296, %p297
      %p300 = scmp.ne.s32.totalorder %s285, %s299
      %p301 = scmp.eq.s32.totalorder %s34, 0
      %p302 = por %p300, %p301
      %p303 = scmp.le.s32.totalorder 1, %s28
      %p304 = scmp.lt.s32.totalorder %s28, 3
      %p305 = pnand %p303, %p304
      %p306 = pneg %p305
      // Predicated region
      $region9: #{stacked2d_linear_forward.1} parent=5 // pred_check
        _
      $region10: #{stacked2d_linear_forward.1} parent=5 // pred_check_branch
        %308 = sbr.rel (%p305) target = $region12
      $region11: #{stacked2d_linear_forward.1} parent=5 // pred_region
        %s309 = ssub.s32 %s28, 1
        // Predicated region
        $region13: #{stacked2d_linear_forward.1} parent=11 // pred_check
          %p310 = pneg %p49
        $region14: #{stacked2d_linear_forward.1} parent=11 // pred_check_branch
          %312 = sbr.rel (%p310) target = $region16
        $region15: #{stacked2d_linear_forward.1} parent=11 // pred_region
          _
        $region16: #{stacked2d_linear_forward.1} parent=11 // pred_fallthru
          _
        // Predicated region
        $region17: #{stacked2d_linear_forward.1} parent=11 // pred_check
          %p313 = pneg %p70
        $region18: #{stacked2d_linear_forward.1} parent=11 // pred_check_branch
          %315 = sbr.rel (%p313) target = $region20
        $region19: #{stacked2d_linear_forward.1} parent=11 // pred_region
          %s317 = ssub.s32 16, 16
          %318 = vsyncadd [#allocation9], %s317
          %321 = dma.hbm_to_smem %s1, 16, [#allocation7], [#allocation9]
        $region20: #{stacked2d_linear_forward.1} parent=11 // pred_fallthru
          _
        // Predicated region
        $region21: #{stacked2d_linear_forward.1} parent=11 // pred_check
          %p322 = pneg %p91
        $region22: #{stacked2d_linear_forward.1} parent=11 // pred_check_branch
          %324 = sbr.rel (%p322) target = $region24
        $region23: #{stacked2d_linear_forward.1} parent=11 // pred_region
          %s326 = ssub.s32 16, 16
          %327 = vsyncadd [#allocation11], %s326
          %330 = dma.hbm_to_smem %s2, 16, [#allocation10], [#allocation11]
        $region24: #{stacked2d_linear_forward.1} parent=11 // pred_fallthru
          _
        // Predicated region
        $region25: #{stacked2d_linear_forward.1} parent=11 // pred_check
          %p331 = pneg %p112
        $region26: #{stacked2d_linear_forward.1} parent=11 // pred_check_branch
          %333 = sbr.rel (%p331) target = $region28
        $region27: #{stacked2d_linear_forward.1} parent=11 // pred_region
          %s335 = ssub.s32 16, 16
          %336 = vsyncadd [#allocation11], %s335
          %339 = dma.hbm_to_smem %s3, 16, [#allocation12], [#allocation11]
        $region28: #{stacked2d_linear_forward.1} parent=11 // pred_fallthru
          _
        // Predicated region
        $region29: #{stacked2d_linear_forward.1} parent=11 // pred_check
          %p340 = pneg %p133
        $region30: #{stacked2d_linear_forward.1} parent=11 // pred_check_branch
          %342 = sbr.rel (%p340) target = $region32
        $region31: #{stacked2d_linear_forward.1} parent=11 // pred_region
          %s344 = ssub.s32 32, 32
          %345 = vsyncadd [#allocation14], %s344
          %348 = dma.hbm_to_smem %s4, 32, [#allocation13], [#allocation14]
        $region32: #{stacked2d_linear_forward.1} parent=11 // pred_fallthru
          _
        // Predicated region
        $region33: #{stacked2d_linear_forward.1} parent=11 // pred_check
          %p349 = pneg %p154
        $region34: #{stacked2d_linear_forward.1} parent=11 // pred_check_branch
          %351 = sbr.rel (%p349) target = $region36
        $region35: #{stacked2d_linear_forward.1} parent=11 // pred_region
          %s353 = ssub.s32 16, 16
          %354 = vsyncadd [#allocation14], %s353
          %357 = dma.hbm_to_smem %s5, 16, [#allocation15], [#allocation14]
        $region36: #{stacked2d_linear_forward.1} parent=11 // pred_fallthru
          _
        // Predicated region
        $region37: #{stacked2d_linear_forward.1} parent=11 // pred_check
          %p358 = pneg %p175
        $region38: #{stacked2d_linear_forward.1} parent=11 // pred_check_branch
          %360 = sbr.rel (%p358) target = $region40
        $region39: #{stacked2d_linear_forward.1} parent=11 // pred_region
          %s362 = ssub.s32 16, 16
          %363 = vsyncadd [#allocation17], %s362
          %366 = dma.hbm_to_smem %s6, 16, [#allocation16], [#allocation17]
        $region40: #{stacked2d_linear_forward.1} parent=11 // pred_fallthru
          _
        // Predicated region
        $region41: #{stacked2d_linear_forward.1} parent=11 // pred_check
          %p367 = pneg %p274
        $region42: #{stacked2d_linear_forward.1} parent=11 // pred_check_branch
          %369 = sbr.rel (%p367) target = $region44
        $region43: #{stacked2d_linear_forward.1} parent=11 // pred_region
          _
        $region44: #{stacked2d_linear_forward.1} parent=11 // pred_fallthru
          _
      $region12: #{stacked2d_linear_forward.1} parent=5 // pred_fallthru
        _
      %p370 = scmp.lt.s32.totalorder %s28, 2
      // Predicated region
      $region45: #{stacked2d_linear_forward.1} parent=5 // pred_check
        %p371 = pneg %p370
      $region46: #{stacked2d_linear_forward.1} parent=5 // pred_check_branch
        %373 = sbr.rel (%p371) target = $region48
      $region47: #{stacked2d_linear_forward.1} parent=5 // pred_region
        // Predicated region
        $region49: #{stacked2d_linear_forward.1} parent=47 // pred_check
          %p374 = pneg %p195
        $region50: #{stacked2d_linear_forward.1} parent=47 // pred_check_branch
          %376 = sbr.rel (%p374) target = $region52
        $region51: #{stacked2d_linear_forward.1} parent=47 // pred_region
          %s377 = sand.u32 %s185, 1
          %s378 = scalar_lea.sflag [#allocation8], %s377
          %s379 = sand.u32 %s185, 1
          %s380 = smul.addr %s379, 4096
          %s381 = scalar_lea.vmem [#allocation18], %s380
          %s383 = ssub.s32 65536, 65536
          %384 = vsyncadd %s378, %s383
          %s385 = smul.addr %s28, 1024
          %s386 = smul.addr %s385, 64
          %s387 = scalar_lea.hbm %s7, %s386
          %s388 = sshll.u32 %s381, 4
          %s389 = int_to_ptr.vmem [resolvable:$true] %s388
          %394 = dma.hbm_to_vmem [thread:$0]  %s387, 65536, %s389, %s378, 256, 256, 16
        $region52: #{stacked2d_linear_forward.1} parent=47 // pred_fallthru
          _
        // Predicated region
        $region53: #{stacked2d_linear_forward.1} parent=47 // pred_check
          %p395 = pneg %p221
        $region54: #{stacked2d_linear_forward.1} parent=47 // pred_check_branch
          %397 = sbr.rel (%p395) target = $region56
        $region55: #{stacked2d_linear_forward.1} parent=47 // pred_region
          %s398 = sand.u32 %s28, 1
          %s399 = scalar_lea.sflag [#allocation20], %s398
          %s400 = sand.u32 %s211, 1
          %s401 = smul.addr %s400, 4
          %s402 = scalar_lea.vmem [#allocation19], %s401
          %s403 = smul.u32 4, %s28
          %s405 = ssub.s32 64, 64
          %406 = vsyncadd %s399, %s405
          %s407 = smul.addr %s403, 16
          %s408 = scalar_lea.hbm %s8, %s407
          %s410 = sshll.u32 %s402, 4
          %s411 = int_to_ptr.vmem [resolvable:$true] %s410
          %413 = dma.hbm_to_vmem [thread:$0]  %s408, 64, %s411, %s399
        $region56: #{stacked2d_linear_forward.1} parent=47 // pred_fallthru
          _
        // Predicated region
        $region57: #{stacked2d_linear_forward.1} parent=47 // pred_check
          %p414 = pneg %p247
        $region58: #{stacked2d_linear_forward.1} parent=47 // pred_check_branch
          %416 = sbr.rel (%p414) target = $region60
        $region59: #{stacked2d_linear_forward.1} parent=47 // pred_region
          %s417 = sand.u32 %s28, 1
          %s418 = scalar_lea.sflag [#allocation20], %s417
          %s419 = sand.u32 %s237, 1
          %s420 = smul.addr %s419, 4
          %s421 = scalar_lea.vmem [#allocation21], %s420
          %s422 = smul.u32 4, %s28
          %s424 = ssub.s32 64, 64
          %425 = vsyncadd %s418, %s424
          %s426 = smul.addr %s422, 16
          %s427 = scalar_lea.hbm %s9, %s426
          %s429 = sshll.u32 %s421, 4
          %s430 = int_to_ptr.vmem [resolvable:$true] %s429
          %432 = dma.hbm_to_vmem [thread:$0]  %s427, 64, %s430, %s418
        $region60: #{stacked2d_linear_forward.1} parent=47 // pred_fallthru
          _
      $region48: #{stacked2d_linear_forward.1} parent=5 // pred_fallthru
        _
      %p433 = scmp.le.s32.totalorder 1, %s28
      %p434 = scmp.lt.s32.totalorder %s28, 3
      %p435 = pnand %p433, %p434
      %p436 = pneg %p435
      // Predicated region
      $region61: #{stacked2d_linear_forward.1} parent=5 // pred_check
        _
      $region62: #{stacked2d_linear_forward.1} parent=5 // pred_check_branch
        %438 = sbr.rel (%p435) target = $region64
      $region63: #{stacked2d_linear_forward.1} parent=5 // pred_region
        %s439 = ssub.s32 %s28, 1
        // Predicated region
        $region65: #{stacked2d_linear_forward.1} parent=63 // pred_check
          %p440 = pneg %p70
        $region66: #{stacked2d_linear_forward.1} parent=63 // pred_check_branch
          %442 = sbr.rel (%p440) target = $region68
        $region67: #{stacked2d_linear_forward.1} parent=63 // pred_region
          %443 = dma.done [#allocation9], 16
        $region68: #{stacked2d_linear_forward.1} parent=63 // pred_fallthru
          _
        // Predicated region
        $region69: #{stacked2d_linear_forward.1} parent=63 // pred_check
          %p444 = pneg %p91
        $region70: #{stacked2d_linear_forward.1} parent=63 // pred_check_branch
          %446 = sbr.rel (%p444) target = $region72
        $region71: #{stacked2d_linear_forward.1} parent=63 // pred_region
          %447 = dma.done [#allocation11], 16
        $region72: #{stacked2d_linear_forward.1} parent=63 // pred_fallthru
          _
        // Predicated region
        $region73: #{stacked2d_linear_forward.1} parent=63 // pred_check
          %p448 = pneg %p112
        $region74: #{stacked2d_linear_forward.1} parent=63 // pred_check_branch
          %450 = sbr.rel (%p448) target = $region76
        $region75: #{stacked2d_linear_forward.1} parent=63 // pred_region
          %451 = dma.done [#allocation11], 16
        $region76: #{stacked2d_linear_forward.1} parent=63 // pred_fallthru
          _
        // Predicated region
        $region77: #{stacked2d_linear_forward.1} parent=63 // pred_check
          %p452 = pneg %p133
        $region78: #{stacked2d_linear_forward.1} parent=63 // pred_check_branch
          %454 = sbr.rel (%p452) target = $region80
        $region79: #{stacked2d_linear_forward.1} parent=63 // pred_region
          %455 = dma.done [#allocation14], 32
        $region80: #{stacked2d_linear_forward.1} parent=63 // pred_fallthru
          _
        // Predicated region
        $region81: #{stacked2d_linear_forward.1} parent=63 // pred_check
          %p456 = pneg %p154
        $region82: #{stacked2d_linear_forward.1} parent=63 // pred_check_branch
          %458 = sbr.rel (%p456) target = $region84
        $region83: #{stacked2d_linear_forward.1} parent=63 // pred_region
          %459 = dma.done [#allocation14], 16
        $region84: #{stacked2d_linear_forward.1} parent=63 // pred_fallthru
          _
        // Predicated region
        $region85: #{stacked2d_linear_forward.1} parent=63 // pred_check
          %p460 = pneg %p175
        $region86: #{stacked2d_linear_forward.1} parent=63 // pred_check_branch
          %462 = sbr.rel (%p460) target = $region88
        $region87: #{stacked2d_linear_forward.1} parent=63 // pred_region
          %463 = dma.done [#allocation17], 16
        $region88: #{stacked2d_linear_forward.1} parent=63 // pred_fallthru
          _
        %s464 = sand.u32 %s188, 1
        %s465 = scalar_lea.sflag [#allocation8], %s464
        %s466 = sand.u32 %s188, 1
        %s467 = smul.addr %s466, 4096
        %s468 = scalar_lea.vmem [#allocation18], %s467
        // Predicated region
        $region89: #{stacked2d_linear_forward.1} parent=63 // pred_check
          %p469 = pneg %p201
        $region90: #{stacked2d_linear_forward.1} parent=63 // pred_check_branch
          %471 = sbr.rel (%p469) target = $region92
        $region91: #{stacked2d_linear_forward.1} parent=63 // pred_region
          %472 = dma.done %s465, 65536
        $region92: #{stacked2d_linear_forward.1} parent=63 // pred_fallthru
          _
        %s473 = sand.u32 %s33, 1
        %s474 = scalar_lea.sflag [#allocation20], %s473
        %s475 = sand.u32 %s214, 1
        %s476 = smul.addr %s475, 4
        %s477 = scalar_lea.vmem [#allocation19], %s476
        // Predicated region
        $region93: #{stacked2d_linear_forward.1} parent=63 // pred_check
          %p478 = pneg %p227
        $region94: #{stacked2d_linear_forward.1} parent=63 // pred_check_branch
          %480 = sbr.rel (%p478) target = $region96
        $region95: #{stacked2d_linear_forward.1} parent=63 // pred_region
          %481 = dma.done %s474, 64
        $region96: #{stacked2d_linear_forward.1} parent=63 // pred_fallthru
          _
        %s482 = sand.u32 %s33, 1
        %s483 = scalar_lea.sflag [#allocation20], %s482
        %s484 = sand.u32 %s240, 1
        %s485 = smul.addr %s484, 4
        %s486 = scalar_lea.vmem [#allocation21], %s485
        // Predicated region
        $region97: #{stacked2d_linear_forward.1} parent=63 // pred_check
          %p487 = pneg %p253
        $region98: #{stacked2d_linear_forward.1} parent=63 // pred_check_branch
          %489 = sbr.rel (%p487) target = $region100
        $region99: #{stacked2d_linear_forward.1} parent=63 // pred_region
          %490 = dma.done %s483, 64
        $region100: #{stacked2d_linear_forward.1} parent=63 // pred_fallthru
          _
        %491 = sfence
        %p492 = pneg %p49
        %p493 = pneg %p46
        %p494 = pneg %p70
        %p495 = pneg %p67
        %p496 = pneg %p91
        %p497 = pneg %p88
        %p498 = pneg %p112
        %p499 = pneg %p109
        %p500 = pneg %p133
        %p501 = pneg %p130
        %p502 = pneg %p154
        %p503 = pneg %p151
        %p504 = pneg %p175
        %p505 = pneg %p172
        %s506 = sand.u32 %s188, 1
        %s507 = scalar_lea.sflag [#allocation8], %s506
        %s508 = sand.u32 %s188, 1
        %s509 = smul.addr %s508, 4096
        %s510 = scalar_lea.vmem [#allocation18], %s509
        %p511 = pneg %p201
        %p512 = pneg %p198
        %s513 = sand.u32 %s33, 1
        %s514 = scalar_lea.sflag [#allocation20], %s513
        %s515 = sand.u32 %s214, 1
        %s516 = smul.addr %s515, 4
        %s517 = scalar_lea.vmem [#allocation19], %s516
        %p518 = pneg %p227
        %p519 = pneg %p224
        %s520 = sand.u32 %s33, 1
        %s521 = scalar_lea.sflag [#allocation20], %s520
        %s522 = sand.u32 %s240, 1
        %s523 = smul.addr %s522, 4
        %s524 = scalar_lea.vmem [#allocation21], %s523
        %p525 = pneg %p253
        %p526 = pneg %p250
        %p527 = pneg %p274
        %p528 = pneg %p271
        %p529 = pneg %p295
        %p530 = pneg %p292
        %s531 = smul.u32 4, %s33
        %s532 = smul.u32 4, %s33
        %p533 = scmp.eq.s32.totalorder %s33, 0
        // Predicated region
        $region101: #{stacked2d_linear_forward.1} parent=63 // pred_check
          %p534 = pneg %p533
        $region102: #{stacked2d_linear_forward.1} parent=63 // pred_check_branch
          %536 = sbr.rel (%p534) target = $region104
        $region103: #{stacked2d_linear_forward.1} parent=63 // pred_region
          %vm537 = vcmask 7168
          %538 = vst.msk [vmem:[#allocation5] sm:$0xff] %vm537, 0.0
          %539 = vst [vmem:[#allocation4] sm:$0xff] 0.0
          %540 = vst [vmem:[#allocation4 + $0x8] sm:$0xff] 0.0
          %541 = vst [vmem:[#allocation4 + $0x10] sm:$0xff] 0.0
          %542 = vst [vmem:[#allocation4 + $0x18] sm:$0xff] 0.0
          %543 = vst [vmem:[#allocation4 + $0x20] sm:$0xff] 0.0
          %544 = vst [vmem:[#allocation4 + $0x28] sm:$0xff] 0.0
          %545 = vst [vmem:[#allocation4 + $0x30] sm:$0xff] 0.0
          %546 = vst [vmem:[#allocation4 + $0x38] sm:$0xff] 0.0
          %547 = vst [vmem:[#allocation4 + $0x40] sm:$0xff] 0.0
          %548 = vst [vmem:[#allocation4 + $0x48] sm:$0xff] 0.0
          %549 = vst [vmem:[#allocation4 + $0x50] sm:$0xff] 0.0
          %550 = vst [vmem:[#allocation4 + $0x58] sm:$0xff] 0.0
          %551 = vst [vmem:[#allocation4 + $0x60] sm:$0xff] 0.0
          %552 = vst [vmem:[#allocation4 + $0x68] sm:$0xff] 0.0
          %553 = vst [vmem:[#allocation4 + $0x70] sm:$0xff] 0.0
          %554 = vst [vmem:[#allocation4 + $0x78] sm:$0xff] 0.0
          %555 = vst [vmem:[#allocation2] sm:$0xff] 0.0
          %vm556 = vcmask 326656
          %557 = vst.msk [vmem:[#allocation2 + $0x8] sm:$0xff] %vm556, 0.0
          %558 = vst [vmem:[#allocation2 + $0x10] sm:$0xf] 0.0
          %vm559 = vcmask 322560
          %560 = vst.msk [vmem:[#allocation2 + $0x18] sm:$0xf] %vm559, 0.0
          %561 = vst [vmem:[#allocation3] sm:$0xff] 0.0
          %562 = vst.msk [vmem:[#allocation3 + $0x8] sm:$0xff] %vm556, 0.0
          %563 = vst [vmem:[#allocation3 + $0x10] sm:$0xf] 0.0
          %564 = vst.msk [vmem:[#allocation3 + $0x18] sm:$0xf] %vm559, 0.0
          %565 = vst [vmem:[#allocation3 + $0x20] sm:$0xff] 0.0
          %566 = vst.msk [vmem:[#allocation3 + $0x28] sm:$0xff] %vm556, 0.0
          %567 = vst [vmem:[#allocation3 + $0x30] sm:$0xf] 0.0
          %568 = vst.msk [vmem:[#allocation3 + $0x38] sm:$0xf] %vm559, 0.0
          %569 = vst [vmem:[#allocation3 + $0x40] sm:$0xff] 0.0
          %570 = vst.msk [vmem:[#allocation3 + $0x48] sm:$0xff] %vm556, 0.0
          %571 = vst [vmem:[#allocation3 + $0x50] sm:$0xf] 0.0
          %572 = vst.msk [vmem:[#allocation3 + $0x58] sm:$0xf] %vm559, 0.0
          %573 = vst [vmem:[#allocation3 + $0x60] sm:$0xff] 0.0
          %574 = vst.msk [vmem:[#allocation3 + $0x68] sm:$0xff] %vm556, 0.0
          %575 = vst [vmem:[#allocation3 + $0x70] sm:$0xf] 0.0
          %576 = vst.msk [vmem:[#allocation3 + $0x78] sm:$0xf] %vm559, 0.0
          %577 = vst [vmem:[#allocation3 + $0x80] sm:$0xff] 0.0
          %578 = vst.msk [vmem:[#allocation3 + $0x88] sm:$0xff] %vm556, 0.0
          %579 = vst [vmem:[#allocation3 + $0x90] sm:$0xf] 0.0
          %580 = vst.msk [vmem:[#allocation3 + $0x98] sm:$0xf] %vm559, 0.0
          %581 = vst [vmem:[#allocation3 + $0xa0] sm:$0xff] 0.0
          %582 = vst.msk [vmem:[#allocation3 + $0xa8] sm:$0xff] %vm556, 0.0
          %583 = vst [vmem:[#allocation3 + $0xb0] sm:$0xf] 0.0
          %584 = vst.msk [vmem:[#allocation3 + $0xb8] sm:$0xf] %vm559, 0.0
          %v585 = vld [vmem:[%s0] sm:$0xff]
          %v586 = vld [vmem:[%s0 + $0x8] sm:$0xff]
          %v589 = vrot.slane %v585, 6
          %v590 = vrot.slane %v586, 6
          %593 = vst [vmem:[#allocation2] sm:$0xfc] %v589
          %vm594 = vcmask 326658
          %595 = vst.msk [vmem:[#allocation2 + $0x8] sm:$0xfc] %vm594, %v590
          %596 = vst [vmem:[#allocation2 + $0x10] sm:$0x3] %v589
          %vm597 = vcmask 320512
          %598 = vst.msk [vmem:[#allocation2 + $0x18] sm:$0x3] %vm597, %v590
          %v599 = vlaneseq
          %v600 = vand.u32 %v599, 127
          %v601 = vadd.s32 %v600, 128
          %vm602 = vcmp.ge.s32.totalorder %v600, 1
          %vm603 = vcmp.ge.s32.totalorder %v601, 1
          %vm604 = vcmp.le.s32.totalorder %v600, 166
          %vm605 = vcmp.le.s32.totalorder %v601, 166
          %v606 = vld [vmem:[#allocation2] sm:$0xff]
          %v607 = vld [vmem:[#allocation2 + $0x8] sm:$0xff]
          %v608 = vld [vmem:[#allocation2 + $0x10] sm:$0xf]
          %v609 = vld [vmem:[#allocation2 + $0x18] sm:$0xf]
          %vm610 = vcmask 1047872
          %611 = vrot.lane.b32.xlu0 %v606, 40
          %v612 = vpop.permute.xlu0 %611
          %v613 = vsel %vm610, %v612, %v607
          %614 = vrot.lane.b32.xlu0 %v608, 40
          %v615 = vpop.permute.xlu0 %614
          %v616 = vsel %vm610, %v615, %v609
          %617 = vrot.lane.b32.xlu0 %v613, 40
          %v618 = vpop.permute.xlu0 %617
          %619 = vrot.lane.b32.xlu0 %v616, 40
          %v620 = vpop.permute.xlu0 %619
          %v621 = vsel %vm610, %v618, %v612
          %v622 = vsel %vm610, %v620, %v615
          %627 = vrot.lane.b32.xlu0 %v613, 89
          %v628 = vpop.permute.xlu0 %627
          %629 = vrot.lane.b32.xlu0 %v621, 89
          %v630 = vpop.permute.xlu0 %629
          %631 = vrot.lane.b32.xlu0 %v616, 89
          %v632 = vpop.permute.xlu0 %631
          %633 = vrot.lane.b32.xlu0 %v622, 89
          %v634 = vpop.permute.xlu0 %633
          %vm635 = vcmask 728064
          %v636 = vsel %vm635, %v628, %v630
          %v637 = vsel %vm635, %v632, %v634
          %v642 = vsel %vm602, %v636, 0.0
          %v643 = vsel %vm603, %v630, 0.0
          %v644 = vsel %vm602, %v637, 0.0
          %v645 = vsel %vm603, %v634, 0.0
          %648 = vrot.lane.b32.xlu0 %v606, 127
          %v649 = vpop.permute.xlu0 %648
          %650 = vrot.lane.b32.xlu0 %v613, 127
          %v651 = vpop.permute.xlu0 %650
          %652 = vrot.lane.b32.xlu0 %v608, 127
          %v653 = vpop.permute.xlu0 %652
          %654 = vrot.lane.b32.xlu0 %v616, 127
          %v655 = vpop.permute.xlu0 %654
          %vm656 = vcmask 1039360
          %v657 = vsel %vm656, %v649, %v651
          %v658 = vsel %vm656, %v653, %v655
          %v663 = vsel %vm604, %v657, 0.0
          %v664 = vsel %vm605, %v651, 0.0
          %v665 = vsel %vm604, %v658, 0.0
          %v666 = vsel %vm605, %v655, 0.0
          %s667 = sld [smem:[#allocation7]]
          %v668 = vstv %s667
          %v669 = vmul.f32 %v668, %v642
          %v670 = vmul.f32 %v668, %v643
          %v671 = vadd.f32 %v669, 0.0
          %v672 = vadd.f32 %v670, 0.0
          %s673 = sld [smem:[#allocation7 + $0x1]]
          %v674 = vstv %s673
          %v675 = vmul.f32 %v674, %v606
          %v676 = vmul.f32 %v674, %v607
          %v677 = vadd.f32 %v671, %v675
          %v678 = vadd.f32 %v672, %v676
          %s679 = sld [smem:[#allocation7 + $0x2]]
          %v680 = vstv %s679
          %v681 = vmul.f32 %v680, %v663
          %v682 = vmul.f32 %v680, %v664
          %v683 = vadd.f32 %v677, %v681
          %v684 = vadd.f32 %v678, %v682
          %s685 = sld [smem:[#allocation7 + $0x3]]
          %v686 = vstv %s685
          %v687 = vmul.f32 %v686, %v642
          %v688 = vmul.f32 %v686, %v643
          %v689 = vmul.f32 %v686, %v644
          %v690 = vmul.f32 %v686, %v645
          %vm695 = vcmask 1045504
          %v696 = vrot.slane %v687, 2
          %v697 = vrot.slane %v689, 2
          %v698 = vsel %vm695, %v696, %v697
          %v699 = vrot.slane %v688, 2
          %v700 = vrot.slane %v690, 2
          %v701 = vsel %vm695, %v699, %v700
          %v704 = vadd.f32 %v683, %v698
          %v705 = vadd.f32 %v684, %v701
          %s706 = sld [smem:[#allocation7 + $0x4]]
          %v707 = vstv %s706
          %v708 = vmul.f32 %v707, %v606
          %v709 = vmul.f32 %v707, %v607
          %v710 = vmul.f32 %v707, %v608
          %v711 = vmul.f32 %v707, %v609
          %v716 = vrot.slane %v708, 2
          %v717 = vrot.slane %v710, 2
          %v718 = vsel %vm695, %v716, %v717
          %v719 = vrot.slane %v709, 2
          %v720 = vrot.slane %v711, 2
          %v721 = vsel %vm695, %v719, %v720
          %v724 = vadd.f32 %v704, %v718
          %v725 = vadd.f32 %v705, %v721
          %s726 = sld [smem:[#allocation7 + $0x5]]
          %v727 = vstv %s726
          %v728 = vmul.f32 %v727, %v663
          %v729 = vmul.f32 %v727, %v664
          %v730 = vmul.f32 %v727, %v665
          %v731 = vmul.f32 %v727, %v666
          %v736 = vrot.slane %v728, 2
          %v737 = vrot.slane %v730, 2
          %v738 = vsel %vm695, %v736, %v737
          %v739 = vrot.slane %v729, 2
          %v740 = vrot.slane %v731, 2
          %v741 = vsel %vm695, %v739, %v740
          %v744 = vadd.f32 %v724, %v738
          %v745 = vadd.f32 %v725, %v741
          %s746 = sld [smem:[#allocation7 + $0x6]]
          %v747 = vstv %s746
          %v748 = vmul.f32 %v747, %v642
          %v749 = vmul.f32 %v747, %v643
          %v750 = vmul.f32 %v747, %v644
          %v751 = vmul.f32 %v747, %v645
          %vm756 = vcmask 1043456
          %v757 = vrot.slane %v748, 4
          %v758 = vrot.slane %v750, 4
          %v759 = vsel %vm756, %v757, %v758
          %v760 = vrot.slane %v749, 4
          %v761 = vrot.slane %v751, 4
          %v762 = vsel %vm756, %v760, %v761
          %v765 = vadd.f32 %v744, %v759
          %v766 = vadd.f32 %v745, %v762
          %s767 = sld [smem:[#allocation7 + $0x7]]
          %v768 = vstv %s767
          %v769 = vmul.f32 %v768, %v606
          %v770 = vmul.f32 %v768, %v607
          %v771 = vmul.f32 %v768, %v608
          %v772 = vmul.f32 %v768, %v609
          %v777 = vrot.slane %v769, 4
          %v778 = vrot.slane %v771, 4
          %v779 = vsel %vm756, %v777, %v778
          %v780 = vrot.slane %v770, 4
          %v781 = vrot.slane %v772, 4
          %v782 = vsel %vm756, %v780, %v781
          %v785 = vadd.f32 %v765, %v779
          %v786 = vadd.f32 %v766, %v782
          %s787 = sld [smem:[#allocation7 + $0x8]]
          %v788 = vstv %s787
          %v789 = vmul.f32 %v788, %v663
          %v790 = vmul.f32 %v788, %v664
          %v791 = vmul.f32 %v788, %v665
          %v792 = vmul.f32 %v788, %v666
          %v797 = vrot.slane %v789, 4
          %v798 = vrot.slane %v791, 4
          %v799 = vsel %vm756, %v797, %v798
          %v800 = vrot.slane %v790, 4
          %v801 = vrot.slane %v792, 4
          %v802 = vsel %vm756, %v800, %v801
          %v805 = vadd.f32 %v785, %v799
          %v806 = vadd.f32 %v786, %v802
          %s807 = sld [smem:[#allocation10]]
          %s808 = sld [smem:[#allocation12]]
          %v809 = vsel %vm556, %v806, 0.0
          %v810 = vadd.f32 %v805, %v809
          %811 = vadd.xlane.f32.xlu0 %v810
          %v812 = vpop.xlane.xlu0 %811
          %v813 = vrot.slane %v812, 4
          %v814 = vadd.f32 %v812, %v813
          %v815 = vrot.slane %v814, 2
          %v816 = vadd.f32 %v814, %v815
          %v817 = vrot.slane %v816, 1
          %v818 = vadd.f32 %v816, %v817
          %s819 = vtos %v818
          %v820 = vmul.f32 %v805, %v805
          %v821 = vmul.f32 %v806, %v806
          %v822 = vsel %vm556, %v821, 0.0
          %v823 = vadd.f32 %v820, %v822
          %824 = vadd.xlane.f32.xlu0 %v823
          %v825 = vpop.xlane.xlu0 %824
          %v826 = vrot.slane %v825, 4
          %v827 = vadd.f32 %v825, %v826
          %v828 = vrot.slane %v827, 2
          %v829 = vadd.f32 %v827, %v828
          %v830 = vrot.slane %v829, 1
          %v831 = vadd.f32 %v829, %v830
          %s832 = vtos %v831
          %s833 = smul.f32 %s819, 0.00074404763
          %s834 = smul.f32 %s832, 0.00074404763
          %s835 = smul.f32 %s833, %s833
          %s836 = ssub.f32 %s834, %s835
          %v837 = vstv %s833
          %v838 = vsub.f32 %v805, %v837
          %v839 = vsub.f32 %v806, %v837
          %s840 = sadd.f32 %s836, 1e-05
          %v841 = vstv %s840
          %v842 = vrsqrt.pop %v841
          %s843 = vtos %v842
          %v844 = vstv %s843
          %v845 = vmul.f32 %v838, %v844
          %v846 = vmul.f32 %v839, %v844
          %v847 = vstv %s807
          %v848 = vmul.f32 %v845, %v847
          %v849 = vmul.f32 %v846, %v847
          %v850 = vstv %s808
          %v851 = vadd.f32 %v848, %v850
          %v852 = vadd.f32 %v849, %v850
          %v853 = vmax.f32 %v851, 0.0
          %v854 = vmax.f32 %v852, 0.0
          %v857 = vrot.slane %v853, 6
          %v858 = vrot.slane %v854, 6
          %861 = vst [vmem:[#allocation3] sm:$0xfc] %v857
          %862 = vst.msk [vmem:[#allocation3 + $0x8] sm:$0xfc] %vm594, %v858
          %863 = vst [vmem:[#allocation3 + $0x10] sm:$0x3] %v857
          %864 = vst.msk [vmem:[#allocation3 + $0x18] sm:$0x3] %vm597, %v858
          %s865 = sld [smem:[#allocation7 + $0x9]]
          %v866 = vstv %s865
          %v867 = vmul.f32 %v866, %v642
          %v868 = vmul.f32 %v866, %v643
          %v869 = vadd.f32 %v867, 0.0
          %v870 = vadd.f32 %v868, 0.0
          %s871 = sld [smem:[#allocation7 + $0xa]]
          %v872 = vstv %s871
          %v873 = vmul.f32 %v872, %v606
          %v874 = vmul.f32 %v872, %v607
          %v875 = vadd.f32 %v869, %v873
          %v876 = vadd.f32 %v870, %v874
          %s877 = sld [smem:[#allocation7 + $0xb]]
          %v878 = vstv %s877
          %v879 = vmul.f32 %v878, %v663
          %v880 = vmul.f32 %v878, %v664
          %v881 = vadd.f32 %v875, %v879
          %v882 = vadd.f32 %v876, %v880
          %s883 = sld [smem:[#allocation7 + $0xc]]
          %v884 = vstv %s883
          %v885 = vmul.f32 %v884, %v642
          %v886 = vmul.f32 %v884, %v643
          %v887 = vmul.f32 %v884, %v644
          %v888 = vmul.f32 %v884, %v645
          %v893 = vrot.slane %v885, 2
          %v894 = vrot.slane %v887, 2
          %v895 = vsel %vm695, %v893, %v894
          %v896 = vrot.slane %v886, 2
          %v897 = vrot.slane %v888, 2
          %v898 = vsel %vm695, %v896, %v897
          %v901 = vadd.f32 %v881, %v895
          %v902 = vadd.f32 %v882, %v898
          %s903 = sld [smem:[#allocation7 + $0xd]]
          %v904 = vstv %s903
          %v905 = vmul.f32 %v904, %v606
          %v906 = vmul.f32 %v904, %v607
          %v907 = vmul.f32 %v904, %v608
          %v908 = vmul.f32 %v904, %v609
          %v913 = vrot.slane %v905, 2
          %v914 = vrot.slane %v907, 2
          %v915 = vsel %vm695, %v913, %v914
          %v916 = vrot.slane %v906, 2
          %v917 = vrot.slane %v908, 2
          %v918 = vsel %vm695, %v916, %v917
          %v921 = vadd.f32 %v901, %v915
          %v922 = vadd.f32 %v902, %v918
          %s923 = sld [smem:[#allocation7 + $0xe]]
          %v924 = vstv %s923
          %v925 = vmul.f32 %v924, %v663
          %v926 = vmul.f32 %v924, %v664
          %v927 = vmul.f32 %v924, %v665
          %v928 = vmul.f32 %v924, %v666
          %v933 = vrot.slane %v925, 2
          %v934 = vrot.slane %v927, 2
          %v935 = vsel %vm695, %v933, %v934
          %v936 = vrot.slane %v926, 2
          %v937 = vrot.slane %v928, 2
          %v938 = vsel %vm695, %v936, %v937
          %v941 = vadd.f32 %v921, %v935
          %v942 = vadd.f32 %v922, %v938
          %s943 = sld [smem:[#allocation7 + $0xf]]
          %v944 = vstv %s943
          %v945 = vmul.f32 %v944, %v642
          %v946 = vmul.f32 %v944, %v643
          %v947 = vmul.f32 %v944, %v644
          %v948 = vmul.f32 %v944, %v645
          %v953 = vrot.slane %v945, 4
          %v954 = vrot.slane %v947, 4
          %v955 = vsel %vm756, %v953, %v954
          %v956 = vrot.slane %v946, 4
          %v957 = vrot.slane %v948, 4
          %v958 = vsel %vm756, %v956, %v957
          %v961 = vadd.f32 %v941, %v955
          %v962 = vadd.f32 %v942, %v958
          %s963 = sld [smem:[#allocation7 + $0x10]]
          %v964 = vstv %s963
          %v965 = vmul.f32 %v964, %v606
          %v966 = vmul.f32 %v964, %v607
          %v967 = vmul.f32 %v964, %v608
          %v968 = vmul.f32 %v964, %v609
          %v973 = vrot.slane %v965, 4
          %v974 = vrot.slane %v967, 4
          %v975 = vsel %vm756, %v973, %v974
          %v976 = vrot.slane %v966, 4
          %v977 = vrot.slane %v968, 4
          %v978 = vsel %vm756, %v976, %v977
          %v981 = vadd.f32 %v961, %v975
          %v982 = vadd.f32 %v962, %v978
          %s983 = sld [smem:[#allocation7 + $0x11]]
          %v984 = vstv %s983
          %v985 = vmul.f32 %v984, %v663
          %v986 = vmul.f32 %v984, %v664
          %v987 = vmul.f32 %v984, %v665
          %v988 = vmul.f32 %v984, %v666
          %v993 = vrot.slane %v985, 4
          %v994 = vrot.slane %v987, 4
          %v995 = vsel %vm756, %v993, %v994
          %v996 = vrot.slane %v986, 4
          %v997 = vrot.slane %v988, 4
          %v998 = vsel %vm756, %v996, %v997
          %v1001 = vadd.f32 %v981, %v995
          %v1002 = vadd.f32 %v982, %v998
          %s1003 = sld [smem:[#allocation10 + $0x1]]
          %s1004 = sld [smem:[#allocation12 + $0x1]]
          %v1005 = vsel %vm556, %v1002, 0.0
          %v1006 = vadd.f32 %v1001, %v1005
          %1007 = vadd.xlane.f32.xlu0 %v1006
          %v1008 = vpop.xlane.xlu0 %1007
          %v1009 = vrot.slane %v1008, 4
          %v1010 = vadd.f32 %v1008, %v1009
          %v1011 = vrot.slane %v1010, 2
          %v1012 = vadd.f32 %v1010, %v1011
          %v1013 = vrot.slane %v1012, 1
          %v1014 = vadd.f32 %v1012, %v1013
          %s1015 = vtos %v1014
          %v1016 = vmul.f32 %v1001, %v1001
          %v1017 = vmul.f32 %v1002, %v1002
          %v1018 = vsel %vm556, %v1017, 0.0
          %v1019 = vadd.f32 %v1016, %v1018
          %1020 = vadd.xlane.f32.xlu0 %v1019
          %v1021 = vpop.xlane.xlu0 %1020
          %v1022 = vrot.slane %v1021, 4
          %v1023 = vadd.f32 %v1021, %v1022
          %v1024 = vrot.slane %v1023, 2
          %v1025 = vadd.f32 %v1023, %v1024
          %v1026 = vrot.slane %v1025, 1
          %v1027 = vadd.f32 %v1025, %v1026
          %s1028 = vtos %v1027
          %s1029 = smul.f32 %s1015, 0.00074404763
          %s1030 = smul.f32 %s1028, 0.00074404763
          %s1031 = smul.f32 %s1029, %s1029
          %s1032 = ssub.f32 %s1030, %s1031
          %v1033 = vstv %s1029
          %v1034 = vsub.f32 %v1001, %v1033
          %v1035 = vsub.f32 %v1002, %v1033
          %s1036 = sadd.f32 %s1032, 1e-05
          %v1037 = vstv %s1036
          %v1038 = vrsqrt.pop %v1037
          %s1039 = vtos %v1038
          %v1040 = vstv %s1039
          %v1041 = vmul.f32 %v1034, %v1040
          %v1042 = vmul.f32 %v1035, %v1040
          %v1043 = vstv %s1003
          %v1044 = vmul.f32 %v1041, %v1043
          %v1045 = vmul.f32 %v1042, %v1043
          %v1046 = vstv %s1004
          %v1047 = vadd.f32 %v1044, %v1046
          %v1048 = vadd.f32 %v1045, %v1046
          %v1049 = vmax.f32 %v1047, 0.0
          %v1050 = vmax.f32 %v1048, 0.0
          %v1053 = vrot.slane %v1049, 6
          %v1054 = vrot.slane %v1050, 6
          %s1057 = scalar_lea.vmem [#allocation3], 32
          %1058 = vst [vmem:[%s1057] sm:$0xfc] %v1053
          %1059 = vst.msk [vmem:[%s1057 + $0x8] sm:$0xfc] %vm594, %v1054
          %1060 = vst [vmem:[%s1057 + $0x10] sm:$0x3] %v1053
          %1061 = vst.msk [vmem:[%s1057 + $0x18] sm:$0x3] %vm597, %v1054
          %s1062 = sld [smem:[#allocation7 + $0x12]]
          %v1063 = vstv %s1062
          %v1064 = vmul.f32 %v1063, %v642
          %v1065 = vmul.f32 %v1063, %v643
          %v1066 = vadd.f32 %v1064, 0.0
          %v1067 = vadd.f32 %v1065, 0.0
          %s1068 = sld [smem:[#allocation7 + $0x13]]
          %v1069 = vstv %s1068
          %v1070 = vmul.f32 %v1069, %v606
          %v1071 = vmul.f32 %v1069, %v607
          %v1072 = vadd.f32 %v1066, %v1070
          %v1073 = vadd.f32 %v1067, %v1071
          %s1074 = sld [smem:[#allocation7 + $0x14]]
          %v1075 = vstv %s1074
          %v1076 = vmul.f32 %v1075, %v663
          %v1077 = vmul.f32 %v1075, %v664
          %v1078 = vadd.f32 %v1072, %v1076
          %v1079 = vadd.f32 %v1073, %v1077
          %s1080 = sld [smem:[#allocation7 + $0x15]]
          %v1081 = vstv %s1080
          %v1082 = vmul.f32 %v1081, %v642
          %v1083 = vmul.f32 %v1081, %v643
          %v1084 = vmul.f32 %v1081, %v644
          %v1085 = vmul.f32 %v1081, %v645
          %v1090 = vrot.slane %v1082, 2
          %v1091 = vrot.slane %v1084, 2
          %v1092 = vsel %vm695, %v1090, %v1091
          %v1093 = vrot.slane %v1083, 2
          %v1094 = vrot.slane %v1085, 2
          %v1095 = vsel %vm695, %v1093, %v1094
          %v1098 = vadd.f32 %v1078, %v1092
          %v1099 = vadd.f32 %v1079, %v1095
          %s1100 = sld [smem:[#allocation7 + $0x16]]
          %v1101 = vstv %s1100
          %v1102 = vmul.f32 %v1101, %v606
          %v1103 = vmul.f32 %v1101, %v607
          %v1104 = vmul.f32 %v1101, %v608
          %v1105 = vmul.f32 %v1101, %v609
          %v1110 = vrot.slane %v1102, 2
          %v1111 = vrot.slane %v1104, 2
          %v1112 = vsel %vm695, %v1110, %v1111
          %v1113 = vrot.slane %v1103, 2
          %v1114 = vrot.slane %v1105, 2
          %v1115 = vsel %vm695, %v1113, %v1114
          %v1118 = vadd.f32 %v1098, %v1112
          %v1119 = vadd.f32 %v1099, %v1115
          %s1120 = sld [smem:[#allocation7 + $0x17]]
          %v1121 = vstv %s1120
          %v1122 = vmul.f32 %v1121, %v663
          %v1123 = vmul.f32 %v1121, %v664
          %v1124 = vmul.f32 %v1121, %v665
          %v1125 = vmul.f32 %v1121, %v666
          %v1130 = vrot.slane %v1122, 2
          %v1131 = vrot.slane %v1124, 2
          %v1132 = vsel %vm695, %v1130, %v1131
          %v1133 = vrot.slane %v1123, 2
          %v1134 = vrot.slane %v1125, 2
          %v1135 = vsel %vm695, %v1133, %v1134
          %v1138 = vadd.f32 %v1118, %v1132
          %v1139 = vadd.f32 %v1119, %v1135
          %s1140 = sld [smem:[#allocation7 + $0x18]]
          %v1141 = vstv %s1140
          %v1142 = vmul.f32 %v1141, %v642
          %v1143 = vmul.f32 %v1141, %v643
          %v1144 = vmul.f32 %v1141, %v644
          %v1145 = vmul.f32 %v1141, %v645
          %v1150 = vrot.slane %v1142, 4
          %v1151 = vrot.slane %v1144, 4
          %v1152 = vsel %vm756, %v1150, %v1151
          %v1153 = vrot.slane %v1143, 4
          %v1154 = vrot.slane %v1145, 4
          %v1155 = vsel %vm756, %v1153, %v1154
          %v1158 = vadd.f32 %v1138, %v1152
          %v1159 = vadd.f32 %v1139, %v1155
          %s1160 = sld [smem:[#allocation7 + $0x19]]
          %v1161 = vstv %s1160
          %v1162 = vmul.f32 %v1161, %v606
          %v1163 = vmul.f32 %v1161, %v607
          %v1164 = vmul.f32 %v1161, %v608
          %v1165 = vmul.f32 %v1161, %v609
          %v1170 = vrot.slane %v1162, 4
          %v1171 = vrot.slane %v1164, 4
          %v1172 = vsel %vm756, %v1170, %v1171
          %v1173 = vrot.slane %v1163, 4
          %v1174 = vrot.slane %v1165, 4
          %v1175 = vsel %vm756, %v1173, %v1174
          %v1178 = vadd.f32 %v1158, %v1172
          %v1179 = vadd.f32 %v1159, %v1175
          %s1180 = sld [smem:[#allocation7 + $0x1a]]
          %v1181 = vstv %s1180
          %v1182 = vmul.f32 %v1181, %v663
          %v1183 = vmul.f32 %v1181, %v664
          %v1184 = vmul.f32 %v1181, %v665
          %v1185 = vmul.f32 %v1181, %v666
          %v1190 = vrot.slane %v1182, 4
          %v1191 = vrot.slane %v1184, 4
          %v1192 = vsel %vm756, %v1190, %v1191
          %v1193 = vrot.slane %v1183, 4
          %v1194 = vrot.slane %v1185, 4
          %v1195 = vsel %vm756, %v1193, %v1194
          %v1198 = vadd.f32 %v1178, %v1192
          %v1199 = vadd.f32 %v1179, %v1195
          %s1200 = sld [smem:[#allocation10 + $0x2]]
          %s1201 = sld [smem:[#allocation12 + $0x2]]
          %v1202 = vsel %vm556, %v1199, 0.0
          %v1203 = vadd.f32 %v1198, %v1202
          %1204 = vadd.xlane.f32.xlu0 %v1203
          %v1205 = vpop.xlane.xlu0 %1204
          %v1206 = vrot.slane %v1205, 4
          %v1207 = vadd.f32 %v1205, %v1206
          %v1208 = vrot.slane %v1207, 2
          %v1209 = vadd.f32 %v1207, %v1208
          %v1210 = vrot.slane %v1209, 1
          %v1211 = vadd.f32 %v1209, %v1210
          %s1212 = vtos %v1211
          %v1213 = vmul.f32 %v1198, %v1198
          %v1214 = vmul.f32 %v1199, %v1199
          %v1215 = vsel %vm556, %v1214, 0.0
          %v1216 = vadd.f32 %v1213, %v1215
          %1217 = vadd.xlane.f32.xlu0 %v1216
          %v1218 = vpop.xlane.xlu0 %1217
          %v1219 = vrot.slane %v1218, 4
          %v1220 = vadd.f32 %v1218, %v1219
          %v1221 = vrot.slane %v1220, 2
          %v1222 = vadd.f32 %v1220, %v1221
          %v1223 = vrot.slane %v1222, 1
          %v1224 = vadd.f32 %v1222, %v1223
          %s1225 = vtos %v1224
          %s1226 = smul.f32 %s1212, 0.00074404763
          %s1227 = smul.f32 %s1225, 0.00074404763
          %s1228 = smul.f32 %s1226, %s1226
          %s1229 = ssub.f32 %s1227, %s1228
          %v1230 = vstv %s1226
          %v1231 = vsub.f32 %v1198, %v1230
          %v1232 = vsub.f32 %v1199, %v1230
          %s1233 = sadd.f32 %s1229, 1e-05
          %v1234 = vstv %s1233
          %v1235 = vrsqrt.pop %v1234
          %s1236 = vtos %v1235
          %v1237 = vstv %s1236
          %v1238 = vmul.f32 %v1231, %v1237
          %v1239 = vmul.f32 %v1232, %v1237
          %v1240 = vstv %s1200
          %v1241 = vmul.f32 %v1238, %v1240
          %v1242 = vmul.f32 %v1239, %v1240
          %v1243 = vstv %s1201
          %v1244 = vadd.f32 %v1241, %v1243
          %v1245 = vadd.f32 %v1242, %v1243
          %v1246 = vmax.f32 %v1244, 0.0
          %v1247 = vmax.f32 %v1245, 0.0
          %v1250 = vrot.slane %v1246, 6
          %v1251 = vrot.slane %v1247, 6
          %s1254 = scalar_lea.vmem [#allocation3], 64
          %1255 = vst [vmem:[%s1254] sm:$0xfc] %v1250
          %1256 = vst.msk [vmem:[%s1254 + $0x8] sm:$0xfc] %vm594, %v1251
          %1257 = vst [vmem:[%s1254 + $0x10] sm:$0x3] %v1250
          %1258 = vst.msk [vmem:[%s1254 + $0x18] sm:$0x3] %vm597, %v1251
          %s1259 = sld [smem:[#allocation7 + $0x1b]]
          %v1260 = vstv %s1259
          %v1261 = vmul.f32 %v1260, %v642
          %v1262 = vmul.f32 %v1260, %v643
          %v1263 = vadd.f32 %v1261, 0.0
          %v1264 = vadd.f32 %v1262, 0.0
          %s1265 = sld [smem:[#allocation7 + $0x1c]]
          %v1266 = vstv %s1265
          %v1267 = vmul.f32 %v1266, %v606
          %v1268 = vmul.f32 %v1266, %v607
          %v1269 = vadd.f32 %v1263, %v1267
          %v1270 = vadd.f32 %v1264, %v1268
          %s1271 = sld [smem:[#allocation7 + $0x1d]]
          %v1272 = vstv %s1271
          %v1273 = vmul.f32 %v1272, %v663
          %v1274 = vmul.f32 %v1272, %v664
          %v1275 = vadd.f32 %v1269, %v1273
          %v1276 = vadd.f32 %v1270, %v1274
          %s1277 = sld [smem:[#allocation7 + $0x1e]]
          %v1278 = vstv %s1277
          %v1279 = vmul.f32 %v1278, %v642
          %v1280 = vmul.f32 %v1278, %v643
          %v1281 = vmul.f32 %v1278, %v644
          %v1282 = vmul.f32 %v1278, %v645
          %v1287 = vrot.slane %v1279, 2
          %v1288 = vrot.slane %v1281, 2
          %v1289 = vsel %vm695, %v1287, %v1288
          %v1290 = vrot.slane %v1280, 2
          %v1291 = vrot.slane %v1282, 2
          %v1292 = vsel %vm695, %v1290, %v1291
          %v1295 = vadd.f32 %v1275, %v1289
          %v1296 = vadd.f32 %v1276, %v1292
          %s1297 = sld [smem:[#allocation7 + $0x1f]]
          %v1298 = vstv %s1297
          %v1299 = vmul.f32 %v1298, %v606
          %v1300 = vmul.f32 %v1298, %v607
          %v1301 = vmul.f32 %v1298, %v608
          %v1302 = vmul.f32 %v1298, %v609
          %v1307 = vrot.slane %v1299, 2
          %v1308 = vrot.slane %v1301, 2
          %v1309 = vsel %vm695, %v1307, %v1308
          %v1310 = vrot.slane %v1300, 2
          %v1311 = vrot.slane %v1302, 2
          %v1312 = vsel %vm695, %v1310, %v1311
          %v1315 = vadd.f32 %v1295, %v1309
          %v1316 = vadd.f32 %v1296, %v1312
          %s1317 = sld [smem:[#allocation7 + $0x20]]
          %v1318 = vstv %s1317
          %v1319 = vmul.f32 %v1318, %v663
          %v1320 = vmul.f32 %v1318, %v664
          %v1321 = vmul.f32 %v1318, %v665
          %v1322 = vmul.f32 %v1318, %v666
          %v1327 = vrot.slane %v1319, 2
          %v1328 = vrot.slane %v1321, 2
          %v1329 = vsel %vm695, %v1327, %v1328
          %v1330 = vrot.slane %v1320, 2
          %v1331 = vrot.slane %v1322, 2
          %v1332 = vsel %vm695, %v1330, %v1331
          %v1335 = vadd.f32 %v1315, %v1329
          %v1336 = vadd.f32 %v1316, %v1332
          %s1337 = sld [smem:[#allocation7 + $0x21]]
          %v1338 = vstv %s1337
          %v1339 = vmul.f32 %v1338, %v642
          %v1340 = vmul.f32 %v1338, %v643
          %v1341 = vmul.f32 %v1338, %v644
          %v1342 = vmul.f32 %v1338, %v645
          %v1347 = vrot.slane %v1339, 4
          %v1348 = vrot.slane %v1341, 4
          %v1349 = vsel %vm756, %v1347, %v1348
          %v1350 = vrot.slane %v1340, 4
          %v1351 = vrot.slane %v1342, 4
          %v1352 = vsel %vm756, %v1350, %v1351
          %v1355 = vadd.f32 %v1335, %v1349
          %v1356 = vadd.f32 %v1336, %v1352
          %s1357 = sld [smem:[#allocation7 + $0x22]]
          %v1358 = vstv %s1357
          %v1359 = vmul.f32 %v1358, %v606
          %v1360 = vmul.f32 %v1358, %v607
          %v1361 = vmul.f32 %v1358, %v608
          %v1362 = vmul.f32 %v1358, %v609
          %v1367 = vrot.slane %v1359, 4
          %v1368 = vrot.slane %v1361, 4
          %v1369 = vsel %vm756, %v1367, %v1368
          %v1370 = vrot.slane %v1360, 4
          %v1371 = vrot.slane %v1362, 4
          %v1372 = vsel %vm756, %v1370, %v1371
          %v1375 = vadd.f32 %v1355, %v1369
          %v1376 = vadd.f32 %v1356, %v1372
          %s1377 = sld [smem:[#allocation7 + $0x23]]
          %v1378 = vstv %s1377
          %v1379 = vmul.f32 %v1378, %v663
          %v1380 = vmul.f32 %v1378, %v664
          %v1381 = vmul.f32 %v1378, %v665
          %v1382 = vmul.f32 %v1378, %v666
          %v1387 = vrot.slane %v1379, 4
          %v1388 = vrot.slane %v1381, 4
          %v1389 = vsel %vm756, %v1387, %v1388
          %v1390 = vrot.slane %v1380, 4
          %v1391 = vrot.slane %v1382, 4
          %v1392 = vsel %vm756, %v1390, %v1391
          %v1395 = vadd.f32 %v1375, %v1389
          %v1396 = vadd.f32 %v1376, %v1392
          %s1397 = sld [smem:[#allocation10 + $0x3]]
          %s1398 = sld [smem:[#allocation12 + $0x3]]
          %v1399 = vsel %vm556, %v1396, 0.0
          %v1400 = vadd.f32 %v1395, %v1399
          %1401 = vadd.xlane.f32.xlu0 %v1400
          %v1402 = vpop.xlane.xlu0 %1401
          %v1403 = vrot.slane %v1402, 4
          %v1404 = vadd.f32 %v1402, %v1403
          %v1405 = vrot.slane %v1404, 2
          %v1406 = vadd.f32 %v1404, %v1405
          %v1407 = vrot.slane %v1406, 1
          %v1408 = vadd.f32 %v1406, %v1407
          %s1409 = vtos %v1408
          %v1410 = vmul.f32 %v1395, %v1395
          %v1411 = vmul.f32 %v1396, %v1396
          %v1412 = vsel %vm556, %v1411, 0.0
          %v1413 = vadd.f32 %v1410, %v1412
          %1414 = vadd.xlane.f32.xlu0 %v1413
          %v1415 = vpop.xlane.xlu0 %1414
          %v1416 = vrot.slane %v1415, 4
          %v1417 = vadd.f32 %v1415, %v1416
          %v1418 = vrot.slane %v1417, 2
          %v1419 = vadd.f32 %v1417, %v1418
          %v1420 = vrot.slane %v1419, 1
          %v1421 = vadd.f32 %v1419, %v1420
          %s1422 = vtos %v1421
          %s1423 = smul.f32 %s1409, 0.00074404763
          %s1424 = smul.f32 %s1422, 0.00074404763
          %s1425 = smul.f32 %s1423, %s1423
          %s1426 = ssub.f32 %s1424, %s1425
          %v1427 = vstv %s1423
          %v1428 = vsub.f32 %v1395, %v1427
          %v1429 = vsub.f32 %v1396, %v1427
          %s1430 = sadd.f32 %s1426, 1e-05
          %v1431 = vstv %s1430
          %v1432 = vrsqrt.pop %v1431
          %s1433 = vtos %v1432
          %v1434 = vstv %s1433
          %v1435 = vmul.f32 %v1428, %v1434
          %v1436 = vmul.f32 %v1429, %v1434
          %v1437 = vstv %s1397
          %v1438 = vmul.f32 %v1435, %v1437
          %v1439 = vmul.f32 %v1436, %v1437
          %v1440 = vstv %s1398
          %v1441 = vadd.f32 %v1438, %v1440
          %v1442 = vadd.f32 %v1439, %v1440
          %v1443 = vmax.f32 %v1441, 0.0
          %v1444 = vmax.f32 %v1442, 0.0
          %v1447 = vrot.slane %v1443, 6
          %v1448 = vrot.slane %v1444, 6
          %s1451 = scalar_lea.vmem [#allocation3], 96
          %1452 = vst [vmem:[%s1451] sm:$0xfc] %v1447
          %1453 = vst.msk [vmem:[%s1451 + $0x8] sm:$0xfc] %vm594, %v1448
          %1454 = vst [vmem:[%s1451 + $0x10] sm:$0x3] %v1447
          %1455 = vst.msk [vmem:[%s1451 + $0x18] sm:$0x3] %vm597, %v1448
          %s1456 = sld [smem:[#allocation7 + $0x24]]
          %v1457 = vstv %s1456
          %v1458 = vmul.f32 %v1457, %v642
          %v1459 = vmul.f32 %v1457, %v643
          %v1460 = vadd.f32 %v1458, 0.0
          %v1461 = vadd.f32 %v1459, 0.0
          %s1462 = sld [smem:[#allocation7 + $0x25]]
          %v1463 = vstv %s1462
          %v1464 = vmul.f32 %v1463, %v606
          %v1465 = vmul.f32 %v1463, %v607
          %v1466 = vadd.f32 %v1460, %v1464
          %v1467 = vadd.f32 %v1461, %v1465
          %s1468 = sld [smem:[#allocation7 + $0x26]]
          %v1469 = vstv %s1468
          %v1470 = vmul.f32 %v1469, %v663
          %v1471 = vmul.f32 %v1469, %v664
          %v1472 = vadd.f32 %v1466, %v1470
          %v1473 = vadd.f32 %v1467, %v1471
          %s1474 = sld [smem:[#allocation7 + $0x27]]
          %v1475 = vstv %s1474
          %v1476 = vmul.f32 %v1475, %v642
          %v1477 = vmul.f32 %v1475, %v643
          %v1478 = vmul.f32 %v1475, %v644
          %v1479 = vmul.f32 %v1475, %v645
          %v1484 = vrot.slane %v1476, 2
          %v1485 = vrot.slane %v1478, 2
          %v1486 = vsel %vm695, %v1484, %v1485
          %v1487 = vrot.slane %v1477, 2
          %v1488 = vrot.slane %v1479, 2
          %v1489 = vsel %vm695, %v1487, %v1488
          %v1492 = vadd.f32 %v1472, %v1486
          %v1493 = vadd.f32 %v1473, %v1489
          %s1494 = sld [smem:[#allocation7 + $0x28]]
          %v1495 = vstv %s1494
          %v1496 = vmul.f32 %v1495, %v606
          %v1497 = vmul.f32 %v1495, %v607
          %v1498 = vmul.f32 %v1495, %v608
          %v1499 = vmul.f32 %v1495, %v609
          %v1504 = vrot.slane %v1496, 2
          %v1505 = vrot.slane %v1498, 2
          %v1506 = vsel %vm695, %v1504, %v1505
          %v1507 = vrot.slane %v1497, 2
          %v1508 = vrot.slane %v1499, 2
          %v1509 = vsel %vm695, %v1507, %v1508
          %v1512 = vadd.f32 %v1492, %v1506
          %v1513 = vadd.f32 %v1493, %v1509
          %s1514 = sld [smem:[#allocation7 + $0x29]]
          %v1515 = vstv %s1514
          %v1516 = vmul.f32 %v1515, %v663
          %v1517 = vmul.f32 %v1515, %v664
          %v1518 = vmul.f32 %v1515, %v665
          %v1519 = vmul.f32 %v1515, %v666
          %v1524 = vrot.slane %v1516, 2
          %v1525 = vrot.slane %v1518, 2
          %v1526 = vsel %vm695, %v1524, %v1525
          %v1527 = vrot.slane %v1517, 2
          %v1528 = vrot.slane %v1519, 2
          %v1529 = vsel %vm695, %v1527, %v1528
          %v1532 = vadd.f32 %v1512, %v1526
          %v1533 = vadd.f32 %v1513, %v1529
          %s1534 = sld [smem:[#allocation7 + $0x2a]]
          %v1535 = vstv %s1534
          %v1536 = vmul.f32 %v1535, %v642
          %v1537 = vmul.f32 %v1535, %v643
          %v1538 = vmul.f32 %v1535, %v644
          %v1539 = vmul.f32 %v1535, %v645
          %v1544 = vrot.slane %v1536, 4
          %v1545 = vrot.slane %v1538, 4
          %v1546 = vsel %vm756, %v1544, %v1545
          %v1547 = vrot.slane %v1537, 4
          %v1548 = vrot.slane %v1539, 4
          %v1549 = vsel %vm756, %v1547, %v1548
          %v1552 = vadd.f32 %v1532, %v1546
          %v1553 = vadd.f32 %v1533, %v1549
          %s1554 = sld [smem:[#allocation7 + $0x2b]]
          %v1555 = vstv %s1554
          %v1556 = vmul.f32 %v1555, %v606
          %v1557 = vmul.f32 %v1555, %v607
          %v1558 = vmul.f32 %v1555, %v608
          %v1559 = vmul.f32 %v1555, %v609
          %v1564 = vrot.slane %v1556, 4
          %v1565 = vrot.slane %v1558, 4
          %v1566 = vsel %vm756, %v1564, %v1565
          %v1567 = vrot.slane %v1557, 4
          %v1568 = vrot.slane %v1559, 4
          %v1569 = vsel %vm756, %v1567, %v1568
          %v1572 = vadd.f32 %v1552, %v1566
          %v1573 = vadd.f32 %v1553, %v1569
          %s1574 = sld [smem:[#allocation7 + $0x2c]]
          %v1575 = vstv %s1574
          %v1576 = vmul.f32 %v1575, %v663
          %v1577 = vmul.f32 %v1575, %v664
          %v1578 = vmul.f32 %v1575, %v665
          %v1579 = vmul.f32 %v1575, %v666
          %v1584 = vrot.slane %v1576, 4
          %v1585 = vrot.slane %v1578, 4
          %v1586 = vsel %vm756, %v1584, %v1585
          %v1587 = vrot.slane %v1577, 4
          %v1588 = vrot.slane %v1579, 4
          %v1589 = vsel %vm756, %v1587, %v1588
          %v1592 = vadd.f32 %v1572, %v1586
          %v1593 = vadd.f32 %v1573, %v1589
          %s1594 = sld [smem:[#allocation10 + $0x4]]
          %s1595 = sld [smem:[#allocation12 + $0x4]]
          %v1596 = vsel %vm556, %v1593, 0.0
          %v1597 = vadd.f32 %v1592, %v1596
          %1598 = vadd.xlane.f32.xlu0 %v1597
          %v1599 = vpop.xlane.xlu0 %1598
          %v1600 = vrot.slane %v1599, 4
          %v1601 = vadd.f32 %v1599, %v1600
          %v1602 = vrot.slane %v1601, 2
          %v1603 = vadd.f32 %v1601, %v1602
          %v1604 = vrot.slane %v1603, 1
          %v1605 = vadd.f32 %v1603, %v1604
          %s1606 = vtos %v1605
          %v1607 = vmul.f32 %v1592, %v1592
          %v1608 = vmul.f32 %v1593, %v1593
          %v1609 = vsel %vm556, %v1608, 0.0
          %v1610 = vadd.f32 %v1607, %v1609
          %1611 = vadd.xlane.f32.xlu0 %v1610
          %v1612 = vpop.xlane.xlu0 %1611
          %v1613 = vrot.slane %v1612, 4
          %v1614 = vadd.f32 %v1612, %v1613
          %v1615 = vrot.slane %v1614, 2
          %v1616 = vadd.f32 %v1614, %v1615
          %v1617 = vrot.slane %v1616, 1
          %v1618 = vadd.f32 %v1616, %v1617
          %s1619 = vtos %v1618
          %s1620 = smul.f32 %s1606, 0.00074404763
          %s1621 = smul.f32 %s1619, 0.00074404763
          %s1622 = smul.f32 %s1620, %s1620
          %s1623 = ssub.f32 %s1621, %s1622
          %v1624 = vstv %s1620
          %v1625 = vsub.f32 %v1592, %v1624
          %v1626 = vsub.f32 %v1593, %v1624
          %s1627 = sadd.f32 %s1623, 1e-05
          %v1628 = vstv %s1627
          %v1629 = vrsqrt.pop %v1628
          %s1630 = vtos %v1629
          %v1631 = vstv %s1630
          %v1632 = vmul.f32 %v1625, %v1631
          %v1633 = vmul.f32 %v1626, %v1631
          %v1634 = vstv %s1594
          %v1635 = vmul.f32 %v1632, %v1634
          %v1636 = vmul.f32 %v1633, %v1634
          %v1637 = vstv %s1595
          %v1638 = vadd.f32 %v1635, %v1637
          %v1639 = vadd.f32 %v1636, %v1637
          %v1640 = vmax.f32 %v1638, 0.0
          %v1641 = vmax.f32 %v1639, 0.0
          %v1644 = vrot.slane %v1640, 6
          %v1645 = vrot.slane %v1641, 6
          %s1648 = scalar_lea.vmem [#allocation3], 128
          %1649 = vst [vmem:[%s1648] sm:$0xfc] %v1644
          %1650 = vst.msk [vmem:[%s1648 + $0x8] sm:$0xfc] %vm594, %v1645
          %1651 = vst [vmem:[%s1648 + $0x10] sm:$0x3] %v1644
          %1652 = vst.msk [vmem:[%s1648 + $0x18] sm:$0x3] %vm597, %v1645
          %s1653 = sld [smem:[#allocation7 + $0x2d]]
          %v1654 = vstv %s1653
          %v1655 = vmul.f32 %v1654, %v642
          %v1656 = vmul.f32 %v1654, %v643
          %v1657 = vadd.f32 %v1655, 0.0
          %v1658 = vadd.f32 %v1656, 0.0
          %s1659 = sld [smem:[#allocation7 + $0x2e]]
          %v1660 = vstv %s1659
          %v1661 = vmul.f32 %v1660, %v606
          %v1662 = vmul.f32 %v1660, %v607
          %v1663 = vadd.f32 %v1657, %v1661
          %v1664 = vadd.f32 %v1658, %v1662
          %s1665 = sld [smem:[#allocation7 + $0x2f]]
          %v1666 = vstv %s1665
          %v1667 = vmul.f32 %v1666, %v663
          %v1668 = vmul.f32 %v1666, %v664
          %v1669 = vadd.f32 %v1663, %v1667
          %v1670 = vadd.f32 %v1664, %v1668
          %s1671 = sld [smem:[#allocation7 + $0x30]]
          %v1672 = vstv %s1671
          %v1673 = vmul.f32 %v1672, %v642
          %v1674 = vmul.f32 %v1672, %v643
          %v1675 = vmul.f32 %v1672, %v644
          %v1676 = vmul.f32 %v1672, %v645
          %v1681 = vrot.slane %v1673, 2
          %v1682 = vrot.slane %v1675, 2
          %v1683 = vsel %vm695, %v1681, %v1682
          %v1684 = vrot.slane %v1674, 2
          %v1685 = vrot.slane %v1676, 2
          %v1686 = vsel %vm695, %v1684, %v1685
          %v1689 = vadd.f32 %v1669, %v1683
          %v1690 = vadd.f32 %v1670, %v1686
          %s1691 = sld [smem:[#allocation7 + $0x31]]
          %v1692 = vstv %s1691
          %v1693 = vmul.f32 %v1692, %v606
          %v1694 = vmul.f32 %v1692, %v607
          %v1695 = vmul.f32 %v1692, %v608
          %v1696 = vmul.f32 %v1692, %v609
          %v1701 = vrot.slane %v1693, 2
          %v1702 = vrot.slane %v1695, 2
          %v1703 = vsel %vm695, %v1701, %v1702
          %v1704 = vrot.slane %v1694, 2
          %v1705 = vrot.slane %v1696, 2
          %v1706 = vsel %vm695, %v1704, %v1705
          %v1709 = vadd.f32 %v1689, %v1703
          %v1710 = vadd.f32 %v1690, %v1706
          %s1711 = sld [smem:[#allocation7 + $0x32]]
          %v1712 = vstv %s1711
          %v1713 = vmul.f32 %v1712, %v663
          %v1714 = vmul.f32 %v1712, %v664
          %v1715 = vmul.f32 %v1712, %v665
          %v1716 = vmul.f32 %v1712, %v666
          %v1721 = vrot.slane %v1713, 2
          %v1722 = vrot.slane %v1715, 2
          %v1723 = vsel %vm695, %v1721, %v1722
          %v1724 = vrot.slane %v1714, 2
          %v1725 = vrot.slane %v1716, 2
          %v1726 = vsel %vm695, %v1724, %v1725
          %v1729 = vadd.f32 %v1709, %v1723
          %v1730 = vadd.f32 %v1710, %v1726
          %s1731 = sld [smem:[#allocation7 + $0x33]]
          %v1732 = vstv %s1731
          %v1733 = vmul.f32 %v1732, %v642
          %v1734 = vmul.f32 %v1732, %v643
          %v1735 = vmul.f32 %v1732, %v644
          %v1736 = vmul.f32 %v1732, %v645
          %v1741 = vrot.slane %v1733, 4
          %v1742 = vrot.slane %v1735, 4
          %v1743 = vsel %vm756, %v1741, %v1742
          %v1744 = vrot.slane %v1734, 4
          %v1745 = vrot.slane %v1736, 4
          %v1746 = vsel %vm756, %v1744, %v1745
          %v1749 = vadd.f32 %v1729, %v1743
          %v1750 = vadd.f32 %v1730, %v1746
          %s1751 = sld [smem:[#allocation7 + $0x34]]
          %v1752 = vstv %s1751
          %v1753 = vmul.f32 %v1752, %v606
          %v1754 = vmul.f32 %v1752, %v607
          %v1755 = vmul.f32 %v1752, %v608
          %v1756 = vmul.f32 %v1752, %v609
          %v1761 = vrot.slane %v1753, 4
          %v1762 = vrot.slane %v1755, 4
          %v1763 = vsel %vm756, %v1761, %v1762
          %v1764 = vrot.slane %v1754, 4
          %v1765 = vrot.slane %v1756, 4
          %v1766 = vsel %vm756, %v1764, %v1765
          %v1769 = vadd.f32 %v1749, %v1763
          %v1770 = vadd.f32 %v1750, %v1766
          %s1771 = sld [smem:[#allocation7 + $0x35]]
          %v1772 = vstv %s1771
          %v1773 = vmul.f32 %v1772, %v663
          %v1774 = vmul.f32 %v1772, %v664
          %v1775 = vmul.f32 %v1772, %v665
          %v1776 = vmul.f32 %v1772, %v666
          %v1781 = vrot.slane %v1773, 4
          %v1782 = vrot.slane %v1775, 4
          %v1783 = vsel %vm756, %v1781, %v1782
          %v1784 = vrot.slane %v1774, 4
          %v1785 = vrot.slane %v1776, 4
          %v1786 = vsel %vm756, %v1784, %v1785
          %v1789 = vadd.f32 %v1769, %v1783
          %v1790 = vadd.f32 %v1770, %v1786
          %s1791 = sld [smem:[#allocation10 + $0x5]]
          %s1792 = sld [smem:[#allocation12 + $0x5]]
          %v1793 = vsel %vm556, %v1790, 0.0
          %v1794 = vadd.f32 %v1789, %v1793
          %1795 = vadd.xlane.f32.xlu0 %v1794
          %v1796 = vpop.xlane.xlu0 %1795
          %v1797 = vrot.slane %v1796, 4
          %v1798 = vadd.f32 %v1796, %v1797
          %v1799 = vrot.slane %v1798, 2
          %v1800 = vadd.f32 %v1798, %v1799
          %v1801 = vrot.slane %v1800, 1
          %v1802 = vadd.f32 %v1800, %v1801
          %s1803 = vtos %v1802
          %v1804 = vmul.f32 %v1789, %v1789
          %v1805 = vmul.f32 %v1790, %v1790
          %v1806 = vsel %vm556, %v1805, 0.0
          %v1807 = vadd.f32 %v1804, %v1806
          %1808 = vadd.xlane.f32.xlu0 %v1807
          %v1809 = vpop.xlane.xlu0 %1808
          %v1810 = vrot.slane %v1809, 4
          %v1811 = vadd.f32 %v1809, %v1810
          %v1812 = vrot.slane %v1811, 2
          %v1813 = vadd.f32 %v1811, %v1812
          %v1814 = vrot.slane %v1813, 1
          %v1815 = vadd.f32 %v1813, %v1814
          %s1816 = vtos %v1815
          %s1817 = smul.f32 %s1803, 0.00074404763
          %s1818 = smul.f32 %s1816, 0.00074404763
          %s1819 = smul.f32 %s1817, %s1817
          %s1820 = ssub.f32 %s1818, %s1819
          %v1821 = vstv %s1817
          %v1822 = vsub.f32 %v1789, %v1821
          %v1823 = vsub.f32 %v1790, %v1821
          %s1824 = sadd.f32 %s1820, 1e-05
          %v1825 = vstv %s1824
          %v1826 = vrsqrt.pop %v1825
          %s1827 = vtos %v1826
          %v1828 = vstv %s1827
          %v1829 = vmul.f32 %v1822, %v1828
          %v1830 = vmul.f32 %v1823, %v1828
          %v1831 = vstv %s1791
          %v1832 = vmul.f32 %v1829, %v1831
          %v1833 = vmul.f32 %v1830, %v1831
          %v1834 = vstv %s1792
          %v1835 = vadd.f32 %v1832, %v1834
          %v1836 = vadd.f32 %v1833, %v1834
          %v1837 = vmax.f32 %v1835, 0.0
          %v1838 = vmax.f32 %v1836, 0.0
          %v1841 = vrot.slane %v1837, 6
          %v1842 = vrot.slane %v1838, 6
          %s1845 = scalar_lea.vmem [#allocation3], 160
          %1846 = vst [vmem:[%s1845] sm:$0xfc] %v1841
          %1847 = vst.msk [vmem:[%s1845 + $0x8] sm:$0xfc] %vm594, %v1842
          %1848 = vst [vmem:[%s1845 + $0x10] sm:$0x3] %v1841
          %1849 = vst.msk [vmem:[%s1845 + $0x18] sm:$0x3] %vm597, %v1842
          %v1850 = vld [vmem:[#allocation3] sm:$0xff]
          %v1851 = vld [vmem:[#allocation3 + $0x8] sm:$0xff]
          %v1852 = vld [vmem:[#allocation3 + $0x10] sm:$0xf]
          %v1853 = vld [vmem:[#allocation3 + $0x18] sm:$0xf]
          %1854 = vrot.lane.b32.xlu0 %v1850, 40
          %v1855 = vpop.permute.xlu0 %1854
          %v1856 = vsel %vm610, %v1855, %v1851
          %1857 = vrot.lane.b32.xlu0 %v1852, 40
          %v1858 = vpop.permute.xlu0 %1857
          %v1859 = vsel %vm610, %v1858, %v1853
          %1860 = vrot.lane.b32.xlu0 %v1856, 40
          %v1861 = vpop.permute.xlu0 %1860
          %1862 = vrot.lane.b32.xlu0 %v1859, 40
          %v1863 = vpop.permute.xlu0 %1862
          %v1864 = vsel %vm610, %v1861, %v1855
          %v1865 = vsel %vm610, %v1863, %v1858
          %1870 = vrot.lane.b32.xlu0 %v1856, 89
          %v1871 = vpop.permute.xlu0 %1870
          %1872 = vrot.lane.b32.xlu0 %v1864, 89
          %v1873 = vpop.permute.xlu0 %1872
          %1874 = vrot.lane.b32.xlu0 %v1859, 89
          %v1875 = vpop.permute.xlu0 %1874
          %1876 = vrot.lane.b32.xlu0 %v1865, 89
          %v1877 = vpop.permute.xlu0 %1876
          %v1878 = vsel %vm635, %v1871, %v1873
          %v1879 = vsel %vm635, %v1875, %v1877
          %v1884 = vsel %vm602, %v1878, 0.0
          %v1885 = vsel %vm603, %v1873, 0.0
          %v1886 = vsel %vm602, %v1879, 0.0
          %v1887 = vsel %vm603, %v1877, 0.0
          %1890 = vrot.lane.b32.xlu0 %v1850, 127
          %v1891 = vpop.permute.xlu0 %1890
          %1892 = vrot.lane.b32.xlu0 %v1856, 127
          %v1893 = vpop.permute.xlu0 %1892
          %1894 = vrot.lane.b32.xlu0 %v1852, 127
          %v1895 = vpop.permute.xlu0 %1894
          %1896 = vrot.lane.b32.xlu0 %v1859, 127
          %v1897 = vpop.permute.xlu0 %1896
          %v1898 = vsel %vm656, %v1891, %v1893
          %v1899 = vsel %vm656, %v1895, %v1897
          %v1904 = vsel %vm604, %v1898, 0.0
          %v1905 = vsel %vm605, %v1893, 0.0
          %v1906 = vsel %vm604, %v1899, 0.0
          %v1907 = vsel %vm605, %v1897, 0.0
          %s1908 = sld [smem:[#allocation13]]
          %v1909 = vstv %s1908
          %v1910 = vmul.f32 %v1909, %v1884
          %v1911 = vmul.f32 %v1909, %v1885
          %v1912 = vadd.f32 %v1910, 0.0
          %v1913 = vadd.f32 %v1911, 0.0
          %s1914 = sld [smem:[#allocation13 + $0x1]]
          %v1915 = vstv %s1914
          %v1916 = vmul.f32 %v1915, %v1850
          %v1917 = vmul.f32 %v1915, %v1851
          %v1918 = vadd.f32 %v1912, %v1916
          %v1919 = vadd.f32 %v1913, %v1917
          %s1920 = sld [smem:[#allocation13 + $0x2]]
          %v1921 = vstv %s1920
          %v1922 = vmul.f32 %v1921, %v1904
          %v1923 = vmul.f32 %v1921, %v1905
          %v1924 = vadd.f32 %v1918, %v1922
          %v1925 = vadd.f32 %v1919, %v1923
          %s1926 = sld [smem:[#allocation13 + $0x3]]
          %v1927 = vstv %s1926
          %v1928 = vmul.f32 %v1927, %v1884
          %v1929 = vmul.f32 %v1927, %v1885
          %v1930 = vmul.f32 %v1927, %v1886
          %v1931 = vmul.f32 %v1927, %v1887
          %v1936 = vrot.slane %v1928, 2
          %v1937 = vrot.slane %v1930, 2
          %v1938 = vsel %vm695, %v1936, %v1937
          %v1939 = vrot.slane %v1929, 2
          %v1940 = vrot.slane %v1931, 2
          %v1941 = vsel %vm695, %v1939, %v1940
          %v1944 = vadd.f32 %v1924, %v1938
          %v1945 = vadd.f32 %v1925, %v1941
          %s1946 = sld [smem:[#allocation13 + $0x4]]
          %v1947 = vstv %s1946
          %v1948 = vmul.f32 %v1947, %v1850
          %v1949 = vmul.f32 %v1947, %v1851
          %v1950 = vmul.f32 %v1947, %v1852
          %v1951 = vmul.f32 %v1947, %v1853
          %v1956 = vrot.slane %v1948, 2
          %v1957 = vrot.slane %v1950, 2
          %v1958 = vsel %vm695, %v1956, %v1957
          %v1959 = vrot.slane %v1949, 2
          %v1960 = vrot.slane %v1951, 2
          %v1961 = vsel %vm695, %v1959, %v1960
          %v1964 = vadd.f32 %v1944, %v1958
          %v1965 = vadd.f32 %v1945, %v1961
          %s1966 = sld [smem:[#allocation13 + $0x5]]
          %v1967 = vstv %s1966
          %v1968 = vmul.f32 %v1967, %v1904
          %v1969 = vmul.f32 %v1967, %v1905
          %v1970 = vmul.f32 %v1967, %v1906
          %v1971 = vmul.f32 %v1967, %v1907
          %v1976 = vrot.slane %v1968, 2
          %v1977 = vrot.slane %v1970, 2
          %v1978 = vsel %vm695, %v1976, %v1977
          %v1979 = vrot.slane %v1969, 2
          %v1980 = vrot.slane %v1971, 2
          %v1981 = vsel %vm695, %v1979, %v1980
          %v1984 = vadd.f32 %v1964, %v1978
          %v1985 = vadd.f32 %v1965, %v1981
          %s1986 = sld [smem:[#allocation13 + $0x6]]
          %v1987 = vstv %s1986
          %v1988 = vmul.f32 %v1987, %v1884
          %v1989 = vmul.f32 %v1987, %v1885
          %v1990 = vmul.f32 %v1987, %v1886
          %v1991 = vmul.f32 %v1987, %v1887
          %v1996 = vrot.slane %v1988, 4
          %v1997 = vrot.slane %v1990, 4
          %v1998 = vsel %vm756, %v1996, %v1997
          %v1999 = vrot.slane %v1989, 4
          %v2000 = vrot.slane %v1991, 4
          %v2001 = vsel %vm756, %v1999, %v2000
          %v2004 = vadd.f32 %v1984, %v1998
          %v2005 = vadd.f32 %v1985, %v2001
          %s2006 = sld [smem:[#allocation13 + $0x7]]
          %v2007 = vstv %s2006
          %v2008 = vmul.f32 %v2007, %v1850
          %v2009 = vmul.f32 %v2007, %v1851
          %v2010 = vmul.f32 %v2007, %v1852
          %v2011 = vmul.f32 %v2007, %v1853
          %v2016 = vrot.slane %v2008, 4
          %v2017 = vrot.slane %v2010, 4
          %v2018 = vsel %vm756, %v2016, %v2017
          %v2019 = vrot.slane %v2009, 4
          %v2020 = vrot.slane %v2011, 4
          %v2021 = vsel %vm756, %v2019, %v2020
          %v2024 = vadd.f32 %v2004, %v2018
          %v2025 = vadd.f32 %v2005, %v2021
          %s2026 = sld [smem:[#allocation13 + $0x8]]
          %v2027 = vstv %s2026
          %v2028 = vmul.f32 %v2027, %v1904
          %v2029 = vmul.f32 %v2027, %v1905
          %v2030 = vmul.f32 %v2027, %v1906
          %v2031 = vmul.f32 %v2027, %v1907
          %v2036 = vrot.slane %v2028, 4
          %v2037 = vrot.slane %v2030, 4
          %v2038 = vsel %vm756, %v2036, %v2037
          %v2039 = vrot.slane %v2029, 4
          %v2040 = vrot.slane %v2031, 4
          %v2041 = vsel %vm756, %v2039, %v2040
          %v2044 = vadd.f32 %v2024, %v2038
          %v2045 = vadd.f32 %v2025, %v2041
          %s2046 = sld [smem:[#allocation13 + $0x36]]
          %v2047 = vstv %s2046
          %v2048 = vmul.f32 %v2047, %v1884
          %v2049 = vmul.f32 %v2047, %v1885
          %v2050 = vadd.f32 %v2048, 0.0
          %v2051 = vadd.f32 %v2049, 0.0
          %s2052 = sld [smem:[#allocation13 + $0x37]]
          %v2053 = vstv %s2052
          %v2054 = vmul.f32 %v2053, %v1850
          %v2055 = vmul.f32 %v2053, %v1851
          %v2056 = vadd.f32 %v2050, %v2054
          %v2057 = vadd.f32 %v2051, %v2055
          %s2058 = sld [smem:[#allocation13 + $0x38]]
          %v2059 = vstv %s2058
          %v2060 = vmul.f32 %v2059, %v1904
          %v2061 = vmul.f32 %v2059, %v1905
          %v2062 = vadd.f32 %v2056, %v2060
          %v2063 = vadd.f32 %v2057, %v2061
          %s2064 = sld [smem:[#allocation13 + $0x39]]
          %v2065 = vstv %s2064
          %v2066 = vmul.f32 %v2065, %v1884
          %v2067 = vmul.f32 %v2065, %v1885
          %v2068 = vmul.f32 %v2065, %v1886
          %v2069 = vmul.f32 %v2065, %v1887
          %v2074 = vrot.slane %v2066, 2
          %v2075 = vrot.slane %v2068, 2
          %v2076 = vsel %vm695, %v2074, %v2075
          %v2077 = vrot.slane %v2067, 2
          %v2078 = vrot.slane %v2069, 2
          %v2079 = vsel %vm695, %v2077, %v2078
          %v2082 = vadd.f32 %v2062, %v2076
          %v2083 = vadd.f32 %v2063, %v2079
          %s2084 = sld [smem:[#allocation13 + $0x3a]]
          %v2085 = vstv %s2084
          %v2086 = vmul.f32 %v2085, %v1850
          %v2087 = vmul.f32 %v2085, %v1851
          %v2088 = vmul.f32 %v2085, %v1852
          %v2089 = vmul.f32 %v2085, %v1853
          %v2094 = vrot.slane %v2086, 2
          %v2095 = vrot.slane %v2088, 2
          %v2096 = vsel %vm695, %v2094, %v2095
          %v2097 = vrot.slane %v2087, 2
          %v2098 = vrot.slane %v2089, 2
          %v2099 = vsel %vm695, %v2097, %v2098
          %v2102 = vadd.f32 %v2082, %v2096
          %v2103 = vadd.f32 %v2083, %v2099
          %s2104 = sld [smem:[#allocation13 + $0x3b]]
          %v2105 = vstv %s2104
          %v2106 = vmul.f32 %v2105, %v1904
          %v2107 = vmul.f32 %v2105, %v1905
          %v2108 = vmul.f32 %v2105, %v1906
          %v2109 = vmul.f32 %v2105, %v1907
          %v2114 = vrot.slane %v2106, 2
          %v2115 = vrot.slane %v2108, 2
          %v2116 = vsel %vm695, %v2114, %v2115
          %v2117 = vrot.slane %v2107, 2
          %v2118 = vrot.slane %v2109, 2
          %v2119 = vsel %vm695, %v2117, %v2118
          %v2122 = vadd.f32 %v2102, %v2116
          %v2123 = vadd.f32 %v2103, %v2119
          %s2124 = sld [smem:[#allocation13 + $0x3c]]
          %v2125 = vstv %s2124
          %v2126 = vmul.f32 %v2125, %v1884
          %v2127 = vmul.f32 %v2125, %v1885
          %v2128 = vmul.f32 %v2125, %v1886
          %v2129 = vmul.f32 %v2125, %v1887
          %v2134 = vrot.slane %v2126, 4
          %v2135 = vrot.slane %v2128, 4
          %v2136 = vsel %vm756, %v2134, %v2135
          %v2137 = vrot.slane %v2127, 4
          %v2138 = vrot.slane %v2129, 4
          %v2139 = vsel %vm756, %v2137, %v2138
          %v2142 = vadd.f32 %v2122, %v2136
          %v2143 = vadd.f32 %v2123, %v2139
          %s2144 = sld [smem:[#allocation13 + $0x3d]]
          %v2145 = vstv %s2144
          %v2146 = vmul.f32 %v2145, %v1850
          %v2147 = vmul.f32 %v2145, %v1851
          %v2148 = vmul.f32 %v2145, %v1852
          %v2149 = vmul.f32 %v2145, %v1853
          %v2154 = vrot.slane %v2146, 4
          %v2155 = vrot.slane %v2148, 4
          %v2156 = vsel %vm756, %v2154, %v2155
          %v2157 = vrot.slane %v2147, 4
          %v2158 = vrot.slane %v2149, 4
          %v2159 = vsel %vm756, %v2157, %v2158
          %v2162 = vadd.f32 %v2142, %v2156
          %v2163 = vadd.f32 %v2143, %v2159
          %s2164 = sld [smem:[#allocation13 + $0x3e]]
          %v2165 = vstv %s2164
          %v2166 = vmul.f32 %v2165, %v1904
          %v2167 = vmul.f32 %v2165, %v1905
          %v2168 = vmul.f32 %v2165, %v1906
          %v2169 = vmul.f32 %v2165, %v1907
          %v2174 = vrot.slane %v2166, 4
          %v2175 = vrot.slane %v2168, 4
          %v2176 = vsel %vm756, %v2174, %v2175
          %v2177 = vrot.slane %v2167, 4
          %v2178 = vrot.slane %v2169, 4
          %v2179 = vsel %vm756, %v2177, %v2178
          %v2182 = vadd.f32 %v2162, %v2176
          %v2183 = vadd.f32 %v2163, %v2179
          %s2184 = sld [smem:[#allocation13 + $0x6c]]
          %v2185 = vstv %s2184
          %v2186 = vmul.f32 %v2185, %v1884
          %v2187 = vmul.f32 %v2185, %v1885
          %v2188 = vadd.f32 %v2186, 0.0
          %v2189 = vadd.f32 %v2187, 0.0
          %s2190 = sld [smem:[#allocation13 + $0x6d]]
          %v2191 = vstv %s2190
          %v2192 = vmul.f32 %v2191, %v1850
          %v2193 = vmul.f32 %v2191, %v1851
          %v2194 = vadd.f32 %v2188, %v2192
          %v2195 = vadd.f32 %v2189, %v2193
          %s2196 = sld [smem:[#allocation13 + $0x6e]]
          %v2197 = vstv %s2196
          %v2198 = vmul.f32 %v2197, %v1904
          %v2199 = vmul.f32 %v2197, %v1905
          %v2200 = vadd.f32 %v2194, %v2198
          %v2201 = vadd.f32 %v2195, %v2199
          %s2202 = sld [smem:[#allocation13 + $0x6f]]
          %v2203 = vstv %s2202
          %v2204 = vmul.f32 %v2203, %v1884
          %v2205 = vmul.f32 %v2203, %v1885
          %v2206 = vmul.f32 %v2203, %v1886
          %v2207 = vmul.f32 %v2203, %v1887
          %v2212 = vrot.slane %v2204, 2
          %v2213 = vrot.slane %v2206, 2
          %v2214 = vsel %vm695, %v2212, %v2213
          %v2215 = vrot.slane %v2205, 2
          %v2216 = vrot.slane %v2207, 2
          %v2217 = vsel %vm695, %v2215, %v2216
          %v2220 = vadd.f32 %v2200, %v2214
          %v2221 = vadd.f32 %v2201, %v2217
          %s2222 = sld [smem:[#allocation13 + $0x70]]
          %v2223 = vstv %s2222
          %v2224 = vmul.f32 %v2223, %v1850
          %v2225 = vmul.f32 %v2223, %v1851
          %v2226 = vmul.f32 %v2223, %v1852
          %v2227 = vmul.f32 %v2223, %v1853
          %v2232 = vrot.slane %v2224, 2
          %v2233 = vrot.slane %v2226, 2
          %v2234 = vsel %vm695, %v2232, %v2233
          %v2235 = vrot.slane %v2225, 2
          %v2236 = vrot.slane %v2227, 2
          %v2237 = vsel %vm695, %v2235, %v2236
          %v2240 = vadd.f32 %v2220, %v2234
          %v2241 = vadd.f32 %v2221, %v2237
          %s2242 = sld [smem:[#allocation13 + $0x71]]
          %v2243 = vstv %s2242
          %v2244 = vmul.f32 %v2243, %v1904
          %v2245 = vmul.f32 %v2243, %v1905
          %v2246 = vmul.f32 %v2243, %v1906
          %v2247 = vmul.f32 %v2243, %v1907
          %v2252 = vrot.slane %v2244, 2
          %v2253 = vrot.slane %v2246, 2
          %v2254 = vsel %vm695, %v2252, %v2253
          %v2255 = vrot.slane %v2245, 2
          %v2256 = vrot.slane %v2247, 2
          %v2257 = vsel %vm695, %v2255, %v2256
          %v2260 = vadd.f32 %v2240, %v2254
          %v2261 = vadd.f32 %v2241, %v2257
          %s2262 = sld [smem:[#allocation13 + $0x72]]
          %v2263 = vstv %s2262
          %v2264 = vmul.f32 %v2263, %v1884
          %v2265 = vmul.f32 %v2263, %v1885
          %v2266 = vmul.f32 %v2263, %v1886
          %v2267 = vmul.f32 %v2263, %v1887
          %v2272 = vrot.slane %v2264, 4
          %v2273 = vrot.slane %v2266, 4
          %v2274 = vsel %vm756, %v2272, %v2273
          %v2275 = vrot.slane %v2265, 4
          %v2276 = vrot.slane %v2267, 4
          %v2277 = vsel %vm756, %v2275, %v2276
          %v2280 = vadd.f32 %v2260, %v2274
          %v2281 = vadd.f32 %v2261, %v2277
          %s2282 = sld [smem:[#allocation13 + $0x73]]
          %v2283 = vstv %s2282
          %v2284 = vmul.f32 %v2283, %v1850
          %v2285 = vmul.f32 %v2283, %v1851
          %v2286 = vmul.f32 %v2283, %v1852
          %v2287 = vmul.f32 %v2283, %v1853
          %v2292 = vrot.slane %v2284, 4
          %v2293 = vrot.slane %v2286, 4
          %v2294 = vsel %vm756, %v2292, %v2293
          %v2295 = vrot.slane %v2285, 4
          %v2296 = vrot.slane %v2287, 4
          %v2297 = vsel %vm756, %v2295, %v2296
          %v2300 = vadd.f32 %v2280, %v2294
          %v2301 = vadd.f32 %v2281, %v2297
          %s2302 = sld [smem:[#allocation13 + $0x74]]
          %v2303 = vstv %s2302
          %v2304 = vmul.f32 %v2303, %v1904
          %v2305 = vmul.f32 %v2303, %v1905
          %v2306 = vmul.f32 %v2303, %v1906
          %v2307 = vmul.f32 %v2303, %v1907
          %v2312 = vrot.slane %v2304, 4
          %v2313 = vrot.slane %v2306, 4
          %v2314 = vsel %vm756, %v2312, %v2313
          %v2315 = vrot.slane %v2305, 4
          %v2316 = vrot.slane %v2307, 4
          %v2317 = vsel %vm756, %v2315, %v2316
          %v2320 = vadd.f32 %v2300, %v2314
          %v2321 = vadd.f32 %v2301, %v2317
          %v2322 = vld [vmem:[%s1057] sm:$0xff]
          %v2323 = vld [vmem:[%s1057 + $0x8] sm:$0xff]
          %v2324 = vld [vmem:[%s1057 + $0x10] sm:$0xf]
          %v2325 = vld [vmem:[%s1057 + $0x18] sm:$0xf]
          %2326 = vrot.lane.b32.xlu0 %v2322, 40
          %v2327 = vpop.permute.xlu0 %2326
          %v2328 = vsel %vm610, %v2327, %v2323
          %2329 = vrot.lane.b32.xlu0 %v2324, 40
          %v2330 = vpop.permute.xlu0 %2329
          %v2331 = vsel %vm610, %v2330, %v2325
          %2332 = vrot.lane.b32.xlu0 %v2328, 40
          %v2333 = vpop.permute.xlu0 %2332
          %2334 = vrot.lane.b32.xlu0 %v2331, 40
          %v2335 = vpop.permute.xlu0 %2334
          %v2336 = vsel %vm610, %v2333, %v2327
          %v2337 = vsel %vm610, %v2335, %v2330
          %2342 = vrot.lane.b32.xlu0 %v2328, 89
          %v2343 = vpop.permute.xlu0 %2342
          %2344 = vrot.lane.b32.xlu0 %v2336, 89
          %v2345 = vpop.permute.xlu0 %2344
          %2346 = vrot.lane.b32.xlu0 %v2331, 89
          %v2347 = vpop.permute.xlu0 %2346
          %2348 = vrot.lane.b32.xlu0 %v2337, 89
          %v2349 = vpop.permute.xlu0 %2348
          %v2350 = vsel %vm635, %v2343, %v2345
          %v2351 = vsel %vm635, %v2347, %v2349
          %v2356 = vsel %vm602, %v2350, 0.0
          %v2357 = vsel %vm603, %v2345, 0.0
          %v2358 = vsel %vm602, %v2351, 0.0
          %v2359 = vsel %vm603, %v2349, 0.0
          %2362 = vrot.lane.b32.xlu0 %v2322, 127
          %v2363 = vpop.permute.xlu0 %2362
          %2364 = vrot.lane.b32.xlu0 %v2328, 127
          %v2365 = vpop.permute.xlu0 %2364
          %2366 = vrot.lane.b32.xlu0 %v2324, 127
          %v2367 = vpop.permute.xlu0 %2366
          %2368 = vrot.lane.b32.xlu0 %v2331, 127
          %v2369 = vpop.permute.xlu0 %2368
          %v2370 = vsel %vm656, %v2363, %v2365
          %v2371 = vsel %vm656, %v2367, %v2369
          %v2376 = vsel %vm604, %v2370, 0.0
          %v2377 = vsel %vm605, %v2365, 0.0
          %v2378 = vsel %vm604, %v2371, 0.0
          %v2379 = vsel %vm605, %v2369, 0.0
          %s2380 = sld [smem:[#allocation13 + $0x9]]
          %v2381 = vstv %s2380
          %v2382 = vmul.f32 %v2381, %v2356
          %v2383 = vmul.f32 %v2381, %v2357
          %v2384 = vadd.f32 %v2044, %v2382
          %v2385 = vadd.f32 %v2045, %v2383
          %s2386 = sld [smem:[#allocation13 + $0xa]]
          %v2387 = vstv %s2386
          %v2388 = vmul.f32 %v2387, %v2322
          %v2389 = vmul.f32 %v2387, %v2323
          %v2390 = vadd.f32 %v2384, %v2388
          %v2391 = vadd.f32 %v2385, %v2389
          %s2392 = sld [smem:[#allocation13 + $0xb]]
          %v2393 = vstv %s2392
          %v2394 = vmul.f32 %v2393, %v2376
          %v2395 = vmul.f32 %v2393, %v2377
          %v2396 = vadd.f32 %v2390, %v2394
          %v2397 = vadd.f32 %v2391, %v2395
          %s2398 = sld [smem:[#allocation13 + $0xc]]
          %v2399 = vstv %s2398
          %v2400 = vmul.f32 %v2399, %v2356
          %v2401 = vmul.f32 %v2399, %v2357
          %v2402 = vmul.f32 %v2399, %v2358
          %v2403 = vmul.f32 %v2399, %v2359
          %v2408 = vrot.slane %v2400, 2
          %v2409 = vrot.slane %v2402, 2
          %v2410 = vsel %vm695, %v2408, %v2409
          %v2411 = vrot.slane %v2401, 2
          %v2412 = vrot.slane %v2403, 2
          %v2413 = vsel %vm695, %v2411, %v2412
          %v2416 = vadd.f32 %v2396, %v2410
          %v2417 = vadd.f32 %v2397, %v2413
          %s2418 = sld [smem:[#allocation13 + $0xd]]
          %v2419 = vstv %s2418
          %v2420 = vmul.f32 %v2419, %v2322
          %v2421 = vmul.f32 %v2419, %v2323
          %v2422 = vmul.f32 %v2419, %v2324
          %v2423 = vmul.f32 %v2419, %v2325
          %v2428 = vrot.slane %v2420, 2
          %v2429 = vrot.slane %v2422, 2
          %v2430 = vsel %vm695, %v2428, %v2429
          %v2431 = vrot.slane %v2421, 2
          %v2432 = vrot.slane %v2423, 2
          %v2433 = vsel %vm695, %v2431, %v2432
          %v2436 = vadd.f32 %v2416, %v2430
          %v2437 = vadd.f32 %v2417, %v2433
          %s2438 = sld [smem:[#allocation13 + $0xe]]
          %v2439 = vstv %s2438
          %v2440 = vmul.f32 %v2439, %v2376
          %v2441 = vmul.f32 %v2439, %v2377
          %v2442 = vmul.f32 %v2439, %v2378
          %v2443 = vmul.f32 %v2439, %v2379
          %v2448 = vrot.slane %v2440, 2
          %v2449 = vrot.slane %v2442, 2
          %v2450 = vsel %vm695, %v2448, %v2449
          %v2451 = vrot.slane %v2441, 2
          %v2452 = vrot.slane %v2443, 2
          %v2453 = vsel %vm695, %v2451, %v2452
          %v2456 = vadd.f32 %v2436, %v2450
          %v2457 = vadd.f32 %v2437, %v2453
          %s2458 = sld [smem:[#allocation13 + $0xf]]
          %v2459 = vstv %s2458
          %v2460 = vmul.f32 %v2459, %v2356
          %v2461 = vmul.f32 %v2459, %v2357
          %v2462 = vmul.f32 %v2459, %v2358
          %v2463 = vmul.f32 %v2459, %v2359
          %v2468 = vrot.slane %v2460, 4
          %v2469 = vrot.slane %v2462, 4
          %v2470 = vsel %vm756, %v2468, %v2469
          %v2471 = vrot.slane %v2461, 4
          %v2472 = vrot.slane %v2463, 4
          %v2473 = vsel %vm756, %v2471, %v2472
          %v2476 = vadd.f32 %v2456, %v2470
          %v2477 = vadd.f32 %v2457, %v2473
          %s2478 = sld [smem:[#allocation13 + $0x10]]
          %v2479 = vstv %s2478
          %v2480 = vmul.f32 %v2479, %v2322
          %v2481 = vmul.f32 %v2479, %v2323
          %v2482 = vmul.f32 %v2479, %v2324
          %v2483 = vmul.f32 %v2479, %v2325
          %v2488 = vrot.slane %v2480, 4
          %v2489 = vrot.slane %v2482, 4
          %v2490 = vsel %vm756, %v2488, %v2489
          %v2491 = vrot.slane %v2481, 4
          %v2492 = vrot.slane %v2483, 4
          %v2493 = vsel %vm756, %v2491, %v2492
          %v2496 = vadd.f32 %v2476, %v2490
          %v2497 = vadd.f32 %v2477, %v2493
          %s2498 = sld [smem:[#allocation13 + $0x11]]
          %v2499 = vstv %s2498
          %v2500 = vmul.f32 %v2499, %v2376
          %v2501 = vmul.f32 %v2499, %v2377
          %v2502 = vmul.f32 %v2499, %v2378
          %v2503 = vmul.f32 %v2499, %v2379
          %v2508 = vrot.slane %v2500, 4
          %v2509 = vrot.slane %v2502, 4
          %v2510 = vsel %vm756, %v2508, %v2509
          %v2511 = vrot.slane %v2501, 4
          %v2512 = vrot.slane %v2503, 4
          %v2513 = vsel %vm756, %v2511, %v2512
          %v2516 = vadd.f32 %v2496, %v2510
          %v2517 = vadd.f32 %v2497, %v2513
          %s2518 = sld [smem:[#allocation13 + $0x3f]]
          %v2519 = vstv %s2518
          %v2520 = vmul.f32 %v2519, %v2356
          %v2521 = vmul.f32 %v2519, %v2357
          %v2522 = vadd.f32 %v2182, %v2520
          %v2523 = vadd.f32 %v2183, %v2521
          %s2524 = sld [smem:[#allocation13 + $0x40]]
          %v2525 = vstv %s2524
          %v2526 = vmul.f32 %v2525, %v2322
          %v2527 = vmul.f32 %v2525, %v2323
          %v2528 = vadd.f32 %v2522, %v2526
          %v2529 = vadd.f32 %v2523, %v2527
          %s2530 = sld [smem:[#allocation13 + $0x41]]
          %v2531 = vstv %s2530
          %v2532 = vmul.f32 %v2531, %v2376
          %v2533 = vmul.f32 %v2531, %v2377
          %v2534 = vadd.f32 %v2528, %v2532
          %v2535 = vadd.f32 %v2529, %v2533
          %s2536 = sld [smem:[#allocation13 + $0x42]]
          %v2537 = vstv %s2536
          %v2538 = vmul.f32 %v2537, %v2356
          %v2539 = vmul.f32 %v2537, %v2357
          %v2540 = vmul.f32 %v2537, %v2358
          %v2541 = vmul.f32 %v2537, %v2359
          %v2546 = vrot.slane %v2538, 2
          %v2547 = vrot.slane %v2540, 2
          %v2548 = vsel %vm695, %v2546, %v2547
          %v2549 = vrot.slane %v2539, 2
          %v2550 = vrot.slane %v2541, 2
          %v2551 = vsel %vm695, %v2549, %v2550
          %v2554 = vadd.f32 %v2534, %v2548
          %v2555 = vadd.f32 %v2535, %v2551
          %s2556 = sld [smem:[#allocation13 + $0x43]]
          %v2557 = vstv %s2556
          %v2558 = vmul.f32 %v2557, %v2322
          %v2559 = vmul.f32 %v2557, %v2323
          %v2560 = vmul.f32 %v2557, %v2324
          %v2561 = vmul.f32 %v2557, %v2325
          %v2566 = vrot.slane %v2558, 2
          %v2567 = vrot.slane %v2560, 2
          %v2568 = vsel %vm695, %v2566, %v2567
          %v2569 = vrot.slane %v2559, 2
          %v2570 = vrot.slane %v2561, 2
          %v2571 = vsel %vm695, %v2569, %v2570
          %v2574 = vadd.f32 %v2554, %v2568
          %v2575 = vadd.f32 %v2555, %v2571
          %s2576 = sld [smem:[#allocation13 + $0x44]]
          %v2577 = vstv %s2576
          %v2578 = vmul.f32 %v2577, %v2376
          %v2579 = vmul.f32 %v2577, %v2377
          %v2580 = vmul.f32 %v2577, %v2378
          %v2581 = vmul.f32 %v2577, %v2379
          %v2586 = vrot.slane %v2578, 2
          %v2587 = vrot.slane %v2580, 2
          %v2588 = vsel %vm695, %v2586, %v2587
          %v2589 = vrot.slane %v2579, 2
          %v2590 = vrot.slane %v2581, 2
          %v2591 = vsel %vm695, %v2589, %v2590
          %v2594 = vadd.f32 %v2574, %v2588
          %v2595 = vadd.f32 %v2575, %v2591
          %s2596 = sld [smem:[#allocation13 + $0x45]]
          %v2597 = vstv %s2596
          %v2598 = vmul.f32 %v2597, %v2356
          %v2599 = vmul.f32 %v2597, %v2357
          %v2600 = vmul.f32 %v2597, %v2358
          %v2601 = vmul.f32 %v2597, %v2359
          %v2606 = vrot.slane %v2598, 4
          %v2607 = vrot.slane %v2600, 4
          %v2608 = vsel %vm756, %v2606, %v2607
          %v2609 = vrot.slane %v2599, 4
          %v2610 = vrot.slane %v2601, 4
          %v2611 = vsel %vm756, %v2609, %v2610
          %v2614 = vadd.f32 %v2594, %v2608
          %v2615 = vadd.f32 %v2595, %v2611
          %s2616 = sld [smem:[#allocation13 + $0x46]]
          %v2617 = vstv %s2616
          %v2618 = vmul.f32 %v2617, %v2322
          %v2619 = vmul.f32 %v2617, %v2323
          %v2620 = vmul.f32 %v2617, %v2324
          %v2621 = vmul.f32 %v2617, %v2325
          %v2626 = vrot.slane %v2618, 4
          %v2627 = vrot.slane %v2620, 4
          %v2628 = vsel %vm756, %v2626, %v2627
          %v2629 = vrot.slane %v2619, 4
          %v2630 = vrot.slane %v2621, 4
          %v2631 = vsel %vm756, %v2629, %v2630
          %v2634 = vadd.f32 %v2614, %v2628
          %v2635 = vadd.f32 %v2615, %v2631
          %s2636 = sld [smem:[#allocation13 + $0x47]]
          %v2637 = vstv %s2636
          %v2638 = vmul.f32 %v2637, %v2376
          %v2639 = vmul.f32 %v2637, %v2377
          %v2640 = vmul.f32 %v2637, %v2378
          %v2641 = vmul.f32 %v2637, %v2379
          %v2646 = vrot.slane %v2638, 4
          %v2647 = vrot.slane %v2640, 4
          %v2648 = vsel %vm756, %v2646, %v2647
          %v2649 = vrot.slane %v2639, 4
          %v2650 = vrot.slane %v2641, 4
          %v2651 = vsel %vm756, %v2649, %v2650
          %v2654 = vadd.f32 %v2634, %v2648
          %v2655 = vadd.f32 %v2635, %v2651
          %s2656 = sld [smem:[#allocation13 + $0x75]]
          %v2657 = vstv %s2656
          %v2658 = vmul.f32 %v2657, %v2356
          %v2659 = vmul.f32 %v2657, %v2357
          %v2660 = vadd.f32 %v2320, %v2658
          %v2661 = vadd.f32 %v2321, %v2659
          %s2662 = sld [smem:[#allocation13 + $0x76]]
          %v2663 = vstv %s2662
          %v2664 = vmul.f32 %v2663, %v2322
          %v2665 = vmul.f32 %v2663, %v2323
          %v2666 = vadd.f32 %v2660, %v2664
          %v2667 = vadd.f32 %v2661, %v2665
          %s2668 = sld [smem:[#allocation13 + $0x77]]
          %v2669 = vstv %s2668
          %v2670 = vmul.f32 %v2669, %v2376
          %v2671 = vmul.f32 %v2669, %v2377
          %v2672 = vadd.f32 %v2666, %v2670
          %v2673 = vadd.f32 %v2667, %v2671
          %s2674 = sld [smem:[#allocation13 + $0x78]]
          %v2675 = vstv %s2674
          %v2676 = vmul.f32 %v2675, %v2356
          %v2677 = vmul.f32 %v2675, %v2357
          %v2678 = vmul.f32 %v2675, %v2358
          %v2679 = vmul.f32 %v2675, %v2359
          %v2684 = vrot.slane %v2676, 2
          %v2685 = vrot.slane %v2678, 2
          %v2686 = vsel %vm695, %v2684, %v2685
          %v2687 = vrot.slane %v2677, 2
          %v2688 = vrot.slane %v2679, 2
          %v2689 = vsel %vm695, %v2687, %v2688
          %v2692 = vadd.f32 %v2672, %v2686
          %v2693 = vadd.f32 %v2673, %v2689
          %s2694 = sld [smem:[#allocation13 + $0x79]]
          %v2695 = vstv %s2694
          %v2696 = vmul.f32 %v2695, %v2322
          %v2697 = vmul.f32 %v2695, %v2323
          %v2698 = vmul.f32 %v2695, %v2324
          %v2699 = vmul.f32 %v2695, %v2325
          %v2704 = vrot.slane %v2696, 2
          %v2705 = vrot.slane %v2698, 2
          %v2706 = vsel %vm695, %v2704, %v2705
          %v2707 = vrot.slane %v2697, 2
          %v2708 = vrot.slane %v2699, 2
          %v2709 = vsel %vm695, %v2707, %v2708
          %v2712 = vadd.f32 %v2692, %v2706
          %v2713 = vadd.f32 %v2693, %v2709
          %s2714 = sld [smem:[#allocation13 + $0x7a]]
          %v2715 = vstv %s2714
          %v2716 = vmul.f32 %v2715, %v2376
          %v2717 = vmul.f32 %v2715, %v2377
          %v2718 = vmul.f32 %v2715, %v2378
          %v2719 = vmul.f32 %v2715, %v2379
          %v2724 = vrot.slane %v2716, 2
          %v2725 = vrot.slane %v2718, 2
          %v2726 = vsel %vm695, %v2724, %v2725
          %v2727 = vrot.slane %v2717, 2
          %v2728 = vrot.slane %v2719, 2
          %v2729 = vsel %vm695, %v2727, %v2728
          %v2732 = vadd.f32 %v2712, %v2726
          %v2733 = vadd.f32 %v2713, %v2729
          %s2734 = sld [smem:[#allocation13 + $0x7b]]
          %v2735 = vstv %s2734
          %v2736 = vmul.f32 %v2735, %v2356
          %v2737 = vmul.f32 %v2735, %v2357
          %v2738 = vmul.f32 %v2735, %v2358
          %v2739 = vmul.f32 %v2735, %v2359
          %v2744 = vrot.slane %v2736, 4
          %v2745 = vrot.slane %v2738, 4
          %v2746 = vsel %vm756, %v2744, %v2745
          %v2747 = vrot.slane %v2737, 4
          %v2748 = vrot.slane %v2739, 4
          %v2749 = vsel %vm756, %v2747, %v2748
          %v2752 = vadd.f32 %v2732, %v2746
          %v2753 = vadd.f32 %v2733, %v2749
          %s2754 = sld [smem:[#allocation13 + $0x7c]]
          %v2755 = vstv %s2754
          %v2756 = vmul.f32 %v2755, %v2322
          %v2757 = vmul.f32 %v2755, %v2323
          %v2758 = vmul.f32 %v2755, %v2324
          %v2759 = vmul.f32 %v2755, %v2325
          %v2764 = vrot.slane %v2756, 4
          %v2765 = vrot.slane %v2758, 4
          %v2766 = vsel %vm756, %v2764, %v2765
          %v2767 = vrot.slane %v2757, 4
          %v2768 = vrot.slane %v2759, 4
          %v2769 = vsel %vm756, %v2767, %v2768
          %v2772 = vadd.f32 %v2752, %v2766
          %v2773 = vadd.f32 %v2753, %v2769
          %s2774 = sld [smem:[#allocation13 + $0x7d]]
          %v2775 = vstv %s2774
          %v2776 = vmul.f32 %v2775, %v2376
          %v2777 = vmul.f32 %v2775, %v2377
          %v2778 = vmul.f32 %v2775, %v2378
          %v2779 = vmul.f32 %v2775, %v2379
          %v2784 = vrot.slane %v2776, 4
          %v2785 = vrot.slane %v2778, 4
          %v2786 = vsel %vm756, %v2784, %v2785
          %v2787 = vrot.slane %v2777, 4
          %v2788 = vrot.slane %v2779, 4
          %v2789 = vsel %vm756, %v2787, %v2788
          %v2792 = vadd.f32 %v2772, %v2786
          %v2793 = vadd.f32 %v2773, %v2789
          %v2794 = vld [vmem:[%s1254] sm:$0xff]
          %v2795 = vld [vmem:[%s1254 + $0x8] sm:$0xff]
          %v2796 = vld [vmem:[%s1254 + $0x10] sm:$0xf]
          %v2797 = vld [vmem:[%s1254 + $0x18] sm:$0xf]
          %2798 = vrot.lane.b32.xlu0 %v2794, 40
          %v2799 = vpop.permute.xlu0 %2798
          %v2800 = vsel %vm610, %v2799, %v2795
          %2801 = vrot.lane.b32.xlu0 %v2796, 40
          %v2802 = vpop.permute.xlu0 %2801
          %v2803 = vsel %vm610, %v2802, %v2797
          %2804 = vrot.lane.b32.xlu0 %v2800, 40
          %v2805 = vpop.permute.xlu0 %2804
          %2806 = vrot.lane.b32.xlu0 %v2803, 40
          %v2807 = vpop.permute.xlu0 %2806
          %v2808 = vsel %vm610, %v2805, %v2799
          %v2809 = vsel %vm610, %v2807, %v2802
          %2814 = vrot.lane.b32.xlu0 %v2800, 89
          %v2815 = vpop.permute.xlu0 %2814
          %2816 = vrot.lane.b32.xlu0 %v2808, 89
          %v2817 = vpop.permute.xlu0 %2816
          %2818 = vrot.lane.b32.xlu0 %v2803, 89
          %v2819 = vpop.permute.xlu0 %2818
          %2820 = vrot.lane.b32.xlu0 %v2809, 89
          %v2821 = vpop.permute.xlu0 %2820
          %v2822 = vsel %vm635, %v2815, %v2817
          %v2823 = vsel %vm635, %v2819, %v2821
          %v2828 = vsel %vm602, %v2822, 0.0
          %v2829 = vsel %vm603, %v2817, 0.0
          %v2830 = vsel %vm602, %v2823, 0.0
          %v2831 = vsel %vm603, %v2821, 0.0
          %2834 = vrot.lane.b32.xlu0 %v2794, 127
          %v2835 = vpop.permute.xlu0 %2834
          %2836 = vrot.lane.b32.xlu0 %v2800, 127
          %v2837 = vpop.permute.xlu0 %2836
          %2838 = vrot.lane.b32.xlu0 %v2796, 127
          %v2839 = vpop.permute.xlu0 %2838
          %2840 = vrot.lane.b32.xlu0 %v2803, 127
          %v2841 = vpop.permute.xlu0 %2840
          %v2842 = vsel %vm656, %v2835, %v2837
          %v2843 = vsel %vm656, %v2839, %v2841
          %v2848 = vsel %vm604, %v2842, 0.0
          %v2849 = vsel %vm605, %v2837, 0.0
          %v2850 = vsel %vm604, %v2843, 0.0
          %v2851 = vsel %vm605, %v2841, 0.0
          %s2852 = sld [smem:[#allocation13 + $0x12]]
          %v2853 = vstv %s2852
          %v2854 = vmul.f32 %v2853, %v2828
          %v2855 = vmul.f32 %v2853, %v2829
          %v2856 = vadd.f32 %v2516, %v2854
          %v2857 = vadd.f32 %v2517, %v2855
          %s2858 = sld [smem:[#allocation13 + $0x13]]
          %v2859 = vstv %s2858
          %v2860 = vmul.f32 %v2859, %v2794
          %v2861 = vmul.f32 %v2859, %v2795
          %v2862 = vadd.f32 %v2856, %v2860
          %v2863 = vadd.f32 %v2857, %v2861
          %s2864 = sld [smem:[#allocation13 + $0x14]]
          %v2865 = vstv %s2864
          %v2866 = vmul.f32 %v2865, %v2848
          %v2867 = vmul.f32 %v2865, %v2849
          %v2868 = vadd.f32 %v2862, %v2866
          %v2869 = vadd.f32 %v2863, %v2867
          %s2870 = sld [smem:[#allocation13 + $0x15]]
          %v2871 = vstv %s2870
          %v2872 = vmul.f32 %v2871, %v2828
          %v2873 = vmul.f32 %v2871, %v2829
          %v2874 = vmul.f32 %v2871, %v2830
          %v2875 = vmul.f32 %v2871, %v2831
          %v2880 = vrot.slane %v2872, 2
          %v2881 = vrot.slane %v2874, 2
          %v2882 = vsel %vm695, %v2880, %v2881
          %v2883 = vrot.slane %v2873, 2
          %v2884 = vrot.slane %v2875, 2
          %v2885 = vsel %vm695, %v2883, %v2884
          %v2888 = vadd.f32 %v2868, %v2882
          %v2889 = vadd.f32 %v2869, %v2885
          %s2890 = sld [smem:[#allocation13 + $0x16]]
          %v2891 = vstv %s2890
          %v2892 = vmul.f32 %v2891, %v2794
          %v2893 = vmul.f32 %v2891, %v2795
          %v2894 = vmul.f32 %v2891, %v2796
          %v2895 = vmul.f32 %v2891, %v2797
          %v2900 = vrot.slane %v2892, 2
          %v2901 = vrot.slane %v2894, 2
          %v2902 = vsel %vm695, %v2900, %v2901
          %v2903 = vrot.slane %v2893, 2
          %v2904 = vrot.slane %v2895, 2
          %v2905 = vsel %vm695, %v2903, %v2904
          %v2908 = vadd.f32 %v2888, %v2902
          %v2909 = vadd.f32 %v2889, %v2905
          %s2910 = sld [smem:[#allocation13 + $0x17]]
          %v2911 = vstv %s2910
          %v2912 = vmul.f32 %v2911, %v2848
          %v2913 = vmul.f32 %v2911, %v2849
          %v2914 = vmul.f32 %v2911, %v2850
          %v2915 = vmul.f32 %v2911, %v2851
          %v2920 = vrot.slane %v2912, 2
          %v2921 = vrot.slane %v2914, 2
          %v2922 = vsel %vm695, %v2920, %v2921
          %v2923 = vrot.slane %v2913, 2
          %v2924 = vrot.slane %v2915, 2
          %v2925 = vsel %vm695, %v2923, %v2924
          %v2928 = vadd.f32 %v2908, %v2922
          %v2929 = vadd.f32 %v2909, %v2925
          %s2930 = sld [smem:[#allocation13 + $0x18]]
          %v2931 = vstv %s2930
          %v2932 = vmul.f32 %v2931, %v2828
          %v2933 = vmul.f32 %v2931, %v2829
          %v2934 = vmul.f32 %v2931, %v2830
          %v2935 = vmul.f32 %v2931, %v2831
          %v2940 = vrot.slane %v2932, 4
          %v2941 = vrot.slane %v2934, 4
          %v2942 = vsel %vm756, %v2940, %v2941
          %v2943 = vrot.slane %v2933, 4
          %v2944 = vrot.slane %v2935, 4
          %v2945 = vsel %vm756, %v2943, %v2944
          %v2948 = vadd.f32 %v2928, %v2942
          %v2949 = vadd.f32 %v2929, %v2945
          %s2950 = sld [smem:[#allocation13 + $0x19]]
          %v2951 = vstv %s2950
          %v2952 = vmul.f32 %v2951, %v2794
          %v2953 = vmul.f32 %v2951, %v2795
          %v2954 = vmul.f32 %v2951, %v2796
          %v2955 = vmul.f32 %v2951, %v2797
          %v2960 = vrot.slane %v2952, 4
          %v2961 = vrot.slane %v2954, 4
          %v2962 = vsel %vm756, %v2960, %v2961
          %v2963 = vrot.slane %v2953, 4
          %v2964 = vrot.slane %v2955, 4
          %v2965 = vsel %vm756, %v2963, %v2964
          %v2968 = vadd.f32 %v2948, %v2962
          %v2969 = vadd.f32 %v2949, %v2965
          %s2970 = sld [smem:[#allocation13 + $0x1a]]
          %v2971 = vstv %s2970
          %v2972 = vmul.f32 %v2971, %v2848
          %v2973 = vmul.f32 %v2971, %v2849
          %v2974 = vmul.f32 %v2971, %v2850
          %v2975 = vmul.f32 %v2971, %v2851
          %v2980 = vrot.slane %v2972, 4
          %v2981 = vrot.slane %v2974, 4
          %v2982 = vsel %vm756, %v2980, %v2981
          %v2983 = vrot.slane %v2973, 4
          %v2984 = vrot.slane %v2975, 4
          %v2985 = vsel %vm756, %v2983, %v2984
          %v2988 = vadd.f32 %v2968, %v2982
          %v2989 = vadd.f32 %v2969, %v2985
          %s2990 = sld [smem:[#allocation13 + $0x48]]
          %v2991 = vstv %s2990
          %v2992 = vmul.f32 %v2991, %v2828
          %v2993 = vmul.f32 %v2991, %v2829
          %v2994 = vadd.f32 %v2654, %v2992
          %v2995 = vadd.f32 %v2655, %v2993
          %s2996 = sld [smem:[#allocation13 + $0x49]]
          %v2997 = vstv %s2996
          %v2998 = vmul.f32 %v2997, %v2794
          %v2999 = vmul.f32 %v2997, %v2795
          %v3000 = vadd.f32 %v2994, %v2998
          %v3001 = vadd.f32 %v2995, %v2999
          %s3002 = sld [smem:[#allocation13 + $0x4a]]
          %v3003 = vstv %s3002
          %v3004 = vmul.f32 %v3003, %v2848
          %v3005 = vmul.f32 %v3003, %v2849
          %v3006 = vadd.f32 %v3000, %v3004
          %v3007 = vadd.f32 %v3001, %v3005
          %s3008 = sld [smem:[#allocation13 + $0x4b]]
          %v3009 = vstv %s3008
          %v3010 = vmul.f32 %v3009, %v2828
          %v3011 = vmul.f32 %v3009, %v2829
          %v3012 = vmul.f32 %v3009, %v2830
          %v3013 = vmul.f32 %v3009, %v2831
          %v3018 = vrot.slane %v3010, 2
          %v3019 = vrot.slane %v3012, 2
          %v3020 = vsel %vm695, %v3018, %v3019
          %v3021 = vrot.slane %v3011, 2
          %v3022 = vrot.slane %v3013, 2
          %v3023 = vsel %vm695, %v3021, %v3022
          %v3026 = vadd.f32 %v3006, %v3020
          %v3027 = vadd.f32 %v3007, %v3023
          %s3028 = sld [smem:[#allocation13 + $0x4c]]
          %v3029 = vstv %s3028
          %v3030 = vmul.f32 %v3029, %v2794
          %v3031 = vmul.f32 %v3029, %v2795
          %v3032 = vmul.f32 %v3029, %v2796
          %v3033 = vmul.f32 %v3029, %v2797
          %v3038 = vrot.slane %v3030, 2
          %v3039 = vrot.slane %v3032, 2
          %v3040 = vsel %vm695, %v3038, %v3039
          %v3041 = vrot.slane %v3031, 2
          %v3042 = vrot.slane %v3033, 2
          %v3043 = vsel %vm695, %v3041, %v3042
          %v3046 = vadd.f32 %v3026, %v3040
          %v3047 = vadd.f32 %v3027, %v3043
          %s3048 = sld [smem:[#allocation13 + $0x4d]]
          %v3049 = vstv %s3048
          %v3050 = vmul.f32 %v3049, %v2848
          %v3051 = vmul.f32 %v3049, %v2849
          %v3052 = vmul.f32 %v3049, %v2850
          %v3053 = vmul.f32 %v3049, %v2851
          %v3058 = vrot.slane %v3050, 2
          %v3059 = vrot.slane %v3052, 2
          %v3060 = vsel %vm695, %v3058, %v3059
          %v3061 = vrot.slane %v3051, 2
          %v3062 = vrot.slane %v3053, 2
          %v3063 = vsel %vm695, %v3061, %v3062
          %v3066 = vadd.f32 %v3046, %v3060
          %v3067 = vadd.f32 %v3047, %v3063
          %s3068 = sld [smem:[#allocation13 + $0x4e]]
          %v3069 = vstv %s3068
          %v3070 = vmul.f32 %v3069, %v2828
          %v3071 = vmul.f32 %v3069, %v2829
          %v3072 = vmul.f32 %v3069, %v2830
          %v3073 = vmul.f32 %v3069, %v2831
          %v3078 = vrot.slane %v3070, 4
          %v3079 = vrot.slane %v3072, 4
          %v3080 = vsel %vm756, %v3078, %v3079
          %v3081 = vrot.slane %v3071, 4
          %v3082 = vrot.slane %v3073, 4
          %v3083 = vsel %vm756, %v3081, %v3082
          %v3086 = vadd.f32 %v3066, %v3080
          %v3087 = vadd.f32 %v3067, %v3083
          %s3088 = sld [smem:[#allocation13 + $0x4f]]
          %v3089 = vstv %s3088
          %v3090 = vmul.f32 %v3089, %v2794
          %v3091 = vmul.f32 %v3089, %v2795
          %v3092 = vmul.f32 %v3089, %v2796
          %v3093 = vmul.f32 %v3089, %v2797
          %v3098 = vrot.slane %v3090, 4
          %v3099 = vrot.slane %v3092, 4
          %v3100 = vsel %vm756, %v3098, %v3099
          %v3101 = vrot.slane %v3091, 4
          %v3102 = vrot.slane %v3093, 4
          %v3103 = vsel %vm756, %v3101, %v3102
          %v3106 = vadd.f32 %v3086, %v3100
          %v3107 = vadd.f32 %v3087, %v3103
          %s3108 = sld [smem:[#allocation13 + $0x50]]
          %v3109 = vstv %s3108
          %v3110 = vmul.f32 %v3109, %v2848
          %v3111 = vmul.f32 %v3109, %v2849
          %v3112 = vmul.f32 %v3109, %v2850
          %v3113 = vmul.f32 %v3109, %v2851
          %v3118 = vrot.slane %v3110, 4
          %v3119 = vrot.slane %v3112, 4
          %v3120 = vsel %vm756, %v3118, %v3119
          %v3121 = vrot.slane %v3111, 4
          %v3122 = vrot.slane %v3113, 4
          %v3123 = vsel %vm756, %v3121, %v3122
          %v3126 = vadd.f32 %v3106, %v3120
          %v3127 = vadd.f32 %v3107, %v3123
          %s3128 = sld [smem:[#allocation13 + $0x7e]]
          %v3129 = vstv %s3128
          %v3130 = vmul.f32 %v3129, %v2828
          %v3131 = vmul.f32 %v3129, %v2829
          %v3132 = vadd.f32 %v2792, %v3130
          %v3133 = vadd.f32 %v2793, %v3131
          %s3134 = sld [smem:[#allocation13 + $0x7f]]
          %v3135 = vstv %s3134
          %v3136 = vmul.f32 %v3135, %v2794
          %v3137 = vmul.f32 %v3135, %v2795
          %v3138 = vadd.f32 %v3132, %v3136
          %v3139 = vadd.f32 %v3133, %v3137
          %s3140 = sld [smem:[#allocation13 + $0x80]]
          %v3141 = vstv %s3140
          %v3142 = vmul.f32 %v3141, %v2848
          %v3143 = vmul.f32 %v3141, %v2849
          %v3144 = vadd.f32 %v3138, %v3142
          %v3145 = vadd.f32 %v3139, %v3143
          %s3146 = sld [smem:[#allocation13 + $0x81]]
          %v3147 = vstv %s3146
          %v3148 = vmul.f32 %v3147, %v2828
          %v3149 = vmul.f32 %v3147, %v2829
          %v3150 = vmul.f32 %v3147, %v2830
          %v3151 = vmul.f32 %v3147, %v2831
          %v3156 = vrot.slane %v3148, 2
          %v3157 = vrot.slane %v3150, 2
          %v3158 = vsel %vm695, %v3156, %v3157
          %v3159 = vrot.slane %v3149, 2
          %v3160 = vrot.slane %v3151, 2
          %v3161 = vsel %vm695, %v3159, %v3160
          %v3164 = vadd.f32 %v3144, %v3158
          %v3165 = vadd.f32 %v3145, %v3161
          %s3166 = sld [smem:[#allocation13 + $0x82]]
          %v3167 = vstv %s3166
          %v3168 = vmul.f32 %v3167, %v2794
          %v3169 = vmul.f32 %v3167, %v2795
          %v3170 = vmul.f32 %v3167, %v2796
          %v3171 = vmul.f32 %v3167, %v2797
          %v3176 = vrot.slane %v3168, 2
          %v3177 = vrot.slane %v3170, 2
          %v3178 = vsel %vm695, %v3176, %v3177
          %v3179 = vrot.slane %v3169, 2
          %v3180 = vrot.slane %v3171, 2
          %v3181 = vsel %vm695, %v3179, %v3180
          %v3184 = vadd.f32 %v3164, %v3178
          %v3185 = vadd.f32 %v3165, %v3181
          %s3186 = sld [smem:[#allocation13 + $0x83]]
          %v3187 = vstv %s3186
          %v3188 = vmul.f32 %v3187, %v2848
          %v3189 = vmul.f32 %v3187, %v2849
          %v3190 = vmul.f32 %v3187, %v2850
          %v3191 = vmul.f32 %v3187, %v2851
          %v3196 = vrot.slane %v3188, 2
          %v3197 = vrot.slane %v3190, 2
          %v3198 = vsel %vm695, %v3196, %v3197
          %v3199 = vrot.slane %v3189, 2
          %v3200 = vrot.slane %v3191, 2
          %v3201 = vsel %vm695, %v3199, %v3200
          %v3204 = vadd.f32 %v3184, %v3198
          %v3205 = vadd.f32 %v3185, %v3201
          %s3206 = sld [smem:[#allocation13 + $0x84]]
          %v3207 = vstv %s3206
          %v3208 = vmul.f32 %v3207, %v2828
          %v3209 = vmul.f32 %v3207, %v2829
          %v3210 = vmul.f32 %v3207, %v2830
          %v3211 = vmul.f32 %v3207, %v2831
          %v3216 = vrot.slane %v3208, 4
          %v3217 = vrot.slane %v3210, 4
          %v3218 = vsel %vm756, %v3216, %v3217
          %v3219 = vrot.slane %v3209, 4
          %v3220 = vrot.slane %v3211, 4
          %v3221 = vsel %vm756, %v3219, %v3220
          %v3224 = vadd.f32 %v3204, %v3218
          %v3225 = vadd.f32 %v3205, %v3221
          %s3226 = sld [smem:[#allocation13 + $0x85]]
          %v3227 = vstv %s3226
          %v3228 = vmul.f32 %v3227, %v2794
          %v3229 = vmul.f32 %v3227, %v2795
          %v3230 = vmul.f32 %v3227, %v2796
          %v3231 = vmul.f32 %v3227, %v2797
          %v3236 = vrot.slane %v3228, 4
          %v3237 = vrot.slane %v3230, 4
          %v3238 = vsel %vm756, %v3236, %v3237
          %v3239 = vrot.slane %v3229, 4
          %v3240 = vrot.slane %v3231, 4
          %v3241 = vsel %vm756, %v3239, %v3240
          %v3244 = vadd.f32 %v3224, %v3238
          %v3245 = vadd.f32 %v3225, %v3241
          %s3246 = sld [smem:[#allocation13 + $0x86]]
          %v3247 = vstv %s3246
          %v3248 = vmul.f32 %v3247, %v2848
          %v3249 = vmul.f32 %v3247, %v2849
          %v3250 = vmul.f32 %v3247, %v2850
          %v3251 = vmul.f32 %v3247, %v2851
          %v3256 = vrot.slane %v3248, 4
          %v3257 = vrot.slane %v3250, 4
          %v3258 = vsel %vm756, %v3256, %v3257
          %v3259 = vrot.slane %v3249, 4
          %v3260 = vrot.slane %v3251, 4
          %v3261 = vsel %vm756, %v3259, %v3260
          %v3264 = vadd.f32 %v3244, %v3258
          %v3265 = vadd.f32 %v3245, %v3261
          %v3266 = vld [vmem:[%s1451] sm:$0xff]
          %v3267 = vld [vmem:[%s1451 + $0x8] sm:$0xff]
          %v3268 = vld [vmem:[%s1451 + $0x10] sm:$0xf]
          %v3269 = vld [vmem:[%s1451 + $0x18] sm:$0xf]
          %3270 = vrot.lane.b32.xlu0 %v3266, 40
          %v3271 = vpop.permute.xlu0 %3270
          %v3272 = vsel %vm610, %v3271, %v3267
          %3273 = vrot.lane.b32.xlu0 %v3268, 40
          %v3274 = vpop.permute.xlu0 %3273
          %v3275 = vsel %vm610, %v3274, %v3269
          %3276 = vrot.lane.b32.xlu0 %v3272, 40
          %v3277 = vpop.permute.xlu0 %3276
          %3278 = vrot.lane.b32.xlu0 %v3275, 40
          %v3279 = vpop.permute.xlu0 %3278
          %v3280 = vsel %vm610, %v3277, %v3271
          %v3281 = vsel %vm610, %v3279, %v3274
          %3286 = vrot.lane.b32.xlu0 %v3272, 89
          %v3287 = vpop.permute.xlu0 %3286
          %3288 = vrot.lane.b32.xlu0 %v3280, 89
          %v3289 = vpop.permute.xlu0 %3288
          %3290 = vrot.lane.b32.xlu0 %v3275, 89
          %v3291 = vpop.permute.xlu0 %3290
          %3292 = vrot.lane.b32.xlu0 %v3281, 89
          %v3293 = vpop.permute.xlu0 %3292
          %v3294 = vsel %vm635, %v3287, %v3289
          %v3295 = vsel %vm635, %v3291, %v3293
          %v3300 = vsel %vm602, %v3294, 0.0
          %v3301 = vsel %vm603, %v3289, 0.0
          %v3302 = vsel %vm602, %v3295, 0.0
          %v3303 = vsel %vm603, %v3293, 0.0
          %3306 = vrot.lane.b32.xlu0 %v3266, 127
          %v3307 = vpop.permute.xlu0 %3306
          %3308 = vrot.lane.b32.xlu0 %v3272, 127
          %v3309 = vpop.permute.xlu0 %3308
          %3310 = vrot.lane.b32.xlu0 %v3268, 127
          %v3311 = vpop.permute.xlu0 %3310
          %3312 = vrot.lane.b32.xlu0 %v3275, 127
          %v3313 = vpop.permute.xlu0 %3312
          %v3314 = vsel %vm656, %v3307, %v3309
          %v3315 = vsel %vm656, %v3311, %v3313
          %v3320 = vsel %vm604, %v3314, 0.0
          %v3321 = vsel %vm605, %v3309, 0.0
          %v3322 = vsel %vm604, %v3315, 0.0
          %v3323 = vsel %vm605, %v3313, 0.0
          %s3324 = sld [smem:[#allocation13 + $0x1b]]
          %v3325 = vstv %s3324
          %v3326 = vmul.f32 %v3325, %v3300
          %v3327 = vmul.f32 %v3325, %v3301
          %v3328 = vadd.f32 %v2988, %v3326
          %v3329 = vadd.f32 %v2989, %v3327
          %s3330 = sld [smem:[#allocation13 + $0x1c]]
          %v3331 = vstv %s3330
          %v3332 = vmul.f32 %v3331, %v3266
          %v3333 = vmul.f32 %v3331, %v3267
          %v3334 = vadd.f32 %v3328, %v3332
          %v3335 = vadd.f32 %v3329, %v3333
          %s3336 = sld [smem:[#allocation13 + $0x1d]]
          %v3337 = vstv %s3336
          %v3338 = vmul.f32 %v3337, %v3320
          %v3339 = vmul.f32 %v3337, %v3321
          %v3340 = vadd.f32 %v3334, %v3338
          %v3341 = vadd.f32 %v3335, %v3339
          %s3342 = sld [smem:[#allocation13 + $0x1e]]
          %v3343 = vstv %s3342
          %v3344 = vmul.f32 %v3343, %v3300
          %v3345 = vmul.f32 %v3343, %v3301
          %v3346 = vmul.f32 %v3343, %v3302
          %v3347 = vmul.f32 %v3343, %v3303
          %v3352 = vrot.slane %v3344, 2
          %v3353 = vrot.slane %v3346, 2
          %v3354 = vsel %vm695, %v3352, %v3353
          %v3355 = vrot.slane %v3345, 2
          %v3356 = vrot.slane %v3347, 2
          %v3357 = vsel %vm695, %v3355, %v3356
          %v3360 = vadd.f32 %v3340, %v3354
          %v3361 = vadd.f32 %v3341, %v3357
          %s3362 = sld [smem:[#allocation13 + $0x1f]]
          %v3363 = vstv %s3362
          %v3364 = vmul.f32 %v3363, %v3266
          %v3365 = vmul.f32 %v3363, %v3267
          %v3366 = vmul.f32 %v3363, %v3268
          %v3367 = vmul.f32 %v3363, %v3269
          %v3372 = vrot.slane %v3364, 2
          %v3373 = vrot.slane %v3366, 2
          %v3374 = vsel %vm695, %v3372, %v3373
          %v3375 = vrot.slane %v3365, 2
          %v3376 = vrot.slane %v3367, 2
          %v3377 = vsel %vm695, %v3375, %v3376
          %v3380 = vadd.f32 %v3360, %v3374
          %v3381 = vadd.f32 %v3361, %v3377
          %s3382 = sld [smem:[#allocation13 + $0x20]]
          %v3383 = vstv %s3382
          %v3384 = vmul.f32 %v3383, %v3320
          %v3385 = vmul.f32 %v3383, %v3321
          %v3386 = vmul.f32 %v3383, %v3322
          %v3387 = vmul.f32 %v3383, %v3323
          %v3392 = vrot.slane %v3384, 2
          %v3393 = vrot.slane %v3386, 2
          %v3394 = vsel %vm695, %v3392, %v3393
          %v3395 = vrot.slane %v3385, 2
          %v3396 = vrot.slane %v3387, 2
          %v3397 = vsel %vm695, %v3395, %v3396
          %v3400 = vadd.f32 %v3380, %v3394
          %v3401 = vadd.f32 %v3381, %v3397
          %s3402 = sld [smem:[#allocation13 + $0x21]]
          %v3403 = vstv %s3402
          %v3404 = vmul.f32 %v3403, %v3300
          %v3405 = vmul.f32 %v3403, %v3301
          %v3406 = vmul.f32 %v3403, %v3302
          %v3407 = vmul.f32 %v3403, %v3303
          %v3412 = vrot.slane %v3404, 4
          %v3413 = vrot.slane %v3406, 4
          %v3414 = vsel %vm756, %v3412, %v3413
          %v3415 = vrot.slane %v3405, 4
          %v3416 = vrot.slane %v3407, 4
          %v3417 = vsel %vm756, %v3415, %v3416
          %v3420 = vadd.f32 %v3400, %v3414
          %v3421 = vadd.f32 %v3401, %v3417
          %s3422 = sld [smem:[#allocation13 + $0x22]]
          %v3423 = vstv %s3422
          %v3424 = vmul.f32 %v3423, %v3266
          %v3425 = vmul.f32 %v3423, %v3267
          %v3426 = vmul.f32 %v3423, %v3268
          %v3427 = vmul.f32 %v3423, %v3269
          %v3432 = vrot.slane %v3424, 4
          %v3433 = vrot.slane %v3426, 4
          %v3434 = vsel %vm756, %v3432, %v3433
          %v3435 = vrot.slane %v3425, 4
          %v3436 = vrot.slane %v3427, 4
          %v3437 = vsel %vm756, %v3435, %v3436
          %v3440 = vadd.f32 %v3420, %v3434
          %v3441 = vadd.f32 %v3421, %v3437
          %s3442 = sld [smem:[#allocation13 + $0x23]]
          %v3443 = vstv %s3442
          %v3444 = vmul.f32 %v3443, %v3320
          %v3445 = vmul.f32 %v3443, %v3321
          %v3446 = vmul.f32 %v3443, %v3322
          %v3447 = vmul.f32 %v3443, %v3323
          %v3452 = vrot.slane %v3444, 4
          %v3453 = vrot.slane %v3446, 4
          %v3454 = vsel %vm756, %v3452, %v3453
          %v3455 = vrot.slane %v3445, 4
          %v3456 = vrot.slane %v3447, 4
          %v3457 = vsel %vm756, %v3455, %v3456
          %v3460 = vadd.f32 %v3440, %v3454
          %v3461 = vadd.f32 %v3441, %v3457
          %s3462 = sld [smem:[#allocation13 + $0x51]]
          %v3463 = vstv %s3462
          %v3464 = vmul.f32 %v3463, %v3300
          %v3465 = vmul.f32 %v3463, %v3301
          %v3466 = vadd.f32 %v3126, %v3464
          %v3467 = vadd.f32 %v3127, %v3465
          %s3468 = sld [smem:[#allocation13 + $0x52]]
          %v3469 = vstv %s3468
          %v3470 = vmul.f32 %v3469, %v3266
          %v3471 = vmul.f32 %v3469, %v3267
          %v3472 = vadd.f32 %v3466, %v3470
          %v3473 = vadd.f32 %v3467, %v3471
          %s3474 = sld [smem:[#allocation13 + $0x53]]
          %v3475 = vstv %s3474
          %v3476 = vmul.f32 %v3475, %v3320
          %v3477 = vmul.f32 %v3475, %v3321
          %v3478 = vadd.f32 %v3472, %v3476
          %v3479 = vadd.f32 %v3473, %v3477
          %s3480 = sld [smem:[#allocation13 + $0x54]]
          %v3481 = vstv %s3480
          %v3482 = vmul.f32 %v3481, %v3300
          %v3483 = vmul.f32 %v3481, %v3301
          %v3484 = vmul.f32 %v3481, %v3302
          %v3485 = vmul.f32 %v3481, %v3303
          %v3490 = vrot.slane %v3482, 2
          %v3491 = vrot.slane %v3484, 2
          %v3492 = vsel %vm695, %v3490, %v3491
          %v3493 = vrot.slane %v3483, 2
          %v3494 = vrot.slane %v3485, 2
          %v3495 = vsel %vm695, %v3493, %v3494
          %v3498 = vadd.f32 %v3478, %v3492
          %v3499 = vadd.f32 %v3479, %v3495
          %s3500 = sld [smem:[#allocation13 + $0x55]]
          %v3501 = vstv %s3500
          %v3502 = vmul.f32 %v3501, %v3266
          %v3503 = vmul.f32 %v3501, %v3267
          %v3504 = vmul.f32 %v3501, %v3268
          %v3505 = vmul.f32 %v3501, %v3269
          %v3510 = vrot.slane %v3502, 2
          %v3511 = vrot.slane %v3504, 2
          %v3512 = vsel %vm695, %v3510, %v3511
          %v3513 = vrot.slane %v3503, 2
          %v3514 = vrot.slane %v3505, 2
          %v3515 = vsel %vm695, %v3513, %v3514
          %v3518 = vadd.f32 %v3498, %v3512
          %v3519 = vadd.f32 %v3499, %v3515
          %s3520 = sld [smem:[#allocation13 + $0x56]]
          %v3521 = vstv %s3520
          %v3522 = vmul.f32 %v3521, %v3320
          %v3523 = vmul.f32 %v3521, %v3321
          %v3524 = vmul.f32 %v3521, %v3322
          %v3525 = vmul.f32 %v3521, %v3323
          %v3530 = vrot.slane %v3522, 2
          %v3531 = vrot.slane %v3524, 2
          %v3532 = vsel %vm695, %v3530, %v3531
          %v3533 = vrot.slane %v3523, 2
          %v3534 = vrot.slane %v3525, 2
          %v3535 = vsel %vm695, %v3533, %v3534
          %v3538 = vadd.f32 %v3518, %v3532
          %v3539 = vadd.f32 %v3519, %v3535
          %s3540 = sld [smem:[#allocation13 + $0x57]]
          %v3541 = vstv %s3540
          %v3542 = vmul.f32 %v3541, %v3300
          %v3543 = vmul.f32 %v3541, %v3301
          %v3544 = vmul.f32 %v3541, %v3302
          %v3545 = vmul.f32 %v3541, %v3303
          %v3550 = vrot.slane %v3542, 4
          %v3551 = vrot.slane %v3544, 4
          %v3552 = vsel %vm756, %v3550, %v3551
          %v3553 = vrot.slane %v3543, 4
          %v3554 = vrot.slane %v3545, 4
          %v3555 = vsel %vm756, %v3553, %v3554
          %v3558 = vadd.f32 %v3538, %v3552
          %v3559 = vadd.f32 %v3539, %v3555
          %s3560 = sld [smem:[#allocation13 + $0x58]]
          %v3561 = vstv %s3560
          %v3562 = vmul.f32 %v3561, %v3266
          %v3563 = vmul.f32 %v3561, %v3267
          %v3564 = vmul.f32 %v3561, %v3268
          %v3565 = vmul.f32 %v3561, %v3269
          %v3570 = vrot.slane %v3562, 4
          %v3571 = vrot.slane %v3564, 4
          %v3572 = vsel %vm756, %v3570, %v3571
          %v3573 = vrot.slane %v3563, 4
          %v3574 = vrot.slane %v3565, 4
          %v3575 = vsel %vm756, %v3573, %v3574
          %v3578 = vadd.f32 %v3558, %v3572
          %v3579 = vadd.f32 %v3559, %v3575
          %s3580 = sld [smem:[#allocation13 + $0x59]]
          %v3581 = vstv %s3580
          %v3582 = vmul.f32 %v3581, %v3320
          %v3583 = vmul.f32 %v3581, %v3321
          %v3584 = vmul.f32 %v3581, %v3322
          %v3585 = vmul.f32 %v3581, %v3323
          %v3590 = vrot.slane %v3582, 4
          %v3591 = vrot.slane %v3584, 4
          %v3592 = vsel %vm756, %v3590, %v3591
          %v3593 = vrot.slane %v3583, 4
          %v3594 = vrot.slane %v3585, 4
          %v3595 = vsel %vm756, %v3593, %v3594
          %v3598 = vadd.f32 %v3578, %v3592
          %v3599 = vadd.f32 %v3579, %v3595
          %s3600 = sld [smem:[#allocation13 + $0x87]]
          %v3601 = vstv %s3600
          %v3602 = vmul.f32 %v3601, %v3300
          %v3603 = vmul.f32 %v3601, %v3301
          %v3604 = vadd.f32 %v3264, %v3602
          %v3605 = vadd.f32 %v3265, %v3603
          %s3606 = sld [smem:[#allocation13 + $0x88]]
          %v3607 = vstv %s3606
          %v3608 = vmul.f32 %v3607, %v3266
          %v3609 = vmul.f32 %v3607, %v3267
          %v3610 = vadd.f32 %v3604, %v3608
          %v3611 = vadd.f32 %v3605, %v3609
          %s3612 = sld [smem:[#allocation13 + $0x89]]
          %v3613 = vstv %s3612
          %v3614 = vmul.f32 %v3613, %v3320
          %v3615 = vmul.f32 %v3613, %v3321
          %v3616 = vadd.f32 %v3610, %v3614
          %v3617 = vadd.f32 %v3611, %v3615
          %s3618 = sld [smem:[#allocation13 + $0x8a]]
          %v3619 = vstv %s3618
          %v3620 = vmul.f32 %v3619, %v3300
          %v3621 = vmul.f32 %v3619, %v3301
          %v3622 = vmul.f32 %v3619, %v3302
          %v3623 = vmul.f32 %v3619, %v3303
          %v3628 = vrot.slane %v3620, 2
          %v3629 = vrot.slane %v3622, 2
          %v3630 = vsel %vm695, %v3628, %v3629
          %v3631 = vrot.slane %v3621, 2
          %v3632 = vrot.slane %v3623, 2
          %v3633 = vsel %vm695, %v3631, %v3632
          %v3636 = vadd.f32 %v3616, %v3630
          %v3637 = vadd.f32 %v3617, %v3633
          %s3638 = sld [smem:[#allocation13 + $0x8b]]
          %v3639 = vstv %s3638
          %v3640 = vmul.f32 %v3639, %v3266
          %v3641 = vmul.f32 %v3639, %v3267
          %v3642 = vmul.f32 %v3639, %v3268
          %v3643 = vmul.f32 %v3639, %v3269
          %v3648 = vrot.slane %v3640, 2
          %v3649 = vrot.slane %v3642, 2
          %v3650 = vsel %vm695, %v3648, %v3649
          %v3651 = vrot.slane %v3641, 2
          %v3652 = vrot.slane %v3643, 2
          %v3653 = vsel %vm695, %v3651, %v3652
          %v3656 = vadd.f32 %v3636, %v3650
          %v3657 = vadd.f32 %v3637, %v3653
          %s3658 = sld [smem:[#allocation13 + $0x8c]]
          %v3659 = vstv %s3658
          %v3660 = vmul.f32 %v3659, %v3320
          %v3661 = vmul.f32 %v3659, %v3321
          %v3662 = vmul.f32 %v3659, %v3322
          %v3663 = vmul.f32 %v3659, %v3323
          %v3668 = vrot.slane %v3660, 2
          %v3669 = vrot.slane %v3662, 2
          %v3670 = vsel %vm695, %v3668, %v3669
          %v3671 = vrot.slane %v3661, 2
          %v3672 = vrot.slane %v3663, 2
          %v3673 = vsel %vm695, %v3671, %v3672
          %v3676 = vadd.f32 %v3656, %v3670
          %v3677 = vadd.f32 %v3657, %v3673
          %s3678 = sld [smem:[#allocation13 + $0x8d]]
          %v3679 = vstv %s3678
          %v3680 = vmul.f32 %v3679, %v3300
          %v3681 = vmul.f32 %v3679, %v3301
          %v3682 = vmul.f32 %v3679, %v3302
          %v3683 = vmul.f32 %v3679, %v3303
          %v3688 = vrot.slane %v3680, 4
          %v3689 = vrot.slane %v3682, 4
          %v3690 = vsel %vm756, %v3688, %v3689
          %v3691 = vrot.slane %v3681, 4
          %v3692 = vrot.slane %v3683, 4
          %v3693 = vsel %vm756, %v3691, %v3692
          %v3696 = vadd.f32 %v3676, %v3690
          %v3697 = vadd.f32 %v3677, %v3693
          %s3698 = sld [smem:[#allocation13 + $0x8e]]
          %v3699 = vstv %s3698
          %v3700 = vmul.f32 %v3699, %v3266
          %v3701 = vmul.f32 %v3699, %v3267
          %v3702 = vmul.f32 %v3699, %v3268
          %v3703 = vmul.f32 %v3699, %v3269
          %v3708 = vrot.slane %v3700, 4
          %v3709 = vrot.slane %v3702, 4
          %v3710 = vsel %vm756, %v3708, %v3709
          %v3711 = vrot.slane %v3701, 4
          %v3712 = vrot.slane %v3703, 4
          %v3713 = vsel %vm756, %v3711, %v3712
          %v3716 = vadd.f32 %v3696, %v3710
          %v3717 = vadd.f32 %v3697, %v3713
          %s3718 = sld [smem:[#allocation13 + $0x8f]]
          %v3719 = vstv %s3718
          %v3720 = vmul.f32 %v3719, %v3320
          %v3721 = vmul.f32 %v3719, %v3321
          %v3722 = vmul.f32 %v3719, %v3322
          %v3723 = vmul.f32 %v3719, %v3323
          %v3728 = vrot.slane %v3720, 4
          %v3729 = vrot.slane %v3722, 4
          %v3730 = vsel %vm756, %v3728, %v3729
          %v3731 = vrot.slane %v3721, 4
          %v3732 = vrot.slane %v3723, 4
          %v3733 = vsel %vm756, %v3731, %v3732
          %v3736 = vadd.f32 %v3716, %v3730
          %v3737 = vadd.f32 %v3717, %v3733
          %v3738 = vld [vmem:[%s1648] sm:$0xff]
          %v3739 = vld [vmem:[%s1648 + $0x8] sm:$0xff]
          %v3740 = vld [vmem:[%s1648 + $0x10] sm:$0xf]
          %v3741 = vld [vmem:[%s1648 + $0x18] sm:$0xf]
          %3742 = vrot.lane.b32.xlu0 %v3738, 40
          %v3743 = vpop.permute.xlu0 %3742
          %v3744 = vsel %vm610, %v3743, %v3739
          %3745 = vrot.lane.b32.xlu0 %v3740, 40
          %v3746 = vpop.permute.xlu0 %3745
          %v3747 = vsel %vm610, %v3746, %v3741
          %3748 = vrot.lane.b32.xlu0 %v3744, 40
          %v3749 = vpop.permute.xlu0 %3748
          %3750 = vrot.lane.b32.xlu0 %v3747, 40
          %v3751 = vpop.permute.xlu0 %3750
          %v3752 = vsel %vm610, %v3749, %v3743
          %v3753 = vsel %vm610, %v3751, %v3746
          %3758 = vrot.lane.b32.xlu0 %v3744, 89
          %v3759 = vpop.permute.xlu0 %3758
          %3760 = vrot.lane.b32.xlu0 %v3752, 89
          %v3761 = vpop.permute.xlu0 %3760
          %3762 = vrot.lane.b32.xlu0 %v3747, 89
          %v3763 = vpop.permute.xlu0 %3762
          %3764 = vrot.lane.b32.xlu0 %v3753, 89
          %v3765 = vpop.permute.xlu0 %3764
          %v3766 = vsel %vm635, %v3759, %v3761
          %v3767 = vsel %vm635, %v3763, %v3765
          %v3772 = vsel %vm602, %v3766, 0.0
          %v3773 = vsel %vm603, %v3761, 0.0
          %v3774 = vsel %vm602, %v3767, 0.0
          %v3775 = vsel %vm603, %v3765, 0.0
          %3778 = vrot.lane.b32.xlu0 %v3738, 127
          %v3779 = vpop.permute.xlu0 %3778
          %3780 = vrot.lane.b32.xlu0 %v3744, 127
          %v3781 = vpop.permute.xlu0 %3780
          %3782 = vrot.lane.b32.xlu0 %v3740, 127
          %v3783 = vpop.permute.xlu0 %3782
          %3784 = vrot.lane.b32.xlu0 %v3747, 127
          %v3785 = vpop.permute.xlu0 %3784
          %v3786 = vsel %vm656, %v3779, %v3781
          %v3787 = vsel %vm656, %v3783, %v3785
          %v3792 = vsel %vm604, %v3786, 0.0
          %v3793 = vsel %vm605, %v3781, 0.0
          %v3794 = vsel %vm604, %v3787, 0.0
          %v3795 = vsel %vm605, %v3785, 0.0
          %s3796 = sld [smem:[#allocation13 + $0x24]]
          %v3797 = vstv %s3796
          %v3798 = vmul.f32 %v3797, %v3772
          %v3799 = vmul.f32 %v3797, %v3773
          %v3800 = vadd.f32 %v3460, %v3798
          %v3801 = vadd.f32 %v3461, %v3799
          %s3802 = sld [smem:[#allocation13 + $0x25]]
          %v3803 = vstv %s3802
          %v3804 = vmul.f32 %v3803, %v3738
          %v3805 = vmul.f32 %v3803, %v3739
          %v3806 = vadd.f32 %v3800, %v3804
          %v3807 = vadd.f32 %v3801, %v3805
          %s3808 = sld [smem:[#allocation13 + $0x26]]
          %v3809 = vstv %s3808
          %v3810 = vmul.f32 %v3809, %v3792
          %v3811 = vmul.f32 %v3809, %v3793
          %v3812 = vadd.f32 %v3806, %v3810
          %v3813 = vadd.f32 %v3807, %v3811
          %s3814 = sld [smem:[#allocation13 + $0x27]]
          %v3815 = vstv %s3814
          %v3816 = vmul.f32 %v3815, %v3772
          %v3817 = vmul.f32 %v3815, %v3773
          %v3818 = vmul.f32 %v3815, %v3774
          %v3819 = vmul.f32 %v3815, %v3775
          %v3824 = vrot.slane %v3816, 2
          %v3825 = vrot.slane %v3818, 2
          %v3826 = vsel %vm695, %v3824, %v3825
          %v3827 = vrot.slane %v3817, 2
          %v3828 = vrot.slane %v3819, 2
          %v3829 = vsel %vm695, %v3827, %v3828
          %v3832 = vadd.f32 %v3812, %v3826
          %v3833 = vadd.f32 %v3813, %v3829
          %s3834 = sld [smem:[#allocation13 + $0x28]]
          %v3835 = vstv %s3834
          %v3836 = vmul.f32 %v3835, %v3738
          %v3837 = vmul.f32 %v3835, %v3739
          %v3838 = vmul.f32 %v3835, %v3740
          %v3839 = vmul.f32 %v3835, %v3741
          %v3844 = vrot.slane %v3836, 2
          %v3845 = vrot.slane %v3838, 2
          %v3846 = vsel %vm695, %v3844, %v3845
          %v3847 = vrot.slane %v3837, 2
          %v3848 = vrot.slane %v3839, 2
          %v3849 = vsel %vm695, %v3847, %v3848
          %v3852 = vadd.f32 %v3832, %v3846
          %v3853 = vadd.f32 %v3833, %v3849
          %s3854 = sld [smem:[#allocation13 + $0x29]]
          %v3855 = vstv %s3854
          %v3856 = vmul.f32 %v3855, %v3792
          %v3857 = vmul.f32 %v3855, %v3793
          %v3858 = vmul.f32 %v3855, %v3794
          %v3859 = vmul.f32 %v3855, %v3795
          %v3864 = vrot.slane %v3856, 2
          %v3865 = vrot.slane %v3858, 2
          %v3866 = vsel %vm695, %v3864, %v3865
          %v3867 = vrot.slane %v3857, 2
          %v3868 = vrot.slane %v3859, 2
          %v3869 = vsel %vm695, %v3867, %v3868
          %v3872 = vadd.f32 %v3852, %v3866
          %v3873 = vadd.f32 %v3853, %v3869
          %s3874 = sld [smem:[#allocation13 + $0x2a]]
          %v3875 = vstv %s3874
          %v3876 = vmul.f32 %v3875, %v3772
          %v3877 = vmul.f32 %v3875, %v3773
          %v3878 = vmul.f32 %v3875, %v3774
          %v3879 = vmul.f32 %v3875, %v3775
          %v3884 = vrot.slane %v3876, 4
          %v3885 = vrot.slane %v3878, 4
          %v3886 = vsel %vm756, %v3884, %v3885
          %v3887 = vrot.slane %v3877, 4
          %v3888 = vrot.slane %v3879, 4
          %v3889 = vsel %vm756, %v3887, %v3888
          %v3892 = vadd.f32 %v3872, %v3886
          %v3893 = vadd.f32 %v3873, %v3889
          %s3894 = sld [smem:[#allocation13 + $0x2b]]
          %v3895 = vstv %s3894
          %v3896 = vmul.f32 %v3895, %v3738
          %v3897 = vmul.f32 %v3895, %v3739
          %v3898 = vmul.f32 %v3895, %v3740
          %v3899 = vmul.f32 %v3895, %v3741
          %v3904 = vrot.slane %v3896, 4
          %v3905 = vrot.slane %v3898, 4
          %v3906 = vsel %vm756, %v3904, %v3905
          %v3907 = vrot.slane %v3897, 4
          %v3908 = vrot.slane %v3899, 4
          %v3909 = vsel %vm756, %v3907, %v3908
          %v3912 = vadd.f32 %v3892, %v3906
          %v3913 = vadd.f32 %v3893, %v3909
          %s3914 = sld [smem:[#allocation13 + $0x2c]]
          %v3915 = vstv %s3914
          %v3916 = vmul.f32 %v3915, %v3792
          %v3917 = vmul.f32 %v3915, %v3793
          %v3918 = vmul.f32 %v3915, %v3794
          %v3919 = vmul.f32 %v3915, %v3795
          %v3924 = vrot.slane %v3916, 4
          %v3925 = vrot.slane %v3918, 4
          %v3926 = vsel %vm756, %v3924, %v3925
          %v3927 = vrot.slane %v3917, 4
          %v3928 = vrot.slane %v3919, 4
          %v3929 = vsel %vm756, %v3927, %v3928
          %v3932 = vadd.f32 %v3912, %v3926
          %v3933 = vadd.f32 %v3913, %v3929
          %s3934 = sld [smem:[#allocation13 + $0x5a]]
          %v3935 = vstv %s3934
          %v3936 = vmul.f32 %v3935, %v3772
          %v3937 = vmul.f32 %v3935, %v3773
          %v3938 = vadd.f32 %v3598, %v3936
          %v3939 = vadd.f32 %v3599, %v3937
          %s3940 = sld [smem:[#allocation13 + $0x5b]]
          %v3941 = vstv %s3940
          %v3942 = vmul.f32 %v3941, %v3738
          %v3943 = vmul.f32 %v3941, %v3739
          %v3944 = vadd.f32 %v3938, %v3942
          %v3945 = vadd.f32 %v3939, %v3943
          %s3946 = sld [smem:[#allocation13 + $0x5c]]
          %v3947 = vstv %s3946
          %v3948 = vmul.f32 %v3947, %v3792
          %v3949 = vmul.f32 %v3947, %v3793
          %v3950 = vadd.f32 %v3944, %v3948
          %v3951 = vadd.f32 %v3945, %v3949
          %s3952 = sld [smem:[#allocation13 + $0x5d]]
          %v3953 = vstv %s3952
          %v3954 = vmul.f32 %v3953, %v3772
          %v3955 = vmul.f32 %v3953, %v3773
          %v3956 = vmul.f32 %v3953, %v3774
          %v3957 = vmul.f32 %v3953, %v3775
          %v3962 = vrot.slane %v3954, 2
          %v3963 = vrot.slane %v3956, 2
          %v3964 = vsel %vm695, %v3962, %v3963
          %v3965 = vrot.slane %v3955, 2
          %v3966 = vrot.slane %v3957, 2
          %v3967 = vsel %vm695, %v3965, %v3966
          %v3970 = vadd.f32 %v3950, %v3964
          %v3971 = vadd.f32 %v3951, %v3967
          %s3972 = sld [smem:[#allocation13 + $0x5e]]
          %v3973 = vstv %s3972
          %v3974 = vmul.f32 %v3973, %v3738
          %v3975 = vmul.f32 %v3973, %v3739
          %v3976 = vmul.f32 %v3973, %v3740
          %v3977 = vmul.f32 %v3973, %v3741
          %v3982 = vrot.slane %v3974, 2
          %v3983 = vrot.slane %v3976, 2
          %v3984 = vsel %vm695, %v3982, %v3983
          %v3985 = vrot.slane %v3975, 2
          %v3986 = vrot.slane %v3977, 2
          %v3987 = vsel %vm695, %v3985, %v3986
          %v3990 = vadd.f32 %v3970, %v3984
          %v3991 = vadd.f32 %v3971, %v3987
          %s3992 = sld [smem:[#allocation13 + $0x5f]]
          %v3993 = vstv %s3992
          %v3994 = vmul.f32 %v3993, %v3792
          %v3995 = vmul.f32 %v3993, %v3793
          %v3996 = vmul.f32 %v3993, %v3794
          %v3997 = vmul.f32 %v3993, %v3795
          %v4002 = vrot.slane %v3994, 2
          %v4003 = vrot.slane %v3996, 2
          %v4004 = vsel %vm695, %v4002, %v4003
          %v4005 = vrot.slane %v3995, 2
          %v4006 = vrot.slane %v3997, 2
          %v4007 = vsel %vm695, %v4005, %v4006
          %v4010 = vadd.f32 %v3990, %v4004
          %v4011 = vadd.f32 %v3991, %v4007
          %s4012 = sld [smem:[#allocation13 + $0x60]]
          %v4013 = vstv %s4012
          %v4014 = vmul.f32 %v4013, %v3772
          %v4015 = vmul.f32 %v4013, %v3773
          %v4016 = vmul.f32 %v4013, %v3774
          %v4017 = vmul.f32 %v4013, %v3775
          %v4022 = vrot.slane %v4014, 4
          %v4023 = vrot.slane %v4016, 4
          %v4024 = vsel %vm756, %v4022, %v4023
          %v4025 = vrot.slane %v4015, 4
          %v4026 = vrot.slane %v4017, 4
          %v4027 = vsel %vm756, %v4025, %v4026
          %v4030 = vadd.f32 %v4010, %v4024
          %v4031 = vadd.f32 %v4011, %v4027
          %s4032 = sld [smem:[#allocation13 + $0x61]]
          %v4033 = vstv %s4032
          %v4034 = vmul.f32 %v4033, %v3738
          %v4035 = vmul.f32 %v4033, %v3739
          %v4036 = vmul.f32 %v4033, %v3740
          %v4037 = vmul.f32 %v4033, %v3741
          %v4042 = vrot.slane %v4034, 4
          %v4043 = vrot.slane %v4036, 4
          %v4044 = vsel %vm756, %v4042, %v4043
          %v4045 = vrot.slane %v4035, 4
          %v4046 = vrot.slane %v4037, 4
          %v4047 = vsel %vm756, %v4045, %v4046
          %v4050 = vadd.f32 %v4030, %v4044
          %v4051 = vadd.f32 %v4031, %v4047
          %s4052 = sld [smem:[#allocation13 + $0x62]]
          %v4053 = vstv %s4052
          %v4054 = vmul.f32 %v4053, %v3792
          %v4055 = vmul.f32 %v4053, %v3793
          %v4056 = vmul.f32 %v4053, %v3794
          %v4057 = vmul.f32 %v4053, %v3795
          %v4062 = vrot.slane %v4054, 4
          %v4063 = vrot.slane %v4056, 4
          %v4064 = vsel %vm756, %v4062, %v4063
          %v4065 = vrot.slane %v4055, 4
          %v4066 = vrot.slane %v4057, 4
          %v4067 = vsel %vm756, %v4065, %v4066
          %v4070 = vadd.f32 %v4050, %v4064
          %v4071 = vadd.f32 %v4051, %v4067
          %s4072 = sld [smem:[#allocation13 + $0x90]]
          %v4073 = vstv %s4072
          %v4074 = vmul.f32 %v4073, %v3772
          %v4075 = vmul.f32 %v4073, %v3773
          %v4076 = vadd.f32 %v3736, %v4074
          %v4077 = vadd.f32 %v3737, %v4075
          %s4078 = sld [smem:[#allocation13 + $0x91]]
          %v4079 = vstv %s4078
          %v4080 = vmul.f32 %v4079, %v3738
          %v4081 = vmul.f32 %v4079, %v3739
          %v4082 = vadd.f32 %v4076, %v4080
          %v4083 = vadd.f32 %v4077, %v4081
          %s4084 = sld [smem:[#allocation13 + $0x92]]
          %v4085 = vstv %s4084
          %v4086 = vmul.f32 %v4085, %v3792
          %v4087 = vmul.f32 %v4085, %v3793
          %v4088 = vadd.f32 %v4082, %v4086
          %v4089 = vadd.f32 %v4083, %v4087
          %s4090 = sld [smem:[#allocation13 + $0x93]]
          %v4091 = vstv %s4090
          %v4092 = vmul.f32 %v4091, %v3772
          %v4093 = vmul.f32 %v4091, %v3773
          %v4094 = vmul.f32 %v4091, %v3774
          %v4095 = vmul.f32 %v4091, %v3775
          %v4100 = vrot.slane %v4092, 2
          %v4101 = vrot.slane %v4094, 2
          %v4102 = vsel %vm695, %v4100, %v4101
          %v4103 = vrot.slane %v4093, 2
          %v4104 = vrot.slane %v4095, 2
          %v4105 = vsel %vm695, %v4103, %v4104
          %v4108 = vadd.f32 %v4088, %v4102
          %v4109 = vadd.f32 %v4089, %v4105
          %s4110 = sld [smem:[#allocation13 + $0x94]]
          %v4111 = vstv %s4110
          %v4112 = vmul.f32 %v4111, %v3738
          %v4113 = vmul.f32 %v4111, %v3739
          %v4114 = vmul.f32 %v4111, %v3740
          %v4115 = vmul.f32 %v4111, %v3741
          %v4120 = vrot.slane %v4112, 2
          %v4121 = vrot.slane %v4114, 2
          %v4122 = vsel %vm695, %v4120, %v4121
          %v4123 = vrot.slane %v4113, 2
          %v4124 = vrot.slane %v4115, 2
          %v4125 = vsel %vm695, %v4123, %v4124
          %v4128 = vadd.f32 %v4108, %v4122
          %v4129 = vadd.f32 %v4109, %v4125
          %s4130 = sld [smem:[#allocation13 + $0x95]]
          %v4131 = vstv %s4130
          %v4132 = vmul.f32 %v4131, %v3792
          %v4133 = vmul.f32 %v4131, %v3793
          %v4134 = vmul.f32 %v4131, %v3794
          %v4135 = vmul.f32 %v4131, %v3795
          %v4140 = vrot.slane %v4132, 2
          %v4141 = vrot.slane %v4134, 2
          %v4142 = vsel %vm695, %v4140, %v4141
          %v4143 = vrot.slane %v4133, 2
          %v4144 = vrot.slane %v4135, 2
          %v4145 = vsel %vm695, %v4143, %v4144
          %v4148 = vadd.f32 %v4128, %v4142
          %v4149 = vadd.f32 %v4129, %v4145
          %s4150 = sld [smem:[#allocation13 + $0x96]]
          %v4151 = vstv %s4150
          %v4152 = vmul.f32 %v4151, %v3772
          %v4153 = vmul.f32 %v4151, %v3773
          %v4154 = vmul.f32 %v4151, %v3774
          %v4155 = vmul.f32 %v4151, %v3775
          %v4160 = vrot.slane %v4152, 4
          %v4161 = vrot.slane %v4154, 4
          %v4162 = vsel %vm756, %v4160, %v4161
          %v4163 = vrot.slane %v4153, 4
          %v4164 = vrot.slane %v4155, 4
          %v4165 = vsel %vm756, %v4163, %v4164
          %v4168 = vadd.f32 %v4148, %v4162
          %v4169 = vadd.f32 %v4149, %v4165
          %s4170 = sld [smem:[#allocation13 + $0x97]]
          %v4171 = vstv %s4170
          %v4172 = vmul.f32 %v4171, %v3738
          %v4173 = vmul.f32 %v4171, %v3739
          %v4174 = vmul.f32 %v4171, %v3740
          %v4175 = vmul.f32 %v4171, %v3741
          %v4180 = vrot.slane %v4172, 4
          %v4181 = vrot.slane %v4174, 4
          %v4182 = vsel %vm756, %v4180, %v4181
          %v4183 = vrot.slane %v4173, 4
          %v4184 = vrot.slane %v4175, 4
          %v4185 = vsel %vm756, %v4183, %v4184
          %v4188 = vadd.f32 %v4168, %v4182
          %v4189 = vadd.f32 %v4169, %v4185
          %s4190 = sld [smem:[#allocation13 + $0x98]]
          %v4191 = vstv %s4190
          %v4192 = vmul.f32 %v4191, %v3792
          %v4193 = vmul.f32 %v4191, %v3793
          %v4194 = vmul.f32 %v4191, %v3794
          %v4195 = vmul.f32 %v4191, %v3795
          %v4200 = vrot.slane %v4192, 4
          %v4201 = vrot.slane %v4194, 4
          %v4202 = vsel %vm756, %v4200, %v4201
          %v4203 = vrot.slane %v4193, 4
          %v4204 = vrot.slane %v4195, 4
          %v4205 = vsel %vm756, %v4203, %v4204
          %v4208 = vadd.f32 %v4188, %v4202
          %v4209 = vadd.f32 %v4189, %v4205
          %v4210 = vld [vmem:[%s1845] sm:$0xff]
          %v4211 = vld [vmem:[%s1845 + $0x8] sm:$0xff]
          %v4212 = vld [vmem:[%s1845 + $0x10] sm:$0xf]
          %v4213 = vld [vmem:[%s1845 + $0x18] sm:$0xf]
          %4214 = vrot.lane.b32.xlu0 %v4210, 40
          %v4215 = vpop.permute.xlu0 %4214
          %v4216 = vsel %vm610, %v4215, %v4211
          %4217 = vrot.lane.b32.xlu0 %v4212, 40
          %v4218 = vpop.permute.xlu0 %4217
          %v4219 = vsel %vm610, %v4218, %v4213
          %4220 = vrot.lane.b32.xlu0 %v4216, 40
          %v4221 = vpop.permute.xlu0 %4220
          %4222 = vrot.lane.b32.xlu0 %v4219, 40
          %v4223 = vpop.permute.xlu0 %4222
          %v4224 = vsel %vm610, %v4221, %v4215
          %v4225 = vsel %vm610, %v4223, %v4218
          %4230 = vrot.lane.b32.xlu0 %v4216, 89
          %v4231 = vpop.permute.xlu0 %4230
          %4232 = vrot.lane.b32.xlu0 %v4224, 89
          %v4233 = vpop.permute.xlu0 %4232
          %4234 = vrot.lane.b32.xlu0 %v4219, 89
          %v4235 = vpop.permute.xlu0 %4234
          %4236 = vrot.lane.b32.xlu0 %v4225, 89
          %v4237 = vpop.permute.xlu0 %4236
          %v4238 = vsel %vm635, %v4231, %v4233
          %v4239 = vsel %vm635, %v4235, %v4237
          %v4244 = vsel %vm602, %v4238, 0.0
          %v4245 = vsel %vm603, %v4233, 0.0
          %v4246 = vsel %vm602, %v4239, 0.0
          %v4247 = vsel %vm603, %v4237, 0.0
          %4250 = vrot.lane.b32.xlu0 %v4210, 127
          %v4251 = vpop.permute.xlu0 %4250
          %4252 = vrot.lane.b32.xlu0 %v4216, 127
          %v4253 = vpop.permute.xlu0 %4252
          %4254 = vrot.lane.b32.xlu0 %v4212, 127
          %v4255 = vpop.permute.xlu0 %4254
          %4256 = vrot.lane.b32.xlu0 %v4219, 127
          %v4257 = vpop.permute.xlu0 %4256
          %v4258 = vsel %vm656, %v4251, %v4253
          %v4259 = vsel %vm656, %v4255, %v4257
          %v4264 = vsel %vm604, %v4258, 0.0
          %v4265 = vsel %vm605, %v4253, 0.0
          %v4266 = vsel %vm604, %v4259, 0.0
          %v4267 = vsel %vm605, %v4257, 0.0
          %s4268 = sld [smem:[#allocation13 + $0x2d]]
          %v4269 = vstv %s4268
          %v4270 = vmul.f32 %v4269, %v4244
          %v4271 = vmul.f32 %v4269, %v4245
          %v4272 = vadd.f32 %v3932, %v4270
          %v4273 = vadd.f32 %v3933, %v4271
          %s4274 = sld [smem:[#allocation13 + $0x2e]]
          %v4275 = vstv %s4274
          %v4276 = vmul.f32 %v4275, %v4210
          %v4277 = vmul.f32 %v4275, %v4211
          %v4278 = vadd.f32 %v4272, %v4276
          %v4279 = vadd.f32 %v4273, %v4277
          %s4280 = sld [smem:[#allocation13 + $0x2f]]
          %v4281 = vstv %s4280
          %v4282 = vmul.f32 %v4281, %v4264
          %v4283 = vmul.f32 %v4281, %v4265
          %v4284 = vadd.f32 %v4278, %v4282
          %v4285 = vadd.f32 %v4279, %v4283
          %s4286 = sld [smem:[#allocation13 + $0x30]]
          %v4287 = vstv %s4286
          %v4288 = vmul.f32 %v4287, %v4244
          %v4289 = vmul.f32 %v4287, %v4245
          %v4290 = vmul.f32 %v4287, %v4246
          %v4291 = vmul.f32 %v4287, %v4247
          %v4296 = vrot.slane %v4288, 2
          %v4297 = vrot.slane %v4290, 2
          %v4298 = vsel %vm695, %v4296, %v4297
          %v4299 = vrot.slane %v4289, 2
          %v4300 = vrot.slane %v4291, 2
          %v4301 = vsel %vm695, %v4299, %v4300
          %v4304 = vadd.f32 %v4284, %v4298
          %v4305 = vadd.f32 %v4285, %v4301
          %s4306 = sld [smem:[#allocation13 + $0x31]]
          %v4307 = vstv %s4306
          %v4308 = vmul.f32 %v4307, %v4210
          %v4309 = vmul.f32 %v4307, %v4211
          %v4310 = vmul.f32 %v4307, %v4212
          %v4311 = vmul.f32 %v4307, %v4213
          %v4316 = vrot.slane %v4308, 2
          %v4317 = vrot.slane %v4310, 2
          %v4318 = vsel %vm695, %v4316, %v4317
          %v4319 = vrot.slane %v4309, 2
          %v4320 = vrot.slane %v4311, 2
          %v4321 = vsel %vm695, %v4319, %v4320
          %v4324 = vadd.f32 %v4304, %v4318
          %v4325 = vadd.f32 %v4305, %v4321
          %s4326 = sld [smem:[#allocation13 + $0x32]]
          %v4327 = vstv %s4326
          %v4328 = vmul.f32 %v4327, %v4264
          %v4329 = vmul.f32 %v4327, %v4265
          %v4330 = vmul.f32 %v4327, %v4266
          %v4331 = vmul.f32 %v4327, %v4267
          %v4336 = vrot.slane %v4328, 2
          %v4337 = vrot.slane %v4330, 2
          %v4338 = vsel %vm695, %v4336, %v4337
          %v4339 = vrot.slane %v4329, 2
          %v4340 = vrot.slane %v4331, 2
          %v4341 = vsel %vm695, %v4339, %v4340
          %v4344 = vadd.f32 %v4324, %v4338
          %v4345 = vadd.f32 %v4325, %v4341
          %s4346 = sld [smem:[#allocation13 + $0x33]]
          %v4347 = vstv %s4346
          %v4348 = vmul.f32 %v4347, %v4244
          %v4349 = vmul.f32 %v4347, %v4245
          %v4350 = vmul.f32 %v4347, %v4246
          %v4351 = vmul.f32 %v4347, %v4247
          %v4356 = vrot.slane %v4348, 4
          %v4357 = vrot.slane %v4350, 4
          %v4358 = vsel %vm756, %v4356, %v4357
          %v4359 = vrot.slane %v4349, 4
          %v4360 = vrot.slane %v4351, 4
          %v4361 = vsel %vm756, %v4359, %v4360
          %v4364 = vadd.f32 %v4344, %v4358
          %v4365 = vadd.f32 %v4345, %v4361
          %s4366 = sld [smem:[#allocation13 + $0x34]]
          %v4367 = vstv %s4366
          %v4368 = vmul.f32 %v4367, %v4210
          %v4369 = vmul.f32 %v4367, %v4211
          %v4370 = vmul.f32 %v4367, %v4212
          %v4371 = vmul.f32 %v4367, %v4213
          %v4376 = vrot.slane %v4368, 4
          %v4377 = vrot.slane %v4370, 4
          %v4378 = vsel %vm756, %v4376, %v4377
          %v4379 = vrot.slane %v4369, 4
          %v4380 = vrot.slane %v4371, 4
          %v4381 = vsel %vm756, %v4379, %v4380
          %v4384 = vadd.f32 %v4364, %v4378
          %v4385 = vadd.f32 %v4365, %v4381
          %s4386 = sld [smem:[#allocation13 + $0x35]]
          %v4387 = vstv %s4386
          %v4388 = vmul.f32 %v4387, %v4264
          %v4389 = vmul.f32 %v4387, %v4265
          %v4390 = vmul.f32 %v4387, %v4266
          %v4391 = vmul.f32 %v4387, %v4267
          %v4396 = vrot.slane %v4388, 4
          %v4397 = vrot.slane %v4390, 4
          %v4398 = vsel %vm756, %v4396, %v4397
          %v4399 = vrot.slane %v4389, 4
          %v4400 = vrot.slane %v4391, 4
          %v4401 = vsel %vm756, %v4399, %v4400
          %v4404 = vadd.f32 %v4384, %v4398
          %v4405 = vadd.f32 %v4385, %v4401
          %s4406 = sld [smem:[#allocation13 + $0x63]]
          %v4407 = vstv %s4406
          %v4408 = vmul.f32 %v4407, %v4244
          %v4409 = vmul.f32 %v4407, %v4245
          %v4410 = vadd.f32 %v4070, %v4408
          %v4411 = vadd.f32 %v4071, %v4409
          %s4412 = sld [smem:[#allocation13 + $0x64]]
          %v4413 = vstv %s4412
          %v4414 = vmul.f32 %v4413, %v4210
          %v4415 = vmul.f32 %v4413, %v4211
          %v4416 = vadd.f32 %v4410, %v4414
          %v4417 = vadd.f32 %v4411, %v4415
          %s4418 = sld [smem:[#allocation13 + $0x65]]
          %v4419 = vstv %s4418
          %v4420 = vmul.f32 %v4419, %v4264
          %v4421 = vmul.f32 %v4419, %v4265
          %v4422 = vadd.f32 %v4416, %v4420
          %v4423 = vadd.f32 %v4417, %v4421
          %s4424 = sld [smem:[#allocation13 + $0x66]]
          %v4425 = vstv %s4424
          %v4426 = vmul.f32 %v4425, %v4244
          %v4427 = vmul.f32 %v4425, %v4245
          %v4428 = vmul.f32 %v4425, %v4246
          %v4429 = vmul.f32 %v4425, %v4247
          %v4434 = vrot.slane %v4426, 2
          %v4435 = vrot.slane %v4428, 2
          %v4436 = vsel %vm695, %v4434, %v4435
          %v4437 = vrot.slane %v4427, 2
          %v4438 = vrot.slane %v4429, 2
          %v4439 = vsel %vm695, %v4437, %v4438
          %v4442 = vadd.f32 %v4422, %v4436
          %v4443 = vadd.f32 %v4423, %v4439
          %s4444 = sld [smem:[#allocation13 + $0x67]]
          %v4445 = vstv %s4444
          %v4446 = vmul.f32 %v4445, %v4210
          %v4447 = vmul.f32 %v4445, %v4211
          %v4448 = vmul.f32 %v4445, %v4212
          %v4449 = vmul.f32 %v4445, %v4213
          %v4454 = vrot.slane %v4446, 2
          %v4455 = vrot.slane %v4448, 2
          %v4456 = vsel %vm695, %v4454, %v4455
          %v4457 = vrot.slane %v4447, 2
          %v4458 = vrot.slane %v4449, 2
          %v4459 = vsel %vm695, %v4457, %v4458
          %v4462 = vadd.f32 %v4442, %v4456
          %v4463 = vadd.f32 %v4443, %v4459
          %s4464 = sld [smem:[#allocation13 + $0x68]]
          %v4465 = vstv %s4464
          %v4466 = vmul.f32 %v4465, %v4264
          %v4467 = vmul.f32 %v4465, %v4265
          %v4468 = vmul.f32 %v4465, %v4266
          %v4469 = vmul.f32 %v4465, %v4267
          %v4474 = vrot.slane %v4466, 2
          %v4475 = vrot.slane %v4468, 2
          %v4476 = vsel %vm695, %v4474, %v4475
          %v4477 = vrot.slane %v4467, 2
          %v4478 = vrot.slane %v4469, 2
          %v4479 = vsel %vm695, %v4477, %v4478
          %v4482 = vadd.f32 %v4462, %v4476
          %v4483 = vadd.f32 %v4463, %v4479
          %s4484 = sld [smem:[#allocation13 + $0x69]]
          %v4485 = vstv %s4484
          %v4486 = vmul.f32 %v4485, %v4244
          %v4487 = vmul.f32 %v4485, %v4245
          %v4488 = vmul.f32 %v4485, %v4246
          %v4489 = vmul.f32 %v4485, %v4247
          %v4494 = vrot.slane %v4486, 4
          %v4495 = vrot.slane %v4488, 4
          %v4496 = vsel %vm756, %v4494, %v4495
          %v4497 = vrot.slane %v4487, 4
          %v4498 = vrot.slane %v4489, 4
          %v4499 = vsel %vm756, %v4497, %v4498
          %v4502 = vadd.f32 %v4482, %v4496
          %v4503 = vadd.f32 %v4483, %v4499
          %s4504 = sld [smem:[#allocation13 + $0x6a]]
          %v4505 = vstv %s4504
          %v4506 = vmul.f32 %v4505, %v4210
          %v4507 = vmul.f32 %v4505, %v4211
          %v4508 = vmul.f32 %v4505, %v4212
          %v4509 = vmul.f32 %v4505, %v4213
          %v4514 = vrot.slane %v4506, 4
          %v4515 = vrot.slane %v4508, 4
          %v4516 = vsel %vm756, %v4514, %v4515
          %v4517 = vrot.slane %v4507, 4
          %v4518 = vrot.slane %v4509, 4
          %v4519 = vsel %vm756, %v4517, %v4518
          %v4522 = vadd.f32 %v4502, %v4516
          %v4523 = vadd.f32 %v4503, %v4519
          %s4524 = sld [smem:[#allocation13 + $0x6b]]
          %v4525 = vstv %s4524
          %v4526 = vmul.f32 %v4525, %v4264
          %v4527 = vmul.f32 %v4525, %v4265
          %v4528 = vmul.f32 %v4525, %v4266
          %v4529 = vmul.f32 %v4525, %v4267
          %v4534 = vrot.slane %v4526, 4
          %v4535 = vrot.slane %v4528, 4
          %v4536 = vsel %vm756, %v4534, %v4535
          %v4537 = vrot.slane %v4527, 4
          %v4538 = vrot.slane %v4529, 4
          %v4539 = vsel %vm756, %v4537, %v4538
          %v4542 = vadd.f32 %v4522, %v4536
          %v4543 = vadd.f32 %v4523, %v4539
          %s4544 = sld [smem:[#allocation13 + $0x99]]
          %v4545 = vstv %s4544
          %v4546 = vmul.f32 %v4545, %v4244
          %v4547 = vmul.f32 %v4545, %v4245
          %v4548 = vadd.f32 %v4208, %v4546
          %v4549 = vadd.f32 %v4209, %v4547
          %s4550 = sld [smem:[#allocation13 + $0x9a]]
          %v4551 = vstv %s4550
          %v4552 = vmul.f32 %v4551, %v4210
          %v4553 = vmul.f32 %v4551, %v4211
          %v4554 = vadd.f32 %v4548, %v4552
          %v4555 = vadd.f32 %v4549, %v4553
          %s4556 = sld [smem:[#allocation13 + $0x9b]]
          %v4557 = vstv %s4556
          %v4558 = vmul.f32 %v4557, %v4264
          %v4559 = vmul.f32 %v4557, %v4265
          %v4560 = vadd.f32 %v4554, %v4558
          %v4561 = vadd.f32 %v4555, %v4559
          %s4562 = sld [smem:[#allocation13 + $0x9c]]
          %v4563 = vstv %s4562
          %v4564 = vmul.f32 %v4563, %v4244
          %v4565 = vmul.f32 %v4563, %v4245
          %v4566 = vmul.f32 %v4563, %v4246
          %v4567 = vmul.f32 %v4563, %v4247
          %v4572 = vrot.slane %v4564, 2
          %v4573 = vrot.slane %v4566, 2
          %v4574 = vsel %vm695, %v4572, %v4573
          %v4575 = vrot.slane %v4565, 2
          %v4576 = vrot.slane %v4567, 2
          %v4577 = vsel %vm695, %v4575, %v4576
          %v4580 = vadd.f32 %v4560, %v4574
          %v4581 = vadd.f32 %v4561, %v4577
          %s4582 = sld [smem:[#allocation13 + $0x9d]]
          %v4583 = vstv %s4582
          %v4584 = vmul.f32 %v4583, %v4210
          %v4585 = vmul.f32 %v4583, %v4211
          %v4586 = vmul.f32 %v4583, %v4212
          %v4587 = vmul.f32 %v4583, %v4213
          %v4592 = vrot.slane %v4584, 2
          %v4593 = vrot.slane %v4586, 2
          %v4594 = vsel %vm695, %v4592, %v4593
          %v4595 = vrot.slane %v4585, 2
          %v4596 = vrot.slane %v4587, 2
          %v4597 = vsel %vm695, %v4595, %v4596
          %v4600 = vadd.f32 %v4580, %v4594
          %v4601 = vadd.f32 %v4581, %v4597
          %s4602 = sld [smem:[#allocation13 + $0x9e]]
          %v4603 = vstv %s4602
          %v4604 = vmul.f32 %v4603, %v4264
          %v4605 = vmul.f32 %v4603, %v4265
          %v4606 = vmul.f32 %v4603, %v4266
          %v4607 = vmul.f32 %v4603, %v4267
          %v4612 = vrot.slane %v4604, 2
          %v4613 = vrot.slane %v4606, 2
          %v4614 = vsel %vm695, %v4612, %v4613
          %v4615 = vrot.slane %v4605, 2
          %v4616 = vrot.slane %v4607, 2
          %v4617 = vsel %vm695, %v4615, %v4616
          %v4620 = vadd.f32 %v4600, %v4614
          %v4621 = vadd.f32 %v4601, %v4617
          %s4622 = sld [smem:[#allocation13 + $0x9f]]
          %v4623 = vstv %s4622
          %v4624 = vmul.f32 %v4623, %v4244
          %v4625 = vmul.f32 %v4623, %v4245
          %v4626 = vmul.f32 %v4623, %v4246
          %v4627 = vmul.f32 %v4623, %v4247
          %v4632 = vrot.slane %v4624, 4
          %v4633 = vrot.slane %v4626, 4
          %v4634 = vsel %vm756, %v4632, %v4633
          %v4635 = vrot.slane %v4625, 4
          %v4636 = vrot.slane %v4627, 4
          %v4637 = vsel %vm756, %v4635, %v4636
          %v4640 = vadd.f32 %v4620, %v4634
          %v4641 = vadd.f32 %v4621, %v4637
          %s4642 = sld [smem:[#allocation13 + $0xa0]]
          %v4643 = vstv %s4642
          %v4644 = vmul.f32 %v4643, %v4210
          %v4645 = vmul.f32 %v4643, %v4211
          %v4646 = vmul.f32 %v4643, %v4212
          %v4647 = vmul.f32 %v4643, %v4213
          %v4652 = vrot.slane %v4644, 4
          %v4653 = vrot.slane %v4646, 4
          %v4654 = vsel %vm756, %v4652, %v4653
          %v4655 = vrot.slane %v4645, 4
          %v4656 = vrot.slane %v4647, 4
          %v4657 = vsel %vm756, %v4655, %v4656
          %v4660 = vadd.f32 %v4640, %v4654
          %v4661 = vadd.f32 %v4641, %v4657
          %s4662 = sld [smem:[#allocation13 + $0xa1]]
          %v4663 = vstv %s4662
          %v4664 = vmul.f32 %v4663, %v4264
          %v4665 = vmul.f32 %v4663, %v4265
          %v4666 = vmul.f32 %v4663, %v4266
          %v4667 = vmul.f32 %v4663, %v4267
          %v4672 = vrot.slane %v4664, 4
          %v4673 = vrot.slane %v4666, 4
          %v4674 = vsel %vm756, %v4672, %v4673
          %v4675 = vrot.slane %v4665, 4
          %v4676 = vrot.slane %v4667, 4
          %v4677 = vsel %vm756, %v4675, %v4676
          %v4680 = vadd.f32 %v4660, %v4674
          %v4681 = vadd.f32 %v4661, %v4677
          %s4682 = sld [smem:[#allocation15]]
          %s4683 = sld [smem:[#allocation16]]
          %v4684 = vsel %vm556, %v4405, 0.0
          %v4685 = vadd.f32 %v4404, %v4684
          %4686 = vadd.xlane.f32.xlu0 %v4685
          %v4687 = vpop.xlane.xlu0 %4686
          %v4688 = vrot.slane %v4687, 4
          %v4689 = vadd.f32 %v4687, %v4688
          %v4690 = vrot.slane %v4689, 2
          %v4691 = vadd.f32 %v4689, %v4690
          %v4692 = vrot.slane %v4691, 1
          %v4693 = vadd.f32 %v4691, %v4692
          %s4694 = vtos %v4693
          %v4695 = vmul.f32 %v4404, %v4404
          %v4696 = vmul.f32 %v4405, %v4405
          %v4697 = vsel %vm556, %v4696, 0.0
          %v4698 = vadd.f32 %v4695, %v4697
          %4699 = vadd.xlane.f32.xlu0 %v4698
          %v4700 = vpop.xlane.xlu0 %4699
          %v4701 = vrot.slane %v4700, 4
          %v4702 = vadd.f32 %v4700, %v4701
          %v4703 = vrot.slane %v4702, 2
          %v4704 = vadd.f32 %v4702, %v4703
          %v4705 = vrot.slane %v4704, 1
          %v4706 = vadd.f32 %v4704, %v4705
          %s4707 = vtos %v4706
          %s4708 = smul.f32 %s4694, 0.00074404763
          %s4709 = smul.f32 %s4707, 0.00074404763
          %s4710 = smul.f32 %s4708, %s4708
          %s4711 = ssub.f32 %s4709, %s4710
          %v4712 = vstv %s4708
          %v4713 = vsub.f32 %v4404, %v4712
          %v4714 = vsub.f32 %v4405, %v4712
          %s4715 = sadd.f32 %s4711, 1e-05
          %v4716 = vstv %s4715
          %v4717 = vrsqrt.pop %v4716
          %s4718 = vtos %v4717
          %v4719 = vstv %s4718
          %v4720 = vmul.f32 %v4713, %v4719
          %v4721 = vmul.f32 %v4714, %v4719
          %v4722 = vstv %s4682
          %v4723 = vmul.f32 %v4720, %v4722
          %v4724 = vmul.f32 %v4721, %v4722
          %v4725 = vstv %s4683
          %v4726 = vadd.f32 %v4723, %v4725
          %v4727 = vadd.f32 %v4724, %v4725
          %v4728 = vmax.f32 %v4726, 0.0
          %v4729 = vmax.f32 %v4727, 0.0
          %4730 = vst [vmem:[#allocation4] sm:$0x3] %v4728
          %4731 = vst.msk [vmem:[#allocation4 + $0x8] sm:$0x3] %vm597, %v4729
          %v4734 = vrot.slane %v4728, 2
          %v4735 = vrot.slane %v4729, 2
          %4736 = vrot.lane.b32.xlu0 %v4734, 40
          %v4737 = vpop.permute.xlu0 %4736
          %4738 = vrot.lane.b32.xlu0 %v4735, 40
          %v4739 = vpop.permute.xlu0 %4738
          %v4740 = vsel %vm556, %v4737, %v4739
          %vm4743 = vcmask 1041728
          %4744 = vst.msk [vmem:[#allocation4 + $0x8] sm:$0x3] %vm4743, %v4737
          %vm4745 = vcmask 648192
          %4746 = vst.msk [vmem:[#allocation4 + $0x10] sm:$0x3] %vm4745, %v4740
          %v4747 = vrot.slane %v4728, 4
          %v4748 = vrot.slane %v4729, 4
          %4749 = vrot.lane.b32.xlu0 %v4747, 80
          %v4750 = vpop.permute.xlu0 %4749
          %4751 = vrot.lane.b32.xlu0 %v4748, 80
          %v4752 = vpop.permute.xlu0 %4751
          %vm4753 = vcmask 654336
          %v4754 = vsel %vm4753, %v4750, %v4752
          %vm4757 = vcmask 1042048
          %4758 = vst.msk [vmem:[#allocation4 + $0x10] sm:$0x3] %vm4757, %v4750
          %vm4759 = vcmask 975872
          %4760 = vst.msk [vmem:[#allocation4 + $0x18] sm:$0x3] %vm4759, %v4754
          %v4761 = vrot.slane %v4728, 6
          %v4762 = vrot.slane %v4729, 6
          %4763 = vrot.lane.b32.xlu0 %v4761, 120
          %v4764 = vpop.permute.xlu0 %4763
          %4765 = vrot.lane.b32.xlu0 %v4762, 120
          %v4766 = vpop.permute.xlu0 %4765
          %vm4767 = vcmask 982016
          %v4768 = vsel %vm4767, %v4764, %v4766
          %vm4772 = vcmask 1042368
          %4773 = vst.msk [vmem:[#allocation4 + $0x18] sm:$0x3] %vm4772, %v4764
          %4774 = vst [vmem:[#allocation4 + $0x20] sm:$0x3] %v4768
          %vm4775 = vcmask 254976
          %4776 = vst.msk [vmem:[#allocation4 + $0x28] sm:$0x3] %vm4775, %v4766
          %s4777 = sld [smem:[#allocation15 + $0x1]]
          %s4778 = sld [smem:[#allocation16 + $0x1]]
          %v4779 = vsel %vm556, %v4543, 0.0
          %v4780 = vadd.f32 %v4542, %v4779
          %4781 = vadd.xlane.f32.xlu0 %v4780
          %v4782 = vpop.xlane.xlu0 %4781
          %v4783 = vrot.slane %v4782, 4
          %v4784 = vadd.f32 %v4782, %v4783
          %v4785 = vrot.slane %v4784, 2
          %v4786 = vadd.f32 %v4784, %v4785
          %v4787 = vrot.slane %v4786, 1
          %v4788 = vadd.f32 %v4786, %v4787
          %s4789 = vtos %v4788
          %v4790 = vmul.f32 %v4542, %v4542
          %v4791 = vmul.f32 %v4543, %v4543
          %v4792 = vsel %vm556, %v4791, 0.0
          %v4793 = vadd.f32 %v4790, %v4792
          %4794 = vadd.xlane.f32.xlu0 %v4793
          %v4795 = vpop.xlane.xlu0 %4794
          %v4796 = vrot.slane %v4795, 4
          %v4797 = vadd.f32 %v4795, %v4796
          %v4798 = vrot.slane %v4797, 2
          %v4799 = vadd.f32 %v4797, %v4798
          %v4800 = vrot.slane %v4799, 1
          %v4801 = vadd.f32 %v4799, %v4800
          %s4802 = vtos %v4801
          %s4803 = smul.f32 %s4789, 0.00074404763
          %s4804 = smul.f32 %s4802, 0.00074404763
          %s4805 = smul.f32 %s4803, %s4803
          %s4806 = ssub.f32 %s4804, %s4805
          %v4807 = vstv %s4803
          %v4808 = vsub.f32 %v4542, %v4807
          %v4809 = vsub.f32 %v4543, %v4807
          %s4810 = sadd.f32 %s4806, 1e-05
          %v4811 = vstv %s4810
          %v4812 = vrsqrt.pop %v4811
          %s4813 = vtos %v4812
          %v4814 = vstv %s4813
          %v4815 = vmul.f32 %v4808, %v4814
          %v4816 = vmul.f32 %v4809, %v4814
          %v4817 = vstv %s4777
          %v4818 = vmul.f32 %v4815, %v4817
          %v4819 = vmul.f32 %v4816, %v4817
          %v4820 = vstv %s4778
          %v4821 = vadd.f32 %v4818, %v4820
          %v4822 = vadd.f32 %v4819, %v4820
          %v4823 = vmax.f32 %v4821, 0.0
          %v4824 = vmax.f32 %v4822, 0.0
          %4827 = vrot.lane.b32.xlu0 %v4823, 32
          %v4828 = vpop.permute.xlu0 %4827
          %4829 = vrot.lane.b32.xlu0 %v4824, 32
          %v4830 = vpop.permute.xlu0 %4829
          %vm4831 = vcmask 261120
          %v4832 = vsel %vm4831, %v4828, %v4830
          %vm4835 = vcmask 1041664
          %4836 = vst.msk [vmem:[#allocation4 + $0x28] sm:$0x3] %vm4835, %v4828
          %vm4837 = vcmask 582656
          %4838 = vst.msk [vmem:[#allocation4 + $0x30] sm:$0x3] %vm4837, %v4832
          %v4839 = vrot.slane %v4823, 2
          %v4840 = vrot.slane %v4824, 2
          %4841 = vrot.lane.b32.xlu0 %v4839, 72
          %v4842 = vpop.permute.xlu0 %4841
          %4843 = vrot.lane.b32.xlu0 %v4840, 72
          %v4844 = vpop.permute.xlu0 %4843
          %vm4845 = vcmask 588800
          %v4846 = vsel %vm4845, %v4842, %v4844
          %vm4849 = vcmask 1041984
          %4850 = vst.msk [vmem:[#allocation4 + $0x30] sm:$0x3] %vm4849, %v4842
          %vm4851 = vcmask 910336
          %4852 = vst.msk [vmem:[#allocation4 + $0x38] sm:$0x3] %vm4851, %v4846
          %v4853 = vrot.slane %v4823, 4
          %v4854 = vrot.slane %v4824, 4
          %4855 = vrot.lane.b32.xlu0 %v4853, 112
          %v4856 = vpop.permute.xlu0 %4855
          %4857 = vrot.lane.b32.xlu0 %v4854, 112
          %v4858 = vpop.permute.xlu0 %4857
          %vm4859 = vcmask 916480
          %v4860 = vsel %vm4859, %v4856, %v4858
          %vm4864 = vcmask 1042304
          %4865 = vst.msk [vmem:[#allocation4 + $0x38] sm:$0x3] %vm4864, %v4856
          %4866 = vst [vmem:[#allocation4 + $0x40] sm:$0x3] %v4860
          %vm4867 = vcmask 189440
          %4868 = vst.msk [vmem:[#allocation4 + $0x48] sm:$0x3] %vm4867, %v4858
          %v4869 = vrot.slane %v4823, 6
          %v4870 = vrot.slane %v4824, 6
          %4871 = vrot.lane.b32.xlu0 %v4869, 24
          %v4872 = vpop.permute.xlu0 %4871
          %4873 = vrot.lane.b32.xlu0 %v4870, 24
          %v4874 = vpop.permute.xlu0 %4873
          %vm4875 = vcmask 195584
          %v4876 = vsel %vm4875, %v4872, %v4874
          %vm4879 = vcmask 1041600
          %4880 = vst.msk [vmem:[#allocation4 + $0x48] sm:$0x3] %vm4879, %v4872
          %vm4881 = vcmask 517120
          %4882 = vst.msk [vmem:[#allocation4 + $0x50] sm:$0x3] %vm4881, %v4876
          %s4883 = sld [smem:[#allocation15 + $0x2]]
          %s4884 = sld [smem:[#allocation16 + $0x2]]
          %v4885 = vsel %vm556, %v4681, 0.0
          %v4886 = vadd.f32 %v4680, %v4885
          %4887 = vadd.xlane.f32.xlu0 %v4886
          %v4888 = vpop.xlane.xlu0 %4887
          %v4889 = vrot.slane %v4888, 4
          %v4890 = vadd.f32 %v4888, %v4889
          %v4891 = vrot.slane %v4890, 2
          %v4892 = vadd.f32 %v4890, %v4891
          %v4893 = vrot.slane %v4892, 1
          %v4894 = vadd.f32 %v4892, %v4893
          %s4895 = vtos %v4894
          %v4896 = vmul.f32 %v4680, %v4680
          %v4897 = vmul.f32 %v4681, %v4681
          %v4898 = vsel %vm556, %v4897, 0.0
          %v4899 = vadd.f32 %v4896, %v4898
          %4900 = vadd.xlane.f32.xlu0 %v4899
          %v4901 = vpop.xlane.xlu0 %4900
          %v4902 = vrot.slane %v4901, 4
          %v4903 = vadd.f32 %v4901, %v4902
          %v4904 = vrot.slane %v4903, 2
          %v4905 = vadd.f32 %v4903, %v4904
          %v4906 = vrot.slane %v4905, 1
          %v4907 = vadd.f32 %v4905, %v4906
          %s4908 = vtos %v4907
          %s4909 = smul.f32 %s4895, 0.00074404763
          %s4910 = smul.f32 %s4908, 0.00074404763
          %s4911 = smul.f32 %s4909, %s4909
          %s4912 = ssub.f32 %s4910, %s4911
          %v4913 = vstv %s4909
          %v4914 = vsub.f32 %v4680, %v4913
          %v4915 = vsub.f32 %v4681, %v4913
          %s4916 = sadd.f32 %s4912, 1e-05
          %v4917 = vstv %s4916
          %v4918 = vrsqrt.pop %v4917
          %s4919 = vtos %v4918
          %v4920 = vstv %s4919
          %v4921 = vmul.f32 %v4914, %v4920
          %v4922 = vmul.f32 %v4915, %v4920
          %v4923 = vstv %s4883
          %v4924 = vmul.f32 %v4921, %v4923
          %v4925 = vmul.f32 %v4922, %v4923
          %v4926 = vstv %s4884
          %v4927 = vadd.f32 %v4924, %v4926
          %v4928 = vadd.f32 %v4925, %v4926
          %v4929 = vmax.f32 %v4927, 0.0
          %v4930 = vmax.f32 %v4928, 0.0
          %4933 = vrot.lane.b32.xlu0 %v4929, 64
          %v4934 = vpop.permute.xlu0 %4933
          %4935 = vrot.lane.b32.xlu0 %v4930, 64
          %v4936 = vpop.permute.xlu0 %4935
          %vm4937 = vcmask 523264
          %v4938 = vsel %vm4937, %v4934, %v4936
          %vm4941 = vcmask 1041920
          %4942 = vst.msk [vmem:[#allocation4 + $0x50] sm:$0x3] %vm4941, %v4934
          %vm4943 = vcmask 844800
          %4944 = vst.msk [vmem:[#allocation4 + $0x58] sm:$0x3] %vm4943, %v4938
          %v4945 = vrot.slane %v4929, 2
          %v4946 = vrot.slane %v4930, 2
          %4947 = vrot.lane.b32.xlu0 %v4945, 104
          %v4948 = vpop.permute.xlu0 %4947
          %4949 = vrot.lane.b32.xlu0 %v4946, 104
          %v4950 = vpop.permute.xlu0 %4949
          %vm4951 = vcmask 850944
          %v4952 = vsel %vm4951, %v4948, %v4950
          %vm4956 = vcmask 1042240
          %4957 = vst.msk [vmem:[#allocation4 + $0x58] sm:$0x3] %vm4956, %v4948
          %4958 = vst [vmem:[#allocation4 + $0x60] sm:$0x3] %v4952
          %vm4959 = vcmask 123904
          %4960 = vst.msk [vmem:[#allocation4 + $0x68] sm:$0x3] %vm4959, %v4950
          %v4961 = vrot.slane %v4929, 4
          %v4962 = vrot.slane %v4930, 4
          %4963 = vrot.lane.b32.xlu0 %v4961, 16
          %v4964 = vpop.permute.xlu0 %4963
          %4965 = vrot.lane.b32.xlu0 %v4962, 16
          %v4966 = vpop.permute.xlu0 %4965
          %vm4967 = vcmask 130048
          %v4968 = vsel %vm4967, %v4964, %v4966
          %vm4971 = vcmask 1041536
          %4972 = vst.msk [vmem:[#allocation4 + $0x68] sm:$0x3] %vm4971, %v4964
          %vm4973 = vcmask 451584
          %4974 = vst.msk [vmem:[#allocation4 + $0x70] sm:$0x3] %vm4973, %v4968
          %v4975 = vrot.slane %v4929, 6
          %v4976 = vrot.slane %v4930, 6
          %4977 = vrot.lane.b32.xlu0 %v4975, 56
          %v4978 = vpop.permute.xlu0 %4977
          %4979 = vrot.lane.b32.xlu0 %v4976, 56
          %v4980 = vpop.permute.xlu0 %4979
          %vm4981 = vcmask 457728
          %v4982 = vsel %vm4981, %v4978, %v4980
          %vm4985 = vcmask 1041856
          %4986 = vst.msk [vmem:[#allocation4 + $0x70] sm:$0x3] %vm4985, %v4978
          %vm4987 = vcmask 779264
          %4988 = vst.msk [vmem:[#allocation4 + $0x78] sm:$0x3] %vm4987, %v4982
        $region104: #{stacked2d_linear_forward.1} parent=63 // pred_fallthru
          _
        %v4989 = vld [vmem:[#allocation4] sm:$0xff]
        %v4990 = vld [vmem:[#allocation4 + $0x8] sm:$0xff]
        %v4991 = vld [vmem:[#allocation4 + $0x10] sm:$0xff]
        %v4992 = vld [vmem:[#allocation4 + $0x18] sm:$0xff]
        %v4993 = vld [vmem:[#allocation4 + $0x20] sm:$0xff]
        %v4994 = vld [vmem:[#allocation4 + $0x28] sm:$0xff]
        %v4995 = vld [vmem:[#allocation4 + $0x30] sm:$0xff]
        %v4996 = vld [vmem:[#allocation4 + $0x38] sm:$0xff]
        %v4997 = vld [vmem:[#allocation4 + $0x40] sm:$0xff]
        %v4998 = vld [vmem:[#allocation4 + $0x48] sm:$0xff]
        %v4999 = vld [vmem:[#allocation4 + $0x50] sm:$0xff]
        %v5000 = vld [vmem:[#allocation4 + $0x58] sm:$0xff]
        %v5001 = vld [vmem:[#allocation4 + $0x60] sm:$0xff]
        %v5002 = vld [vmem:[#allocation4 + $0x68] sm:$0xff]
        %v5003 = vld [vmem:[#allocation4 + $0x70] sm:$0xff]
        %v5004 = vld [vmem:[#allocation4 + $0x78] sm:$0xff]
        %v5005 = vpack.c.bf16 %v4989, %v4989
        %v5006 = vpack.c.bf16 %v4990, %v4990
        %v5007 = vpack.c.bf16 %v4991, %v4991
        %v5008 = vpack.c.bf16 %v4992, %v4992
        %v5009 = vpack.c.bf16 %v4993, %v4993
        %v5010 = vpack.c.bf16 %v4994, %v4994
        %v5011 = vpack.c.bf16 %v4995, %v4995
        %v5012 = vpack.c.bf16 %v4996, %v4996
        %v5013 = vpack.c.bf16 %v4997, %v4997
        %v5014 = vpack.c.bf16 %v4998, %v4998
        %v5015 = vpack.c.bf16 %v4999, %v4999
        %v5016 = vpack.c.bf16 %v5000, %v5000
        %v5017 = vpack.c.bf16 %v5001, %v5001
        %v5018 = vpack.c.bf16 %v5002, %v5002
        %v5019 = vpack.c.bf16 %v5003, %v5003
        %v5020 = vpack.c.bf16 %v5004, %v5004
        %v5021 = vld [vmem:[%s468] sm:$0xff]
        %v5022 = vld [vmem:[%s468 + $0x8] sm:$0xff]
        %v5023 = vld [vmem:[%s468 + $0x10] sm:$0xff]
        %v5024 = vld [vmem:[%s468 + $0x18] sm:$0xff]
        %v5025 = vld [vmem:[%s468 + $0x20] sm:$0xff]
        %v5026 = vld [vmem:[%s468 + $0x28] sm:$0xff]
        %v5027 = vld [vmem:[%s468 + $0x30] sm:$0xff]
        %v5028 = vld [vmem:[%s468 + $0x38] sm:$0xff]
        %v5029 = vld [vmem:[%s468 + $0x40] sm:$0xff]
        %v5030 = vld [vmem:[%s468 + $0x48] sm:$0xff]
        %v5031 = vld [vmem:[%s468 + $0x50] sm:$0xff]
        %v5032 = vld [vmem:[%s468 + $0x58] sm:$0xff]
        %v5033 = vld [vmem:[%s468 + $0x60] sm:$0xff]
        %v5034 = vld [vmem:[%s468 + $0x68] sm:$0xff]
        %v5035 = vld [vmem:[%s468 + $0x70] sm:$0xff]
        %v5036 = vld [vmem:[%s468 + $0x78] sm:$0xff]
        %v5037 = vld [vmem:[%s468 + $0x80] sm:$0xff]
        %v5038 = vld [vmem:[%s468 + $0x88] sm:$0xff]
        %v5039 = vld [vmem:[%s468 + $0x90] sm:$0xff]
        %v5040 = vld [vmem:[%s468 + $0x98] sm:$0xff]
        %v5041 = vld [vmem:[%s468 + $0xa0] sm:$0xff]
        %v5042 = vld [vmem:[%s468 + $0xa8] sm:$0xff]
        %v5043 = vld [vmem:[%s468 + $0xb0] sm:$0xff]
        %v5044 = vld [vmem:[%s468 + $0xb8] sm:$0xff]
        %v5045 = vld [vmem:[%s468 + $0xc0] sm:$0xff]
        %v5046 = vld [vmem:[%s468 + $0xc8] sm:$0xff]
        %v5047 = vld [vmem:[%s468 + $0xd0] sm:$0xff]
        %v5048 = vld [vmem:[%s468 + $0xd8] sm:$0xff]
        %v5049 = vld [vmem:[%s468 + $0xe0] sm:$0xff]
        %v5050 = vld [vmem:[%s468 + $0xe8] sm:$0xff]
        %v5051 = vld [vmem:[%s468 + $0xf0] sm:$0xff]
        %v5052 = vld [vmem:[%s468 + $0xf8] sm:$0xff]
        %v5053 = vld [vmem:[%s468 + $0x100] sm:$0xff]
        %v5054 = vld [vmem:[%s468 + $0x108] sm:$0xff]
        %v5055 = vld [vmem:[%s468 + $0x110] sm:$0xff]
        %v5056 = vld [vmem:[%s468 + $0x118] sm:$0xff]
        %v5057 = vld [vmem:[%s468 + $0x120] sm:$0xff]
        %v5058 = vld [vmem:[%s468 + $0x128] sm:$0xff]
        %v5059 = vld [vmem:[%s468 + $0x130] sm:$0xff]
        %v5060 = vld [vmem:[%s468 + $0x138] sm:$0xff]
        %v5061 = vld [vmem:[%s468 + $0x140] sm:$0xff]
        %v5062 = vld [vmem:[%s468 + $0x148] sm:$0xff]
        %v5063 = vld [vmem:[%s468 + $0x150] sm:$0xff]
        %v5064 = vld [vmem:[%s468 + $0x158] sm:$0xff]
        %v5065 = vld [vmem:[%s468 + $0x160] sm:$0xff]
        %v5066 = vld [vmem:[%s468 + $0x168] sm:$0xff]
        %v5067 = vld [vmem:[%s468 + $0x170] sm:$0xff]
        %v5068 = vld [vmem:[%s468 + $0x178] sm:$0xff]
        %v5069 = vld [vmem:[%s468 + $0x180] sm:$0xff]
        %v5070 = vld [vmem:[%s468 + $0x188] sm:$0xff]
        %v5071 = vld [vmem:[%s468 + $0x190] sm:$0xff]
        %v5072 = vld [vmem:[%s468 + $0x198] sm:$0xff]
        %v5073 = vld [vmem:[%s468 + $0x1a0] sm:$0xff]
        %v5074 = vld [vmem:[%s468 + $0x1a8] sm:$0xff]
        %v5075 = vld [vmem:[%s468 + $0x1b0] sm:$0xff]
        %v5076 = vld [vmem:[%s468 + $0x1b8] sm:$0xff]
        %v5077 = vld [vmem:[%s468 + $0x1c0] sm:$0xff]
        %v5078 = vld [vmem:[%s468 + $0x1c8] sm:$0xff]
        %v5079 = vld [vmem:[%s468 + $0x1d0] sm:$0xff]
        %v5080 = vld [vmem:[%s468 + $0x1d8] sm:$0xff]
        %v5081 = vld [vmem:[%s468 + $0x1e0] sm:$0xff]
        %v5082 = vld [vmem:[%s468 + $0x1e8] sm:$0xff]
        %v5083 = vld [vmem:[%s468 + $0x1f0] sm:$0xff]
        %v5084 = vld [vmem:[%s468 + $0x1f8] sm:$0xff]
        %v5085 = vld [vmem:[%s468 + $0x200] sm:$0xff]
        %v5086 = vld [vmem:[%s468 + $0x208] sm:$0xff]
        %v5087 = vld [vmem:[%s468 + $0x210] sm:$0xff]
        %v5088 = vld [vmem:[%s468 + $0x218] sm:$0xff]
        %v5089 = vld [vmem:[%s468 + $0x220] sm:$0xff]
        %v5090 = vld [vmem:[%s468 + $0x228] sm:$0xff]
        %v5091 = vld [vmem:[%s468 + $0x230] sm:$0xff]
        %v5092 = vld [vmem:[%s468 + $0x238] sm:$0xff]
        %v5093 = vld [vmem:[%s468 + $0x240] sm:$0xff]
        %v5094 = vld [vmem:[%s468 + $0x248] sm:$0xff]
        %v5095 = vld [vmem:[%s468 + $0x250] sm:$0xff]
        %v5096 = vld [vmem:[%s468 + $0x258] sm:$0xff]
        %v5097 = vld [vmem:[%s468 + $0x260] sm:$0xff]
        %v5098 = vld [vmem:[%s468 + $0x268] sm:$0xff]
        %v5099 = vld [vmem:[%s468 + $0x270] sm:$0xff]
        %v5100 = vld [vmem:[%s468 + $0x278] sm:$0xff]
        %v5101 = vld [vmem:[%s468 + $0x280] sm:$0xff]
        %v5102 = vld [vmem:[%s468 + $0x288] sm:$0xff]
        %v5103 = vld [vmem:[%s468 + $0x290] sm:$0xff]
        %v5104 = vld [vmem:[%s468 + $0x298] sm:$0xff]
        %v5105 = vld [vmem:[%s468 + $0x2a0] sm:$0xff]
        %v5106 = vld [vmem:[%s468 + $0x2a8] sm:$0xff]
        %v5107 = vld [vmem:[%s468 + $0x2b0] sm:$0xff]
        %v5108 = vld [vmem:[%s468 + $0x2b8] sm:$0xff]
        %v5109 = vld [vmem:[%s468 + $0x2c0] sm:$0xff]
        %v5110 = vld [vmem:[%s468 + $0x2c8] sm:$0xff]
        %v5111 = vld [vmem:[%s468 + $0x2d0] sm:$0xff]
        %v5112 = vld [vmem:[%s468 + $0x2d8] sm:$0xff]
        %v5113 = vld [vmem:[%s468 + $0x2e0] sm:$0xff]
        %v5114 = vld [vmem:[%s468 + $0x2e8] sm:$0xff]
        %v5115 = vld [vmem:[%s468 + $0x2f0] sm:$0xff]
        %v5116 = vld [vmem:[%s468 + $0x2f8] sm:$0xff]
        %v5117 = vld [vmem:[%s468 + $0x300] sm:$0xff]
        %v5118 = vld [vmem:[%s468 + $0x308] sm:$0xff]
        %v5119 = vld [vmem:[%s468 + $0x310] sm:$0xff]
        %v5120 = vld [vmem:[%s468 + $0x318] sm:$0xff]
        %v5121 = vld [vmem:[%s468 + $0x320] sm:$0xff]
        %v5122 = vld [vmem:[%s468 + $0x328] sm:$0xff]
        %v5123 = vld [vmem:[%s468 + $0x330] sm:$0xff]
        %v5124 = vld [vmem:[%s468 + $0x338] sm:$0xff]
        %v5125 = vld [vmem:[%s468 + $0x340] sm:$0xff]
        %v5126 = vld [vmem:[%s468 + $0x348] sm:$0xff]
        %v5127 = vld [vmem:[%s468 + $0x350] sm:$0xff]
        %v5128 = vld [vmem:[%s468 + $0x358] sm:$0xff]
        %v5129 = vld [vmem:[%s468 + $0x360] sm:$0xff]
        %v5130 = vld [vmem:[%s468 + $0x368] sm:$0xff]
        %v5131 = vld [vmem:[%s468 + $0x370] sm:$0xff]
        %v5132 = vld [vmem:[%s468 + $0x378] sm:$0xff]
        %v5133 = vld [vmem:[%s468 + $0x380] sm:$0xff]
        %v5134 = vld [vmem:[%s468 + $0x388] sm:$0xff]
        %v5135 = vld [vmem:[%s468 + $0x390] sm:$0xff]
        %v5136 = vld [vmem:[%s468 + $0x398] sm:$0xff]
        %v5137 = vld [vmem:[%s468 + $0x3a0] sm:$0xff]
        %v5138 = vld [vmem:[%s468 + $0x3a8] sm:$0xff]
        %v5139 = vld [vmem:[%s468 + $0x3b0] sm:$0xff]
        %v5140 = vld [vmem:[%s468 + $0x3b8] sm:$0xff]
        %v5141 = vld [vmem:[%s468 + $0x3c0] sm:$0xff]
        %v5142 = vld [vmem:[%s468 + $0x3c8] sm:$0xff]
        %v5143 = vld [vmem:[%s468 + $0x3d0] sm:$0xff]
        %v5144 = vld [vmem:[%s468 + $0x3d8] sm:$0xff]
        %v5145 = vld [vmem:[%s468 + $0x3e0] sm:$0xff]
        %v5146 = vld [vmem:[%s468 + $0x3e8] sm:$0xff]
        %v5147 = vld [vmem:[%s468 + $0x3f0] sm:$0xff]
        %v5148 = vld [vmem:[%s468 + $0x3f8] sm:$0xff]
        %v5149 = vld [vmem:[%s468 + $0x400] sm:$0xff]
        %v5150 = vld [vmem:[%s468 + $0x408] sm:$0xff]
        %v5151 = vld [vmem:[%s468 + $0x410] sm:$0xff]
        %v5152 = vld [vmem:[%s468 + $0x418] sm:$0xff]
        %v5153 = vld [vmem:[%s468 + $0x420] sm:$0xff]
        %v5154 = vld [vmem:[%s468 + $0x428] sm:$0xff]
        %v5155 = vld [vmem:[%s468 + $0x430] sm:$0xff]
        %v5156 = vld [vmem:[%s468 + $0x438] sm:$0xff]
        %v5157 = vld [vmem:[%s468 + $0x440] sm:$0xff]
        %v5158 = vld [vmem:[%s468 + $0x448] sm:$0xff]
        %v5159 = vld [vmem:[%s468 + $0x450] sm:$0xff]
        %v5160 = vld [vmem:[%s468 + $0x458] sm:$0xff]
        %v5161 = vld [vmem:[%s468 + $0x460] sm:$0xff]
        %v5162 = vld [vmem:[%s468 + $0x468] sm:$0xff]
        %v5163 = vld [vmem:[%s468 + $0x470] sm:$0xff]
        %v5164 = vld [vmem:[%s468 + $0x478] sm:$0xff]
        %v5165 = vld [vmem:[%s468 + $0x480] sm:$0xff]
        %v5166 = vld [vmem:[%s468 + $0x488] sm:$0xff]
        %v5167 = vld [vmem:[%s468 + $0x490] sm:$0xff]
        %v5168 = vld [vmem:[%s468 + $0x498] sm:$0xff]
        %v5169 = vld [vmem:[%s468 + $0x4a0] sm:$0xff]
        %v5170 = vld [vmem:[%s468 + $0x4a8] sm:$0xff]
        %v5171 = vld [vmem:[%s468 + $0x4b0] sm:$0xff]
        %v5172 = vld [vmem:[%s468 + $0x4b8] sm:$0xff]
        %v5173 = vld [vmem:[%s468 + $0x4c0] sm:$0xff]
        %v5174 = vld [vmem:[%s468 + $0x4c8] sm:$0xff]
        %v5175 = vld [vmem:[%s468 + $0x4d0] sm:$0xff]
        %v5176 = vld [vmem:[%s468 + $0x4d8] sm:$0xff]
        %v5177 = vld [vmem:[%s468 + $0x4e0] sm:$0xff]
        %v5178 = vld [vmem:[%s468 + $0x4e8] sm:$0xff]
        %v5179 = vld [vmem:[%s468 + $0x4f0] sm:$0xff]
        %v5180 = vld [vmem:[%s468 + $0x4f8] sm:$0xff]
        %v5181 = vld [vmem:[%s468 + $0x500] sm:$0xff]
        %v5182 = vld [vmem:[%s468 + $0x508] sm:$0xff]
        %v5183 = vld [vmem:[%s468 + $0x510] sm:$0xff]
        %v5184 = vld [vmem:[%s468 + $0x518] sm:$0xff]
        %v5185 = vld [vmem:[%s468 + $0x520] sm:$0xff]
        %v5186 = vld [vmem:[%s468 + $0x528] sm:$0xff]
        %v5187 = vld [vmem:[%s468 + $0x530] sm:$0xff]
        %v5188 = vld [vmem:[%s468 + $0x538] sm:$0xff]
        %v5189 = vld [vmem:[%s468 + $0x540] sm:$0xff]
        %v5190 = vld [vmem:[%s468 + $0x548] sm:$0xff]
        %v5191 = vld [vmem:[%s468 + $0x550] sm:$0xff]
        %v5192 = vld [vmem:[%s468 + $0x558] sm:$0xff]
        %v5193 = vld [vmem:[%s468 + $0x560] sm:$0xff]
        %v5194 = vld [vmem:[%s468 + $0x568] sm:$0xff]
        %v5195 = vld [vmem:[%s468 + $0x570] sm:$0xff]
        %v5196 = vld [vmem:[%s468 + $0x578] sm:$0xff]
        %v5197 = vld [vmem:[%s468 + $0x580] sm:$0xff]
        %v5198 = vld [vmem:[%s468 + $0x588] sm:$0xff]
        %v5199 = vld [vmem:[%s468 + $0x590] sm:$0xff]
        %v5200 = vld [vmem:[%s468 + $0x598] sm:$0xff]
        %v5201 = vld [vmem:[%s468 + $0x5a0] sm:$0xff]
        %v5202 = vld [vmem:[%s468 + $0x5a8] sm:$0xff]
        %v5203 = vld [vmem:[%s468 + $0x5b0] sm:$0xff]
        %v5204 = vld [vmem:[%s468 + $0x5b8] sm:$0xff]
        %v5205 = vld [vmem:[%s468 + $0x5c0] sm:$0xff]
        %v5206 = vld [vmem:[%s468 + $0x5c8] sm:$0xff]
        %v5207 = vld [vmem:[%s468 + $0x5d0] sm:$0xff]
        %v5208 = vld [vmem:[%s468 + $0x5d8] sm:$0xff]
        %v5209 = vld [vmem:[%s468 + $0x5e0] sm:$0xff]
        %v5210 = vld [vmem:[%s468 + $0x5e8] sm:$0xff]
        %v5211 = vld [vmem:[%s468 + $0x5f0] sm:$0xff]
        %v5212 = vld [vmem:[%s468 + $0x5f8] sm:$0xff]
        %v5213 = vld [vmem:[%s468 + $0x600] sm:$0xff]
        %v5214 = vld [vmem:[%s468 + $0x608] sm:$0xff]
        %v5215 = vld [vmem:[%s468 + $0x610] sm:$0xff]
        %v5216 = vld [vmem:[%s468 + $0x618] sm:$0xff]
        %v5217 = vld [vmem:[%s468 + $0x620] sm:$0xff]
        %v5218 = vld [vmem:[%s468 + $0x628] sm:$0xff]
        %v5219 = vld [vmem:[%s468 + $0x630] sm:$0xff]
        %v5220 = vld [vmem:[%s468 + $0x638] sm:$0xff]
        %v5221 = vld [vmem:[%s468 + $0x640] sm:$0xff]
        %v5222 = vld [vmem:[%s468 + $0x648] sm:$0xff]
        %v5223 = vld [vmem:[%s468 + $0x650] sm:$0xff]
        %v5224 = vld [vmem:[%s468 + $0x658] sm:$0xff]
        %v5225 = vld [vmem:[%s468 + $0x660] sm:$0xff]
        %v5226 = vld [vmem:[%s468 + $0x668] sm:$0xff]
        %v5227 = vld [vmem:[%s468 + $0x670] sm:$0xff]
        %v5228 = vld [vmem:[%s468 + $0x678] sm:$0xff]
        %v5229 = vld [vmem:[%s468 + $0x680] sm:$0xff]
        %v5230 = vld [vmem:[%s468 + $0x688] sm:$0xff]
        %v5231 = vld [vmem:[%s468 + $0x690] sm:$0xff]
        %v5232 = vld [vmem:[%s468 + $0x698] sm:$0xff]
        %v5233 = vld [vmem:[%s468 + $0x6a0] sm:$0xff]
        %v5234 = vld [vmem:[%s468 + $0x6a8] sm:$0xff]
        %v5235 = vld [vmem:[%s468 + $0x6b0] sm:$0xff]
        %v5236 = vld [vmem:[%s468 + $0x6b8] sm:$0xff]
        %v5237 = vld [vmem:[%s468 + $0x6c0] sm:$0xff]
        %v5238 = vld [vmem:[%s468 + $0x6c8] sm:$0xff]
        %v5239 = vld [vmem:[%s468 + $0x6d0] sm:$0xff]
        %v5240 = vld [vmem:[%s468 + $0x6d8] sm:$0xff]
        %v5241 = vld [vmem:[%s468 + $0x6e0] sm:$0xff]
        %v5242 = vld [vmem:[%s468 + $0x6e8] sm:$0xff]
        %v5243 = vld [vmem:[%s468 + $0x6f0] sm:$0xff]
        %v5244 = vld [vmem:[%s468 + $0x6f8] sm:$0xff]
        %v5245 = vld [vmem:[%s468 + $0x700] sm:$0xff]
        %v5246 = vld [vmem:[%s468 + $0x708] sm:$0xff]
        %v5247 = vld [vmem:[%s468 + $0x710] sm:$0xff]
        %v5248 = vld [vmem:[%s468 + $0x718] sm:$0xff]
        %v5249 = vld [vmem:[%s468 + $0x720] sm:$0xff]
        %v5250 = vld [vmem:[%s468 + $0x728] sm:$0xff]
        %v5251 = vld [vmem:[%s468 + $0x730] sm:$0xff]
        %v5252 = vld [vmem:[%s468 + $0x738] sm:$0xff]
        %v5253 = vld [vmem:[%s468 + $0x740] sm:$0xff]
        %v5254 = vld [vmem:[%s468 + $0x748] sm:$0xff]
        %v5255 = vld [vmem:[%s468 + $0x750] sm:$0xff]
        %v5256 = vld [vmem:[%s468 + $0x758] sm:$0xff]
        %v5257 = vld [vmem:[%s468 + $0x760] sm:$0xff]
        %v5258 = vld [vmem:[%s468 + $0x768] sm:$0xff]
        %v5259 = vld [vmem:[%s468 + $0x770] sm:$0xff]
        %v5260 = vld [vmem:[%s468 + $0x778] sm:$0xff]
        %v5261 = vld [vmem:[%s468 + $0x780] sm:$0xff]
        %v5262 = vld [vmem:[%s468 + $0x788] sm:$0xff]
        %v5263 = vld [vmem:[%s468 + $0x790] sm:$0xff]
        %v5264 = vld [vmem:[%s468 + $0x798] sm:$0xff]
        %v5265 = vld [vmem:[%s468 + $0x7a0] sm:$0xff]
        %v5266 = vld [vmem:[%s468 + $0x7a8] sm:$0xff]
        %v5267 = vld [vmem:[%s468 + $0x7b0] sm:$0xff]
        %v5268 = vld [vmem:[%s468 + $0x7b8] sm:$0xff]
        %v5269 = vld [vmem:[%s468 + $0x7c0] sm:$0xff]
        %v5270 = vld [vmem:[%s468 + $0x7c8] sm:$0xff]
        %v5271 = vld [vmem:[%s468 + $0x7d0] sm:$0xff]
        %v5272 = vld [vmem:[%s468 + $0x7d8] sm:$0xff]
        %v5273 = vld [vmem:[%s468 + $0x7e0] sm:$0xff]
        %v5274 = vld [vmem:[%s468 + $0x7e8] sm:$0xff]
        %v5275 = vld [vmem:[%s468 + $0x7f0] sm:$0xff]
        %v5276 = vld [vmem:[%s468 + $0x7f8] sm:$0xff]
        %v5277 = vld [vmem:[%s468 + $0x800] sm:$0xff]
        %v5278 = vld [vmem:[%s468 + $0x808] sm:$0xff]
        %v5279 = vld [vmem:[%s468 + $0x810] sm:$0xff]
        %v5280 = vld [vmem:[%s468 + $0x818] sm:$0xff]
        %v5281 = vld [vmem:[%s468 + $0x820] sm:$0xff]
        %v5282 = vld [vmem:[%s468 + $0x828] sm:$0xff]
        %v5283 = vld [vmem:[%s468 + $0x830] sm:$0xff]
        %v5284 = vld [vmem:[%s468 + $0x838] sm:$0xff]
        %v5285 = vld [vmem:[%s468 + $0x840] sm:$0xff]
        %v5286 = vld [vmem:[%s468 + $0x848] sm:$0xff]
        %v5287 = vld [vmem:[%s468 + $0x850] sm:$0xff]
        %v5288 = vld [vmem:[%s468 + $0x858] sm:$0xff]
        %v5289 = vld [vmem:[%s468 + $0x860] sm:$0xff]
        %v5290 = vld [vmem:[%s468 + $0x868] sm:$0xff]
        %v5291 = vld [vmem:[%s468 + $0x870] sm:$0xff]
        %v5292 = vld [vmem:[%s468 + $0x878] sm:$0xff]
        %v5293 = vld [vmem:[%s468 + $0x880] sm:$0xff]
        %v5294 = vld [vmem:[%s468 + $0x888] sm:$0xff]
        %v5295 = vld [vmem:[%s468 + $0x890] sm:$0xff]
        %v5296 = vld [vmem:[%s468 + $0x898] sm:$0xff]
        %v5297 = vld [vmem:[%s468 + $0x8a0] sm:$0xff]
        %v5298 = vld [vmem:[%s468 + $0x8a8] sm:$0xff]
        %v5299 = vld [vmem:[%s468 + $0x8b0] sm:$0xff]
        %v5300 = vld [vmem:[%s468 + $0x8b8] sm:$0xff]
        %v5301 = vld [vmem:[%s468 + $0x8c0] sm:$0xff]
        %v5302 = vld [vmem:[%s468 + $0x8c8] sm:$0xff]
        %v5303 = vld [vmem:[%s468 + $0x8d0] sm:$0xff]
        %v5304 = vld [vmem:[%s468 + $0x8d8] sm:$0xff]
        %v5305 = vld [vmem:[%s468 + $0x8e0] sm:$0xff]
        %v5306 = vld [vmem:[%s468 + $0x8e8] sm:$0xff]
        %v5307 = vld [vmem:[%s468 + $0x8f0] sm:$0xff]
        %v5308 = vld [vmem:[%s468 + $0x8f8] sm:$0xff]
        %v5309 = vld [vmem:[%s468 + $0x900] sm:$0xff]
        %v5310 = vld [vmem:[%s468 + $0x908] sm:$0xff]
        %v5311 = vld [vmem:[%s468 + $0x910] sm:$0xff]
        %v5312 = vld [vmem:[%s468 + $0x918] sm:$0xff]
        %v5313 = vld [vmem:[%s468 + $0x920] sm:$0xff]
        %v5314 = vld [vmem:[%s468 + $0x928] sm:$0xff]
        %v5315 = vld [vmem:[%s468 + $0x930] sm:$0xff]
        %v5316 = vld [vmem:[%s468 + $0x938] sm:$0xff]
        %v5317 = vld [vmem:[%s468 + $0x940] sm:$0xff]
        %v5318 = vld [vmem:[%s468 + $0x948] sm:$0xff]
        %v5319 = vld [vmem:[%s468 + $0x950] sm:$0xff]
        %v5320 = vld [vmem:[%s468 + $0x958] sm:$0xff]
        %v5321 = vld [vmem:[%s468 + $0x960] sm:$0xff]
        %v5322 = vld [vmem:[%s468 + $0x968] sm:$0xff]
        %v5323 = vld [vmem:[%s468 + $0x970] sm:$0xff]
        %v5324 = vld [vmem:[%s468 + $0x978] sm:$0xff]
        %v5325 = vld [vmem:[%s468 + $0x980] sm:$0xff]
        %v5326 = vld [vmem:[%s468 + $0x988] sm:$0xff]
        %v5327 = vld [vmem:[%s468 + $0x990] sm:$0xff]
        %v5328 = vld [vmem:[%s468 + $0x998] sm:$0xff]
        %v5329 = vld [vmem:[%s468 + $0x9a0] sm:$0xff]
        %v5330 = vld [vmem:[%s468 + $0x9a8] sm:$0xff]
        %v5331 = vld [vmem:[%s468 + $0x9b0] sm:$0xff]
        %v5332 = vld [vmem:[%s468 + $0x9b8] sm:$0xff]
        %v5333 = vld [vmem:[%s468 + $0x9c0] sm:$0xff]
        %v5334 = vld [vmem:[%s468 + $0x9c8] sm:$0xff]
        %v5335 = vld [vmem:[%s468 + $0x9d0] sm:$0xff]
        %v5336 = vld [vmem:[%s468 + $0x9d8] sm:$0xff]
        %v5337 = vld [vmem:[%s468 + $0x9e0] sm:$0xff]
        %v5338 = vld [vmem:[%s468 + $0x9e8] sm:$0xff]
        %v5339 = vld [vmem:[%s468 + $0x9f0] sm:$0xff]
        %v5340 = vld [vmem:[%s468 + $0x9f8] sm:$0xff]
        %v5341 = vld [vmem:[%s468 + $0xa00] sm:$0xff]
        %v5342 = vld [vmem:[%s468 + $0xa08] sm:$0xff]
        %v5343 = vld [vmem:[%s468 + $0xa10] sm:$0xff]
        %v5344 = vld [vmem:[%s468 + $0xa18] sm:$0xff]
        %v5345 = vld [vmem:[%s468 + $0xa20] sm:$0xff]
        %v5346 = vld [vmem:[%s468 + $0xa28] sm:$0xff]
        %v5347 = vld [vmem:[%s468 + $0xa30] sm:$0xff]
        %v5348 = vld [vmem:[%s468 + $0xa38] sm:$0xff]
        %v5349 = vld [vmem:[%s468 + $0xa40] sm:$0xff]
        %v5350 = vld [vmem:[%s468 + $0xa48] sm:$0xff]
        %v5351 = vld [vmem:[%s468 + $0xa50] sm:$0xff]
        %v5352 = vld [vmem:[%s468 + $0xa58] sm:$0xff]
        %v5353 = vld [vmem:[%s468 + $0xa60] sm:$0xff]
        %v5354 = vld [vmem:[%s468 + $0xa68] sm:$0xff]
        %v5355 = vld [vmem:[%s468 + $0xa70] sm:$0xff]
        %v5356 = vld [vmem:[%s468 + $0xa78] sm:$0xff]
        %v5357 = vld [vmem:[%s468 + $0xa80] sm:$0xff]
        %v5358 = vld [vmem:[%s468 + $0xa88] sm:$0xff]
        %v5359 = vld [vmem:[%s468 + $0xa90] sm:$0xff]
        %v5360 = vld [vmem:[%s468 + $0xa98] sm:$0xff]
        %v5361 = vld [vmem:[%s468 + $0xaa0] sm:$0xff]
        %v5362 = vld [vmem:[%s468 + $0xaa8] sm:$0xff]
        %v5363 = vld [vmem:[%s468 + $0xab0] sm:$0xff]
        %v5364 = vld [vmem:[%s468 + $0xab8] sm:$0xff]
        %v5365 = vld [vmem:[%s468 + $0xac0] sm:$0xff]
        %v5366 = vld [vmem:[%s468 + $0xac8] sm:$0xff]
        %v5367 = vld [vmem:[%s468 + $0xad0] sm:$0xff]
        %v5368 = vld [vmem:[%s468 + $0xad8] sm:$0xff]
        %v5369 = vld [vmem:[%s468 + $0xae0] sm:$0xff]
        %v5370 = vld [vmem:[%s468 + $0xae8] sm:$0xff]
        %v5371 = vld [vmem:[%s468 + $0xaf0] sm:$0xff]
        %v5372 = vld [vmem:[%s468 + $0xaf8] sm:$0xff]
        %v5373 = vld [vmem:[%s468 + $0xb00] sm:$0xff]
        %v5374 = vld [vmem:[%s468 + $0xb08] sm:$0xff]
        %v5375 = vld [vmem:[%s468 + $0xb10] sm:$0xff]
        %v5376 = vld [vmem:[%s468 + $0xb18] sm:$0xff]
        %v5377 = vld [vmem:[%s468 + $0xb20] sm:$0xff]
        %v5378 = vld [vmem:[%s468 + $0xb28] sm:$0xff]
        %v5379 = vld [vmem:[%s468 + $0xb30] sm:$0xff]
        %v5380 = vld [vmem:[%s468 + $0xb38] sm:$0xff]
        %v5381 = vld [vmem:[%s468 + $0xb40] sm:$0xff]
        %v5382 = vld [vmem:[%s468 + $0xb48] sm:$0xff]
        %v5383 = vld [vmem:[%s468 + $0xb50] sm:$0xff]
        %v5384 = vld [vmem:[%s468 + $0xb58] sm:$0xff]
        %v5385 = vld [vmem:[%s468 + $0xb60] sm:$0xff]
        %v5386 = vld [vmem:[%s468 + $0xb68] sm:$0xff]
        %v5387 = vld [vmem:[%s468 + $0xb70] sm:$0xff]
        %v5388 = vld [vmem:[%s468 + $0xb78] sm:$0xff]
        %v5389 = vld [vmem:[%s468 + $0xb80] sm:$0xff]
        %v5390 = vld [vmem:[%s468 + $0xb88] sm:$0xff]
        %v5391 = vld [vmem:[%s468 + $0xb90] sm:$0xff]
        %v5392 = vld [vmem:[%s468 + $0xb98] sm:$0xff]
        %v5393 = vld [vmem:[%s468 + $0xba0] sm:$0xff]
        %v5394 = vld [vmem:[%s468 + $0xba8] sm:$0xff]
        %v5395 = vld [vmem:[%s468 + $0xbb0] sm:$0xff]
        %v5396 = vld [vmem:[%s468 + $0xbb8] sm:$0xff]
        %v5397 = vld [vmem:[%s468 + $0xbc0] sm:$0xff]
        %v5398 = vld [vmem:[%s468 + $0xbc8] sm:$0xff]
        %v5399 = vld [vmem:[%s468 + $0xbd0] sm:$0xff]
        %v5400 = vld [vmem:[%s468 + $0xbd8] sm:$0xff]
        %v5401 = vld [vmem:[%s468 + $0xbe0] sm:$0xff]
        %v5402 = vld [vmem:[%s468 + $0xbe8] sm:$0xff]
        %v5403 = vld [vmem:[%s468 + $0xbf0] sm:$0xff]
        %v5404 = vld [vmem:[%s468 + $0xbf8] sm:$0xff]
        %v5405 = vld [vmem:[%s468 + $0xc00] sm:$0xff]
        %v5406 = vld [vmem:[%s468 + $0xc08] sm:$0xff]
        %v5407 = vld [vmem:[%s468 + $0xc10] sm:$0xff]
        %v5408 = vld [vmem:[%s468 + $0xc18] sm:$0xff]
        %v5409 = vld [vmem:[%s468 + $0xc20] sm:$0xff]
        %v5410 = vld [vmem:[%s468 + $0xc28] sm:$0xff]
        %v5411 = vld [vmem:[%s468 + $0xc30] sm:$0xff]
        %v5412 = vld [vmem:[%s468 + $0xc38] sm:$0xff]
        %v5413 = vld [vmem:[%s468 + $0xc40] sm:$0xff]
        %v5414 = vld [vmem:[%s468 + $0xc48] sm:$0xff]
        %v5415 = vld [vmem:[%s468 + $0xc50] sm:$0xff]
        %v5416 = vld [vmem:[%s468 + $0xc58] sm:$0xff]
        %v5417 = vld [vmem:[%s468 + $0xc60] sm:$0xff]
        %v5418 = vld [vmem:[%s468 + $0xc68] sm:$0xff]
        %v5419 = vld [vmem:[%s468 + $0xc70] sm:$0xff]
        %v5420 = vld [vmem:[%s468 + $0xc78] sm:$0xff]
        %v5421 = vld [vmem:[%s468 + $0xc80] sm:$0xff]
        %v5422 = vld [vmem:[%s468 + $0xc88] sm:$0xff]
        %v5423 = vld [vmem:[%s468 + $0xc90] sm:$0xff]
        %v5424 = vld [vmem:[%s468 + $0xc98] sm:$0xff]
        %v5425 = vld [vmem:[%s468 + $0xca0] sm:$0xff]
        %v5426 = vld [vmem:[%s468 + $0xca8] sm:$0xff]
        %v5427 = vld [vmem:[%s468 + $0xcb0] sm:$0xff]
        %v5428 = vld [vmem:[%s468 + $0xcb8] sm:$0xff]
        %v5429 = vld [vmem:[%s468 + $0xcc0] sm:$0xff]
        %v5430 = vld [vmem:[%s468 + $0xcc8] sm:$0xff]
        %v5431 = vld [vmem:[%s468 + $0xcd0] sm:$0xff]
        %v5432 = vld [vmem:[%s468 + $0xcd8] sm:$0xff]
        %v5433 = vld [vmem:[%s468 + $0xce0] sm:$0xff]
        %v5434 = vld [vmem:[%s468 + $0xce8] sm:$0xff]
        %v5435 = vld [vmem:[%s468 + $0xcf0] sm:$0xff]
        %v5436 = vld [vmem:[%s468 + $0xcf8] sm:$0xff]
        %v5437 = vld [vmem:[%s468 + $0xd00] sm:$0xff]
        %v5438 = vld [vmem:[%s468 + $0xd08] sm:$0xff]
        %v5439 = vld [vmem:[%s468 + $0xd10] sm:$0xff]
        %v5440 = vld [vmem:[%s468 + $0xd18] sm:$0xff]
        %v5441 = vld [vmem:[%s468 + $0xd20] sm:$0xff]
        %v5442 = vld [vmem:[%s468 + $0xd28] sm:$0xff]
        %v5443 = vld [vmem:[%s468 + $0xd30] sm:$0xff]
        %v5444 = vld [vmem:[%s468 + $0xd38] sm:$0xff]
        %v5445 = vld [vmem:[%s468 + $0xd40] sm:$0xff]
        %v5446 = vld [vmem:[%s468 + $0xd48] sm:$0xff]
        %v5447 = vld [vmem:[%s468 + $0xd50] sm:$0xff]
        %v5448 = vld [vmem:[%s468 + $0xd58] sm:$0xff]
        %v5449 = vld [vmem:[%s468 + $0xd60] sm:$0xff]
        %v5450 = vld [vmem:[%s468 + $0xd68] sm:$0xff]
        %v5451 = vld [vmem:[%s468 + $0xd70] sm:$0xff]
        %v5452 = vld [vmem:[%s468 + $0xd78] sm:$0xff]
        %v5453 = vld [vmem:[%s468 + $0xd80] sm:$0xff]
        %v5454 = vld [vmem:[%s468 + $0xd88] sm:$0xff]
        %v5455 = vld [vmem:[%s468 + $0xd90] sm:$0xff]
        %v5456 = vld [vmem:[%s468 + $0xd98] sm:$0xff]
        %v5457 = vld [vmem:[%s468 + $0xda0] sm:$0xff]
        %v5458 = vld [vmem:[%s468 + $0xda8] sm:$0xff]
        %v5459 = vld [vmem:[%s468 + $0xdb0] sm:$0xff]
        %v5460 = vld [vmem:[%s468 + $0xdb8] sm:$0xff]
        %v5461 = vld [vmem:[%s468 + $0xdc0] sm:$0xff]
        %v5462 = vld [vmem:[%s468 + $0xdc8] sm:$0xff]
        %v5463 = vld [vmem:[%s468 + $0xdd0] sm:$0xff]
        %v5464 = vld [vmem:[%s468 + $0xdd8] sm:$0xff]
        %v5465 = vld [vmem:[%s468 + $0xde0] sm:$0xff]
        %v5466 = vld [vmem:[%s468 + $0xde8] sm:$0xff]
        %v5467 = vld [vmem:[%s468 + $0xdf0] sm:$0xff]
        %v5468 = vld [vmem:[%s468 + $0xdf8] sm:$0xff]
        %v5469 = vld [vmem:[%s468 + $0xe00] sm:$0xff]
        %v5470 = vld [vmem:[%s468 + $0xe08] sm:$0xff]
        %v5471 = vld [vmem:[%s468 + $0xe10] sm:$0xff]
        %v5472 = vld [vmem:[%s468 + $0xe18] sm:$0xff]
        %v5473 = vld [vmem:[%s468 + $0xe20] sm:$0xff]
        %v5474 = vld [vmem:[%s468 + $0xe28] sm:$0xff]
        %v5475 = vld [vmem:[%s468 + $0xe30] sm:$0xff]
        %v5476 = vld [vmem:[%s468 + $0xe38] sm:$0xff]
        %v5477 = vld [vmem:[%s468 + $0xe40] sm:$0xff]
        %v5478 = vld [vmem:[%s468 + $0xe48] sm:$0xff]
        %v5479 = vld [vmem:[%s468 + $0xe50] sm:$0xff]
        %v5480 = vld [vmem:[%s468 + $0xe58] sm:$0xff]
        %v5481 = vld [vmem:[%s468 + $0xe60] sm:$0xff]
        %v5482 = vld [vmem:[%s468 + $0xe68] sm:$0xff]
        %v5483 = vld [vmem:[%s468 + $0xe70] sm:$0xff]
        %v5484 = vld [vmem:[%s468 + $0xe78] sm:$0xff]
        %v5485 = vld [vmem:[%s468 + $0xe80] sm:$0xff]
        %v5486 = vld [vmem:[%s468 + $0xe88] sm:$0xff]
        %v5487 = vld [vmem:[%s468 + $0xe90] sm:$0xff]
        %v5488 = vld [vmem:[%s468 + $0xe98] sm:$0xff]
        %v5489 = vld [vmem:[%s468 + $0xea0] sm:$0xff]
        %v5490 = vld [vmem:[%s468 + $0xea8] sm:$0xff]
        %v5491 = vld [vmem:[%s468 + $0xeb0] sm:$0xff]
        %v5492 = vld [vmem:[%s468 + $0xeb8] sm:$0xff]
        %v5493 = vld [vmem:[%s468 + $0xec0] sm:$0xff]
        %v5494 = vld [vmem:[%s468 + $0xec8] sm:$0xff]
        %v5495 = vld [vmem:[%s468 + $0xed0] sm:$0xff]
        %v5496 = vld [vmem:[%s468 + $0xed8] sm:$0xff]
        %v5497 = vld [vmem:[%s468 + $0xee0] sm:$0xff]
        %v5498 = vld [vmem:[%s468 + $0xee8] sm:$0xff]
        %v5499 = vld [vmem:[%s468 + $0xef0] sm:$0xff]
        %v5500 = vld [vmem:[%s468 + $0xef8] sm:$0xff]
        %v5501 = vld [vmem:[%s468 + $0xf00] sm:$0xff]
        %v5502 = vld [vmem:[%s468 + $0xf08] sm:$0xff]
        %v5503 = vld [vmem:[%s468 + $0xf10] sm:$0xff]
        %v5504 = vld [vmem:[%s468 + $0xf18] sm:$0xff]
        %v5505 = vld [vmem:[%s468 + $0xf20] sm:$0xff]
        %v5506 = vld [vmem:[%s468 + $0xf28] sm:$0xff]
        %v5507 = vld [vmem:[%s468 + $0xf30] sm:$0xff]
        %v5508 = vld [vmem:[%s468 + $0xf38] sm:$0xff]
        %v5509 = vld [vmem:[%s468 + $0xf40] sm:$0xff]
        %v5510 = vld [vmem:[%s468 + $0xf48] sm:$0xff]
        %v5511 = vld [vmem:[%s468 + $0xf50] sm:$0xff]
        %v5512 = vld [vmem:[%s468 + $0xf58] sm:$0xff]
        %v5513 = vld [vmem:[%s468 + $0xf60] sm:$0xff]
        %v5514 = vld [vmem:[%s468 + $0xf68] sm:$0xff]
        %v5515 = vld [vmem:[%s468 + $0xf70] sm:$0xff]
        %v5516 = vld [vmem:[%s468 + $0xf78] sm:$0xff]
        %v5517 = vld [vmem:[%s468 + $0xf80] sm:$0xff]
        %v5518 = vld [vmem:[%s468 + $0xf88] sm:$0xff]
        %v5519 = vld [vmem:[%s468 + $0xf90] sm:$0xff]
        %v5520 = vld [vmem:[%s468 + $0xf98] sm:$0xff]
        %v5521 = vld [vmem:[%s468 + $0xfa0] sm:$0xff]
        %v5522 = vld [vmem:[%s468 + $0xfa8] sm:$0xff]
        %v5523 = vld [vmem:[%s468 + $0xfb0] sm:$0xff]
        %v5524 = vld [vmem:[%s468 + $0xfb8] sm:$0xff]
        %v5525 = vld [vmem:[%s468 + $0xfc0] sm:$0xff]
        %v5526 = vld [vmem:[%s468 + $0xfc8] sm:$0xff]
        %v5527 = vld [vmem:[%s468 + $0xfd0] sm:$0xff]
        %v5528 = vld [vmem:[%s468 + $0xfd8] sm:$0xff]
        %v5529 = vld [vmem:[%s468 + $0xfe0] sm:$0xff]
        %v5530 = vld [vmem:[%s468 + $0xfe8] sm:$0xff]
        %v5531 = vld [vmem:[%s468 + $0xff0] sm:$0xff]
        %v5532 = vld [vmem:[%s468 + $0xff8] sm:$0xff]
        %v5533 = vld [vmem:[%s477] sm:$0xf]
        %v5535 = vlaneseq
        %v5536 = vshrl.u32 %v5535, 7
        %v5537 = vsub.s32 0, %v5536
        %v5538 = vrot.slane %v5533, %v5537
        %v5539 = vlaneseq
        %v5540 = vshrl.u32 %v5539, 7
        %v5541 = vsub.s32 1, %v5540
        %v5542 = vrot.slane %v5533, %v5541
        %v5543 = vlaneseq
        %v5544 = vshrl.u32 %v5543, 7
        %v5545 = vsub.s32 2, %v5544
        %v5546 = vrot.slane %v5533, %v5545
        %v5547 = vlaneseq
        %v5548 = vshrl.u32 %v5547, 7
        %v5549 = vsub.s32 3, %v5548
        %v5550 = vrot.slane %v5533, %v5549
        %v6067 = vunpack.c.l.b16 %v5021
        %v6068 = vunpack.c.h.b16 %v5021
        %v6069 = vunpack.c.l.b16 %v5022
        %v6070 = vunpack.c.h.b16 %v5022
        %v6071 = vunpack.c.l.b16 %v5023
        %v6072 = vunpack.c.h.b16 %v5023
        %v6073 = vunpack.c.l.b16 %v5024
        %v6074 = vunpack.c.h.b16 %v5024
        %v6075 = vunpack.c.l.b16 %v5025
        %v6076 = vunpack.c.h.b16 %v5025
        %v6077 = vunpack.c.l.b16 %v5026
        %v6078 = vunpack.c.h.b16 %v5026
        %v6079 = vunpack.c.l.b16 %v5027
        %v6080 = vunpack.c.h.b16 %v5027
        %v6081 = vunpack.c.l.b16 %v5028
        %v6082 = vunpack.c.h.b16 %v5028
        %v6083 = vunpack.c.l.b16 %v5029
        %v6084 = vunpack.c.h.b16 %v5029
        %v6085 = vunpack.c.l.b16 %v5030
        %v6086 = vunpack.c.h.b16 %v5030
        %v6087 = vunpack.c.l.b16 %v5031
        %v6088 = vunpack.c.h.b16 %v5031
        %v6089 = vunpack.c.l.b16 %v5032
        %v6090 = vunpack.c.h.b16 %v5032
        %v6091 = vunpack.c.l.b16 %v5033
        %v6092 = vunpack.c.h.b16 %v5033
        %v6093 = vunpack.c.l.b16 %v5034
        %v6094 = vunpack.c.h.b16 %v5034
        %v6095 = vunpack.c.l.b16 %v5035
        %v6096 = vunpack.c.h.b16 %v5035
        %v6097 = vunpack.c.l.b16 %v5036
        %v6098 = vunpack.c.h.b16 %v5036
        %v6099 = vunpack.c.l.b16 %v5037
        %v6100 = vunpack.c.h.b16 %v5037
        %v6101 = vunpack.c.l.b16 %v5038
        %v6102 = vunpack.c.h.b16 %v5038
        %v6103 = vunpack.c.l.b16 %v5039
        %v6104 = vunpack.c.h.b16 %v5039
        %v6105 = vunpack.c.l.b16 %v5040
        %v6106 = vunpack.c.h.b16 %v5040
        %v6107 = vunpack.c.l.b16 %v5041
        %v6108 = vunpack.c.h.b16 %v5041
        %v6109 = vunpack.c.l.b16 %v5042
        %v6110 = vunpack.c.h.b16 %v5042
        %v6111 = vunpack.c.l.b16 %v5043
        %v6112 = vunpack.c.h.b16 %v5043
        %v6113 = vunpack.c.l.b16 %v5044
        %v6114 = vunpack.c.h.b16 %v5044
        %v6115 = vunpack.c.l.b16 %v5045
        %v6116 = vunpack.c.h.b16 %v5045
        %v6117 = vunpack.c.l.b16 %v5046
        %v6118 = vunpack.c.h.b16 %v5046
        %v6119 = vunpack.c.l.b16 %v5047
        %v6120 = vunpack.c.h.b16 %v5047
        %v6121 = vunpack.c.l.b16 %v5048
        %v6122 = vunpack.c.h.b16 %v5048
        %v6123 = vunpack.c.l.b16 %v5049
        %v6124 = vunpack.c.h.b16 %v5049
        %v6125 = vunpack.c.l.b16 %v5050
        %v6126 = vunpack.c.h.b16 %v5050
        %v6127 = vunpack.c.l.b16 %v5051
        %v6128 = vunpack.c.h.b16 %v5051
        %v6129 = vunpack.c.l.b16 %v5052
        %v6130 = vunpack.c.h.b16 %v5052
        %v6131 = vunpack.c.l.b16 %v5053
        %v6132 = vunpack.c.h.b16 %v5053
        %v6133 = vunpack.c.l.b16 %v5054
        %v6134 = vunpack.c.h.b16 %v5054
        %v6135 = vunpack.c.l.b16 %v5055
        %v6136 = vunpack.c.h.b16 %v5055
        %v6137 = vunpack.c.l.b16 %v5056
        %v6138 = vunpack.c.h.b16 %v5056
        %v6139 = vunpack.c.l.b16 %v5057
        %v6140 = vunpack.c.h.b16 %v5057
        %v6141 = vunpack.c.l.b16 %v5058
        %v6142 = vunpack.c.h.b16 %v5058
        %v6143 = vunpack.c.l.b16 %v5059
        %v6144 = vunpack.c.h.b16 %v5059
        %v6145 = vunpack.c.l.b16 %v5060
        %v6146 = vunpack.c.h.b16 %v5060
        %v6147 = vunpack.c.l.b16 %v5061
        %v6148 = vunpack.c.h.b16 %v5061
        %v6149 = vunpack.c.l.b16 %v5062
        %v6150 = vunpack.c.h.b16 %v5062
        %v6151 = vunpack.c.l.b16 %v5063
        %v6152 = vunpack.c.h.b16 %v5063
        %v6153 = vunpack.c.l.b16 %v5064
        %v6154 = vunpack.c.h.b16 %v5064
        %v6155 = vunpack.c.l.b16 %v5065
        %v6156 = vunpack.c.h.b16 %v5065
        %v6157 = vunpack.c.l.b16 %v5066
        %v6158 = vunpack.c.h.b16 %v5066
        %v6159 = vunpack.c.l.b16 %v5067
        %v6160 = vunpack.c.h.b16 %v5067
        %v6161 = vunpack.c.l.b16 %v5068
        %v6162 = vunpack.c.h.b16 %v5068
        %v6163 = vunpack.c.l.b16 %v5069
        %v6164 = vunpack.c.h.b16 %v5069
        %v6165 = vunpack.c.l.b16 %v5070
        %v6166 = vunpack.c.h.b16 %v5070
        %v6167 = vunpack.c.l.b16 %v5071
        %v6168 = vunpack.c.h.b16 %v5071
        %v6169 = vunpack.c.l.b16 %v5072
        %v6170 = vunpack.c.h.b16 %v5072
        %v6171 = vunpack.c.l.b16 %v5073
        %v6172 = vunpack.c.h.b16 %v5073
        %v6173 = vunpack.c.l.b16 %v5074
        %v6174 = vunpack.c.h.b16 %v5074
        %v6175 = vunpack.c.l.b16 %v5075
        %v6176 = vunpack.c.h.b16 %v5075
        %v6177 = vunpack.c.l.b16 %v5076
        %v6178 = vunpack.c.h.b16 %v5076
        %v6179 = vunpack.c.l.b16 %v5077
        %v6180 = vunpack.c.h.b16 %v5077
        %v6181 = vunpack.c.l.b16 %v5078
        %v6182 = vunpack.c.h.b16 %v5078
        %v6183 = vunpack.c.l.b16 %v5079
        %v6184 = vunpack.c.h.b16 %v5079
        %v6185 = vunpack.c.l.b16 %v5080
        %v6186 = vunpack.c.h.b16 %v5080
        %v6187 = vunpack.c.l.b16 %v5081
        %v6188 = vunpack.c.h.b16 %v5081
        %v6189 = vunpack.c.l.b16 %v5082
        %v6190 = vunpack.c.h.b16 %v5082
        %v6191 = vunpack.c.l.b16 %v5083
        %v6192 = vunpack.c.h.b16 %v5083
        %v6193 = vunpack.c.l.b16 %v5084
        %v6194 = vunpack.c.h.b16 %v5084
        %v6195 = vunpack.c.l.b16 %v5085
        %v6196 = vunpack.c.h.b16 %v5085
        %v6197 = vunpack.c.l.b16 %v5086
        %v6198 = vunpack.c.h.b16 %v5086
        %v6199 = vunpack.c.l.b16 %v5087
        %v6200 = vunpack.c.h.b16 %v5087
        %v6201 = vunpack.c.l.b16 %v5088
        %v6202 = vunpack.c.h.b16 %v5088
        %v6203 = vunpack.c.l.b16 %v5089
        %v6204 = vunpack.c.h.b16 %v5089
        %v6205 = vunpack.c.l.b16 %v5090
        %v6206 = vunpack.c.h.b16 %v5090
        %v6207 = vunpack.c.l.b16 %v5091
        %v6208 = vunpack.c.h.b16 %v5091
        %v6209 = vunpack.c.l.b16 %v5092
        %v6210 = vunpack.c.h.b16 %v5092
        %v6211 = vunpack.c.l.b16 %v5093
        %v6212 = vunpack.c.h.b16 %v5093
        %v6213 = vunpack.c.l.b16 %v5094
        %v6214 = vunpack.c.h.b16 %v5094
        %v6215 = vunpack.c.l.b16 %v5095
        %v6216 = vunpack.c.h.b16 %v5095
        %v6217 = vunpack.c.l.b16 %v5096
        %v6218 = vunpack.c.h.b16 %v5096
        %v6219 = vunpack.c.l.b16 %v5097
        %v6220 = vunpack.c.h.b16 %v5097
        %v6221 = vunpack.c.l.b16 %v5098
        %v6222 = vunpack.c.h.b16 %v5098
        %v6223 = vunpack.c.l.b16 %v5099
        %v6224 = vunpack.c.h.b16 %v5099
        %v6225 = vunpack.c.l.b16 %v5100
        %v6226 = vunpack.c.h.b16 %v5100
        %v6227 = vunpack.c.l.b16 %v5101
        %v6228 = vunpack.c.h.b16 %v5101
        %v6229 = vunpack.c.l.b16 %v5102
        %v6230 = vunpack.c.h.b16 %v5102
        %v6231 = vunpack.c.l.b16 %v5103
        %v6232 = vunpack.c.h.b16 %v5103
        %v6233 = vunpack.c.l.b16 %v5104
        %v6234 = vunpack.c.h.b16 %v5104
        %v6235 = vunpack.c.l.b16 %v5105
        %v6236 = vunpack.c.h.b16 %v5105
        %v6237 = vunpack.c.l.b16 %v5106
        %v6238 = vunpack.c.h.b16 %v5106
        %v6239 = vunpack.c.l.b16 %v5107
        %v6240 = vunpack.c.h.b16 %v5107
        %v6241 = vunpack.c.l.b16 %v5108
        %v6242 = vunpack.c.h.b16 %v5108
        %v6243 = vunpack.c.l.b16 %v5109
        %v6244 = vunpack.c.h.b16 %v5109
        %v6245 = vunpack.c.l.b16 %v5110
        %v6246 = vunpack.c.h.b16 %v5110
        %v6247 = vunpack.c.l.b16 %v5111
        %v6248 = vunpack.c.h.b16 %v5111
        %v6249 = vunpack.c.l.b16 %v5112
        %v6250 = vunpack.c.h.b16 %v5112
        %v6251 = vunpack.c.l.b16 %v5113
        %v6252 = vunpack.c.h.b16 %v5113
        %v6253 = vunpack.c.l.b16 %v5114
        %v6254 = vunpack.c.h.b16 %v5114
        %v6255 = vunpack.c.l.b16 %v5115
        %v6256 = vunpack.c.h.b16 %v5115
        %v6257 = vunpack.c.l.b16 %v5116
        %v6258 = vunpack.c.h.b16 %v5116
        %v6259 = vunpack.c.l.b16 %v5117
        %v6260 = vunpack.c.h.b16 %v5117
        %v6261 = vunpack.c.l.b16 %v5118
        %v6262 = vunpack.c.h.b16 %v5118
        %v6263 = vunpack.c.l.b16 %v5119
        %v6264 = vunpack.c.h.b16 %v5119
        %v6265 = vunpack.c.l.b16 %v5120
        %v6266 = vunpack.c.h.b16 %v5120
        %v6267 = vunpack.c.l.b16 %v5121
        %v6268 = vunpack.c.h.b16 %v5121
        %v6269 = vunpack.c.l.b16 %v5122
        %v6270 = vunpack.c.h.b16 %v5122
        %v6271 = vunpack.c.l.b16 %v5123
        %v6272 = vunpack.c.h.b16 %v5123
        %v6273 = vunpack.c.l.b16 %v5124
        %v6274 = vunpack.c.h.b16 %v5124
        %v6275 = vunpack.c.l.b16 %v5125
        %v6276 = vunpack.c.h.b16 %v5125
        %v6277 = vunpack.c.l.b16 %v5126
        %v6278 = vunpack.c.h.b16 %v5126
        %v6279 = vunpack.c.l.b16 %v5127
        %v6280 = vunpack.c.h.b16 %v5127
        %v6281 = vunpack.c.l.b16 %v5128
        %v6282 = vunpack.c.h.b16 %v5128
        %v6283 = vunpack.c.l.b16 %v5129
        %v6284 = vunpack.c.h.b16 %v5129
        %v6285 = vunpack.c.l.b16 %v5130
        %v6286 = vunpack.c.h.b16 %v5130
        %v6287 = vunpack.c.l.b16 %v5131
        %v6288 = vunpack.c.h.b16 %v5131
        %v6289 = vunpack.c.l.b16 %v5132
        %v6290 = vunpack.c.h.b16 %v5132
        %v6291 = vunpack.c.l.b16 %v5133
        %v6292 = vunpack.c.h.b16 %v5133
        %v6293 = vunpack.c.l.b16 %v5134
        %v6294 = vunpack.c.h.b16 %v5134
        %v6295 = vunpack.c.l.b16 %v5135
        %v6296 = vunpack.c.h.b16 %v5135
        %v6297 = vunpack.c.l.b16 %v5136
        %v6298 = vunpack.c.h.b16 %v5136
        %v6299 = vunpack.c.l.b16 %v5137
        %v6300 = vunpack.c.h.b16 %v5137
        %v6301 = vunpack.c.l.b16 %v5138
        %v6302 = vunpack.c.h.b16 %v5138
        %v6303 = vunpack.c.l.b16 %v5139
        %v6304 = vunpack.c.h.b16 %v5139
        %v6305 = vunpack.c.l.b16 %v5140
        %v6306 = vunpack.c.h.b16 %v5140
        %v6307 = vunpack.c.l.b16 %v5141
        %v6308 = vunpack.c.h.b16 %v5141
        %v6309 = vunpack.c.l.b16 %v5142
        %v6310 = vunpack.c.h.b16 %v5142
        %v6311 = vunpack.c.l.b16 %v5143
        %v6312 = vunpack.c.h.b16 %v5143
        %v6313 = vunpack.c.l.b16 %v5144
        %v6314 = vunpack.c.h.b16 %v5144
        %v6315 = vunpack.c.l.b16 %v5145
        %v6316 = vunpack.c.h.b16 %v5145
        %v6317 = vunpack.c.l.b16 %v5146
        %v6318 = vunpack.c.h.b16 %v5146
        %v6319 = vunpack.c.l.b16 %v5147
        %v6320 = vunpack.c.h.b16 %v5147
        %v6321 = vunpack.c.l.b16 %v5148
        %v6322 = vunpack.c.h.b16 %v5148
        %v6323 = vunpack.c.l.b16 %v5149
        %v6324 = vunpack.c.h.b16 %v5149
        %v6325 = vunpack.c.l.b16 %v5150
        %v6326 = vunpack.c.h.b16 %v5150
        %v6327 = vunpack.c.l.b16 %v5151
        %v6328 = vunpack.c.h.b16 %v5151
        %v6329 = vunpack.c.l.b16 %v5152
        %v6330 = vunpack.c.h.b16 %v5152
        %v6331 = vunpack.c.l.b16 %v5153
        %v6332 = vunpack.c.h.b16 %v5153
        %v6333 = vunpack.c.l.b16 %v5154
        %v6334 = vunpack.c.h.b16 %v5154
        %v6335 = vunpack.c.l.b16 %v5155
        %v6336 = vunpack.c.h.b16 %v5155
        %v6337 = vunpack.c.l.b16 %v5156
        %v6338 = vunpack.c.h.b16 %v5156
        %v6339 = vunpack.c.l.b16 %v5157
        %v6340 = vunpack.c.h.b16 %v5157
        %v6341 = vunpack.c.l.b16 %v5158
        %v6342 = vunpack.c.h.b16 %v5158
        %v6343 = vunpack.c.l.b16 %v5159
        %v6344 = vunpack.c.h.b16 %v5159
        %v6345 = vunpack.c.l.b16 %v5160
        %v6346 = vunpack.c.h.b16 %v5160
        %v6347 = vunpack.c.l.b16 %v5161
        %v6348 = vunpack.c.h.b16 %v5161
        %v6349 = vunpack.c.l.b16 %v5162
        %v6350 = vunpack.c.h.b16 %v5162
        %v6351 = vunpack.c.l.b16 %v5163
        %v6352 = vunpack.c.h.b16 %v5163
        %v6353 = vunpack.c.l.b16 %v5164
        %v6354 = vunpack.c.h.b16 %v5164
        %v6355 = vunpack.c.l.b16 %v5165
        %v6356 = vunpack.c.h.b16 %v5165
        %v6357 = vunpack.c.l.b16 %v5166
        %v6358 = vunpack.c.h.b16 %v5166
        %v6359 = vunpack.c.l.b16 %v5167
        %v6360 = vunpack.c.h.b16 %v5167
        %v6361 = vunpack.c.l.b16 %v5168
        %v6362 = vunpack.c.h.b16 %v5168
        %v6363 = vunpack.c.l.b16 %v5169
        %v6364 = vunpack.c.h.b16 %v5169
        %v6365 = vunpack.c.l.b16 %v5170
        %v6366 = vunpack.c.h.b16 %v5170
        %v6367 = vunpack.c.l.b16 %v5171
        %v6368 = vunpack.c.h.b16 %v5171
        %v6369 = vunpack.c.l.b16 %v5172
        %v6370 = vunpack.c.h.b16 %v5172
        %v6371 = vunpack.c.l.b16 %v5173
        %v6372 = vunpack.c.h.b16 %v5173
        %v6373 = vunpack.c.l.b16 %v5174
        %v6374 = vunpack.c.h.b16 %v5174
        %v6375 = vunpack.c.l.b16 %v5175
        %v6376 = vunpack.c.h.b16 %v5175
        %v6377 = vunpack.c.l.b16 %v5176
        %v6378 = vunpack.c.h.b16 %v5176
        %v6379 = vunpack.c.l.b16 %v5177
        %v6380 = vunpack.c.h.b16 %v5177
        %v6381 = vunpack.c.l.b16 %v5178
        %v6382 = vunpack.c.h.b16 %v5178
        %v6383 = vunpack.c.l.b16 %v5179
        %v6384 = vunpack.c.h.b16 %v5179
        %v6385 = vunpack.c.l.b16 %v5180
        %v6386 = vunpack.c.h.b16 %v5180
        %v6387 = vunpack.c.l.b16 %v5181
        %v6388 = vunpack.c.h.b16 %v5181
        %v6389 = vunpack.c.l.b16 %v5182
        %v6390 = vunpack.c.h.b16 %v5182
        %v6391 = vunpack.c.l.b16 %v5183
        %v6392 = vunpack.c.h.b16 %v5183
        %v6393 = vunpack.c.l.b16 %v5184
        %v6394 = vunpack.c.h.b16 %v5184
        %v6395 = vunpack.c.l.b16 %v5185
        %v6396 = vunpack.c.h.b16 %v5185
        %v6397 = vunpack.c.l.b16 %v5186
        %v6398 = vunpack.c.h.b16 %v5186
        %v6399 = vunpack.c.l.b16 %v5187
        %v6400 = vunpack.c.h.b16 %v5187
        %v6401 = vunpack.c.l.b16 %v5188
        %v6402 = vunpack.c.h.b16 %v5188
        %v6403 = vunpack.c.l.b16 %v5189
        %v6404 = vunpack.c.h.b16 %v5189
        %v6405 = vunpack.c.l.b16 %v5190
        %v6406 = vunpack.c.h.b16 %v5190
        %v6407 = vunpack.c.l.b16 %v5191
        %v6408 = vunpack.c.h.b16 %v5191
        %v6409 = vunpack.c.l.b16 %v5192
        %v6410 = vunpack.c.h.b16 %v5192
        %v6411 = vunpack.c.l.b16 %v5193
        %v6412 = vunpack.c.h.b16 %v5193
        %v6413 = vunpack.c.l.b16 %v5194
        %v6414 = vunpack.c.h.b16 %v5194
        %v6415 = vunpack.c.l.b16 %v5195
        %v6416 = vunpack.c.h.b16 %v5195
        %v6417 = vunpack.c.l.b16 %v5196
        %v6418 = vunpack.c.h.b16 %v5196
        %v6419 = vunpack.c.l.b16 %v5197
        %v6420 = vunpack.c.h.b16 %v5197
        %v6421 = vunpack.c.l.b16 %v5198
        %v6422 = vunpack.c.h.b16 %v5198
        %v6423 = vunpack.c.l.b16 %v5199
        %v6424 = vunpack.c.h.b16 %v5199
        %v6425 = vunpack.c.l.b16 %v5200
        %v6426 = vunpack.c.h.b16 %v5200
        %v6427 = vunpack.c.l.b16 %v5201
        %v6428 = vunpack.c.h.b16 %v5201
        %v6429 = vunpack.c.l.b16 %v5202
        %v6430 = vunpack.c.h.b16 %v5202
        %v6431 = vunpack.c.l.b16 %v5203
        %v6432 = vunpack.c.h.b16 %v5203
        %v6433 = vunpack.c.l.b16 %v5204
        %v6434 = vunpack.c.h.b16 %v5204
        %v6435 = vunpack.c.l.b16 %v5205
        %v6436 = vunpack.c.h.b16 %v5205
        %v6437 = vunpack.c.l.b16 %v5206
        %v6438 = vunpack.c.h.b16 %v5206
        %v6439 = vunpack.c.l.b16 %v5207
        %v6440 = vunpack.c.h.b16 %v5207
        %v6441 = vunpack.c.l.b16 %v5208
        %v6442 = vunpack.c.h.b16 %v5208
        %v6443 = vunpack.c.l.b16 %v5209
        %v6444 = vunpack.c.h.b16 %v5209
        %v6445 = vunpack.c.l.b16 %v5210
        %v6446 = vunpack.c.h.b16 %v5210
        %v6447 = vunpack.c.l.b16 %v5211
        %v6448 = vunpack.c.h.b16 %v5211
        %v6449 = vunpack.c.l.b16 %v5212
        %v6450 = vunpack.c.h.b16 %v5212
        %v6451 = vunpack.c.l.b16 %v5213
        %v6452 = vunpack.c.h.b16 %v5213
        %v6453 = vunpack.c.l.b16 %v5214
        %v6454 = vunpack.c.h.b16 %v5214
        %v6455 = vunpack.c.l.b16 %v5215
        %v6456 = vunpack.c.h.b16 %v5215
        %v6457 = vunpack.c.l.b16 %v5216
        %v6458 = vunpack.c.h.b16 %v5216
        %v6459 = vunpack.c.l.b16 %v5217
        %v6460 = vunpack.c.h.b16 %v5217
        %v6461 = vunpack.c.l.b16 %v5218
        %v6462 = vunpack.c.h.b16 %v5218
        %v6463 = vunpack.c.l.b16 %v5219
        %v6464 = vunpack.c.h.b16 %v5219
        %v6465 = vunpack.c.l.b16 %v5220
        %v6466 = vunpack.c.h.b16 %v5220
        %v6467 = vunpack.c.l.b16 %v5221
        %v6468 = vunpack.c.h.b16 %v5221
        %v6469 = vunpack.c.l.b16 %v5222
        %v6470 = vunpack.c.h.b16 %v5222
        %v6471 = vunpack.c.l.b16 %v5223
        %v6472 = vunpack.c.h.b16 %v5223
        %v6473 = vunpack.c.l.b16 %v5224
        %v6474 = vunpack.c.h.b16 %v5224
        %v6475 = vunpack.c.l.b16 %v5225
        %v6476 = vunpack.c.h.b16 %v5225
        %v6477 = vunpack.c.l.b16 %v5226
        %v6478 = vunpack.c.h.b16 %v5226
        %v6479 = vunpack.c.l.b16 %v5227
        %v6480 = vunpack.c.h.b16 %v5227
        %v6481 = vunpack.c.l.b16 %v5228
        %v6482 = vunpack.c.h.b16 %v5228
        %v6483 = vunpack.c.l.b16 %v5229
        %v6484 = vunpack.c.h.b16 %v5229
        %v6485 = vunpack.c.l.b16 %v5230
        %v6486 = vunpack.c.h.b16 %v5230
        %v6487 = vunpack.c.l.b16 %v5231
        %v6488 = vunpack.c.h.b16 %v5231
        %v6489 = vunpack.c.l.b16 %v5232
        %v6490 = vunpack.c.h.b16 %v5232
        %v6491 = vunpack.c.l.b16 %v5233
        %v6492 = vunpack.c.h.b16 %v5233
        %v6493 = vunpack.c.l.b16 %v5234
        %v6494 = vunpack.c.h.b16 %v5234
        %v6495 = vunpack.c.l.b16 %v5235
        %v6496 = vunpack.c.h.b16 %v5235
        %v6497 = vunpack.c.l.b16 %v5236
        %v6498 = vunpack.c.h.b16 %v5236
        %v6499 = vunpack.c.l.b16 %v5237
        %v6500 = vunpack.c.h.b16 %v5237
        %v6501 = vunpack.c.l.b16 %v5238
        %v6502 = vunpack.c.h.b16 %v5238
        %v6503 = vunpack.c.l.b16 %v5239
        %v6504 = vunpack.c.h.b16 %v5239
        %v6505 = vunpack.c.l.b16 %v5240
        %v6506 = vunpack.c.h.b16 %v5240
        %v6507 = vunpack.c.l.b16 %v5241
        %v6508 = vunpack.c.h.b16 %v5241
        %v6509 = vunpack.c.l.b16 %v5242
        %v6510 = vunpack.c.h.b16 %v5242
        %v6511 = vunpack.c.l.b16 %v5243
        %v6512 = vunpack.c.h.b16 %v5243
        %v6513 = vunpack.c.l.b16 %v5244
        %v6514 = vunpack.c.h.b16 %v5244
        %v6515 = vunpack.c.l.b16 %v5245
        %v6516 = vunpack.c.h.b16 %v5245
        %v6517 = vunpack.c.l.b16 %v5246
        %v6518 = vunpack.c.h.b16 %v5246
        %v6519 = vunpack.c.l.b16 %v5247
        %v6520 = vunpack.c.h.b16 %v5247
        %v6521 = vunpack.c.l.b16 %v5248
        %v6522 = vunpack.c.h.b16 %v5248
        %v6523 = vunpack.c.l.b16 %v5249
        %v6524 = vunpack.c.h.b16 %v5249
        %v6525 = vunpack.c.l.b16 %v5250
        %v6526 = vunpack.c.h.b16 %v5250
        %v6527 = vunpack.c.l.b16 %v5251
        %v6528 = vunpack.c.h.b16 %v5251
        %v6529 = vunpack.c.l.b16 %v5252
        %v6530 = vunpack.c.h.b16 %v5252
        %v6531 = vunpack.c.l.b16 %v5253
        %v6532 = vunpack.c.h.b16 %v5253
        %v6533 = vunpack.c.l.b16 %v5254
        %v6534 = vunpack.c.h.b16 %v5254
        %v6535 = vunpack.c.l.b16 %v5255
        %v6536 = vunpack.c.h.b16 %v5255
        %v6537 = vunpack.c.l.b16 %v5256
        %v6538 = vunpack.c.h.b16 %v5256
        %v6539 = vunpack.c.l.b16 %v5257
        %v6540 = vunpack.c.h.b16 %v5257
        %v6541 = vunpack.c.l.b16 %v5258
        %v6542 = vunpack.c.h.b16 %v5258
        %v6543 = vunpack.c.l.b16 %v5259
        %v6544 = vunpack.c.h.b16 %v5259
        %v6545 = vunpack.c.l.b16 %v5260
        %v6546 = vunpack.c.h.b16 %v5260
        %v6547 = vunpack.c.l.b16 %v5261
        %v6548 = vunpack.c.h.b16 %v5261
        %v6549 = vunpack.c.l.b16 %v5262
        %v6550 = vunpack.c.h.b16 %v5262
        %v6551 = vunpack.c.l.b16 %v5263
        %v6552 = vunpack.c.h.b16 %v5263
        %v6553 = vunpack.c.l.b16 %v5264
        %v6554 = vunpack.c.h.b16 %v5264
        %v6555 = vunpack.c.l.b16 %v5265
        %v6556 = vunpack.c.h.b16 %v5265
        %v6557 = vunpack.c.l.b16 %v5266
        %v6558 = vunpack.c.h.b16 %v5266
        %v6559 = vunpack.c.l.b16 %v5267
        %v6560 = vunpack.c.h.b16 %v5267
        %v6561 = vunpack.c.l.b16 %v5268
        %v6562 = vunpack.c.h.b16 %v5268
        %v6563 = vunpack.c.l.b16 %v5269
        %v6564 = vunpack.c.h.b16 %v5269
        %v6565 = vunpack.c.l.b16 %v5270
        %v6566 = vunpack.c.h.b16 %v5270
        %v6567 = vunpack.c.l.b16 %v5271
        %v6568 = vunpack.c.h.b16 %v5271
        %v6569 = vunpack.c.l.b16 %v5272
        %v6570 = vunpack.c.h.b16 %v5272
        %v6571 = vunpack.c.l.b16 %v5273
        %v6572 = vunpack.c.h.b16 %v5273
        %v6573 = vunpack.c.l.b16 %v5274
        %v6574 = vunpack.c.h.b16 %v5274
        %v6575 = vunpack.c.l.b16 %v5275
        %v6576 = vunpack.c.h.b16 %v5275
        %v6577 = vunpack.c.l.b16 %v5276
        %v6578 = vunpack.c.h.b16 %v5276
        %v6579 = vunpack.c.l.b16 %v5277
        %v6580 = vunpack.c.h.b16 %v5277
        %v6581 = vunpack.c.l.b16 %v5278
        %v6582 = vunpack.c.h.b16 %v5278
        %v6583 = vunpack.c.l.b16 %v5279
        %v6584 = vunpack.c.h.b16 %v5279
        %v6585 = vunpack.c.l.b16 %v5280
        %v6586 = vunpack.c.h.b16 %v5280
        %v6587 = vunpack.c.l.b16 %v5281
        %v6588 = vunpack.c.h.b16 %v5281
        %v6589 = vunpack.c.l.b16 %v5282
        %v6590 = vunpack.c.h.b16 %v5282
        %v6591 = vunpack.c.l.b16 %v5283
        %v6592 = vunpack.c.h.b16 %v5283
        %v6593 = vunpack.c.l.b16 %v5284
        %v6594 = vunpack.c.h.b16 %v5284
        %v6595 = vunpack.c.l.b16 %v5285
        %v6596 = vunpack.c.h.b16 %v5285
        %v6597 = vunpack.c.l.b16 %v5286
        %v6598 = vunpack.c.h.b16 %v5286
        %v6599 = vunpack.c.l.b16 %v5287
        %v6600 = vunpack.c.h.b16 %v5287
        %v6601 = vunpack.c.l.b16 %v5288
        %v6602 = vunpack.c.h.b16 %v5288
        %v6603 = vunpack.c.l.b16 %v5289
        %v6604 = vunpack.c.h.b16 %v5289
        %v6605 = vunpack.c.l.b16 %v5290
        %v6606 = vunpack.c.h.b16 %v5290
        %v6607 = vunpack.c.l.b16 %v5291
        %v6608 = vunpack.c.h.b16 %v5291
        %v6609 = vunpack.c.l.b16 %v5292
        %v6610 = vunpack.c.h.b16 %v5292
        %v6611 = vunpack.c.l.b16 %v5293
        %v6612 = vunpack.c.h.b16 %v5293
        %v6613 = vunpack.c.l.b16 %v5294
        %v6614 = vunpack.c.h.b16 %v5294
        %v6615 = vunpack.c.l.b16 %v5295
        %v6616 = vunpack.c.h.b16 %v5295
        %v6617 = vunpack.c.l.b16 %v5296
        %v6618 = vunpack.c.h.b16 %v5296
        %v6619 = vunpack.c.l.b16 %v5297
        %v6620 = vunpack.c.h.b16 %v5297
        %v6621 = vunpack.c.l.b16 %v5298
        %v6622 = vunpack.c.h.b16 %v5298
        %v6623 = vunpack.c.l.b16 %v5299
        %v6624 = vunpack.c.h.b16 %v5299
        %v6625 = vunpack.c.l.b16 %v5300
        %v6626 = vunpack.c.h.b16 %v5300
        %v6627 = vunpack.c.l.b16 %v5301
        %v6628 = vunpack.c.h.b16 %v5301
        %v6629 = vunpack.c.l.b16 %v5302
        %v6630 = vunpack.c.h.b16 %v5302
        %v6631 = vunpack.c.l.b16 %v5303
        %v6632 = vunpack.c.h.b16 %v5303
        %v6633 = vunpack.c.l.b16 %v5304
        %v6634 = vunpack.c.h.b16 %v5304
        %v6635 = vunpack.c.l.b16 %v5305
        %v6636 = vunpack.c.h.b16 %v5305
        %v6637 = vunpack.c.l.b16 %v5306
        %v6638 = vunpack.c.h.b16 %v5306
        %v6639 = vunpack.c.l.b16 %v5307
        %v6640 = vunpack.c.h.b16 %v5307
        %v6641 = vunpack.c.l.b16 %v5308
        %v6642 = vunpack.c.h.b16 %v5308
        %v6643 = vunpack.c.l.b16 %v5309
        %v6644 = vunpack.c.h.b16 %v5309
        %v6645 = vunpack.c.l.b16 %v5310
        %v6646 = vunpack.c.h.b16 %v5310
        %v6647 = vunpack.c.l.b16 %v5311
        %v6648 = vunpack.c.h.b16 %v5311
        %v6649 = vunpack.c.l.b16 %v5312
        %v6650 = vunpack.c.h.b16 %v5312
        %v6651 = vunpack.c.l.b16 %v5313
        %v6652 = vunpack.c.h.b16 %v5313
        %v6653 = vunpack.c.l.b16 %v5314
        %v6654 = vunpack.c.h.b16 %v5314
        %v6655 = vunpack.c.l.b16 %v5315
        %v6656 = vunpack.c.h.b16 %v5315
        %v6657 = vunpack.c.l.b16 %v5316
        %v6658 = vunpack.c.h.b16 %v5316
        %v6659 = vunpack.c.l.b16 %v5317
        %v6660 = vunpack.c.h.b16 %v5317
        %v6661 = vunpack.c.l.b16 %v5318
        %v6662 = vunpack.c.h.b16 %v5318
        %v6663 = vunpack.c.l.b16 %v5319
        %v6664 = vunpack.c.h.b16 %v5319
        %v6665 = vunpack.c.l.b16 %v5320
        %v6666 = vunpack.c.h.b16 %v5320
        %v6667 = vunpack.c.l.b16 %v5321
        %v6668 = vunpack.c.h.b16 %v5321
        %v6669 = vunpack.c.l.b16 %v5322
        %v6670 = vunpack.c.h.b16 %v5322
        %v6671 = vunpack.c.l.b16 %v5323
        %v6672 = vunpack.c.h.b16 %v5323
        %v6673 = vunpack.c.l.b16 %v5324
        %v6674 = vunpack.c.h.b16 %v5324
        %v6675 = vunpack.c.l.b16 %v5325
        %v6676 = vunpack.c.h.b16 %v5325
        %v6677 = vunpack.c.l.b16 %v5326
        %v6678 = vunpack.c.h.b16 %v5326
        %v6679 = vunpack.c.l.b16 %v5327
        %v6680 = vunpack.c.h.b16 %v5327
        %v6681 = vunpack.c.l.b16 %v5328
        %v6682 = vunpack.c.h.b16 %v5328
        %v6683 = vunpack.c.l.b16 %v5329
        %v6684 = vunpack.c.h.b16 %v5329
        %v6685 = vunpack.c.l.b16 %v5330
        %v6686 = vunpack.c.h.b16 %v5330
        %v6687 = vunpack.c.l.b16 %v5331
        %v6688 = vunpack.c.h.b16 %v5331
        %v6689 = vunpack.c.l.b16 %v5332
        %v6690 = vunpack.c.h.b16 %v5332
        %v6691 = vunpack.c.l.b16 %v5333
        %v6692 = vunpack.c.h.b16 %v5333
        %v6693 = vunpack.c.l.b16 %v5334
        %v6694 = vunpack.c.h.b16 %v5334
        %v6695 = vunpack.c.l.b16 %v5335
        %v6696 = vunpack.c.h.b16 %v5335
        %v6697 = vunpack.c.l.b16 %v5336
        %v6698 = vunpack.c.h.b16 %v5336
        %v6699 = vunpack.c.l.b16 %v5337
        %v6700 = vunpack.c.h.b16 %v5337
        %v6701 = vunpack.c.l.b16 %v5338
        %v6702 = vunpack.c.h.b16 %v5338
        %v6703 = vunpack.c.l.b16 %v5339
        %v6704 = vunpack.c.h.b16 %v5339
        %v6705 = vunpack.c.l.b16 %v5340
        %v6706 = vunpack.c.h.b16 %v5340
        %v6707 = vunpack.c.l.b16 %v5341
        %v6708 = vunpack.c.h.b16 %v5341
        %v6709 = vunpack.c.l.b16 %v5342
        %v6710 = vunpack.c.h.b16 %v5342
        %v6711 = vunpack.c.l.b16 %v5343
        %v6712 = vunpack.c.h.b16 %v5343
        %v6713 = vunpack.c.l.b16 %v5344
        %v6714 = vunpack.c.h.b16 %v5344
        %v6715 = vunpack.c.l.b16 %v5345
        %v6716 = vunpack.c.h.b16 %v5345
        %v6717 = vunpack.c.l.b16 %v5346
        %v6718 = vunpack.c.h.b16 %v5346
        %v6719 = vunpack.c.l.b16 %v5347
        %v6720 = vunpack.c.h.b16 %v5347
        %v6721 = vunpack.c.l.b16 %v5348
        %v6722 = vunpack.c.h.b16 %v5348
        %v6723 = vunpack.c.l.b16 %v5349
        %v6724 = vunpack.c.h.b16 %v5349
        %v6725 = vunpack.c.l.b16 %v5350
        %v6726 = vunpack.c.h.b16 %v5350
        %v6727 = vunpack.c.l.b16 %v5351
        %v6728 = vunpack.c.h.b16 %v5351
        %v6729 = vunpack.c.l.b16 %v5352
        %v6730 = vunpack.c.h.b16 %v5352
        %v6731 = vunpack.c.l.b16 %v5353
        %v6732 = vunpack.c.h.b16 %v5353
        %v6733 = vunpack.c.l.b16 %v5354
        %v6734 = vunpack.c.h.b16 %v5354
        %v6735 = vunpack.c.l.b16 %v5355
        %v6736 = vunpack.c.h.b16 %v5355
        %v6737 = vunpack.c.l.b16 %v5356
        %v6738 = vunpack.c.h.b16 %v5356
        %v6739 = vunpack.c.l.b16 %v5357
        %v6740 = vunpack.c.h.b16 %v5357
        %v6741 = vunpack.c.l.b16 %v5358
        %v6742 = vunpack.c.h.b16 %v5358
        %v6743 = vunpack.c.l.b16 %v5359
        %v6744 = vunpack.c.h.b16 %v5359
        %v6745 = vunpack.c.l.b16 %v5360
        %v6746 = vunpack.c.h.b16 %v5360
        %v6747 = vunpack.c.l.b16 %v5361
        %v6748 = vunpack.c.h.b16 %v5361
        %v6749 = vunpack.c.l.b16 %v5362
        %v6750 = vunpack.c.h.b16 %v5362
        %v6751 = vunpack.c.l.b16 %v5363
        %v6752 = vunpack.c.h.b16 %v5363
        %v6753 = vunpack.c.l.b16 %v5364
        %v6754 = vunpack.c.h.b16 %v5364
        %v6755 = vunpack.c.l.b16 %v5365
        %v6756 = vunpack.c.h.b16 %v5365
        %v6757 = vunpack.c.l.b16 %v5366
        %v6758 = vunpack.c.h.b16 %v5366
        %v6759 = vunpack.c.l.b16 %v5367
        %v6760 = vunpack.c.h.b16 %v5367
        %v6761 = vunpack.c.l.b16 %v5368
        %v6762 = vunpack.c.h.b16 %v5368
        %v6763 = vunpack.c.l.b16 %v5369
        %v6764 = vunpack.c.h.b16 %v5369
        %v6765 = vunpack.c.l.b16 %v5370
        %v6766 = vunpack.c.h.b16 %v5370
        %v6767 = vunpack.c.l.b16 %v5371
        %v6768 = vunpack.c.h.b16 %v5371
        %v6769 = vunpack.c.l.b16 %v5372
        %v6770 = vunpack.c.h.b16 %v5372
        %v6771 = vunpack.c.l.b16 %v5373
        %v6772 = vunpack.c.h.b16 %v5373
        %v6773 = vunpack.c.l.b16 %v5374
        %v6774 = vunpack.c.h.b16 %v5374
        %v6775 = vunpack.c.l.b16 %v5375
        %v6776 = vunpack.c.h.b16 %v5375
        %v6777 = vunpack.c.l.b16 %v5376
        %v6778 = vunpack.c.h.b16 %v5376
        %v6779 = vunpack.c.l.b16 %v5377
        %v6780 = vunpack.c.h.b16 %v5377
        %v6781 = vunpack.c.l.b16 %v5378
        %v6782 = vunpack.c.h.b16 %v5378
        %v6783 = vunpack.c.l.b16 %v5379
        %v6784 = vunpack.c.h.b16 %v5379
        %v6785 = vunpack.c.l.b16 %v5380
        %v6786 = vunpack.c.h.b16 %v5380
        %v6787 = vunpack.c.l.b16 %v5381
        %v6788 = vunpack.c.h.b16 %v5381
        %v6789 = vunpack.c.l.b16 %v5382
        %v6790 = vunpack.c.h.b16 %v5382
        %v6791 = vunpack.c.l.b16 %v5383
        %v6792 = vunpack.c.h.b16 %v5383
        %v6793 = vunpack.c.l.b16 %v5384
        %v6794 = vunpack.c.h.b16 %v5384
        %v6795 = vunpack.c.l.b16 %v5385
        %v6796 = vunpack.c.h.b16 %v5385
        %v6797 = vunpack.c.l.b16 %v5386
        %v6798 = vunpack.c.h.b16 %v5386
        %v6799 = vunpack.c.l.b16 %v5387
        %v6800 = vunpack.c.h.b16 %v5387
        %v6801 = vunpack.c.l.b16 %v5388
        %v6802 = vunpack.c.h.b16 %v5388
        %v6803 = vunpack.c.l.b16 %v5389
        %v6804 = vunpack.c.h.b16 %v5389
        %v6805 = vunpack.c.l.b16 %v5390
        %v6806 = vunpack.c.h.b16 %v5390
        %v6807 = vunpack.c.l.b16 %v5391
        %v6808 = vunpack.c.h.b16 %v5391
        %v6809 = vunpack.c.l.b16 %v5392
        %v6810 = vunpack.c.h.b16 %v5392
        %v6811 = vunpack.c.l.b16 %v5393
        %v6812 = vunpack.c.h.b16 %v5393
        %v6813 = vunpack.c.l.b16 %v5394
        %v6814 = vunpack.c.h.b16 %v5394
        %v6815 = vunpack.c.l.b16 %v5395
        %v6816 = vunpack.c.h.b16 %v5395
        %v6817 = vunpack.c.l.b16 %v5396
        %v6818 = vunpack.c.h.b16 %v5396
        %v6819 = vunpack.c.l.b16 %v5397
        %v6820 = vunpack.c.h.b16 %v5397
        %v6821 = vunpack.c.l.b16 %v5398
        %v6822 = vunpack.c.h.b16 %v5398
        %v6823 = vunpack.c.l.b16 %v5399
        %v6824 = vunpack.c.h.b16 %v5399
        %v6825 = vunpack.c.l.b16 %v5400
        %v6826 = vunpack.c.h.b16 %v5400
        %v6827 = vunpack.c.l.b16 %v5401
        %v6828 = vunpack.c.h.b16 %v5401
        %v6829 = vunpack.c.l.b16 %v5402
        %v6830 = vunpack.c.h.b16 %v5402
        %v6831 = vunpack.c.l.b16 %v5403
        %v6832 = vunpack.c.h.b16 %v5403
        %v6833 = vunpack.c.l.b16 %v5404
        %v6834 = vunpack.c.h.b16 %v5404
        %v6835 = vunpack.c.l.b16 %v5405
        %v6836 = vunpack.c.h.b16 %v5405
        %v6837 = vunpack.c.l.b16 %v5406
        %v6838 = vunpack.c.h.b16 %v5406
        %v6839 = vunpack.c.l.b16 %v5407
        %v6840 = vunpack.c.h.b16 %v5407
        %v6841 = vunpack.c.l.b16 %v5408
        %v6842 = vunpack.c.h.b16 %v5408
        %v6843 = vunpack.c.l.b16 %v5409
        %v6844 = vunpack.c.h.b16 %v5409
        %v6845 = vunpack.c.l.b16 %v5410
        %v6846 = vunpack.c.h.b16 %v5410
        %v6847 = vunpack.c.l.b16 %v5411
        %v6848 = vunpack.c.h.b16 %v5411
        %v6849 = vunpack.c.l.b16 %v5412
        %v6850 = vunpack.c.h.b16 %v5412
        %v6851 = vunpack.c.l.b16 %v5413
        %v6852 = vunpack.c.h.b16 %v5413
        %v6853 = vunpack.c.l.b16 %v5414
        %v6854 = vunpack.c.h.b16 %v5414
        %v6855 = vunpack.c.l.b16 %v5415
        %v6856 = vunpack.c.h.b16 %v5415
        %v6857 = vunpack.c.l.b16 %v5416
        %v6858 = vunpack.c.h.b16 %v5416
        %v6859 = vunpack.c.l.b16 %v5417
        %v6860 = vunpack.c.h.b16 %v5417
        %v6861 = vunpack.c.l.b16 %v5418
        %v6862 = vunpack.c.h.b16 %v5418
        %v6863 = vunpack.c.l.b16 %v5419
        %v6864 = vunpack.c.h.b16 %v5419
        %v6865 = vunpack.c.l.b16 %v5420
        %v6866 = vunpack.c.h.b16 %v5420
        %v6867 = vunpack.c.l.b16 %v5421
        %v6868 = vunpack.c.h.b16 %v5421
        %v6869 = vunpack.c.l.b16 %v5422
        %v6870 = vunpack.c.h.b16 %v5422
        %v6871 = vunpack.c.l.b16 %v5423
        %v6872 = vunpack.c.h.b16 %v5423
        %v6873 = vunpack.c.l.b16 %v5424
        %v6874 = vunpack.c.h.b16 %v5424
        %v6875 = vunpack.c.l.b16 %v5425
        %v6876 = vunpack.c.h.b16 %v5425
        %v6877 = vunpack.c.l.b16 %v5426
        %v6878 = vunpack.c.h.b16 %v5426
        %v6879 = vunpack.c.l.b16 %v5427
        %v6880 = vunpack.c.h.b16 %v5427
        %v6881 = vunpack.c.l.b16 %v5428
        %v6882 = vunpack.c.h.b16 %v5428
        %v6883 = vunpack.c.l.b16 %v5429
        %v6884 = vunpack.c.h.b16 %v5429
        %v6885 = vunpack.c.l.b16 %v5430
        %v6886 = vunpack.c.h.b16 %v5430
        %v6887 = vunpack.c.l.b16 %v5431
        %v6888 = vunpack.c.h.b16 %v5431
        %v6889 = vunpack.c.l.b16 %v5432
        %v6890 = vunpack.c.h.b16 %v5432
        %v6891 = vunpack.c.l.b16 %v5433
        %v6892 = vunpack.c.h.b16 %v5433
        %v6893 = vunpack.c.l.b16 %v5434
        %v6894 = vunpack.c.h.b16 %v5434
        %v6895 = vunpack.c.l.b16 %v5435
        %v6896 = vunpack.c.h.b16 %v5435
        %v6897 = vunpack.c.l.b16 %v5436
        %v6898 = vunpack.c.h.b16 %v5436
        %v6899 = vunpack.c.l.b16 %v5437
        %v6900 = vunpack.c.h.b16 %v5437
        %v6901 = vunpack.c.l.b16 %v5438
        %v6902 = vunpack.c.h.b16 %v5438
        %v6903 = vunpack.c.l.b16 %v5439
        %v6904 = vunpack.c.h.b16 %v5439
        %v6905 = vunpack.c.l.b16 %v5440
        %v6906 = vunpack.c.h.b16 %v5440
        %v6907 = vunpack.c.l.b16 %v5441
        %v6908 = vunpack.c.h.b16 %v5441
        %v6909 = vunpack.c.l.b16 %v5442
        %v6910 = vunpack.c.h.b16 %v5442
        %v6911 = vunpack.c.l.b16 %v5443
        %v6912 = vunpack.c.h.b16 %v5443
        %v6913 = vunpack.c.l.b16 %v5444
        %v6914 = vunpack.c.h.b16 %v5444
        %v6915 = vunpack.c.l.b16 %v5445
        %v6916 = vunpack.c.h.b16 %v5445
        %v6917 = vunpack.c.l.b16 %v5446
        %v6918 = vunpack.c.h.b16 %v5446
        %v6919 = vunpack.c.l.b16 %v5447
        %v6920 = vunpack.c.h.b16 %v5447
        %v6921 = vunpack.c.l.b16 %v5448
        %v6922 = vunpack.c.h.b16 %v5448
        %v6923 = vunpack.c.l.b16 %v5449
        %v6924 = vunpack.c.h.b16 %v5449
        %v6925 = vunpack.c.l.b16 %v5450
        %v6926 = vunpack.c.h.b16 %v5450
        %v6927 = vunpack.c.l.b16 %v5451
        %v6928 = vunpack.c.h.b16 %v5451
        %v6929 = vunpack.c.l.b16 %v5452
        %v6930 = vunpack.c.h.b16 %v5452
        %v6931 = vunpack.c.l.b16 %v5453
        %v6932 = vunpack.c.h.b16 %v5453
        %v6933 = vunpack.c.l.b16 %v5454
        %v6934 = vunpack.c.h.b16 %v5454
        %v6935 = vunpack.c.l.b16 %v5455
        %v6936 = vunpack.c.h.b16 %v5455
        %v6937 = vunpack.c.l.b16 %v5456
        %v6938 = vunpack.c.h.b16 %v5456
        %v6939 = vunpack.c.l.b16 %v5457
        %v6940 = vunpack.c.h.b16 %v5457
        %v6941 = vunpack.c.l.b16 %v5458
        %v6942 = vunpack.c.h.b16 %v5458
        %v6943 = vunpack.c.l.b16 %v5459
        %v6944 = vunpack.c.h.b16 %v5459
        %v6945 = vunpack.c.l.b16 %v5460
        %v6946 = vunpack.c.h.b16 %v5460
        %v6947 = vunpack.c.l.b16 %v5461
        %v6948 = vunpack.c.h.b16 %v5461
        %v6949 = vunpack.c.l.b16 %v5462
        %v6950 = vunpack.c.h.b16 %v5462
        %v6951 = vunpack.c.l.b16 %v5463
        %v6952 = vunpack.c.h.b16 %v5463
        %v6953 = vunpack.c.l.b16 %v5464
        %v6954 = vunpack.c.h.b16 %v5464
        %v6955 = vunpack.c.l.b16 %v5465
        %v6956 = vunpack.c.h.b16 %v5465
        %v6957 = vunpack.c.l.b16 %v5466
        %v6958 = vunpack.c.h.b16 %v5466
        %v6959 = vunpack.c.l.b16 %v5467
        %v6960 = vunpack.c.h.b16 %v5467
        %v6961 = vunpack.c.l.b16 %v5468
        %v6962 = vunpack.c.h.b16 %v5468
        %v6963 = vunpack.c.l.b16 %v5469
        %v6964 = vunpack.c.h.b16 %v5469
        %v6965 = vunpack.c.l.b16 %v5470
        %v6966 = vunpack.c.h.b16 %v5470
        %v6967 = vunpack.c.l.b16 %v5471
        %v6968 = vunpack.c.h.b16 %v5471
        %v6969 = vunpack.c.l.b16 %v5472
        %v6970 = vunpack.c.h.b16 %v5472
        %v6971 = vunpack.c.l.b16 %v5473
        %v6972 = vunpack.c.h.b16 %v5473
        %v6973 = vunpack.c.l.b16 %v5474
        %v6974 = vunpack.c.h.b16 %v5474
        %v6975 = vunpack.c.l.b16 %v5475
        %v6976 = vunpack.c.h.b16 %v5475
        %v6977 = vunpack.c.l.b16 %v5476
        %v6978 = vunpack.c.h.b16 %v5476
        %v6979 = vunpack.c.l.b16 %v5477
        %v6980 = vunpack.c.h.b16 %v5477
        %v6981 = vunpack.c.l.b16 %v5478
        %v6982 = vunpack.c.h.b16 %v5478
        %v6983 = vunpack.c.l.b16 %v5479
        %v6984 = vunpack.c.h.b16 %v5479
        %v6985 = vunpack.c.l.b16 %v5480
        %v6986 = vunpack.c.h.b16 %v5480
        %v6987 = vunpack.c.l.b16 %v5481
        %v6988 = vunpack.c.h.b16 %v5481
        %v6989 = vunpack.c.l.b16 %v5482
        %v6990 = vunpack.c.h.b16 %v5482
        %v6991 = vunpack.c.l.b16 %v5483
        %v6992 = vunpack.c.h.b16 %v5483
        %v6993 = vunpack.c.l.b16 %v5484
        %v6994 = vunpack.c.h.b16 %v5484
        %v6995 = vunpack.c.l.b16 %v5485
        %v6996 = vunpack.c.h.b16 %v5485
        %v6997 = vunpack.c.l.b16 %v5486
        %v6998 = vunpack.c.h.b16 %v5486
        %v6999 = vunpack.c.l.b16 %v5487
        %v7000 = vunpack.c.h.b16 %v5487
        %v7001 = vunpack.c.l.b16 %v5488
        %v7002 = vunpack.c.h.b16 %v5488
        %v7003 = vunpack.c.l.b16 %v5489
        %v7004 = vunpack.c.h.b16 %v5489
        %v7005 = vunpack.c.l.b16 %v5490
        %v7006 = vunpack.c.h.b16 %v5490
        %v7007 = vunpack.c.l.b16 %v5491
        %v7008 = vunpack.c.h.b16 %v5491
        %v7009 = vunpack.c.l.b16 %v5492
        %v7010 = vunpack.c.h.b16 %v5492
        %v7011 = vunpack.c.l.b16 %v5493
        %v7012 = vunpack.c.h.b16 %v5493
        %v7013 = vunpack.c.l.b16 %v5494
        %v7014 = vunpack.c.h.b16 %v5494
        %v7015 = vunpack.c.l.b16 %v5495
        %v7016 = vunpack.c.h.b16 %v5495
        %v7017 = vunpack.c.l.b16 %v5496
        %v7018 = vunpack.c.h.b16 %v5496
        %v7019 = vunpack.c.l.b16 %v5497
        %v7020 = vunpack.c.h.b16 %v5497
        %v7021 = vunpack.c.l.b16 %v5498
        %v7022 = vunpack.c.h.b16 %v5498
        %v7023 = vunpack.c.l.b16 %v5499
        %v7024 = vunpack.c.h.b16 %v5499
        %v7025 = vunpack.c.l.b16 %v5500
        %v7026 = vunpack.c.h.b16 %v5500
        %v7027 = vunpack.c.l.b16 %v5501
        %v7028 = vunpack.c.h.b16 %v5501
        %v7029 = vunpack.c.l.b16 %v5502
        %v7030 = vunpack.c.h.b16 %v5502
        %v7031 = vunpack.c.l.b16 %v5503
        %v7032 = vunpack.c.h.b16 %v5503
        %v7033 = vunpack.c.l.b16 %v5504
        %v7034 = vunpack.c.h.b16 %v5504
        %v7035 = vunpack.c.l.b16 %v5505
        %v7036 = vunpack.c.h.b16 %v5505
        %v7037 = vunpack.c.l.b16 %v5506
        %v7038 = vunpack.c.h.b16 %v5506
        %v7039 = vunpack.c.l.b16 %v5507
        %v7040 = vunpack.c.h.b16 %v5507
        %v7041 = vunpack.c.l.b16 %v5508
        %v7042 = vunpack.c.h.b16 %v5508
        %v7043 = vunpack.c.l.b16 %v5509
        %v7044 = vunpack.c.h.b16 %v5509
        %v7045 = vunpack.c.l.b16 %v5510
        %v7046 = vunpack.c.h.b16 %v5510
        %v7047 = vunpack.c.l.b16 %v5511
        %v7048 = vunpack.c.h.b16 %v5511
        %v7049 = vunpack.c.l.b16 %v5512
        %v7050 = vunpack.c.h.b16 %v5512
        %v7051 = vunpack.c.l.b16 %v5513
        %v7052 = vunpack.c.h.b16 %v5513
        %v7053 = vunpack.c.l.b16 %v5514
        %v7054 = vunpack.c.h.b16 %v5514
        %v7055 = vunpack.c.l.b16 %v5515
        %v7056 = vunpack.c.h.b16 %v5515
        %v7057 = vunpack.c.l.b16 %v5516
        %v7058 = vunpack.c.h.b16 %v5516
        %v7059 = vunpack.c.l.b16 %v5517
        %v7060 = vunpack.c.h.b16 %v5517
        %v7061 = vunpack.c.l.b16 %v5518
        %v7062 = vunpack.c.h.b16 %v5518
        %v7063 = vunpack.c.l.b16 %v5519
        %v7064 = vunpack.c.h.b16 %v5519
        %v7065 = vunpack.c.l.b16 %v5520
        %v7066 = vunpack.c.h.b16 %v5520
        %v7067 = vunpack.c.l.b16 %v5521
        %v7068 = vunpack.c.h.b16 %v5521
        %v7069 = vunpack.c.l.b16 %v5522
        %v7070 = vunpack.c.h.b16 %v5522
        %v7071 = vunpack.c.l.b16 %v5523
        %v7072 = vunpack.c.h.b16 %v5523
        %v7073 = vunpack.c.l.b16 %v5524
        %v7074 = vunpack.c.h.b16 %v5524
        %v7075 = vunpack.c.l.b16 %v5525
        %v7076 = vunpack.c.h.b16 %v5525
        %v7077 = vunpack.c.l.b16 %v5526
        %v7078 = vunpack.c.h.b16 %v5526
        %v7079 = vunpack.c.l.b16 %v5527
        %v7080 = vunpack.c.h.b16 %v5527
        %v7081 = vunpack.c.l.b16 %v5528
        %v7082 = vunpack.c.h.b16 %v5528
        %v7083 = vunpack.c.l.b16 %v5529
        %v7084 = vunpack.c.h.b16 %v5529
        %v7085 = vunpack.c.l.b16 %v5530
        %v7086 = vunpack.c.h.b16 %v5530
        %v7087 = vunpack.c.l.b16 %v5531
        %v7088 = vunpack.c.h.b16 %v5531
        %v7089 = vunpack.c.l.b16 %v5532
        %v7090 = vunpack.c.h.b16 %v5532
        %v7091 = vpack.c.b16 %v6071, %v6067
        %v7092 = vpack.c.b16 %v6072, %v6068
        %v7093 = vpack.c.b16 %v6073, %v6069
        %v7094 = vpack.c.b16 %v6074, %v6070
        %v7095 = vpack.c.b16 %v6079, %v6075
        %v7096 = vpack.c.b16 %v6080, %v6076
        %v7097 = vpack.c.b16 %v6081, %v6077
        %v7098 = vpack.c.b16 %v6082, %v6078
        %v7099 = vpack.c.b16 %v6087, %v6083
        %v7100 = vpack.c.b16 %v6088, %v6084
        %v7101 = vpack.c.b16 %v6089, %v6085
        %v7102 = vpack.c.b16 %v6090, %v6086
        %v7103 = vpack.c.b16 %v6095, %v6091
        %v7104 = vpack.c.b16 %v6096, %v6092
        %v7105 = vpack.c.b16 %v6097, %v6093
        %v7106 = vpack.c.b16 %v6098, %v6094
        %v7107 = vpack.c.b16 %v6103, %v6099
        %v7108 = vpack.c.b16 %v6104, %v6100
        %v7109 = vpack.c.b16 %v6105, %v6101
        %v7110 = vpack.c.b16 %v6106, %v6102
        %v7111 = vpack.c.b16 %v6111, %v6107
        %v7112 = vpack.c.b16 %v6112, %v6108
        %v7113 = vpack.c.b16 %v6113, %v6109
        %v7114 = vpack.c.b16 %v6114, %v6110
        %v7115 = vpack.c.b16 %v6119, %v6115
        %v7116 = vpack.c.b16 %v6120, %v6116
        %v7117 = vpack.c.b16 %v6121, %v6117
        %v7118 = vpack.c.b16 %v6122, %v6118
        %v7119 = vpack.c.b16 %v6127, %v6123
        %v7120 = vpack.c.b16 %v6128, %v6124
        %v7121 = vpack.c.b16 %v6129, %v6125
        %v7122 = vpack.c.b16 %v6130, %v6126
        %v7123 = vpack.c.b16 %v6135, %v6131
        %v7124 = vpack.c.b16 %v6136, %v6132
        %v7125 = vpack.c.b16 %v6137, %v6133
        %v7126 = vpack.c.b16 %v6138, %v6134
        %v7127 = vpack.c.b16 %v6143, %v6139
        %v7128 = vpack.c.b16 %v6144, %v6140
        %v7129 = vpack.c.b16 %v6145, %v6141
        %v7130 = vpack.c.b16 %v6146, %v6142
        %v7131 = vpack.c.b16 %v6151, %v6147
        %v7132 = vpack.c.b16 %v6152, %v6148
        %v7133 = vpack.c.b16 %v6153, %v6149
        %v7134 = vpack.c.b16 %v6154, %v6150
        %v7135 = vpack.c.b16 %v6159, %v6155
        %v7136 = vpack.c.b16 %v6160, %v6156
        %v7137 = vpack.c.b16 %v6161, %v6157
        %v7138 = vpack.c.b16 %v6162, %v6158
        %v7139 = vpack.c.b16 %v6167, %v6163
        %v7140 = vpack.c.b16 %v6168, %v6164
        %v7141 = vpack.c.b16 %v6169, %v6165
        %v7142 = vpack.c.b16 %v6170, %v6166
        %v7143 = vpack.c.b16 %v6175, %v6171
        %v7144 = vpack.c.b16 %v6176, %v6172
        %v7145 = vpack.c.b16 %v6177, %v6173
        %v7146 = vpack.c.b16 %v6178, %v6174
        %v7147 = vpack.c.b16 %v6183, %v6179
        %v7148 = vpack.c.b16 %v6184, %v6180
        %v7149 = vpack.c.b16 %v6185, %v6181
        %v7150 = vpack.c.b16 %v6186, %v6182
        %v7151 = vpack.c.b16 %v6191, %v6187
        %v7152 = vpack.c.b16 %v6192, %v6188
        %v7153 = vpack.c.b16 %v6193, %v6189
        %v7154 = vpack.c.b16 %v6194, %v6190
        %v7155 = vpack.c.b16 %v6199, %v6195
        %v7156 = vpack.c.b16 %v6200, %v6196
        %v7157 = vpack.c.b16 %v6201, %v6197
        %v7158 = vpack.c.b16 %v6202, %v6198
        %v7159 = vpack.c.b16 %v6207, %v6203
        %v7160 = vpack.c.b16 %v6208, %v6204
        %v7161 = vpack.c.b16 %v6209, %v6205
        %v7162 = vpack.c.b16 %v6210, %v6206
        %v7163 = vpack.c.b16 %v6215, %v6211
        %v7164 = vpack.c.b16 %v6216, %v6212
        %v7165 = vpack.c.b16 %v6217, %v6213
        %v7166 = vpack.c.b16 %v6218, %v6214
        %v7167 = vpack.c.b16 %v6223, %v6219
        %v7168 = vpack.c.b16 %v6224, %v6220
        %v7169 = vpack.c.b16 %v6225, %v6221
        %v7170 = vpack.c.b16 %v6226, %v6222
        %v7171 = vpack.c.b16 %v6231, %v6227
        %v7172 = vpack.c.b16 %v6232, %v6228
        %v7173 = vpack.c.b16 %v6233, %v6229
        %v7174 = vpack.c.b16 %v6234, %v6230
        %v7175 = vpack.c.b16 %v6239, %v6235
        %v7176 = vpack.c.b16 %v6240, %v6236
        %v7177 = vpack.c.b16 %v6241, %v6237
        %v7178 = vpack.c.b16 %v6242, %v6238
        %v7179 = vpack.c.b16 %v6247, %v6243
        %v7180 = vpack.c.b16 %v6248, %v6244
        %v7181 = vpack.c.b16 %v6249, %v6245
        %v7182 = vpack.c.b16 %v6250, %v6246
        %v7183 = vpack.c.b16 %v6255, %v6251
        %v7184 = vpack.c.b16 %v6256, %v6252
        %v7185 = vpack.c.b16 %v6257, %v6253
        %v7186 = vpack.c.b16 %v6258, %v6254
        %v7187 = vpack.c.b16 %v6263, %v6259
        %v7188 = vpack.c.b16 %v6264, %v6260
        %v7189 = vpack.c.b16 %v6265, %v6261
        %v7190 = vpack.c.b16 %v6266, %v6262
        %v7191 = vpack.c.b16 %v6271, %v6267
        %v7192 = vpack.c.b16 %v6272, %v6268
        %v7193 = vpack.c.b16 %v6273, %v6269
        %v7194 = vpack.c.b16 %v6274, %v6270
        %v7195 = vpack.c.b16 %v6279, %v6275
        %v7196 = vpack.c.b16 %v6280, %v6276
        %v7197 = vpack.c.b16 %v6281, %v6277
        %v7198 = vpack.c.b16 %v6282, %v6278
        %v7199 = vpack.c.b16 %v6287, %v6283
        %v7200 = vpack.c.b16 %v6288, %v6284
        %v7201 = vpack.c.b16 %v6289, %v6285
        %v7202 = vpack.c.b16 %v6290, %v6286
        %v7203 = vpack.c.b16 %v6295, %v6291
        %v7204 = vpack.c.b16 %v6296, %v6292
        %v7205 = vpack.c.b16 %v6297, %v6293
        %v7206 = vpack.c.b16 %v6298, %v6294
        %v7207 = vpack.c.b16 %v6303, %v6299
        %v7208 = vpack.c.b16 %v6304, %v6300
        %v7209 = vpack.c.b16 %v6305, %v6301
        %v7210 = vpack.c.b16 %v6306, %v6302
        %v7211 = vpack.c.b16 %v6311, %v6307
        %v7212 = vpack.c.b16 %v6312, %v6308
        %v7213 = vpack.c.b16 %v6313, %v6309
        %v7214 = vpack.c.b16 %v6314, %v6310
        %v7215 = vpack.c.b16 %v6319, %v6315
        %v7216 = vpack.c.b16 %v6320, %v6316
        %v7217 = vpack.c.b16 %v6321, %v6317
        %v7218 = vpack.c.b16 %v6322, %v6318
        %v7219 = vpack.c.b16 %v6327, %v6323
        %v7220 = vpack.c.b16 %v6328, %v6324
        %v7221 = vpack.c.b16 %v6329, %v6325
        %v7222 = vpack.c.b16 %v6330, %v6326
        %v7223 = vpack.c.b16 %v6335, %v6331
        %v7224 = vpack.c.b16 %v6336, %v6332
        %v7225 = vpack.c.b16 %v6337, %v6333
        %v7226 = vpack.c.b16 %v6338, %v6334
        %v7227 = vpack.c.b16 %v6343, %v6339
        %v7228 = vpack.c.b16 %v6344, %v6340
        %v7229 = vpack.c.b16 %v6345, %v6341
        %v7230 = vpack.c.b16 %v6346, %v6342
        %v7231 = vpack.c.b16 %v6351, %v6347
        %v7232 = vpack.c.b16 %v6352, %v6348
        %v7233 = vpack.c.b16 %v6353, %v6349
        %v7234 = vpack.c.b16 %v6354, %v6350
        %v7235 = vpack.c.b16 %v6359, %v6355
        %v7236 = vpack.c.b16 %v6360, %v6356
        %v7237 = vpack.c.b16 %v6361, %v6357
        %v7238 = vpack.c.b16 %v6362, %v6358
        %v7239 = vpack.c.b16 %v6367, %v6363
        %v7240 = vpack.c.b16 %v6368, %v6364
        %v7241 = vpack.c.b16 %v6369, %v6365
        %v7242 = vpack.c.b16 %v6370, %v6366
        %v7243 = vpack.c.b16 %v6375, %v6371
        %v7244 = vpack.c.b16 %v6376, %v6372
        %v7245 = vpack.c.b16 %v6377, %v6373
        %v7246 = vpack.c.b16 %v6378, %v6374
        %v7247 = vpack.c.b16 %v6383, %v6379
        %v7248 = vpack.c.b16 %v6384, %v6380
        %v7249 = vpack.c.b16 %v6385, %v6381
        %v7250 = vpack.c.b16 %v6386, %v6382
        %v7251 = vpack.c.b16 %v6391, %v6387
        %v7252 = vpack.c.b16 %v6392, %v6388
        %v7253 = vpack.c.b16 %v6393, %v6389
        %v7254 = vpack.c.b16 %v6394, %v6390
        %v7255 = vpack.c.b16 %v6399, %v6395
        %v7256 = vpack.c.b16 %v6400, %v6396
        %v7257 = vpack.c.b16 %v6401, %v6397
        %v7258 = vpack.c.b16 %v6402, %v6398
        %v7259 = vpack.c.b16 %v6407, %v6403
        %v7260 = vpack.c.b16 %v6408, %v6404
        %v7261 = vpack.c.b16 %v6409, %v6405
        %v7262 = vpack.c.b16 %v6410, %v6406
        %v7263 = vpack.c.b16 %v6415, %v6411
        %v7264 = vpack.c.b16 %v6416, %v6412
        %v7265 = vpack.c.b16 %v6417, %v6413
        %v7266 = vpack.c.b16 %v6418, %v6414
        %v7267 = vpack.c.b16 %v6423, %v6419
        %v7268 = vpack.c.b16 %v6424, %v6420
        %v7269 = vpack.c.b16 %v6425, %v6421
        %v7270 = vpack.c.b16 %v6426, %v6422
        %v7271 = vpack.c.b16 %v6431, %v6427
        %v7272 = vpack.c.b16 %v6432, %v6428
        %v7273 = vpack.c.b16 %v6433, %v6429
        %v7274 = vpack.c.b16 %v6434, %v6430
        %v7275 = vpack.c.b16 %v6439, %v6435
        %v7276 = vpack.c.b16 %v6440, %v6436
        %v7277 = vpack.c.b16 %v6441, %v6437
        %v7278 = vpack.c.b16 %v6442, %v6438
        %v7279 = vpack.c.b16 %v6447, %v6443
        %v7280 = vpack.c.b16 %v6448, %v6444
        %v7281 = vpack.c.b16 %v6449, %v6445
        %v7282 = vpack.c.b16 %v6450, %v6446
        %v7283 = vpack.c.b16 %v6455, %v6451
        %v7284 = vpack.c.b16 %v6456, %v6452
        %v7285 = vpack.c.b16 %v6457, %v6453
        %v7286 = vpack.c.b16 %v6458, %v6454
        %v7287 = vpack.c.b16 %v6463, %v6459
        %v7288 = vpack.c.b16 %v6464, %v6460
        %v7289 = vpack.c.b16 %v6465, %v6461
        %v7290 = vpack.c.b16 %v6466, %v6462
        %v7291 = vpack.c.b16 %v6471, %v6467
        %v7292 = vpack.c.b16 %v6472, %v6468
        %v7293 = vpack.c.b16 %v6473, %v6469
        %v7294 = vpack.c.b16 %v6474, %v6470
        %v7295 = vpack.c.b16 %v6479, %v6475
        %v7296 = vpack.c.b16 %v6480, %v6476
        %v7297 = vpack.c.b16 %v6481, %v6477
        %v7298 = vpack.c.b16 %v6482, %v6478
        %v7299 = vpack.c.b16 %v6487, %v6483
        %v7300 = vpack.c.b16 %v6488, %v6484
        %v7301 = vpack.c.b16 %v6489, %v6485
        %v7302 = vpack.c.b16 %v6490, %v6486
        %v7303 = vpack.c.b16 %v6495, %v6491
        %v7304 = vpack.c.b16 %v6496, %v6492
        %v7305 = vpack.c.b16 %v6497, %v6493
        %v7306 = vpack.c.b16 %v6498, %v6494
        %v7307 = vpack.c.b16 %v6503, %v6499
        %v7308 = vpack.c.b16 %v6504, %v6500
        %v7309 = vpack.c.b16 %v6505, %v6501
        %v7310 = vpack.c.b16 %v6506, %v6502
        %v7311 = vpack.c.b16 %v6511, %v6507
        %v7312 = vpack.c.b16 %v6512, %v6508
        %v7313 = vpack.c.b16 %v6513, %v6509
        %v7314 = vpack.c.b16 %v6514, %v6510
        %v7315 = vpack.c.b16 %v6519, %v6515
        %v7316 = vpack.c.b16 %v6520, %v6516
        %v7317 = vpack.c.b16 %v6521, %v6517
        %v7318 = vpack.c.b16 %v6522, %v6518
        %v7319 = vpack.c.b16 %v6527, %v6523
        %v7320 = vpack.c.b16 %v6528, %v6524
        %v7321 = vpack.c.b16 %v6529, %v6525
        %v7322 = vpack.c.b16 %v6530, %v6526
        %v7323 = vpack.c.b16 %v6535, %v6531
        %v7324 = vpack.c.b16 %v6536, %v6532
        %v7325 = vpack.c.b16 %v6537, %v6533
        %v7326 = vpack.c.b16 %v6538, %v6534
        %v7327 = vpack.c.b16 %v6543, %v6539
        %v7328 = vpack.c.b16 %v6544, %v6540
        %v7329 = vpack.c.b16 %v6545, %v6541
        %v7330 = vpack.c.b16 %v6546, %v6542
        %v7331 = vpack.c.b16 %v6551, %v6547
        %v7332 = vpack.c.b16 %v6552, %v6548
        %v7333 = vpack.c.b16 %v6553, %v6549
        %v7334 = vpack.c.b16 %v6554, %v6550
        %v7335 = vpack.c.b16 %v6559, %v6555
        %v7336 = vpack.c.b16 %v6560, %v6556
        %v7337 = vpack.c.b16 %v6561, %v6557
        %v7338 = vpack.c.b16 %v6562, %v6558
        %v7339 = vpack.c.b16 %v6567, %v6563
        %v7340 = vpack.c.b16 %v6568, %v6564
        %v7341 = vpack.c.b16 %v6569, %v6565
        %v7342 = vpack.c.b16 %v6570, %v6566
        %v7343 = vpack.c.b16 %v6575, %v6571
        %v7344 = vpack.c.b16 %v6576, %v6572
        %v7345 = vpack.c.b16 %v6577, %v6573
        %v7346 = vpack.c.b16 %v6578, %v6574
        %v7347 = vpack.c.b16 %v6583, %v6579
        %v7348 = vpack.c.b16 %v6584, %v6580
        %v7349 = vpack.c.b16 %v6585, %v6581
        %v7350 = vpack.c.b16 %v6586, %v6582
        %v7351 = vpack.c.b16 %v6591, %v6587
        %v7352 = vpack.c.b16 %v6592, %v6588
        %v7353 = vpack.c.b16 %v6593, %v6589
        %v7354 = vpack.c.b16 %v6594, %v6590
        %v7355 = vpack.c.b16 %v6599, %v6595
        %v7356 = vpack.c.b16 %v6600, %v6596
        %v7357 = vpack.c.b16 %v6601, %v6597
        %v7358 = vpack.c.b16 %v6602, %v6598
        %v7359 = vpack.c.b16 %v6607, %v6603
        %v7360 = vpack.c.b16 %v6608, %v6604
        %v7361 = vpack.c.b16 %v6609, %v6605
        %v7362 = vpack.c.b16 %v6610, %v6606
        %v7363 = vpack.c.b16 %v6615, %v6611
        %v7364 = vpack.c.b16 %v6616, %v6612
        %v7365 = vpack.c.b16 %v6617, %v6613
        %v7366 = vpack.c.b16 %v6618, %v6614
        %v7367 = vpack.c.b16 %v6623, %v6619
        %v7368 = vpack.c.b16 %v6624, %v6620
        %v7369 = vpack.c.b16 %v6625, %v6621
        %v7370 = vpack.c.b16 %v6626, %v6622
        %v7371 = vpack.c.b16 %v6631, %v6627
        %v7372 = vpack.c.b16 %v6632, %v6628
        %v7373 = vpack.c.b16 %v6633, %v6629
        %v7374 = vpack.c.b16 %v6634, %v6630
        %v7375 = vpack.c.b16 %v6639, %v6635
        %v7376 = vpack.c.b16 %v6640, %v6636
        %v7377 = vpack.c.b16 %v6641, %v6637
        %v7378 = vpack.c.b16 %v6642, %v6638
        %v7379 = vpack.c.b16 %v6647, %v6643
        %v7380 = vpack.c.b16 %v6648, %v6644
        %v7381 = vpack.c.b16 %v6649, %v6645
        %v7382 = vpack.c.b16 %v6650, %v6646
        %v7383 = vpack.c.b16 %v6655, %v6651
        %v7384 = vpack.c.b16 %v6656, %v6652
        %v7385 = vpack.c.b16 %v6657, %v6653
        %v7386 = vpack.c.b16 %v6658, %v6654
        %v7387 = vpack.c.b16 %v6663, %v6659
        %v7388 = vpack.c.b16 %v6664, %v6660
        %v7389 = vpack.c.b16 %v6665, %v6661
        %v7390 = vpack.c.b16 %v6666, %v6662
        %v7391 = vpack.c.b16 %v6671, %v6667
        %v7392 = vpack.c.b16 %v6672, %v6668
        %v7393 = vpack.c.b16 %v6673, %v6669
        %v7394 = vpack.c.b16 %v6674, %v6670
        %v7395 = vpack.c.b16 %v6679, %v6675
        %v7396 = vpack.c.b16 %v6680, %v6676
        %v7397 = vpack.c.b16 %v6681, %v6677
        %v7398 = vpack.c.b16 %v6682, %v6678
        %v7399 = vpack.c.b16 %v6687, %v6683
        %v7400 = vpack.c.b16 %v6688, %v6684
        %v7401 = vpack.c.b16 %v6689, %v6685
        %v7402 = vpack.c.b16 %v6690, %v6686
        %v7403 = vpack.c.b16 %v6695, %v6691
        %v7404 = vpack.c.b16 %v6696, %v6692
        %v7405 = vpack.c.b16 %v6697, %v6693
        %v7406 = vpack.c.b16 %v6698, %v6694
        %v7407 = vpack.c.b16 %v6703, %v6699
        %v7408 = vpack.c.b16 %v6704, %v6700
        %v7409 = vpack.c.b16 %v6705, %v6701
        %v7410 = vpack.c.b16 %v6706, %v6702
        %v7411 = vpack.c.b16 %v6711, %v6707
        %v7412 = vpack.c.b16 %v6712, %v6708
        %v7413 = vpack.c.b16 %v6713, %v6709
        %v7414 = vpack.c.b16 %v6714, %v6710
        %v7415 = vpack.c.b16 %v6719, %v6715
        %v7416 = vpack.c.b16 %v6720, %v6716
        %v7417 = vpack.c.b16 %v6721, %v6717
        %v7418 = vpack.c.b16 %v6722, %v6718
        %v7419 = vpack.c.b16 %v6727, %v6723
        %v7420 = vpack.c.b16 %v6728, %v6724
        %v7421 = vpack.c.b16 %v6729, %v6725
        %v7422 = vpack.c.b16 %v6730, %v6726
        %v7423 = vpack.c.b16 %v6735, %v6731
        %v7424 = vpack.c.b16 %v6736, %v6732
        %v7425 = vpack.c.b16 %v6737, %v6733
        %v7426 = vpack.c.b16 %v6738, %v6734
        %v7427 = vpack.c.b16 %v6743, %v6739
        %v7428 = vpack.c.b16 %v6744, %v6740
        %v7429 = vpack.c.b16 %v6745, %v6741
        %v7430 = vpack.c.b16 %v6746, %v6742
        %v7431 = vpack.c.b16 %v6751, %v6747
        %v7432 = vpack.c.b16 %v6752, %v6748
        %v7433 = vpack.c.b16 %v6753, %v6749
        %v7434 = vpack.c.b16 %v6754, %v6750
        %v7435 = vpack.c.b16 %v6759, %v6755
        %v7436 = vpack.c.b16 %v6760, %v6756
        %v7437 = vpack.c.b16 %v6761, %v6757
        %v7438 = vpack.c.b16 %v6762, %v6758
        %v7439 = vpack.c.b16 %v6767, %v6763
        %v7440 = vpack.c.b16 %v6768, %v6764
        %v7441 = vpack.c.b16 %v6769, %v6765
        %v7442 = vpack.c.b16 %v6770, %v6766
        %v7443 = vpack.c.b16 %v6775, %v6771
        %v7444 = vpack.c.b16 %v6776, %v6772
        %v7445 = vpack.c.b16 %v6777, %v6773
        %v7446 = vpack.c.b16 %v6778, %v6774
        %v7447 = vpack.c.b16 %v6783, %v6779
        %v7448 = vpack.c.b16 %v6784, %v6780
        %v7449 = vpack.c.b16 %v6785, %v6781
        %v7450 = vpack.c.b16 %v6786, %v6782
        %v7451 = vpack.c.b16 %v6791, %v6787
        %v7452 = vpack.c.b16 %v6792, %v6788
        %v7453 = vpack.c.b16 %v6793, %v6789
        %v7454 = vpack.c.b16 %v6794, %v6790
        %v7455 = vpack.c.b16 %v6799, %v6795
        %v7456 = vpack.c.b16 %v6800, %v6796
        %v7457 = vpack.c.b16 %v6801, %v6797
        %v7458 = vpack.c.b16 %v6802, %v6798
        %v7459 = vpack.c.b16 %v6807, %v6803
        %v7460 = vpack.c.b16 %v6808, %v6804
        %v7461 = vpack.c.b16 %v6809, %v6805
        %v7462 = vpack.c.b16 %v6810, %v6806
        %v7463 = vpack.c.b16 %v6815, %v6811
        %v7464 = vpack.c.b16 %v6816, %v6812
        %v7465 = vpack.c.b16 %v6817, %v6813
        %v7466 = vpack.c.b16 %v6818, %v6814
        %v7467 = vpack.c.b16 %v6823, %v6819
        %v7468 = vpack.c.b16 %v6824, %v6820
        %v7469 = vpack.c.b16 %v6825, %v6821
        %v7470 = vpack.c.b16 %v6826, %v6822
        %v7471 = vpack.c.b16 %v6831, %v6827
        %v7472 = vpack.c.b16 %v6832, %v6828
        %v7473 = vpack.c.b16 %v6833, %v6829
        %v7474 = vpack.c.b16 %v6834, %v6830
        %v7475 = vpack.c.b16 %v6839, %v6835
        %v7476 = vpack.c.b16 %v6840, %v6836
        %v7477 = vpack.c.b16 %v6841, %v6837
        %v7478 = vpack.c.b16 %v6842, %v6838
        %v7479 = vpack.c.b16 %v6847, %v6843
        %v7480 = vpack.c.b16 %v6848, %v6844
        %v7481 = vpack.c.b16 %v6849, %v6845
        %v7482 = vpack.c.b16 %v6850, %v6846
        %v7483 = vpack.c.b16 %v6855, %v6851
        %v7484 = vpack.c.b16 %v6856, %v6852
        %v7485 = vpack.c.b16 %v6857, %v6853
        %v7486 = vpack.c.b16 %v6858, %v6854
        %v7487 = vpack.c.b16 %v6863, %v6859
        %v7488 = vpack.c.b16 %v6864, %v6860
        %v7489 = vpack.c.b16 %v6865, %v6861
        %v7490 = vpack.c.b16 %v6866, %v6862
        %v7491 = vpack.c.b16 %v6871, %v6867
        %v7492 = vpack.c.b16 %v6872, %v6868
        %v7493 = vpack.c.b16 %v6873, %v6869
        %v7494 = vpack.c.b16 %v6874, %v6870
        %v7495 = vpack.c.b16 %v6879, %v6875
        %v7496 = vpack.c.b16 %v6880, %v6876
        %v7497 = vpack.c.b16 %v6881, %v6877
        %v7498 = vpack.c.b16 %v6882, %v6878
        %v7499 = vpack.c.b16 %v6887, %v6883
        %v7500 = vpack.c.b16 %v6888, %v6884
        %v7501 = vpack.c.b16 %v6889, %v6885
        %v7502 = vpack.c.b16 %v6890, %v6886
        %v7503 = vpack.c.b16 %v6895, %v6891
        %v7504 = vpack.c.b16 %v6896, %v6892
        %v7505 = vpack.c.b16 %v6897, %v6893
        %v7506 = vpack.c.b16 %v6898, %v6894
        %v7507 = vpack.c.b16 %v6903, %v6899
        %v7508 = vpack.c.b16 %v6904, %v6900
        %v7509 = vpack.c.b16 %v6905, %v6901
        %v7510 = vpack.c.b16 %v6906, %v6902
        %v7511 = vpack.c.b16 %v6911, %v6907
        %v7512 = vpack.c.b16 %v6912, %v6908
        %v7513 = vpack.c.b16 %v6913, %v6909
        %v7514 = vpack.c.b16 %v6914, %v6910
        %v7515 = vpack.c.b16 %v6919, %v6915
        %v7516 = vpack.c.b16 %v6920, %v6916
        %v7517 = vpack.c.b16 %v6921, %v6917
        %v7518 = vpack.c.b16 %v6922, %v6918
        %v7519 = vpack.c.b16 %v6927, %v6923
        %v7520 = vpack.c.b16 %v6928, %v6924
        %v7521 = vpack.c.b16 %v6929, %v6925
        %v7522 = vpack.c.b16 %v6930, %v6926
        %v7523 = vpack.c.b16 %v6935, %v6931
        %v7524 = vpack.c.b16 %v6936, %v6932
        %v7525 = vpack.c.b16 %v6937, %v6933
        %v7526 = vpack.c.b16 %v6938, %v6934
        %v7527 = vpack.c.b16 %v6943, %v6939
        %v7528 = vpack.c.b16 %v6944, %v6940
        %v7529 = vpack.c.b16 %v6945, %v6941
        %v7530 = vpack.c.b16 %v6946, %v6942
        %v7531 = vpack.c.b16 %v6951, %v6947
        %v7532 = vpack.c.b16 %v6952, %v6948
        %v7533 = vpack.c.b16 %v6953, %v6949
        %v7534 = vpack.c.b16 %v6954, %v6950
        %v7535 = vpack.c.b16 %v6959, %v6955
        %v7536 = vpack.c.b16 %v6960, %v6956
        %v7537 = vpack.c.b16 %v6961, %v6957
        %v7538 = vpack.c.b16 %v6962, %v6958
        %v7539 = vpack.c.b16 %v6967, %v6963
        %v7540 = vpack.c.b16 %v6968, %v6964
        %v7541 = vpack.c.b16 %v6969, %v6965
        %v7542 = vpack.c.b16 %v6970, %v6966
        %v7543 = vpack.c.b16 %v6975, %v6971
        %v7544 = vpack.c.b16 %v6976, %v6972
        %v7545 = vpack.c.b16 %v6977, %v6973
        %v7546 = vpack.c.b16 %v6978, %v6974
        %v7547 = vpack.c.b16 %v6983, %v6979
        %v7548 = vpack.c.b16 %v6984, %v6980
        %v7549 = vpack.c.b16 %v6985, %v6981
        %v7550 = vpack.c.b16 %v6986, %v6982
        %v7551 = vpack.c.b16 %v6991, %v6987
        %v7552 = vpack.c.b16 %v6992, %v6988
        %v7553 = vpack.c.b16 %v6993, %v6989
        %v7554 = vpack.c.b16 %v6994, %v6990
        %v7555 = vpack.c.b16 %v6999, %v6995
        %v7556 = vpack.c.b16 %v7000, %v6996
        %v7557 = vpack.c.b16 %v7001, %v6997
        %v7558 = vpack.c.b16 %v7002, %v6998
        %v7559 = vpack.c.b16 %v7007, %v7003
        %v7560 = vpack.c.b16 %v7008, %v7004
        %v7561 = vpack.c.b16 %v7009, %v7005
        %v7562 = vpack.c.b16 %v7010, %v7006
        %v7563 = vpack.c.b16 %v7015, %v7011
        %v7564 = vpack.c.b16 %v7016, %v7012
        %v7565 = vpack.c.b16 %v7017, %v7013
        %v7566 = vpack.c.b16 %v7018, %v7014
        %v7567 = vpack.c.b16 %v7023, %v7019
        %v7568 = vpack.c.b16 %v7024, %v7020
        %v7569 = vpack.c.b16 %v7025, %v7021
        %v7570 = vpack.c.b16 %v7026, %v7022
        %v7571 = vpack.c.b16 %v7031, %v7027
        %v7572 = vpack.c.b16 %v7032, %v7028
        %v7573 = vpack.c.b16 %v7033, %v7029
        %v7574 = vpack.c.b16 %v7034, %v7030
        %v7575 = vpack.c.b16 %v7039, %v7035
        %v7576 = vpack.c.b16 %v7040, %v7036
        %v7577 = vpack.c.b16 %v7041, %v7037
        %v7578 = vpack.c.b16 %v7042, %v7038
        %v7579 = vpack.c.b16 %v7047, %v7043
        %v7580 = vpack.c.b16 %v7048, %v7044
        %v7581 = vpack.c.b16 %v7049, %v7045
        %v7582 = vpack.c.b16 %v7050, %v7046
        %v7583 = vpack.c.b16 %v7055, %v7051
        %v7584 = vpack.c.b16 %v7056, %v7052
        %v7585 = vpack.c.b16 %v7057, %v7053
        %v7586 = vpack.c.b16 %v7058, %v7054
        %v7587 = vpack.c.b16 %v7063, %v7059
        %v7588 = vpack.c.b16 %v7064, %v7060
        %v7589 = vpack.c.b16 %v7065, %v7061
        %v7590 = vpack.c.b16 %v7066, %v7062
        %v7591 = vpack.c.b16 %v7071, %v7067
        %v7592 = vpack.c.b16 %v7072, %v7068
        %v7593 = vpack.c.b16 %v7073, %v7069
        %v7594 = vpack.c.b16 %v7074, %v7070
        %v7595 = vpack.c.b16 %v7079, %v7075
        %v7596 = vpack.c.b16 %v7080, %v7076
        %v7597 = vpack.c.b16 %v7081, %v7077
        %v7598 = vpack.c.b16 %v7082, %v7078
        %v7599 = vpack.c.b16 %v7087, %v7083
        %v7600 = vpack.c.b16 %v7088, %v7084
        %v7601 = vpack.c.b16 %v7089, %v7085
        %v7602 = vpack.c.b16 %v7090, %v7086
        %8115 = vmatprep.subr.bf16.mxu0 %v7092
        %8116 = vmatpush1.bf16.msra.mxu0 %v7091
        %8117 = vmatprep.subr.bf16.mxu0 %v7096
        %8118 = vmatpush1.bf16.msra.mxu0 %v7095
        %8119 = vmatprep.subr.bf16.mxu0 %v7100
        %8120 = vmatpush1.bf16.msra.mxu0 %v7099
        %8121 = vmatprep.subr.bf16.mxu0 %v7104
        %8122 = vmatpush1.bf16.msra.mxu0 %v7103
        %8123 = vmatprep.subr.bf16.mxu0 %v7108
        %8124 = vmatpush1.bf16.msra.mxu0 %v7107
        %8125 = vmatprep.subr.bf16.mxu0 %v7112
        %8126 = vmatpush1.bf16.msra.mxu0 %v7111
        %8127 = vmatprep.subr.bf16.mxu0 %v7116
        %8128 = vmatpush1.bf16.msra.mxu0 %v7115
        %8129 = vmatprep.subr.bf16.mxu0 %v7120
        %8130 = vmatpush1.bf16.msra.mxu0 %v7119
        %8131 = vmatprep.subr.bf16.mxu0 %v7124
        %8132 = vmatpush1.bf16.msra.mxu0 %v7123
        %8133 = vmatprep.subr.bf16.mxu0 %v7128
        %8134 = vmatpush1.bf16.msra.mxu0 %v7127
        %8135 = vmatprep.subr.bf16.mxu0 %v7132
        %8136 = vmatpush1.bf16.msra.mxu0 %v7131
        %8137 = vmatprep.subr.bf16.mxu0 %v7136
        %8138 = vmatpush1.bf16.msra.mxu0 %v7135
        %8139 = vmatprep.subr.bf16.mxu0 %v7140
        %8140 = vmatpush1.bf16.msra.mxu0 %v7139
        %8141 = vmatprep.subr.bf16.mxu0 %v7144
        %8142 = vmatpush1.bf16.msra.mxu0 %v7143
        %8143 = vmatprep.subr.bf16.mxu0 %v7148
        %8144 = vmatpush1.bf16.msra.mxu0 %v7147
        %8145 = vmatprep.subr.bf16.mxu0 %v7152
        %8146 = vmatpush1.bf16.msra.mxu0 %v7151
        %8147 = vmatprep.mubr.bf16.mxu0 %v5006
        %8148 = vmatmul.mubr.bf16.gmra.mrb[0].mxu0 %v5005
        %v8149 = vpop.f32.mrb[0].mxu0
        %v8150 = vadd.f32 %v5538, %v8149
        %v8151 = vpop.f32.mrb[0].mxu0
        %v8152 = vadd.f32 %v5542, %v8151
        %v8153 = vpop.f32.mrb[0].mxu0
        %v8154 = vpop.f32.mrb[0].mxu0
        %8155 = vdwg.mxu0
        %8156 = vmatprep.subr.bf16.mxu0 %v7156
        %8157 = vmatpush1.bf16.msra.mxu0 %v7155
        %8158 = vmatprep.subr.bf16.mxu0 %v7160
        %8159 = vmatpush1.bf16.msra.mxu0 %v7159
        %8160 = vmatprep.subr.bf16.mxu0 %v7164
        %8161 = vmatpush1.bf16.msra.mxu0 %v7163
        %8162 = vmatprep.subr.bf16.mxu0 %v7168
        %8163 = vmatpush1.bf16.msra.mxu0 %v7167
        %8164 = vmatprep.subr.bf16.mxu0 %v7172
        %8165 = vmatpush1.bf16.msra.mxu0 %v7171
        %8166 = vmatprep.subr.bf16.mxu0 %v7176
        %8167 = vmatpush1.bf16.msra.mxu0 %v7175
        %8168 = vmatprep.subr.bf16.mxu0 %v7180
        %8169 = vmatpush1.bf16.msra.mxu0 %v7179
        %8170 = vmatprep.subr.bf16.mxu0 %v7184
        %8171 = vmatpush1.bf16.msra.mxu0 %v7183
        %8172 = vmatprep.subr.bf16.mxu0 %v7188
        %8173 = vmatpush1.bf16.msra.mxu0 %v7187
        %8174 = vmatprep.subr.bf16.mxu0 %v7192
        %8175 = vmatpush1.bf16.msra.mxu0 %v7191
        %8176 = vmatprep.subr.bf16.mxu0 %v7196
        %8177 = vmatpush1.bf16.msra.mxu0 %v7195
        %8178 = vmatprep.subr.bf16.mxu0 %v7200
        %8179 = vmatpush1.bf16.msra.mxu0 %v7199
        %8180 = vmatprep.subr.bf16.mxu0 %v7204
        %8181 = vmatpush1.bf16.msra.mxu0 %v7203
        %8182 = vmatprep.subr.bf16.mxu0 %v7208
        %8183 = vmatpush1.bf16.msra.mxu0 %v7207
        %8184 = vmatprep.subr.bf16.mxu0 %v7212
        %8185 = vmatpush1.bf16.msra.mxu0 %v7211
        %8186 = vmatprep.subr.bf16.mxu0 %v7216
        %8187 = vmatpush1.bf16.msra.mxu0 %v7215
        %8188 = vmatprep.mubr.bf16.mxu0 %v5008
        %8189 = vmatmul.mubr.bf16.gmra.mrb[0].mxu0 %v5007
        %v8190 = vpop.f32.mrb[0].mxu0
        %v8191 = vadd.f32 %v8150, %v8190
        %v8192 = vpop.f32.mrb[0].mxu0
        %v8193 = vadd.f32 %v8152, %v8192
        %v8194 = vpop.f32.mrb[0].mxu0
        %v8195 = vpop.f32.mrb[0].mxu0
        %8196 = vdwg.mxu0
        %8197 = vmatprep.subr.bf16.mxu0 %v7220
        %8198 = vmatpush1.bf16.msra.mxu0 %v7219
        %8199 = vmatprep.subr.bf16.mxu0 %v7224
        %8200 = vmatpush1.bf16.msra.mxu0 %v7223
        %8201 = vmatprep.subr.bf16.mxu0 %v7228
        %8202 = vmatpush1.bf16.msra.mxu0 %v7227
        %8203 = vmatprep.subr.bf16.mxu0 %v7232
        %8204 = vmatpush1.bf16.msra.mxu0 %v7231
        %8205 = vmatprep.subr.bf16.mxu0 %v7236
        %8206 = vmatpush1.bf16.msra.mxu0 %v7235
        %8207 = vmatprep.subr.bf16.mxu0 %v7240
        %8208 = vmatpush1.bf16.msra.mxu0 %v7239
        %8209 = vmatprep.subr.bf16.mxu0 %v7244
        %8210 = vmatpush1.bf16.msra.mxu0 %v7243
        %8211 = vmatprep.subr.bf16.mxu0 %v7248
        %8212 = vmatpush1.bf16.msra.mxu0 %v7247
        %8213 = vmatprep.subr.bf16.mxu0 %v7252
        %8214 = vmatpush1.bf16.msra.mxu0 %v7251
        %8215 = vmatprep.subr.bf16.mxu0 %v7256
        %8216 = vmatpush1.bf16.msra.mxu0 %v7255
        %8217 = vmatprep.subr.bf16.mxu0 %v7260
        %8218 = vmatpush1.bf16.msra.mxu0 %v7259
        %8219 = vmatprep.subr.bf16.mxu0 %v7264
        %8220 = vmatpush1.bf16.msra.mxu0 %v7263
        %8221 = vmatprep.subr.bf16.mxu0 %v7268
        %8222 = vmatpush1.bf16.msra.mxu0 %v7267
        %8223 = vmatprep.subr.bf16.mxu0 %v7272
        %8224 = vmatpush1.bf16.msra.mxu0 %v7271
        %8225 = vmatprep.subr.bf16.mxu0 %v7276
        %8226 = vmatpush1.bf16.msra.mxu0 %v7275
        %8227 = vmatprep.subr.bf16.mxu0 %v7280
        %8228 = vmatpush1.bf16.msra.mxu0 %v7279
        %8229 = vmatprep.mubr.bf16.mxu0 %v5010
        %8230 = vmatmul.mubr.bf16.gmra.mrb[0].mxu0 %v5009
        %v8231 = vpop.f32.mrb[0].mxu0
        %v8232 = vadd.f32 %v8191, %v8231
        %v8233 = vpop.f32.mrb[0].mxu0
        %v8234 = vadd.f32 %v8193, %v8233
        %v8235 = vpop.f32.mrb[0].mxu0
        %v8236 = vpop.f32.mrb[0].mxu0
        %8237 = vdwg.mxu0
        %8238 = vmatprep.subr.bf16.mxu0 %v7284
        %8239 = vmatpush1.bf16.msra.mxu0 %v7283
        %8240 = vmatprep.subr.bf16.mxu0 %v7288
        %8241 = vmatpush1.bf16.msra.mxu0 %v7287
        %8242 = vmatprep.subr.bf16.mxu0 %v7292
        %8243 = vmatpush1.bf16.msra.mxu0 %v7291
        %8244 = vmatprep.subr.bf16.mxu0 %v7296
        %8245 = vmatpush1.bf16.msra.mxu0 %v7295
        %8246 = vmatprep.subr.bf16.mxu0 %v7300
        %8247 = vmatpush1.bf16.msra.mxu0 %v7299
        %8248 = vmatprep.subr.bf16.mxu0 %v7304
        %8249 = vmatpush1.bf16.msra.mxu0 %v7303
        %8250 = vmatprep.subr.bf16.mxu0 %v7308
        %8251 = vmatpush1.bf16.msra.mxu0 %v7307
        %8252 = vmatprep.subr.bf16.mxu0 %v7312
        %8253 = vmatpush1.bf16.msra.mxu0 %v7311
        %8254 = vmatprep.subr.bf16.mxu0 %v7316
        %8255 = vmatpush1.bf16.msra.mxu0 %v7315
        %8256 = vmatprep.subr.bf16.mxu0 %v7320
        %8257 = vmatpush1.bf16.msra.mxu0 %v7319
        %8258 = vmatprep.subr.bf16.mxu0 %v7324
        %8259 = vmatpush1.bf16.msra.mxu0 %v7323
        %8260 = vmatprep.subr.bf16.mxu0 %v7328
        %8261 = vmatpush1.bf16.msra.mxu0 %v7327
        %8262 = vmatprep.subr.bf16.mxu0 %v7332
        %8263 = vmatpush1.bf16.msra.mxu0 %v7331
        %8264 = vmatprep.subr.bf16.mxu0 %v7336
        %8265 = vmatpush1.bf16.msra.mxu0 %v7335
        %8266 = vmatprep.subr.bf16.mxu0 %v7340
        %8267 = vmatpush1.bf16.msra.mxu0 %v7339
        %8268 = vmatprep.subr.bf16.mxu0 %v7344
        %8269 = vmatpush1.bf16.msra.mxu0 %v7343
        %8270 = vmatprep.mubr.bf16.mxu0 %v5012
        %8271 = vmatmul.mubr.bf16.gmra.mrb[0].mxu0 %v5011
        %v8272 = vpop.f32.mrb[0].mxu0
        %v8273 = vadd.f32 %v8232, %v8272
        %v8274 = vpop.f32.mrb[0].mxu0
        %v8275 = vadd.f32 %v8234, %v8274
        %v8276 = vpop.f32.mrb[0].mxu0
        %v8277 = vpop.f32.mrb[0].mxu0
        %8278 = vdwg.mxu0
        %8279 = vmatprep.subr.bf16.mxu0 %v7348
        %8280 = vmatpush1.bf16.msra.mxu0 %v7347
        %8281 = vmatprep.subr.bf16.mxu0 %v7352
        %8282 = vmatpush1.bf16.msra.mxu0 %v7351
        %8283 = vmatprep.subr.bf16.mxu0 %v7356
        %8284 = vmatpush1.bf16.msra.mxu0 %v7355
        %8285 = vmatprep.subr.bf16.mxu0 %v7360
        %8286 = vmatpush1.bf16.msra.mxu0 %v7359
        %8287 = vmatprep.subr.bf16.mxu0 %v7364
        %8288 = vmatpush1.bf16.msra.mxu0 %v7363
        %8289 = vmatprep.subr.bf16.mxu0 %v7368
        %8290 = vmatpush1.bf16.msra.mxu0 %v7367
        %8291 = vmatprep.subr.bf16.mxu0 %v7372
        %8292 = vmatpush1.bf16.msra.mxu0 %v7371
        %8293 = vmatprep.subr.bf16.mxu0 %v7376
        %8294 = vmatpush1.bf16.msra.mxu0 %v7375
        %8295 = vmatprep.subr.bf16.mxu0 %v7380
        %8296 = vmatpush1.bf16.msra.mxu0 %v7379
        %8297 = vmatprep.subr.bf16.mxu0 %v7384
        %8298 = vmatpush1.bf16.msra.mxu0 %v7383
        %8299 = vmatprep.subr.bf16.mxu0 %v7388
        %8300 = vmatpush1.bf16.msra.mxu0 %v7387
        %8301 = vmatprep.subr.bf16.mxu0 %v7392
        %8302 = vmatpush1.bf16.msra.mxu0 %v7391
        %8303 = vmatprep.subr.bf16.mxu0 %v7396
        %8304 = vmatpush1.bf16.msra.mxu0 %v7395
        %8305 = vmatprep.subr.bf16.mxu0 %v7400
        %8306 = vmatpush1.bf16.msra.mxu0 %v7399
        %8307 = vmatprep.subr.bf16.mxu0 %v7404
        %8308 = vmatpush1.bf16.msra.mxu0 %v7403
        %8309 = vmatprep.subr.bf16.mxu0 %v7408
        %8310 = vmatpush1.bf16.msra.mxu0 %v7407
        %8311 = vmatprep.mubr.bf16.mxu0 %v5014
        %8312 = vmatmul.mubr.bf16.gmra.mrb[0].mxu0 %v5013
        %v8313 = vpop.f32.mrb[0].mxu0
        %v8314 = vadd.f32 %v8273, %v8313
        %v8315 = vpop.f32.mrb[0].mxu0
        %v8316 = vadd.f32 %v8275, %v8315
        %v8317 = vpop.f32.mrb[0].mxu0
        %v8318 = vpop.f32.mrb[0].mxu0
        %8319 = vdwg.mxu0
        %8320 = vmatprep.subr.bf16.mxu0 %v7412
        %8321 = vmatpush1.bf16.msra.mxu0 %v7411
        %8322 = vmatprep.subr.bf16.mxu0 %v7416
        %8323 = vmatpush1.bf16.msra.mxu0 %v7415
        %8324 = vmatprep.subr.bf16.mxu0 %v7420
        %8325 = vmatpush1.bf16.msra.mxu0 %v7419
        %8326 = vmatprep.subr.bf16.mxu0 %v7424
        %8327 = vmatpush1.bf16.msra.mxu0 %v7423
        %8328 = vmatprep.subr.bf16.mxu0 %v7428
        %8329 = vmatpush1.bf16.msra.mxu0 %v7427
        %8330 = vmatprep.subr.bf16.mxu0 %v7432
        %8331 = vmatpush1.bf16.msra.mxu0 %v7431
        %8332 = vmatprep.subr.bf16.mxu0 %v7436
        %8333 = vmatpush1.bf16.msra.mxu0 %v7435
        %8334 = vmatprep.subr.bf16.mxu0 %v7440
        %8335 = vmatpush1.bf16.msra.mxu0 %v7439
        %8336 = vmatprep.subr.bf16.mxu0 %v7444
        %8337 = vmatpush1.bf16.msra.mxu0 %v7443
        %8338 = vmatprep.subr.bf16.mxu0 %v7448
        %8339 = vmatpush1.bf16.msra.mxu0 %v7447
        %8340 = vmatprep.subr.bf16.mxu0 %v7452
        %8341 = vmatpush1.bf16.msra.mxu0 %v7451
        %8342 = vmatprep.subr.bf16.mxu0 %v7456
        %8343 = vmatpush1.bf16.msra.mxu0 %v7455
        %8344 = vmatprep.subr.bf16.mxu0 %v7460
        %8345 = vmatpush1.bf16.msra.mxu0 %v7459
        %8346 = vmatprep.subr.bf16.mxu0 %v7464
        %8347 = vmatpush1.bf16.msra.mxu0 %v7463
        %8348 = vmatprep.subr.bf16.mxu0 %v7468
        %8349 = vmatpush1.bf16.msra.mxu0 %v7467
        %8350 = vmatprep.subr.bf16.mxu0 %v7472
        %8351 = vmatpush1.bf16.msra.mxu0 %v7471
        %8352 = vmatprep.mubr.bf16.mxu0 %v5016
        %8353 = vmatmul.mubr.bf16.gmra.mrb[0].mxu0 %v5015
        %v8354 = vpop.f32.mrb[0].mxu0
        %v8355 = vadd.f32 %v8314, %v8354
        %v8356 = vpop.f32.mrb[0].mxu0
        %v8357 = vadd.f32 %v8316, %v8356
        %v8358 = vpop.f32.mrb[0].mxu0
        %v8359 = vpop.f32.mrb[0].mxu0
        %8360 = vdwg.mxu0
        %8361 = vmatprep.subr.bf16.mxu0 %v7476
        %8362 = vmatpush1.bf16.msra.mxu0 %v7475
        %8363 = vmatprep.subr.bf16.mxu0 %v7480
        %8364 = vmatpush1.bf16.msra.mxu0 %v7479
        %8365 = vmatprep.subr.bf16.mxu0 %v7484
        %8366 = vmatpush1.bf16.msra.mxu0 %v7483
        %8367 = vmatprep.subr.bf16.mxu0 %v7488
        %8368 = vmatpush1.bf16.msra.mxu0 %v7487
        %8369 = vmatprep.subr.bf16.mxu0 %v7492
        %8370 = vmatpush1.bf16.msra.mxu0 %v7491
        %8371 = vmatprep.subr.bf16.mxu0 %v7496
        %8372 = vmatpush1.bf16.msra.mxu0 %v7495
        %8373 = vmatprep.subr.bf16.mxu0 %v7500
        %8374 = vmatpush1.bf16.msra.mxu0 %v7499
        %8375 = vmatprep.subr.bf16.mxu0 %v7504
        %8376 = vmatpush1.bf16.msra.mxu0 %v7503
        %8377 = vmatprep.subr.bf16.mxu0 %v7508
        %8378 = vmatpush1.bf16.msra.mxu0 %v7507
        %8379 = vmatprep.subr.bf16.mxu0 %v7512
        %8380 = vmatpush1.bf16.msra.mxu0 %v7511
        %8381 = vmatprep.subr.bf16.mxu0 %v7516
        %8382 = vmatpush1.bf16.msra.mxu0 %v7515
        %8383 = vmatprep.subr.bf16.mxu0 %v7520
        %8384 = vmatpush1.bf16.msra.mxu0 %v7519
        %8385 = vmatprep.subr.bf16.mxu0 %v7524
        %8386 = vmatpush1.bf16.msra.mxu0 %v7523
        %8387 = vmatprep.subr.bf16.mxu0 %v7528
        %8388 = vmatpush1.bf16.msra.mxu0 %v7527
        %8389 = vmatprep.subr.bf16.mxu0 %v7532
        %8390 = vmatpush1.bf16.msra.mxu0 %v7531
        %8391 = vmatprep.subr.bf16.mxu0 %v7536
        %8392 = vmatpush1.bf16.msra.mxu0 %v7535
        %8393 = vmatprep.mubr.bf16.mxu0 %v5018
        %8394 = vmatmul.mubr.bf16.gmra.mrb[0].mxu0 %v5017
        %v8395 = vpop.f32.mrb[0].mxu0
        %v8396 = vadd.f32 %v8355, %v8395
        %v8397 = vpop.f32.mrb[0].mxu0
        %v8398 = vadd.f32 %v8357, %v8397
        %v8399 = vpop.f32.mrb[0].mxu0
        %v8400 = vpop.f32.mrb[0].mxu0
        %8401 = vdwg.mxu0
        %8402 = vmatprep.subr.bf16.mxu0 %v7540
        %8403 = vmatpush1.bf16.msra.mxu0 %v7539
        %8404 = vmatprep.subr.bf16.mxu0 %v7544
        %8405 = vmatpush1.bf16.msra.mxu0 %v7543
        %8406 = vmatprep.subr.bf16.mxu0 %v7548
        %8407 = vmatpush1.bf16.msra.mxu0 %v7547
        %8408 = vmatprep.subr.bf16.mxu0 %v7552
        %8409 = vmatpush1.bf16.msra.mxu0 %v7551
        %8410 = vmatprep.subr.bf16.mxu0 %v7556
        %8411 = vmatpush1.bf16.msra.mxu0 %v7555
        %8412 = vmatprep.subr.bf16.mxu0 %v7560
        %8413 = vmatpush1.bf16.msra.mxu0 %v7559
        %8414 = vmatprep.subr.bf16.mxu0 %v7564
        %8415 = vmatpush1.bf16.msra.mxu0 %v7563
        %8416 = vmatprep.subr.bf16.mxu0 %v7568
        %8417 = vmatpush1.bf16.msra.mxu0 %v7567
        %8418 = vmatprep.subr.bf16.mxu0 %v7572
        %8419 = vmatpush1.bf16.msra.mxu0 %v7571
        %8420 = vmatprep.subr.bf16.mxu0 %v7576
        %8421 = vmatpush1.bf16.msra.mxu0 %v7575
        %8422 = vmatprep.subr.bf16.mxu0 %v7580
        %8423 = vmatpush1.bf16.msra.mxu0 %v7579
        %8424 = vmatprep.subr.bf16.mxu0 %v7584
        %8425 = vmatpush1.bf16.msra.mxu0 %v7583
        %8426 = vmatprep.subr.bf16.mxu0 %v7588
        %8427 = vmatpush1.bf16.msra.mxu0 %v7587
        %8428 = vmatprep.subr.bf16.mxu0 %v7592
        %8429 = vmatpush1.bf16.msra.mxu0 %v7591
        %8430 = vmatprep.subr.bf16.mxu0 %v7596
        %8431 = vmatpush1.bf16.msra.mxu0 %v7595
        %8432 = vmatprep.subr.bf16.mxu0 %v7600
        %8433 = vmatpush1.bf16.msra.mxu0 %v7599
        %8434 = vmatprep.mubr.bf16.mxu0 %v5020
        %8435 = vmatmul.mubr.bf16.gmra.mrb[0].mxu0 %v5019
        %v8436 = vpop.f32.mrb[0].mxu0
        %v8437 = vadd.f32 %v8396, %v8436
        %v8438 = vpop.f32.mrb[0].mxu0
        %v8439 = vadd.f32 %v8398, %v8438
        %v8440 = vpop.f32.mrb[0].mxu0
        %v8441 = vpop.f32.mrb[0].mxu0
        %8442 = vdwg.mxu0
        %8443 = vmatprep.subr.bf16.mxu0 %v7094
        %8444 = vmatpush1.bf16.msra.mxu0 %v7093
        %8445 = vmatprep.subr.bf16.mxu0 %v7098
        %8446 = vmatpush1.bf16.msra.mxu0 %v7097
        %8447 = vmatprep.subr.bf16.mxu0 %v7102
        %8448 = vmatpush1.bf16.msra.mxu0 %v7101
        %8449 = vmatprep.subr.bf16.mxu0 %v7106
        %8450 = vmatpush1.bf16.msra.mxu0 %v7105
        %8451 = vmatprep.subr.bf16.mxu0 %v7110
        %8452 = vmatpush1.bf16.msra.mxu0 %v7109
        %8453 = vmatprep.subr.bf16.mxu0 %v7114
        %8454 = vmatpush1.bf16.msra.mxu0 %v7113
        %8455 = vmatprep.subr.bf16.mxu0 %v7118
        %8456 = vmatpush1.bf16.msra.mxu0 %v7117
        %8457 = vmatprep.subr.bf16.mxu0 %v7122
        %8458 = vmatpush1.bf16.msra.mxu0 %v7121
        %8459 = vmatprep.subr.bf16.mxu0 %v7126
        %8460 = vmatpush1.bf16.msra.mxu0 %v7125
        %8461 = vmatprep.subr.bf16.mxu0 %v7130
        %8462 = vmatpush1.bf16.msra.mxu0 %v7129
        %8463 = vmatprep.subr.bf16.mxu0 %v7134
        %8464 = vmatpush1.bf16.msra.mxu0 %v7133
        %8465 = vmatprep.subr.bf16.mxu0 %v7138
        %8466 = vmatpush1.bf16.msra.mxu0 %v7137
        %8467 = vmatprep.subr.bf16.mxu0 %v7142
        %8468 = vmatpush1.bf16.msra.mxu0 %v7141
        %8469 = vmatprep.subr.bf16.mxu0 %v7146
        %8470 = vmatpush1.bf16.msra.mxu0 %v7145
        %8471 = vmatprep.subr.bf16.mxu0 %v7150
        %8472 = vmatpush1.bf16.msra.mxu0 %v7149
        %8473 = vmatprep.subr.bf16.mxu0 %v7154
        %8474 = vmatpush1.bf16.msra.mxu0 %v7153
        %8475 = vmatprep.mubr.bf16.mxu0 %v5006
        %8476 = vmatmul.mubr.bf16.gmra.mrb[0].mxu0 %v5005
        %v8477 = vpop.f32.mrb[0].mxu0
        %v8478 = vadd.f32 %v5546, %v8477
        %v8479 = vpop.f32.mrb[0].mxu0
        %v8480 = vadd.f32 %v5550, %v8479
        %v8481 = vpop.f32.mrb[0].mxu0
        %v8482 = vpop.f32.mrb[0].mxu0
        %8483 = vdwg.mxu0
        %8484 = vmatprep.subr.bf16.mxu0 %v7158
        %8485 = vmatpush1.bf16.msra.mxu0 %v7157
        %8486 = vmatprep.subr.bf16.mxu0 %v7162
        %8487 = vmatpush1.bf16.msra.mxu0 %v7161
        %8488 = vmatprep.subr.bf16.mxu0 %v7166
        %8489 = vmatpush1.bf16.msra.mxu0 %v7165
        %8490 = vmatprep.subr.bf16.mxu0 %v7170
        %8491 = vmatpush1.bf16.msra.mxu0 %v7169
        %8492 = vmatprep.subr.bf16.mxu0 %v7174
        %8493 = vmatpush1.bf16.msra.mxu0 %v7173
        %8494 = vmatprep.subr.bf16.mxu0 %v7178
        %8495 = vmatpush1.bf16.msra.mxu0 %v7177
        %8496 = vmatprep.subr.bf16.mxu0 %v7182
        %8497 = vmatpush1.bf16.msra.mxu0 %v7181
        %8498 = vmatprep.subr.bf16.mxu0 %v7186
        %8499 = vmatpush1.bf16.msra.mxu0 %v7185
        %8500 = vmatprep.subr.bf16.mxu0 %v7190
        %8501 = vmatpush1.bf16.msra.mxu0 %v7189
        %8502 = vmatprep.subr.bf16.mxu0 %v7194
        %8503 = vmatpush1.bf16.msra.mxu0 %v7193
        %8504 = vmatprep.subr.bf16.mxu0 %v7198
        %8505 = vmatpush1.bf16.msra.mxu0 %v7197
        %8506 = vmatprep.subr.bf16.mxu0 %v7202
        %8507 = vmatpush1.bf16.msra.mxu0 %v7201
        %8508 = vmatprep.subr.bf16.mxu0 %v7206
        %8509 = vmatpush1.bf16.msra.mxu0 %v7205
        %8510 = vmatprep.subr.bf16.mxu0 %v7210
        %8511 = vmatpush1.bf16.msra.mxu0 %v7209
        %8512 = vmatprep.subr.bf16.mxu0 %v7214
        %8513 = vmatpush1.bf16.msra.mxu0 %v7213
        %8514 = vmatprep.subr.bf16.mxu0 %v7218
        %8515 = vmatpush1.bf16.msra.mxu0 %v7217
        %8516 = vmatprep.mubr.bf16.mxu0 %v5008
        %8517 = vmatmul.mubr.bf16.gmra.mrb[0].mxu0 %v5007
        %v8518 = vpop.f32.mrb[0].mxu0
        %v8519 = vadd.f32 %v8478, %v8518
        %v8520 = vpop.f32.mrb[0].mxu0
        %v8521 = vadd.f32 %v8480, %v8520
        %v8522 = vpop.f32.mrb[0].mxu0
        %v8523 = vpop.f32.mrb[0].mxu0
        %8524 = vdwg.mxu0
        %8525 = vmatprep.subr.bf16.mxu0 %v7222
        %8526 = vmatpush1.bf16.msra.mxu0 %v7221
        %8527 = vmatprep.subr.bf16.mxu0 %v7226
        %8528 = vmatpush1.bf16.msra.mxu0 %v7225
        %8529 = vmatprep.subr.bf16.mxu0 %v7230
        %8530 = vmatpush1.bf16.msra.mxu0 %v7229
        %8531 = vmatprep.subr.bf16.mxu0 %v7234
        %8532 = vmatpush1.bf16.msra.mxu0 %v7233
        %8533 = vmatprep.subr.bf16.mxu0 %v7238
        %8534 = vmatpush1.bf16.msra.mxu0 %v7237
        %8535 = vmatprep.subr.bf16.mxu0 %v7242
        %8536 = vmatpush1.bf16.msra.mxu0 %v7241
        %8537 = vmatprep.subr.bf16.mxu0 %v7246
        %8538 = vmatpush1.bf16.msra.mxu0 %v7245
        %8539 = vmatprep.subr.bf16.mxu0 %v7250
        %8540 = vmatpush1.bf16.msra.mxu0 %v7249
        %8541 = vmatprep.subr.bf16.mxu0 %v7254
        %8542 = vmatpush1.bf16.msra.mxu0 %v7253
        %8543 = vmatprep.subr.bf16.mxu0 %v7258
        %8544 = vmatpush1.bf16.msra.mxu0 %v7257
        %8545 = vmatprep.subr.bf16.mxu0 %v7262
        %8546 = vmatpush1.bf16.msra.mxu0 %v7261
        %8547 = vmatprep.subr.bf16.mxu0 %v7266
        %8548 = vmatpush1.bf16.msra.mxu0 %v7265
        %8549 = vmatprep.subr.bf16.mxu0 %v7270
        %8550 = vmatpush1.bf16.msra.mxu0 %v7269
        %8551 = vmatprep.subr.bf16.mxu0 %v7274
        %8552 = vmatpush1.bf16.msra.mxu0 %v7273
        %8553 = vmatprep.subr.bf16.mxu0 %v7278
        %8554 = vmatpush1.bf16.msra.mxu0 %v7277
        %8555 = vmatprep.subr.bf16.mxu0 %v7282
        %8556 = vmatpush1.bf16.msra.mxu0 %v7281
        %8557 = vmatprep.mubr.bf16.mxu0 %v5010
        %8558 = vmatmul.mubr.bf16.gmra.mrb[0].mxu0 %v5009
        %v8559 = vpop.f32.mrb[0].mxu0
        %v8560 = vadd.f32 %v8519, %v8559
        %v8561 = vpop.f32.mrb[0].mxu0
        %v8562 = vadd.f32 %v8521, %v8561
        %v8563 = vpop.f32.mrb[0].mxu0
        %v8564 = vpop.f32.mrb[0].mxu0
        %8565 = vdwg.mxu0
        %8566 = vmatprep.subr.bf16.mxu0 %v7286
        %8567 = vmatpush1.bf16.msra.mxu0 %v7285
        %8568 = vmatprep.subr.bf16.mxu0 %v7290
        %8569 = vmatpush1.bf16.msra.mxu0 %v7289
        %8570 = vmatprep.subr.bf16.mxu0 %v7294
        %8571 = vmatpush1.bf16.msra.mxu0 %v7293
        %8572 = vmatprep.subr.bf16.mxu0 %v7298
        %8573 = vmatpush1.bf16.msra.mxu0 %v7297
        %8574 = vmatprep.subr.bf16.mxu0 %v7302
        %8575 = vmatpush1.bf16.msra.mxu0 %v7301
        %8576 = vmatprep.subr.bf16.mxu0 %v7306
        %8577 = vmatpush1.bf16.msra.mxu0 %v7305
        %8578 = vmatprep.subr.bf16.mxu0 %v7310
        %8579 = vmatpush1.bf16.msra.mxu0 %v7309
        %8580 = vmatprep.subr.bf16.mxu0 %v7314
        %8581 = vmatpush1.bf16.msra.mxu0 %v7313
        %8582 = vmatprep.subr.bf16.mxu0 %v7318
        %8583 = vmatpush1.bf16.msra.mxu0 %v7317
        %8584 = vmatprep.subr.bf16.mxu0 %v7322
        %8585 = vmatpush1.bf16.msra.mxu0 %v7321
        %8586 = vmatprep.subr.bf16.mxu0 %v7326
        %8587 = vmatpush1.bf16.msra.mxu0 %v7325
        %8588 = vmatprep.subr.bf16.mxu0 %v7330
        %8589 = vmatpush1.bf16.msra.mxu0 %v7329
        %8590 = vmatprep.subr.bf16.mxu0 %v7334
        %8591 = vmatpush1.bf16.msra.mxu0 %v7333
        %8592 = vmatprep.subr.bf16.mxu0 %v7338
        %8593 = vmatpush1.bf16.msra.mxu0 %v7337
        %8594 = vmatprep.subr.bf16.mxu0 %v7342
        %8595 = vmatpush1.bf16.msra.mxu0 %v7341
        %8596 = vmatprep.subr.bf16.mxu0 %v7346
        %8597 = vmatpush1.bf16.msra.mxu0 %v7345
        %8598 = vmatprep.mubr.bf16.mxu0 %v5012
        %8599 = vmatmul.mubr.bf16.gmra.mrb[0].mxu0 %v5011
        %v8600 = vpop.f32.mrb[0].mxu0
        %v8601 = vadd.f32 %v8560, %v8600
        %v8602 = vpop.f32.mrb[0].mxu0
        %v8603 = vadd.f32 %v8562, %v8602
        %v8604 = vpop.f32.mrb[0].mxu0
        %v8605 = vpop.f32.mrb[0].mxu0
        %8606 = vdwg.mxu0
        %8607 = vmatprep.subr.bf16.mxu0 %v7350
        %8608 = vmatpush1.bf16.msra.mxu0 %v7349
        %8609 = vmatprep.subr.bf16.mxu0 %v7354
        %8610 = vmatpush1.bf16.msra.mxu0 %v7353
        %8611 = vmatprep.subr.bf16.mxu0 %v7358
        %8612 = vmatpush1.bf16.msra.mxu0 %v7357
        %8613 = vmatprep.subr.bf16.mxu0 %v7362
        %8614 = vmatpush1.bf16.msra.mxu0 %v7361
        %8615 = vmatprep.subr.bf16.mxu0 %v7366
        %8616 = vmatpush1.bf16.msra.mxu0 %v7365
        %8617 = vmatprep.subr.bf16.mxu0 %v7370
        %8618 = vmatpush1.bf16.msra.mxu0 %v7369
        %8619 = vmatprep.subr.bf16.mxu0 %v7374
        %8620 = vmatpush1.bf16.msra.mxu0 %v7373
        %8621 = vmatprep.subr.bf16.mxu0 %v7378
        %8622 = vmatpush1.bf16.msra.mxu0 %v7377
        %8623 = vmatprep.subr.bf16.mxu0 %v7382
        %8624 = vmatpush1.bf16.msra.mxu0 %v7381
        %8625 = vmatprep.subr.bf16.mxu0 %v7386
        %8626 = vmatpush1.bf16.msra.mxu0 %v7385
        %8627 = vmatprep.subr.bf16.mxu0 %v7390
        %8628 = vmatpush1.bf16.msra.mxu0 %v7389
        %8629 = vmatprep.subr.bf16.mxu0 %v7394
        %8630 = vmatpush1.bf16.msra.mxu0 %v7393
        %8631 = vmatprep.subr.bf16.mxu0 %v7398
        %8632 = vmatpush1.bf16.msra.mxu0 %v7397
        %8633 = vmatprep.subr.bf16.mxu0 %v7402
        %8634 = vmatpush1.bf16.msra.mxu0 %v7401
        %8635 = vmatprep.subr.bf16.mxu0 %v7406
        %8636 = vmatpush1.bf16.msra.mxu0 %v7405
        %8637 = vmatprep.subr.bf16.mxu0 %v7410
        %8638 = vmatpush1.bf16.msra.mxu0 %v7409
        %8639 = vmatprep.mubr.bf16.mxu0 %v5014
        %8640 = vmatmul.mubr.bf16.gmra.mrb[0].mxu0 %v5013
        %v8641 = vpop.f32.mrb[0].mxu0
        %v8642 = vadd.f32 %v8601, %v8641
        %v8643 = vpop.f32.mrb[0].mxu0
        %v8644 = vadd.f32 %v8603, %v8643
        %v8645 = vpop.f32.mrb[0].mxu0
        %v8646 = vpop.f32.mrb[0].mxu0
        %8647 = vdwg.mxu0
        %8648 = vmatprep.subr.bf16.mxu0 %v7414
        %8649 = vmatpush1.bf16.msra.mxu0 %v7413
        %8650 = vmatprep.subr.bf16.mxu0 %v7418
        %8651 = vmatpush1.bf16.msra.mxu0 %v7417
        %8652 = vmatprep.subr.bf16.mxu0 %v7422
        %8653 = vmatpush1.bf16.msra.mxu0 %v7421
        %8654 = vmatprep.subr.bf16.mxu0 %v7426
        %8655 = vmatpush1.bf16.msra.mxu0 %v7425
        %8656 = vmatprep.subr.bf16.mxu0 %v7430
        %8657 = vmatpush1.bf16.msra.mxu0 %v7429
        %8658 = vmatprep.subr.bf16.mxu0 %v7434
        %8659 = vmatpush1.bf16.msra.mxu0 %v7433
        %8660 = vmatprep.subr.bf16.mxu0 %v7438
        %8661 = vmatpush1.bf16.msra.mxu0 %v7437
        %8662 = vmatprep.subr.bf16.mxu0 %v7442
        %8663 = vmatpush1.bf16.msra.mxu0 %v7441
        %8664 = vmatprep.subr.bf16.mxu0 %v7446
        %8665 = vmatpush1.bf16.msra.mxu0 %v7445
        %8666 = vmatprep.subr.bf16.mxu0 %v7450
        %8667 = vmatpush1.bf16.msra.mxu0 %v7449
        %8668 = vmatprep.subr.bf16.mxu0 %v7454
        %8669 = vmatpush1.bf16.msra.mxu0 %v7453
        %8670 = vmatprep.subr.bf16.mxu0 %v7458
        %8671 = vmatpush1.bf16.msra.mxu0 %v7457
        %8672 = vmatprep.subr.bf16.mxu0 %v7462
        %8673 = vmatpush1.bf16.msra.mxu0 %v7461
        %8674 = vmatprep.subr.bf16.mxu0 %v7466
        %8675 = vmatpush1.bf16.msra.mxu0 %v7465
        %8676 = vmatprep.subr.bf16.mxu0 %v7470
        %8677 = vmatpush1.bf16.msra.mxu0 %v7469
        %8678 = vmatprep.subr.bf16.mxu0 %v7474
        %8679 = vmatpush1.bf16.msra.mxu0 %v7473
        %8680 = vmatprep.mubr.bf16.mxu0 %v5016
        %8681 = vmatmul.mubr.bf16.gmra.mrb[0].mxu0 %v5015
        %v8682 = vpop.f32.mrb[0].mxu0
        %v8683 = vadd.f32 %v8642, %v8682
        %v8684 = vpop.f32.mrb[0].mxu0
        %v8685 = vadd.f32 %v8644, %v8684
        %v8686 = vpop.f32.mrb[0].mxu0
        %v8687 = vpop.f32.mrb[0].mxu0
        %8688 = vdwg.mxu0
        %8689 = vmatprep.subr.bf16.mxu0 %v7478
        %8690 = vmatpush1.bf16.msra.mxu0 %v7477
        %8691 = vmatprep.subr.bf16.mxu0 %v7482
        %8692 = vmatpush1.bf16.msra.mxu0 %v7481
        %8693 = vmatprep.subr.bf16.mxu0 %v7486
        %8694 = vmatpush1.bf16.msra.mxu0 %v7485
        %8695 = vmatprep.subr.bf16.mxu0 %v7490
        %8696 = vmatpush1.bf16.msra.mxu0 %v7489
        %8697 = vmatprep.subr.bf16.mxu0 %v7494
        %8698 = vmatpush1.bf16.msra.mxu0 %v7493
        %8699 = vmatprep.subr.bf16.mxu0 %v7498
        %8700 = vmatpush1.bf16.msra.mxu0 %v7497
        %8701 = vmatprep.subr.bf16.mxu0 %v7502
        %8702 = vmatpush1.bf16.msra.mxu0 %v7501
        %8703 = vmatprep.subr.bf16.mxu0 %v7506
        %8704 = vmatpush1.bf16.msra.mxu0 %v7505
        %8705 = vmatprep.subr.bf16.mxu0 %v7510
        %8706 = vmatpush1.bf16.msra.mxu0 %v7509
        %8707 = vmatprep.subr.bf16.mxu0 %v7514
        %8708 = vmatpush1.bf16.msra.mxu0 %v7513
        %8709 = vmatprep.subr.bf16.mxu0 %v7518
        %8710 = vmatpush1.bf16.msra.mxu0 %v7517
        %8711 = vmatprep.subr.bf16.mxu0 %v7522
        %8712 = vmatpush1.bf16.msra.mxu0 %v7521
        %8713 = vmatprep.subr.bf16.mxu0 %v7526
        %8714 = vmatpush1.bf16.msra.mxu0 %v7525
        %8715 = vmatprep.subr.bf16.mxu0 %v7530
        %8716 = vmatpush1.bf16.msra.mxu0 %v7529
        %8717 = vmatprep.subr.bf16.mxu0 %v7534
        %8718 = vmatpush1.bf16.msra.mxu0 %v7533
        %8719 = vmatprep.subr.bf16.mxu0 %v7538
        %8720 = vmatpush1.bf16.msra.mxu0 %v7537
        %8721 = vmatprep.mubr.bf16.mxu0 %v5018
        %8722 = vmatmul.mubr.bf16.gmra.mrb[0].mxu0 %v5017
        %v8723 = vpop.f32.mrb[0].mxu0
        %v8724 = vadd.f32 %v8683, %v8723
        %v8725 = vpop.f32.mrb[0].mxu0
        %v8726 = vadd.f32 %v8685, %v8725
        %v8727 = vpop.f32.mrb[0].mxu0
        %v8728 = vpop.f32.mrb[0].mxu0
        %8729 = vdwg.mxu0
        %8730 = vmatprep.subr.bf16.mxu0 %v7542
        %8731 = vmatpush1.bf16.msra.mxu0 %v7541
        %8732 = vmatprep.subr.bf16.mxu0 %v7546
        %8733 = vmatpush1.bf16.msra.mxu0 %v7545
        %8734 = vmatprep.subr.bf16.mxu0 %v7550
        %8735 = vmatpush1.bf16.msra.mxu0 %v7549
        %8736 = vmatprep.subr.bf16.mxu0 %v7554
        %8737 = vmatpush1.bf16.msra.mxu0 %v7553
        %8738 = vmatprep.subr.bf16.mxu0 %v7558
        %8739 = vmatpush1.bf16.msra.mxu0 %v7557
        %8740 = vmatprep.subr.bf16.mxu0 %v7562
        %8741 = vmatpush1.bf16.msra.mxu0 %v7561
        %8742 = vmatprep.subr.bf16.mxu0 %v7566
        %8743 = vmatpush1.bf16.msra.mxu0 %v7565
        %8744 = vmatprep.subr.bf16.mxu0 %v7570
        %8745 = vmatpush1.bf16.msra.mxu0 %v7569
        %8746 = vmatprep.subr.bf16.mxu0 %v7574
        %8747 = vmatpush1.bf16.msra.mxu0 %v7573
        %8748 = vmatprep.subr.bf16.mxu0 %v7578
        %8749 = vmatpush1.bf16.msra.mxu0 %v7577
        %8750 = vmatprep.subr.bf16.mxu0 %v7582
        %8751 = vmatpush1.bf16.msra.mxu0 %v7581
        %8752 = vmatprep.subr.bf16.mxu0 %v7586
        %8753 = vmatpush1.bf16.msra.mxu0 %v7585
        %8754 = vmatprep.subr.bf16.mxu0 %v7590
        %8755 = vmatpush1.bf16.msra.mxu0 %v7589
        %8756 = vmatprep.subr.bf16.mxu0 %v7594
        %8757 = vmatpush1.bf16.msra.mxu0 %v7593
        %8758 = vmatprep.subr.bf16.mxu0 %v7598
        %8759 = vmatpush1.bf16.msra.mxu0 %v7597
        %8760 = vmatprep.subr.bf16.mxu0 %v7602
        %8761 = vmatpush1.bf16.msra.mxu0 %v7601
        %8762 = vmatprep.mubr.bf16.mxu0 %v5020
        %8763 = vmatmul.mubr.bf16.gmra.mrb[0].mxu0 %v5019
        %v8764 = vpop.f32.mrb[0].mxu0
        %v8765 = vadd.f32 %v8724, %v8764
        %v8766 = vpop.f32.mrb[0].mxu0
        %v8767 = vadd.f32 %v8726, %v8766
        %v8768 = vpop.f32.mrb[0].mxu0
        %v8769 = vpop.f32.mrb[0].mxu0
        %8770 = vdwg.mxu0
        %v8771 = vmax.f32 %v8437, 0.0
        %v8772 = vmax.f32 %v8439, 0.0
        %v8773 = vmax.f32 %v8765, 0.0
        %v8774 = vmax.f32 %v8767, 0.0
        %v8775 = vld [vmem:[#allocation5] sm:$0xff]
        %v8776 = vld [vmem:[%s486] sm:$0xf]
        %v8778 = vlaneseq
        %v8779 = vshrl.u32 %v8778, 7
        %v8780 = vsub.s32 0, %v8779
        %v8781 = vrot.slane %v8776, %v8780
        %v8782 = vlaneseq
        %v8783 = vshrl.u32 %v8782, 7
        %v8784 = vsub.s32 1, %v8783
        %v8785 = vrot.slane %v8776, %v8784
        %v8786 = vlaneseq
        %v8787 = vshrl.u32 %v8786, 7
        %v8788 = vsub.s32 2, %v8787
        %v8789 = vrot.slane %v8776, %v8788
        %v8790 = vlaneseq
        %v8791 = vshrl.u32 %v8790, 7
        %v8792 = vsub.s32 3, %v8791
        %v8793 = vrot.slane %v8776, %v8792
        %v8798 = vmul.f32 %v8771, %v8781
        %v8799 = vmul.f32 %v8772, %v8785
        %v8800 = vmul.f32 %v8773, %v8789
        %v8801 = vmul.f32 %v8774, %v8793
        %v8802 = vadd.f32 %v8798, %v8799
        %v8803 = vadd.f32 %v8802, %v8800
        %v8804 = vadd.f32 %v8803, %v8801
        %8805 = vadd.xlane.f32.xlu0 %v8804
        %v8806 = vpop.xlane.xlu0 %8805
        %v8807 = vadd.f32 %v8775, %v8806
        %vm8808 = vcmask 7168
        %8809 = vst.msk [vmem:[#allocation5] sm:$0xff] %vm8808, %v8807
        %p8810 = scmp.eq.s32.totalorder %s33, 1
        // Predicated region
        $region105: #{stacked2d_linear_forward.1} parent=63 // pred_check
          %p8811 = pneg %p8810
        $region106: #{stacked2d_linear_forward.1} parent=63 // pred_check_branch
          %8813 = sbr.rel (%p8811) target = $region108
        $region107: #{stacked2d_linear_forward.1} parent=63 // pred_region
          %v8814 = vld [vmem:[#allocation5] sm:$0x3]
          %s8815 = sld [smem:[#allocation6]]
          %v8816 = vstv %s8815
          %v8817 = vadd.f32 %v8814, %v8816
          %vm8818 = vcmask 1024
          %8819 = vst.msk [vmem:[%s11] sm:$0x3] %vm8818, %v8817
        $region108: #{stacked2d_linear_forward.1} parent=63 // pred_fallthru
          _
        // Predicated region
        $region109: #{stacked2d_linear_forward.1} parent=63 // pred_check
          %p8820 = pneg %p292
        $region110: #{stacked2d_linear_forward.1} parent=63 // pred_check_branch
          %8822 = sbr.rel (%p8820) target = $region112
        $region111: #{stacked2d_linear_forward.1} parent=63 // pred_region
          _
        $region112: #{stacked2d_linear_forward.1} parent=63 // pred_fallthru
          _
        // Predicated region
        $region113: #{stacked2d_linear_forward.1} parent=63 // pred_check
          %p8823 = pneg %p292
        $region114: #{stacked2d_linear_forward.1} parent=63 // pred_check_branch
          %8825 = sbr.rel (%p8823) target = $region116
        $region115: #{stacked2d_linear_forward.1} parent=63 // pred_region
          _
        $region116: #{stacked2d_linear_forward.1} parent=63 // pred_fallthru
          _
      $region64: #{stacked2d_linear_forward.1} parent=5 // pred_fallthru
        _
      %p8826 = scmp.le.s32.totalorder 2, %s28
      // Predicated region
      $region117: #{stacked2d_linear_forward.1} parent=5 // pred_check
        %p8827 = pneg %p8826
      $region118: #{stacked2d_linear_forward.1} parent=5 // pred_check_branch
        %8829 = sbr.rel (%p8827) target = $region120
      $region119: #{stacked2d_linear_forward.1} parent=5 // pred_region
        %s8830 = ssub.s32 %s28, 2
      $region120: #{stacked2d_linear_forward.1} parent=5 // pred_fallthru
        _
    $region6: #{stacked2d_linear_forward.1} parent=1 // loop_footer
      %s32 = sadd.s32 1, %s28
    $region7: #{stacked2d_linear_forward.1} parent=1 // loop_footer_branch
      %27 = sbr.rel target = $region3
    $region8: #{stacked2d_linear_forward.1} parent=1 // loop_exit
      _
    %8831 = vsyncpa [#allocation8], 1
    %s8832 = scalar_lea.sflag [#allocation8], 1
    %8833 = vsyncpa %s8832, 1
    %8834 = vsyncpa [#allocation20], 1
    %s8835 = scalar_lea.sflag [#allocation20], 1
    %8836 = vsyncpa %s8835, 1
    %8837 = vsyncpa [#allocation9], 1
    %s8838 = scalar_lea.sflag [#allocation9], 1
    %8839 = vsyncpa %s8838, 1
    %8840 = vsyncpa [#allocation11], 1
    %8841 = vsyncpa [#allocation14], 1
    %8842 = vsyncpa [#allocation17], 1

</llo_original>
